<compile_context>
chip_gen: v7x
topology: tpu7x:2x2x1
jax: 0.10.0
libtpu: 0.0.40
codegen_flags: <defaults>
</compile_context>

<pallas_src>
import functools

import jax
import jax.numpy as jnp
from jax.experimental import pallas as pl
from jax.experimental.pallas import tpu as pltpu


# ----------------------------- in-kernel math helpers -----------------------------

def _layernorm(x, g, b, eps):
    mu = jnp.mean(x, axis=-1, keepdims=True)
    xc = x - mu
    var = jnp.mean(xc * xc, axis=-1, keepdims=True)
    return xc * jax.lax.rsqrt(var + eps) * g + b


def _erf(x):
    # Abramowitz & Stegun 7.1.26 rational approximation (|err| <= 1.5e-7).
    # Matches PyTorch's exact erf-based nn.GELU() to f32 precision; lax.erf has
    # no guaranteed Mosaic lowering.
    t = 1.0 / (1.0 + 0.3275911 * jnp.abs(x))
    poly = (((((1.061405429 * t - 1.453152027) * t) + 1.421413741) * t
             - 0.284496736) * t + 0.254829592) * t
    y = 1.0 - poly * jnp.exp(-x * x)
    return jnp.where(x >= 0, y, -y)


def _gelu_exact(x):
    # PyTorch nn.GELU() default (exact, erf-based).
    return 0.5 * x * (1.0 + _erf(x * 0.7071067811865476))


_LAYER_KEYS = ("ln1_g", "ln1_b", "w_q", "b_q", "w_k", "b_k", "w_v", "b_v",
               "w_proj", "b_proj", "ln2_g", "ln2_b",
               "w_ff1", "b_ff1", "w_ff2", "b_ff2")


def _layer_weights(refs):
    # refs: 16 stacked per-layer weight refs, each blocked (1, r, c); [0] -> (r, c).
    return {k: r[0] for k, r in zip(_LAYER_KEYS, refs)}


def _encoder_layer(x, lw, *, heads, segments, eps, scale):
    """One TransformerEncoderBlock applied to the (R, E) f32 residual slab `x`.

    Attention is computed independently per static (start, padded_len, valid_len)
    segment (face / bg stream, per batch element); padded key tokens are masked
    with -inf (padded query rows are discarded downstream). Matmuls run in bf16
    with f32 accumulation; the attention output is assembled in registers
    (lane-concat heads, sublane-concat segments) -- no VMEM scratch.
    """
    E = x.shape[-1]
    dh = E // heads

    # ---- sublayer 1: LayerNorm -> MultiHeadAttention -> residual add ----
    h = _layernorm(x, lw["ln1_g"], lw["ln1_b"], eps).astype(jnp.bfloat16)
    q = jnp.dot(h, lw["w_q"], preferred_element_type=jnp.float32) + lw["b_q"]
    k = jnp.dot(h, lw["w_k"], preferred_element_type=jnp.float32) + lw["b_k"]
    v = jnp.dot(h, lw["w_v"], preferred_element_type=jnp.float32) + lw["b_v"]

    seg_outs = []
    for s0, sl, valid in segments:
        qs = q[s0:s0 + sl].astype(jnp.bfloat16)
        ks = k[s0:s0 + sl].astype(jnp.bfloat16)
        vs = v[s0:s0 + sl].astype(jnp.bfloat16)
        keymask = None
        if valid < sl:
            keymask = jax.lax.broadcasted_iota(jnp.int32, (sl, sl), 1) < valid
        head_outs = []
        for hh in range(heads):
            qh = qs[:, hh * dh:(hh + 1) * dh]
            kh = ks[:, hh * dh:(hh + 1) * dh]
            vh = vs[:, hh * dh:(hh + 1) * dh]
            s = jax.lax.dot_general(qh, kh, (((1,), (1,)), ((), ())),
                                    preferred_element_type=jnp.float32)
            if keymask is not None:
                s = jnp.where(keymask, s, -1e30)
            m = jnp.max(s, axis=-1, keepdims=True)
            p = jnp.exp(s - m)
            denom = jnp.sum(p, axis=-1, keepdims=True)
            # Reference quirk: divide by sqrt(emb) AFTER the softmax.
            att = p * pl.reciprocal(denom * scale, approx=True)
            head_outs.append(jnp.dot(att.astype(jnp.bfloat16), vh,
                                     preferred_element_type=jnp.float32))
        seg_outs.append(jnp.concatenate(head_outs, axis=-1))       # (sl, E)
    attn = jnp.concatenate(seg_outs, axis=0)                       # (R, E), in vregs

    x = x + jnp.dot(attn.astype(jnp.bfloat16), lw["w_proj"],
                    preferred_element_type=jnp.float32) + lw["b_proj"]

    # ---- sublayer 2: LayerNorm -> FeedForward (exact GELU) -> residual add ----
    h2 = _layernorm(x, lw["ln2_g"], lw["ln2_b"], eps).astype(jnp.bfloat16)
    f = jnp.dot(h2, lw["w_ff1"], preferred_element_type=jnp.float32) + lw["b_ff1"]
    f = _gelu_exact(f)
    f = jnp.dot(f.astype(jnp.bfloat16), lw["w_ff2"],
                preferred_element_type=jnp.float32) + lw["b_ff2"]
    return x + f


# ----------------------------- Pallas kernels -----------------------------

def _tr6_kernel(patches_ref, patch_w_ref, add_ref, *rest,
                heads, segments, eps, scale):
    # rest = 16 stacked layer-weight refs (order _LAYER_KEYS) + output slab ref.
    wrefs, o_ref = rest[:-1], rest[-1]
    d = pl.program_id(0)

    @pl.when(d == 0)
    def _():
        # Fused shared patch embedding. The Linear bias, cls tokens and learned
        # positions are pre-folded into add_ref; cls / pad rows of patches are 0.
        o_ref[...] = (jnp.dot(patches_ref[...].astype(jnp.bfloat16),
                              patch_w_ref[...],
                              preferred_element_type=jnp.float32)
                      + add_ref[...])

    # Residual stream lives in the output block, carried across the depth axis.
    o_ref[...] = _encoder_layer(o_ref[...], _layer_weights(wrefs),
                                heads=heads, segments=segments,
                                eps=eps, scale=scale)


def _tr1_heads_kernel(x_ref, tok_ref, *rest,
                      heads, segments, eps, scale, batch, row_stride):
    # rest = 16 stacked layer-weight refs, 4 head-param refs (g, b, w, bias),
    #        preds output ref, residual-slab VMEM scratch.
    wrefs = rest[:16]
    hg_ref, hb_ref, hw_ref, hbias_ref = rest[16:20]
    preds_ref = rest[20]
    x_scr = rest[21]

    d = pl.program_id(0)

    @pl.when(d == 0)
    def _():
        x_scr[...] = x_ref[...]

    x_scr[...] = _encoder_layer(x_scr[...], _layer_weights(wrefs),
                                heads=heads, segments=segments,
                                eps=eps, scale=scale)

    @pl.when(d == pl.num_programs(0) - 1)
    def _():
        x = x_scr[...]
        # Head inputs (rows): [0,B) cls token of the final stream (tr1 row 0 per
        # batch); [B,2B) face_token; [2B,3B) bg_token (both passed in from tr6).
        final_toks = jnp.concatenate(
            [x[b * row_stride:b * row_stride + 1] for b in range(batch)], axis=0)
        toks = jnp.concatenate([final_toks, tok_ref[...]], axis=0)   # (3B, E)
        outs = []
        for i in range(3):
            rows = toks[i * batch:(i + 1) * batch]
            hn = _layernorm(rows, hg_ref[i], hb_ref[i], eps)
            outs.append(jnp.dot(hn.astype(jnp.bfloat16), hw_ref[i],
                                preferred_element_type=jnp.float32) + hbias_ref[i])
        preds_ref[...] = jnp.concatenate(outs, axis=0)               # (3B, 128)


# ----------------------------- pallas_call wrappers -----------------------------

def _round_up(x, m):
    return (x + m - 1) // m * m


def _check_segments(segments, total_rows):
    pos = 0
    for s0, sl, valid in segments:
        assert s0 == pos and 0 < valid <= sl and sl % 8 == 0, (segments, total_rows)
        pos += sl
    assert pos == total_rows, (segments, total_rows)


def _full_spec(arr):
    n = arr.ndim
    return pl.BlockSpec(arr.shape, lambda d, _n=n: (0,) * _n)


def _stacked_spec(arr):
    r, c = arr.shape[1], arr.shape[2]
    return pl.BlockSpec((1, r, c), lambda d: (d, 0, 0))


def transformer6_fused(patches, patch_w, addinit, sp, *, heads, segments, eps=1e-5):
    """Fused: patch-embed Linear + cls/pos add + depth-layer TransformerEncoder."""
    R, K = patches.shape
    E = addinit.shape[-1]
    D = sp["ln1_g"].shape[0]
    _check_segments(segments, R)
    scale = float(E) ** 0.5

    sl2 = sum(sl * sl for _, sl, _ in segments)
    flops = 2 * R * K * E + D * (2 * R * E * 8 * E + 4 * sl2 * E)
    transc = D * (heads * sl2 + 2 * R * E)
    wbytes = sum(int(sp[kk].size * sp[kk].dtype.itemsize) for kk in _LAYER_KEYS)
    nbytes = 4 * (patches.size + addinit.size + R * E) + 2 * patch_w.size + wbytes

    kernel = functools.partial(_tr6_kernel, heads=heads, segments=tuple(segments),
                               eps=eps, scale=scale)
    return pl.pallas_call(
        kernel,
        out_shape=jax.ShapeDtypeStruct((R, E), jnp.float32),
        grid=(D,),
        in_specs=[_full_spec(patches), _full_spec(patch_w), _full_spec(addinit)]
                 + [_stacked_spec(sp[kk]) for kk in _LAYER_KEYS],
        out_specs=pl.BlockSpec((R, E), lambda d: (0, 0)),
        # Depth carries the residual stream -> "arbitrary". (On v7x a leading
        # 2-way "parallel" batch axis would use the second TensorCore.)
        compiler_params=pltpu.CompilerParams(dimension_semantics=("arbitrary",)),
        cost_estimate=pl.CostEstimate(flops=int(flops), transcendentals=int(transc),
                                      bytes_accessed=int(nbytes)),
    )(patches, patch_w, addinit, *[sp[kk] for kk in _LAYER_KEYS])


def transformer1_heads_fused(x_slab, tok, sp, hp, *, heads, segments, batch, eps=1e-5):
    """Fused: 1-layer TransformerEncoder + the three LayerNorm+Linear heads."""
    R, E = x_slab.shape
    D = sp["ln1_g"].shape[0]
    _check_segments(segments, R)
    row_stride = segments[0][1]
    P = hp["w"].shape[-1]
    scale = float(E) ** 0.5

    sl2 = sum(sl * sl for _, sl, _ in segments)
    flops = D * (2 * R * E * 8 * E + 4 * sl2 * E) + 3 * 2 * batch * E * P
    transc = D * (heads * sl2 + 2 * R * E)
    wbytes = sum(int(sp[kk].size * sp[kk].dtype.itemsize) for kk in _LAYER_KEYS)
    nbytes = 4 * (2 * x_slab.size + tok.size + 3 * batch * P) + wbytes

    kernel = functools.partial(
        _tr1_heads_kernel, heads=heads, segments=tuple(segments),
        eps=eps, scale=scale, batch=batch, row_stride=row_stride)
    return pl.pallas_call(
        kernel,
        out_shape=jax.ShapeDtypeStruct((3 * batch, P), jnp.float32),
        grid=(D,),
        in_specs=[_full_spec(x_slab), _full_spec(tok)]
                 + [_stacked_spec(sp[kk]) for kk in _LAYER_KEYS]
                 + [_full_spec(hp["g"]), _full_spec(hp["b"]),
                    _full_spec(hp["w"]), _full_spec(hp["bias"])],
        out_specs=pl.BlockSpec((3 * batch, P), lambda d: (0, 0)),
        scratch_shapes=[pltpu.VMEM((R, E), jnp.float32)],
        compiler_params=pltpu.CompilerParams(dimension_semantics=("arbitrary",)),
        cost_estimate=pl.CostEstimate(flops=int(flops), transcendentals=int(transc),
                                      bytes_accessed=int(nbytes)),
    )(x_slab, tok, *[sp[kk] for kk in _LAYER_KEYS],
      hp["g"], hp["b"], hp["w"], hp["bias"])


# ----------------------------- JAX glue -----------------------------

def unfold_patches(x, kh, kw, sh, sw):
    """nn.Unfold((kh,kw), stride=(sh,sw)) followed by 'b c s -> b s c'."""
    B, C, H, W = x.shape
    ph = (H - kh) // sh + 1
    pw = (W - kw) // sw + 1
    rows = (jnp.arange(ph) * sh)[:, None] + jnp.arange(kh)[None, :]   # (ph, kh)
    cols = (jnp.arange(pw) * sw)[:, None] + jnp.arange(kw)[None, :]   # (pw, kw)
    p = x[:, :, rows, :]                       # (B, C, ph, kh, W)
    p = p[:, :, :, :, cols]                    # (B, C, ph, kh, pw, kw)
    p = jnp.transpose(p, (0, 2, 4, 1, 3, 5))   # (B, ph, pw, C, kh, kw)
    return p.reshape(B, ph * pw, C * kh * kw)


def trans_rppg_forward(p, x_face, x_bg, *, kh, kw, sh, sw, emb, heads, n_classes):
    E = emb
    B = x_face.shape[0]
    face_p = unfold_patches(x_face, kh, kw, sh, sw)      # (B, nf, K)
    bg_p = unfold_patches(x_bg, kh, kw, sh, sw)          # (B, nb, K)
    nf, K = face_p.shape[1], face_p.shape[2]
    nb = bg_p.shape[1]
    Nf, Nb = nf + 1, nb + 1                              # +cls token per stream
    Nf_pad, Nb_pad = _round_up(Nf, 8), _round_up(Nb, 8)  # sublane-aligned segments
    Npad = Nf_pad + Nb_pad

    # Token-aligned patch slab: zeros in the cls / pad rows (their embedding and
    # cls/pos contributions are carried entirely by p["addinit"]).
    zk = lambda n: jnp.zeros((B, n, K), jnp.float32)
    patches = jnp.concatenate(
        [zk(1), face_p, zk(Nf_pad - Nf), zk(1), bg_p, zk(Nb_pad - Nb)], axis=1)
    patches = patches.reshape(B * Npad, K)
    addinit = jnp.tile(p["addinit"], (B, 1))             # (B*Npad, E)

    # transformer_6 (shared weights) on both streams, batch folded into one slab:
    # attention restricted to each stream's token segment (padded keys masked).
    seg6 = tuple((b * Npad + s0, sl, valid)
                 for b in range(B)
                 for s0, sl, valid in ((0, Nf_pad, Nf), (Nf_pad, Nb_pad, Nb)))
    slab6 = transformer6_fused(patches, p["patch_w"], addinit, p["tr6"],
                               heads=heads, segments=seg6)
    slab6 = slab6.reshape(B, Npad, E)

    # Reference quirk: cls dropped FIRST, so the per-stream head tokens are the
    # first *patch* tokens.
    face_tok = slab6[:, 1, :]                            # (B, E)
    bg_tok = slab6[:, Nf_pad + 1, :]                     # (B, E)
    face_patches = slab6[:, 1:Nf, :]                     # (B, nf, E)
    bg_patches = slab6[:, Nf_pad + 1:Nf_pad + Nb, :]     # (B, nb, E)

    # pos_final (cls only, no positions) + transformer_1 + all three heads, fused.
    Nfin = 1 + nf + nb
    Nfin_pad = _round_up(Nfin, 8)
    final_in = jnp.concatenate(
        [jnp.broadcast_to(p["cls_final"].reshape(1, 1, E), (B, 1, E)),
         face_patches, bg_patches,
         jnp.zeros((B, Nfin_pad - Nfin, E), jnp.float32)], axis=1)
    final_in = final_in.reshape(B * Nfin_pad, E)
    tok = jnp.concatenate([face_tok, bg_tok], axis=0)    # (2B, E)

    seg1 = tuple((b * Nfin_pad, Nfin_pad, Nfin) for b in range(B))
    preds = transformer1_heads_fused(final_in, tok, p["tr1"], p["heads"],
                                     heads=heads, segments=seg1, batch=B)
    final_pred = preds[0:B, :n_classes]
    face_pred = preds[B:2 * B, :n_classes]
    bg_pred = preds[2 * B:3 * B, :n_classes]
    return final_pred, face_pred, bg_pred


# ----------------------------- parameters -----------------------------

def init_params(key, C, kh, kw, E, n_face, n_bg, depth, n_classes):
    """Raw parameters in the PyTorch module's logical layout (weights as (in, out),
    qkv columns in the '(h d qkv)' interleaved order)."""
    keys = iter(jax.random.split(key, 512))

    def nrm(shape, scale=0.02):
        return (scale * jax.random.normal(next(keys), shape)).astype(jnp.float32)

    def block_params():
        return dict(
            ln1_g=jnp.ones((E,), jnp.float32), ln1_b=jnp.zeros((E,), jnp.float32),
            w_qkv=nrm((E, 3 * E)), b_qkv=jnp.zeros((3 * E,), jnp.float32),
            w_proj=nrm((E, E)), b_proj=jnp.zeros((E,), jnp.float32),
            ln2_g=jnp.ones((E,), jnp.float32), ln2_b=jnp.zeros((E,), jnp.float32),
            w_ff1=nrm((E, 2 * E)), b_ff1=jnp.zeros((2 * E,), jnp.float32),
            w_ff2=nrm((2 * E, E)), b_ff2=jnp.zeros((E,), jnp.float32),
        )

    def head_params():
        return dict(
            g=jnp.ones((E,), jnp.float32), b=jnp.zeros((E,), jnp.float32),
            w=nrm((E, n_classes)), bias=jnp.zeros((n_classes,), jnp.float32),
        )

    return dict(
        patch_w=nrm((C * kh * kw, E)), patch_b=jnp.zeros((E,), jnp.float32),
        cls_face=nrm((1, 1, E), 1.0), pos_face=nrm((n_face + 1, E), 1.0),
        cls_bg=nrm((1, 1, E), 1.0), pos_bg=nrm((n_bg + 1, E), 1.0),
        cls_final=nrm((1, 1, E), 1.0),
        tr6=[block_params() for _ in range(depth)],
        tr1=[block_params()],
        head_final=head_params(), head_face=head_params(), head_bg=head_params(),
    )


def prepare_params(raw, *, n_face, n_bg, n_classes, class_pad=128):
    """Stack per-layer weights along a leading depth axis, permute+split qkv into
    lane-contiguous head-major q/k/v, pre-cast matmul weights to bf16, fold the
    patch bias / cls tokens / positions into an additive init slab, and lane-pad
    the classification heads to 128."""
    E = raw["patch_w"].shape[1]
    # perm[t*E + m] = 3*m + t maps '(h d qkv)' interleaved columns -> [q|k|v],
    # head-major (mathematically identical layout change).
    perm = (jnp.arange(3)[:, None] + 3 * jnp.arange(E)[None, :]).reshape(-1)

    def stack(blocks):
        wq = [b["w_qkv"][:, perm] for b in blocks]
        bq = [b["b_qkv"][perm] for b in blocks]
        bf16 = lambda arrs: jnp.stack(arrs).astype(jnp.bfloat16)
        f32r = lambda arrs: jnp.stack([a.reshape(1, -1) for a in arrs])
        return dict(
            ln1_g=f32r([b["ln1_g"] for b in blocks]),
            ln1_b=f32r([b["ln1_b"] for b in blocks]),
            w_q=bf16([w[:, :E] for w in wq]), b_q=f32r([b[:E] for b in bq]),
            w_k=bf16([w[:, E:2 * E] for w in wq]), b_k=f32r([b[E:2 * E] for b in bq]),
            w_v=bf16([w[:, 2 * E:] for w in wq]), b_v=f32r([b[2 * E:] for b in bq]),
            w_proj=bf16([b["w_proj"] for b in blocks]),
            b_proj=f32r([b["b_proj"] for b in blocks]),
            ln2_g=f32r([b["ln2_g"] for b in blocks]),
            ln2_b=f32r([b["ln2_b"] for b in blocks]),
            w_ff1=bf16([b["w_ff1"] for b in blocks]),
            b_ff1=f32r([b["b_ff1"] for b in blocks]),
            w_ff2=bf16([b["w_ff2"] for b in blocks]),
            b_ff2=f32r([b["b_ff2"] for b in blocks]),
        )

    # Additive init slab for the fused patch-embed step: Linear bias for patch
    # rows, cls+position for cls rows, zeros for alignment-pad rows.
    Nf, Nb = n_face + 1, n_bg + 1
    Nf_pad, Nb_pad = _round_up(Nf, 8), _round_up(Nb, 8)
    pb = raw["patch_b"][None]                                        # (1, E)
    add_face = jnp.concatenate(
        [raw["cls_face"].reshape(1, E) + raw["pos_face"][0:1],
         raw["pos_face"][1:] + pb,
         jnp.zeros((Nf_pad - Nf, E), jnp.float32)], axis=0)
    add_bg = jnp.concatenate(
        [raw["cls_bg"].reshape(1, E) + raw["pos_bg"][0:1],
         raw["pos_bg"][1:] + pb,
         jnp.zeros((Nb_pad - Nb, E), jnp.float32)], axis=0)
    addinit = jnp.concatenate([add_face, add_bg], axis=0)            # (Npad, E)

    def stack_heads(hs):
        P = class_pad
        return dict(
            g=jnp.stack([h["g"].reshape(1, E) for h in hs]),
            b=jnp.stack([h["b"].reshape(1, E) for h in hs]),
            w=jnp.stack([jnp.pad(h["w"], ((0, 0), (0, P - n_classes)))
                         for h in hs]).astype(jnp.bfloat16),
            bias=jnp.stack([jnp.pad(h["bias"], (0, P - n_classes)).reshape(1, P)
                            for h in hs]),
        )

    return dict(
        patch_w=raw["patch_w"].astype(jnp.bfloat16),
        addinit=addinit,
        cls_final=raw["cls_final"],
        tr6=stack(raw["tr6"]), tr1=stack(raw["tr1"]),
        heads=stack_heads([raw["head_final"], raw["head_face"], raw["head_bg"]]),
    )


# ----------------------------- main -----------------------------

if __name__ == "__main__":
    # Small shapes consistent with the module's geometry.
    B, C = 2, 3
    Hf, Hb, W = 7, 5, 24            # face height, bg height, shared width
    kh, kw, sh, sw = 3, 8, 1, 4     # unfold kernel / stride
    E, heads, depth, n_classes = 96, 3, 6, 2

    n_face = ((Hf - kh + sh) // sh) * ((W - kw + sw) // sw)   # 5*5 = 25 patches
    n_bg = ((Hb - kh + sh) // sh) * ((W - kw + sw) // sw)     # 3*5 = 15 patches

    key = jax.random.PRNGKey(0)
    kx, ky, kp = jax.random.split(key, 3)
    x_face = jax.random.normal(kx, (B, C, Hf, W), jnp.float32)
    x_bg = jax.random.normal(ky, (B, C, Hb, W), jnp.float32)

    raw = init_params(kp, C, kh, kw, E, n_face, n_bg, depth, n_classes)
    params = prepare_params(raw, n_face=n_face, n_bg=n_bg, n_classes=n_classes)

    fwd = jax.jit(
        functools.partial(
            trans_rppg_forward, kh=kh, kw=kw, sh=sh, sw=sw,
            emb=E, heads=heads, n_classes=n_classes
        )
    )
    final_pred, face_pred, bg_pred = fwd(params, x_face, x_bg)
    jax.block_until_ready((final_pred, face_pred, bg_pred))

    assert final_pred.shape == (B, n_classes)
    assert face_pred.shape == (B, n_classes)
    assert bg_pred.shape == (B, n_classes)
    assert bool(jnp.all(jnp.isfinite(final_pred)))
    assert bool(jnp.all(jnp.isfinite(face_pred)))
    assert bool(jnp.all(jnp.isfinite(bg_pred)))
    print("KERNEL_OK")
</pallas_src>

<mosaic_0001>
module attributes {stable_mosaic.version = 11 : i64} {
  func.func @_tr6_kernel(%arg0: i32, %arg1: memref<96x72xf32, #tpu.memory_space<vmem>>, %arg2: memref<72x96xbf16, #tpu.memory_space<vmem>>, %arg3: memref<96x96xf32, #tpu.memory_space<vmem>>, %arg4: memref<1x1x96xf32, #tpu.memory_space<vmem>>, %arg5: memref<1x1x96xf32, #tpu.memory_space<vmem>>, %arg6: memref<1x96x96xbf16, #tpu.memory_space<vmem>>, %arg7: memref<1x1x96xf32, #tpu.memory_space<vmem>>, %arg8: memref<1x96x96xbf16, #tpu.memory_space<vmem>>, %arg9: memref<1x1x96xf32, #tpu.memory_space<vmem>>, %arg10: memref<1x96x96xbf16, #tpu.memory_space<vmem>>, %arg11: memref<1x1x96xf32, #tpu.memory_space<vmem>>, %arg12: memref<1x96x96xbf16, #tpu.memory_space<vmem>>, %arg13: memref<1x1x96xf32, #tpu.memory_space<vmem>>, %arg14: memref<1x1x96xf32, #tpu.memory_space<vmem>>, %arg15: memref<1x1x96xf32, #tpu.memory_space<vmem>>, %arg16: memref<1x96x192xbf16, #tpu.memory_space<vmem>>, %arg17: memref<1x1x192xf32, #tpu.memory_space<vmem>>, %arg18: memref<1x192x96xbf16, #tpu.memory_space<vmem>>, %arg19: memref<1x1x96xf32, #tpu.memory_space<vmem>>, %arg20: memref<96x96xf32, #tpu.memory_space<vmem>>) attributes {dimension_semantics = [#tpu.dimension_semantics<arbitrary>], iteration_bounds = array<i64: 6>, scalar_prefetch = 0 : i64, scratch_operands = 0 : i64, tpu.core_type = #tpu.core_type<tc>, window_params = [{pipeline_mode = #tpu.pipeline_mode<synchronous>, transform_indices = @transform_0, window_bounds = array<i64: 96, 72>}, {pipeline_mode = #tpu.pipeline_mode<synchronous>, transform_indices = @transform_1, window_bounds = array<i64: 72, 96>}, {pipeline_mode = #tpu.pipeline_mode<synchronous>, transform_indices = @transform_2, window_bounds = array<i64: 96, 96>}, {transform_indices = @transform_3, window_bounds = array<i64: 1, 1, 96>}, {transform_indices = @transform_4, window_bounds = array<i64: 1, 1, 96>}, {transform_indices = @transform_5, window_bounds = array<i64: 1, 96, 96>}, {transform_indices = @transform_6, window_bounds = array<i64: 1, 1, 96>}, {transform_indices = @transform_7, window_bounds = array<i64: 1, 96, 96>}, {transform_indices = @transform_8, window_bounds = array<i64: 1, 1, 96>}, {transform_indices = @transform_9, window_bounds = array<i64: 1, 96, 96>}, {transform_indices = @transform_10, window_bounds = array<i64: 1, 1, 96>}, {transform_indices = @transform_11, window_bounds = array<i64: 1, 96, 96>}, {transform_indices = @transform_12, window_bounds = array<i64: 1, 1, 96>}, {transform_indices = @transform_13, window_bounds = array<i64: 1, 1, 96>}, {transform_indices = @transform_14, window_bounds = array<i64: 1, 1, 96>}, {transform_indices = @transform_15, window_bounds = array<i64: 1, 96, 192>}, {transform_indices = @transform_16, window_bounds = array<i64: 1, 1, 192>}, {transform_indices = @transform_17, window_bounds = array<i64: 1, 192, 96>}, {transform_indices = @transform_18, window_bounds = array<i64: 1, 1, 96>}, {pipeline_mode = #tpu.pipeline_mode<synchronous>, transform_indices = @transform_19, window_bounds = array<i64: 96, 96>}]} {
    %c0_i32 = arith.constant 0 : i32
    %0 = arith.cmpi eq, %arg0, %c0_i32 : i32
    %1 = arith.extui %0 : i1 to i32
    %c0_i32_0 = arith.constant 0 : i32
    %2 = arith.cmpi ne, %1, %c0_i32_0 : i32
    scf.if %2 {
      %c0_149 = arith.constant 0 : index
      %c0_150 = arith.constant 0 : index
      %404 = vector.load %arg1[%c0_149, %c0_150] : memref<96x72xf32, #tpu.memory_space<vmem>>, vector<96x72xf32>
      %405 = arith.truncf %404 : vector<96x72xf32> to vector<96x72xbf16>
      %c0_151 = arith.constant 0 : index
      %c0_152 = arith.constant 0 : index
      %406 = vector.load %arg2[%c0_151, %c0_152] : memref<72x96xbf16, #tpu.memory_space<vmem>>, vector<72x96xbf16>
      %cst_153 = arith.constant dense<0.000000e+00> : vector<96x96xf32>
      %407 = tpu.matmul %405, %406, %cst_153 {dimension_numbers = #tpu.dot_dimension_numbers<[1], [0], [0], [1], [0, 0, 1, 1], [], []>} : vector<96x72xbf16>, vector<72x96xbf16>, vector<96x96xf32> -> vector<96x96xf32>
      %c0_154 = arith.constant 0 : index
      %c0_155 = arith.constant 0 : index
      %408 = vector.load %arg3[%c0_154, %c0_155] : memref<96x96xf32, #tpu.memory_space<vmem>>, vector<96x96xf32>
      %409 = arith.addf %407, %408 : vector<96x96xf32>
      %c0_156 = arith.constant 0 : index
      %c0_157 = arith.constant 0 : index
      %410 = vector.load %arg20[%c0_156, %c0_157] : memref<96x96xf32, #tpu.memory_space<vmem>>, vector<96x96xf32>
      tpu.vector_store %arg20[%c0_156, %c0_157], %409 {strides = array<i32>} : memref<96x96xf32, #tpu.memory_space<vmem>>, vector<96x96xf32>,
    } else {
    }
    %c0 = arith.constant 0 : index
    %c0_1 = arith.constant 0 : index
    %3 = vector.load %arg20[%c0, %c0_1] : memref<96x96xf32, #tpu.memory_space<vmem>>, vector<96x96xf32>
    %c0_2 = arith.constant 0 : index
    %c0_3 = arith.constant 0 : index
    %c0_4 = arith.constant 0 : index
    %4 = vector.load %arg4[%c0_2, %c0_3, %c0_4] : memref<1x1x96xf32, #tpu.memory_space<vmem>>, vector<1x1x96xf32>
    %5 = vector.shape_cast %4 : vector<1x1x96xf32> to vector<1x96xf32>
    %c0_5 = arith.constant 0 : index
    %c0_6 = arith.constant 0 : index
    %c0_7 = arith.constant 0 : index
    %6 = vector.load %arg5[%c0_5, %c0_6, %c0_7] : memref<1x1x96xf32, #tpu.memory_space<vmem>>, vector<1x1x96xf32>
    %7 = vector.shape_cast %6 : vector<1x1x96xf32> to vector<1x96xf32>
    %c0_8 = arith.constant 0 : index
    %c0_9 = arith.constant 0 : index
    %c0_10 = arith.constant 0 : index
    %8 = vector.load %arg6[%c0_8, %c0_9, %c0_10] : memref<1x96x96xbf16, #tpu.memory_space<vmem>>, vector<1x96x96xbf16>
    %9 = vector.shape_cast %8 : vector<1x96x96xbf16> to vector<96x96xbf16>
    %c0_11 = arith.constant 0 : index
    %c0_12 = arith.constant 0 : index
    %c0_13 = arith.constant 0 : index
    %10 = vector.load %arg7[%c0_11, %c0_12, %c0_13] : memref<1x1x96xf32, #tpu.memory_space<vmem>>, vector<1x1x96xf32>
    %11 = vector.shape_cast %10 : vector<1x1x96xf32> to vector<1x96xf32>
    %c0_14 = arith.constant 0 : index
    %c0_15 = arith.constant 0 : index
    %c0_16 = arith.constant 0 : index
    %12 = vector.load %arg8[%c0_14, %c0_15, %c0_16] : memref<1x96x96xbf16, #tpu.memory_space<vmem>>, vector<1x96x96xbf16>
    %13 = vector.shape_cast %12 : vector<1x96x96xbf16> to vector<96x96xbf16>
    %c0_17 = arith.constant 0 : index
    %c0_18 = arith.constant 0 : index
    %c0_19 = arith.constant 0 : index
    %14 = vector.load %arg9[%c0_17, %c0_18, %c0_19] : memref<1x1x96xf32, #tpu.memory_space<vmem>>, vector<1x1x96xf32>
    %15 = vector.shape_cast %14 : vector<1x1x96xf32> to vector<1x96xf32>
    %c0_20 = arith.constant 0 : index
    %c0_21 = arith.constant 0 : index
    %c0_22 = arith.constant 0 : index
    %16 = vector.load %arg10[%c0_20, %c0_21, %c0_22] : memref<1x96x96xbf16, #tpu.memory_space<vmem>>, vector<1x96x96xbf16>
    %17 = vector.shape_cast %16 : vector<1x96x96xbf16> to vector<96x96xbf16>
    %c0_23 = arith.constant 0 : index
    %c0_24 = arith.constant 0 : index
    %c0_25 = arith.constant 0 : index
    %18 = vector.load %arg11[%c0_23, %c0_24, %c0_25] : memref<1x1x96xf32, #tpu.memory_space<vmem>>, vector<1x1x96xf32>
    %19 = vector.shape_cast %18 : vector<1x1x96xf32> to vector<1x96xf32>
    %c0_26 = arith.constant 0 : index
    %c0_27 = arith.constant 0 : index
    %c0_28 = arith.constant 0 : index
    %20 = vector.load %arg12[%c0_26, %c0_27, %c0_28] : memref<1x96x96xbf16, #tpu.memory_space<vmem>>, vector<1x96x96xbf16>
    %21 = vector.shape_cast %20 : vector<1x96x96xbf16> to vector<96x96xbf16>
    %c0_29 = arith.constant 0 : index
    %c0_30 = arith.constant 0 : index
    %c0_31 = arith.constant 0 : index
    %22 = vector.load %arg13[%c0_29, %c0_30, %c0_31] : memref<1x1x96xf32, #tpu.memory_space<vmem>>, vector<1x1x96xf32>
    %23 = vector.shape_cast %22 : vector<1x1x96xf32> to vector<1x96xf32>
    %c0_32 = arith.constant 0 : index
    %c0_33 = arith.constant 0 : index
    %c0_34 = arith.constant 0 : index
    %24 = vector.load %arg14[%c0_32, %c0_33, %c0_34] : memref<1x1x96xf32, #tpu.memory_space<vmem>>, vector<1x1x96xf32>
    %25 = vector.shape_cast %24 : vector<1x1x96xf32> to vector<1x96xf32>
    %c0_35 = arith.constant 0 : index
    %c0_36 = arith.constant 0 : index
    %c0_37 = arith.constant 0 : index
    %26 = vector.load %arg15[%c0_35, %c0_36, %c0_37] : memref<1x1x96xf32, #tpu.memory_space<vmem>>, vector<1x1x96xf32>
    %27 = vector.shape_cast %26 : vector<1x1x96xf32> to vector<1x96xf32>
    %c0_38 = arith.constant 0 : index
    %c0_39 = arith.constant 0 : index
    %c0_40 = arith.constant 0 : index
    %28 = vector.load %arg16[%c0_38, %c0_39, %c0_40] : memref<1x96x192xbf16, #tpu.memory_space<vmem>>, vector<1x96x192xbf16>
    %29 = vector.shape_cast %28 : vector<1x96x192xbf16> to vector<96x192xbf16>
    %c0_41 = arith.constant 0 : index
    %c0_42 = arith.constant 0 : index
    %c0_43 = arith.constant 0 : index
    %30 = vector.load %arg17[%c0_41, %c0_42, %c0_43] : memref<1x1x192xf32, #tpu.memory_space<vmem>>, vector<1x1x192xf32>
    %31 = vector.shape_cast %30 : vector<1x1x192xf32> to vector<1x192xf32>
    %c0_44 = arith.constant 0 : index
    %c0_45 = arith.constant 0 : index
    %c0_46 = arith.constant 0 : index
    %32 = vector.load %arg18[%c0_44, %c0_45, %c0_46] : memref<1x192x96xbf16, #tpu.memory_space<vmem>>, vector<1x192x96xbf16>
    %33 = vector.shape_cast %32 : vector<1x192x96xbf16> to vector<192x96xbf16>
    %c0_47 = arith.constant 0 : index
    %c0_48 = arith.constant 0 : index
    %c0_49 = arith.constant 0 : index
    %34 = vector.load %arg19[%c0_47, %c0_48, %c0_49] : memref<1x1x96xf32, #tpu.memory_space<vmem>>, vector<1x1x96xf32>
    %35 = vector.shape_cast %34 : vector<1x1x96xf32> to vector<1x96xf32>
    %cst = arith.constant dense<0.000000e+00> : vector<96xf32>
    %36 = vector.multi_reduction <add>, %3, %cst [1] : vector<96x96xf32> to vector<96xf32>
    %37 = vector.shape_cast %36 : vector<96xf32> to vector<96x1xf32>
    %cst_50 = arith.constant 9.600000e+01 : f32
    %38 = vector.broadcast %cst_50 : f32 to vector<96x1xf32>
    %39 = arith.divf %37, %38 : vector<96x1xf32>
    %40 = vector.broadcast %39 : vector<96x1xf32> to vector<96x96xf32>
    %41 = arith.subf %3, %40 : vector<96x96xf32>
    %42 = arith.mulf %41, %41 : vector<96x96xf32>
    %cst_51 = arith.constant dense<0.000000e+00> : vector<96xf32>
    %43 = vector.multi_reduction <add>, %42, %cst_51 [1] : vector<96x96xf32> to vector<96xf32>
    %44 = vector.shape_cast %43 : vector<96xf32> to vector<96x1xf32>
    %cst_52 = arith.constant 9.600000e+01 : f32
    %45 = vector.broadcast %cst_52 : f32 to vector<96x1xf32>
    %46 = arith.divf %44, %45 : vector<96x1xf32>
    %cst_53 = arith.constant 9.99999974E-6 : f32
    %47 = vector.broadcast %cst_53 : f32 to vector<96x1xf32>
    %48 = arith.addf %46, %47 : vector<96x1xf32>
    %49 = math.rsqrt %48 : vector<96x1xf32>
    %50 = vector.broadcast %49 : vector<96x1xf32> to vector<96x96xf32>
    %51 = arith.mulf %41, %50 : vector<96x96xf32>
    %52 = vector.broadcast %5 : vector<1x96xf32> to vector<96x96xf32>
    %53 = arith.mulf %51, %52 : vector<96x96xf32>
    %54 = vector.broadcast %7 : vector<1x96xf32> to vector<96x96xf32>
    %55 = arith.addf %53, %54 : vector<96x96xf32>
    %56 = arith.truncf %55 : vector<96x96xf32> to vector<96x96xbf16>
    %cst_54 = arith.constant dense<0.000000e+00> : vector<96x96xf32>
    %57 = tpu.matmul %56, %9, %cst_54 {dimension_numbers = #tpu.dot_dimension_numbers<[1], [0], [0], [1], [0, 0, 1, 1], [], []>} : vector<96x96xbf16>, vector<96x96xbf16>, vector<96x96xf32> -> vector<96x96xf32>
    %58 = vector.broadcast %11 : vector<1x96xf32> to vector<96x96xf32>
    %59 = arith.addf %57, %58 : vector<96x96xf32>
    %cst_55 = arith.constant dense<0.000000e+00> : vector<96x96xf32>
    %60 = tpu.matmul %56, %13, %cst_55 {dimension_numbers = #tpu.dot_dimension_numbers<[1], [0], [0], [1], [0, 0, 1, 1], [], []>} : vector<96x96xbf16>, vector<96x96xbf16>, vector<96x96xf32> -> vector<96x96xf32>
    %61 = vector.broadcast %15 : vector<1x96xf32> to vector<96x96xf32>
    %62 = arith.addf %60, %61 : vector<96x96xf32>
    %cst_56 = arith.constant dense<0.000000e+00> : vector<96x96xf32>
    %63 = tpu.matmul %56, %17, %cst_56 {dimension_numbers = #tpu.dot_dimension_numbers<[1], [0], [0], [1], [0, 0, 1, 1], [], []>} : vector<96x96xbf16>, vector<96x96xbf16>, vector<96x96xf32> -> vector<96x96xf32>
    %64 = vector.broadcast %19 : vector<1x96xf32> to vector<96x96xf32>
    %65 = arith.addf %63, %64 : vector<96x96xf32>
    %66 = vector.extract_strided_slice %59 {offsets = [0, 0], sizes = [32, 96], strides = [1, 1]} : vector<96x96xf32> to vector<32x96xf32>
    %67 = arith.truncf %66 : vector<32x96xf32> to vector<32x96xbf16>
    %68 = vector.extract_strided_slice %62 {offsets = [0, 0], sizes = [32, 96], strides = [1, 1]} : vector<96x96xf32> to vector<32x96xf32>
    %69 = arith.truncf %68 : vector<32x96xf32> to vector<32x96xbf16>
    %70 = vector.extract_strided_slice %65 {offsets = [0, 0], sizes = [32, 96], strides = [1, 1]} : vector<96x96xf32> to vector<32x96xf32>
    %71 = arith.truncf %70 : vector<32x96xf32> to vector<32x96xbf16>
    %72 = tpu.iota {dimensions = array<i32: 1>} : vector<32x32xi32>
    %c26_i32 = arith.constant 26 : i32
    %73 = vector.broadcast %c26_i32 : i32 to vector<32x32xi32>
    %74 = arith.cmpi slt, %72, %73 : vector<32x32xi32>
    %75 = vector.extract_strided_slice %67 {offsets = [0, 0], sizes = [32, 32], strides = [1, 1]} : vector<32x96xbf16> to vector<32x32xbf16>
    %76 = vector.extract_strided_slice %69 {offsets = [0, 0], sizes = [32, 32], strides = [1, 1]} : vector<32x96xbf16> to vector<32x32xbf16>
    %77 = vector.extract_strided_slice %71 {offsets = [0, 0], sizes = [32, 32], strides = [1, 1]} : vector<32x96xbf16> to vector<32x32xbf16>
    %cst_57 = arith.constant dense<0.000000e+00> : vector<32x32xf32>
    %78 = tpu.matmul %75, %76, %cst_57 {dimension_numbers = #tpu.dot_dimension_numbers<[1], [1], [0], [0], [0, 0, 1, 0], [], []>} : vector<32x32xbf16>, vector<32x32xbf16>, vector<32x32xf32> -> vector<32x32xf32>
    %cst_58 = arith.constant -1.000000e+30 : f32
    %79 = vector.broadcast %cst_58 : f32 to vector<32x32xf32>
    %80 = arith.select %74, %78, %79 : vector<32x32xi1>, vector<32x32xf32>
    %cst_59 = arith.constant dense<0xFF800000> : vector<32xf32>
    %81 = vector.multi_reduction <maximumf>, %80, %cst_59 [1] : vector<32x32xf32> to vector<32xf32>
    %82 = vector.shape_cast %81 : vector<32xf32> to vector<32x1xf32>
    %83 = vector.broadcast %82 : vector<32x1xf32> to vector<32x32xf32>
    %84 = arith.subf %80, %83 : vector<32x32xf32>
    %85 = math.exp %84 : vector<32x32xf32>
    %cst_60 = arith.constant dense<0.000000e+00> : vector<32xf32>
    %86 = vector.multi_reduction <add>, %85, %cst_60 [1] : vector<32x32xf32> to vector<32xf32>
    %87 = vector.shape_cast %86 : vector<32xf32> to vector<32x1xf32>
    %cst_61 = arith.constant 9.79795932 : f32
    %88 = vector.broadcast %cst_61 : f32 to vector<32x1xf32>
    %89 = arith.mulf %87, %88 : vector<32x1xf32>
    %90 = tpu.reciprocal %89 {approx = true} : vector<32x1xf32> -> vector<32x1xf32>
    %91 = vector.broadcast %90 : vector<32x1xf32> to vector<32x32xf32>
    %92 = arith.mulf %85, %91 : vector<32x32xf32>
    %93 = arith.truncf %92 : vector<32x32xf32> to vector<32x32xbf16>
    %cst_62 = arith.constant dense<0.000000e+00> : vector<32x32xf32>
    %94 = tpu.matmul %93, %77, %cst_62 {dimension_numbers = #tpu.dot_dimension_numbers<[1], [0], [0], [1], [0, 0, 1, 1], [], []>} : vector<32x32xbf16>, vector<32x32xbf16>, vector<32x32xf32> -> vector<32x32xf32>
    %95 = vector.extract_strided_slice %67 {offsets = [0, 32], sizes = [32, 32], strides = [1, 1]} : vector<32x96xbf16> to vector<32x32xbf16>
    %96 = vector.extract_strided_slice %69 {offsets = [0, 32], sizes = [32, 32], strides = [1, 1]} : vector<32x96xbf16> to vector<32x32xbf16>
    %97 = vector.extract_strided_slice %71 {offsets = [0, 32], sizes = [32, 32], strides = [1, 1]} : vector<32x96xbf16> to vector<32x32xbf16>
    %cst_63 = arith.constant dense<0.000000e+00> : vector<32x32xf32>
    %98 = tpu.matmul %95, %96, %cst_63 {dimension_numbers = #tpu.dot_dimension_numbers<[1], [1], [0], [0], [0, 0, 1, 0], [], []>} : vector<32x32xbf16>, vector<32x32xbf16>, vector<32x32xf32> -> vector<32x32xf32>
    %cst_64 = arith.constant -1.000000e+30 : f32
    %99 = vector.broadcast %cst_64 : f32 to vector<32x32xf32>
    %100 = arith.select %74, %98, %99 : vector<32x32xi1>, vector<32x32xf32>
    %cst_65 = arith.constant dense<0xFF800000> : vector<32xf32>
    %101 = vector.multi_reduction <maximumf>, %100, %cst_65 [1] : vector<32x32xf32> to vector<32xf32>
    %102 = vector.shape_cast %101 : vector<32xf32> to vector<32x1xf32>
    %103 = vector.broadcast %102 : vector<32x1xf32> to vector<32x32xf32>
    %104 = arith.subf %100, %103 : vector<32x32xf32>
    %105 = math.exp %104 : vector<32x32xf32>
    %cst_66 = arith.constant dense<0.000000e+00> : vector<32xf32>
    %106 = vector.multi_reduction <add>, %105, %cst_66 [1] : vector<32x32xf32> to vector<32xf32>
    %107 = vector.shape_cast %106 : vector<32xf32> to vector<32x1xf32>
    %cst_67 = arith.constant 9.79795932 : f32
    %108 = vector.broadcast %cst_67 : f32 to vector<32x1xf32>
    %109 = arith.mulf %107, %108 : vector<32x1xf32>
    %110 = tpu.reciprocal %109 {approx = true} : vector<32x1xf32> -> vector<32x1xf32>
    %111 = vector.broadcast %110 : vector<32x1xf32> to vector<32x32xf32>
    %112 = arith.mulf %105, %111 : vector<32x32xf32>
    %113 = arith.truncf %112 : vector<32x32xf32> to vector<32x32xbf16>
    %cst_68 = arith.constant dense<0.000000e+00> : vector<32x32xf32>
    %114 = tpu.matmul %113, %97, %cst_68 {dimension_numbers = #tpu.dot_dimension_numbers<[1], [0], [0], [1], [0, 0, 1, 1], [], []>} : vector<32x32xbf16>, vector<32x32xbf16>, vector<32x32xf32> -> vector<32x32xf32>
    %115 = vector.extract_strided_slice %67 {offsets = [0, 64], sizes = [32, 32], strides = [1, 1]} : vector<32x96xbf16> to vector<32x32xbf16>
    %116 = vector.extract_strided_slice %69 {offsets = [0, 64], sizes = [32, 32], strides = [1, 1]} : vector<32x96xbf16> to vector<32x32xbf16>
    %117 = vector.extract_strided_slice %71 {offsets = [0, 64], sizes = [32, 32], strides = [1, 1]} : vector<32x96xbf16> to vector<32x32xbf16>
    %cst_69 = arith.constant dense<0.000000e+00> : vector<32x32xf32>
    %118 = tpu.matmul %115, %116, %cst_69 {dimension_numbers = #tpu.dot_dimension_numbers<[1], [1], [0], [0], [0, 0, 1, 0], [], []>} : vector<32x32xbf16>, vector<32x32xbf16>, vector<32x32xf32> -> vector<32x32xf32>
    %cst_70 = arith.constant -1.000000e+30 : f32
    %119 = vector.broadcast %cst_70 : f32 to vector<32x32xf32>
    %120 = arith.select %74, %118, %119 : vector<32x32xi1>, vector<32x32xf32>
    %cst_71 = arith.constant dense<0xFF800000> : vector<32xf32>
    %121 = vector.multi_reduction <maximumf>, %120, %cst_71 [1] : vector<32x32xf32> to vector<32xf32>
    %122 = vector.shape_cast %121 : vector<32xf32> to vector<32x1xf32>
    %123 = vector.broadcast %122 : vector<32x1xf32> to vector<32x32xf32>
    %124 = arith.subf %120, %123 : vector<32x32xf32>
    %125 = math.exp %124 : vector<32x32xf32>
    %cst_72 = arith.constant dense<0.000000e+00> : vector<32xf32>
    %126 = vector.multi_reduction <add>, %125, %cst_72 [1] : vector<32x32xf32> to vector<32xf32>
    %127 = vector.shape_cast %126 : vector<32xf32> to vector<32x1xf32>
    %cst_73 = arith.constant 9.79795932 : f32
    %128 = vector.broadcast %cst_73 : f32 to vector<32x1xf32>
    %129 = arith.mulf %127, %128 : vector<32x1xf32>
    %130 = tpu.reciprocal %129 {approx = true} : vector<32x1xf32> -> vector<32x1xf32>
    %131 = vector.broadcast %130 : vector<32x1xf32> to vector<32x32xf32>
    %132 = arith.mulf %125, %131 : vector<32x32xf32>
    %133 = arith.truncf %132 : vector<32x32xf32> to vector<32x32xbf16>
    %cst_74 = arith.constant dense<0.000000e+00> : vector<32x32xf32>
    %134 = tpu.matmul %133, %117, %cst_74 {dimension_numbers = #tpu.dot_dimension_numbers<[1], [0], [0], [1], [0, 0, 1, 1], [], []>} : vector<32x32xbf16>, vector<32x32xbf16>, vector<32x32xf32> -> vector<32x32xf32>
    %135 = tpu.concatenate %94, %114, %134 in 1 : vector<32x32xf32>, vector<32x32xf32>, vector<32x32xf32> -> vector<32x96xf32>
    %136 = vector.extract_strided_slice %59 {offsets = [32, 0], sizes = [16, 96], strides = [1, 1]} : vector<96x96xf32> to vector<16x96xf32>
    %137 = arith.truncf %136 : vector<16x96xf32> to vector<16x96xbf16>
    %138 = vector.extract_strided_slice %62 {offsets = [32, 0], sizes = [16, 96], strides = [1, 1]} : vector<96x96xf32> to vector<16x96xf32>
    %139 = arith.truncf %138 : vector<16x96xf32> to vector<16x96xbf16>
    %140 = vector.extract_strided_slice %65 {offsets = [32, 0], sizes = [16, 96], strides = [1, 1]} : vector<96x96xf32> to vector<16x96xf32>
    %141 = arith.truncf %140 : vector<16x96xf32> to vector<16x96xbf16>
    %142 = vector.extract_strided_slice %137 {offsets = [0, 0], sizes = [16, 32], strides = [1, 1]} : vector<16x96xbf16> to vector<16x32xbf16>
    %143 = vector.extract_strided_slice %139 {offsets = [0, 0], sizes = [16, 32], strides = [1, 1]} : vector<16x96xbf16> to vector<16x32xbf16>
    %144 = vector.extract_strided_slice %141 {offsets = [0, 0], sizes = [16, 32], strides = [1, 1]} : vector<16x96xbf16> to vector<16x32xbf16>
    %cst_75 = arith.constant dense<0.000000e+00> : vector<16x16xf32>
    %145 = tpu.matmul %142, %143, %cst_75 {dimension_numbers = #tpu.dot_dimension_numbers<[1], [1], [0], [0], [0, 0, 1, 0], [], []>} : vector<16x32xbf16>, vector<16x32xbf16>, vector<16x16xf32> -> vector<16x16xf32>
    %cst_76 = arith.constant dense<0xFF800000> : vector<16xf32>
    %146 = vector.multi_reduction <maximumf>, %145, %cst_76 [1] : vector<16x16xf32> to vector<16xf32>
    %147 = vector.shape_cast %146 : vector<16xf32> to vector<16x1xf32>
    %148 = vector.broadcast %147 : vector<16x1xf32> to vector<16x16xf32>
    %149 = arith.subf %145, %148 : vector<16x16xf32>
    %150 = math.exp %149 : vector<16x16xf32>
    %cst_77 = arith.constant dense<0.000000e+00> : vector<16xf32>
    %151 = vector.multi_reduction <add>, %150, %cst_77 [1] : vector<16x16xf32> to vector<16xf32>
    %152 = vector.shape_cast %151 : vector<16xf32> to vector<16x1xf32>
    %cst_78 = arith.constant 9.79795932 : f32
    %153 = vector.broadcast %cst_78 : f32 to vector<16x1xf32>
    %154 = arith.mulf %152, %153 : vector<16x1xf32>
    %155 = tpu.reciprocal %154 {approx = true} : vector<16x1xf32> -> vector<16x1xf32>
    %156 = vector.broadcast %155 : vector<16x1xf32> to vector<16x16xf32>
    %157 = arith.mulf %150, %156 : vector<16x16xf32>
    %158 = arith.truncf %157 : vector<16x16xf32> to vector<16x16xbf16>
    %cst_79 = arith.constant dense<0.000000e+00> : vector<16x32xf32>
    %159 = tpu.matmul %158, %144, %cst_79 {dimension_numbers = #tpu.dot_dimension_numbers<[1], [0], [0], [1], [0, 0, 1, 1], [], []>} : vector<16x16xbf16>, vector<16x32xbf16>, vector<16x32xf32> -> vector<16x32xf32>
    %160 = vector.extract_strided_slice %137 {offsets = [0, 32], sizes = [16, 32], strides = [1, 1]} : vector<16x96xbf16> to vector<16x32xbf16>
    %161 = vector.extract_strided_slice %139 {offsets = [0, 32], sizes = [16, 32], strides = [1, 1]} : vector<16x96xbf16> to vector<16x32xbf16>
    %162 = vector.extract_strided_slice %141 {offsets = [0, 32], sizes = [16, 32], strides = [1, 1]} : vector<16x96xbf16> to vector<16x32xbf16>
    %cst_80 = arith.constant dense<0.000000e+00> : vector<16x16xf32>
    %163 = tpu.matmul %160, %161, %cst_80 {dimension_numbers = #tpu.dot_dimension_numbers<[1], [1], [0], [0], [0, 0, 1, 0], [], []>} : vector<16x32xbf16>, vector<16x32xbf16>, vector<16x16xf32> -> vector<16x16xf32>
    %cst_81 = arith.constant dense<0xFF800000> : vector<16xf32>
    %164 = vector.multi_reduction <maximumf>, %163, %cst_81 [1] : vector<16x16xf32> to vector<16xf32>
    %165 = vector.shape_cast %164 : vector<16xf32> to vector<16x1xf32>
    %166 = vector.broadcast %165 : vector<16x1xf32> to vector<16x16xf32>
    %167 = arith.subf %163, %166 : vector<16x16xf32>
    %168 = math.exp %167 : vector<16x16xf32>
    %cst_82 = arith.constant dense<0.000000e+00> : vector<16xf32>
    %169 = vector.multi_reduction <add>, %168, %cst_82 [1] : vector<16x16xf32> to vector<16xf32>
    %170 = vector.shape_cast %169 : vector<16xf32> to vector<16x1xf32>
    %cst_83 = arith.constant 9.79795932 : f32
    %171 = vector.broadcast %cst_83 : f32 to vector<16x1xf32>
    %172 = arith.mulf %170, %171 : vector<16x1xf32>
    %173 = tpu.reciprocal %172 {approx = true} : vector<16x1xf32> -> vector<16x1xf32>
    %174 = vector.broadcast %173 : vector<16x1xf32> to vector<16x16xf32>
    %175 = arith.mulf %168, %174 : vector<16x16xf32>
    %176 = arith.truncf %175 : vector<16x16xf32> to vector<16x16xbf16>
    %cst_84 = arith.constant dense<0.000000e+00> : vector<16x32xf32>
    %177 = tpu.matmul %176, %162, %cst_84 {dimension_numbers = #tpu.dot_dimension_numbers<[1], [0], [0], [1], [0, 0, 1, 1], [], []>} : vector<16x16xbf16>, vector<16x32xbf16>, vector<16x32xf32> -> vector<16x32xf32>
    %178 = vector.extract_strided_slice %137 {offsets = [0, 64], sizes = [16, 32], strides = [1, 1]} : vector<16x96xbf16> to vector<16x32xbf16>
    %179 = vector.extract_strided_slice %139 {offsets = [0, 64], sizes = [16, 32], strides = [1, 1]} : vector<16x96xbf16> to vector<16x32xbf16>
    %180 = vector.extract_strided_slice %141 {offsets = [0, 64], sizes = [16, 32], strides = [1, 1]} : vector<16x96xbf16> to vector<16x32xbf16>
    %cst_85 = arith.constant dense<0.000000e+00> : vector<16x16xf32>
    %181 = tpu.matmul %178, %179, %cst_85 {dimension_numbers = #tpu.dot_dimension_numbers<[1], [1], [0], [0], [0, 0, 1, 0], [], []>} : vector<16x32xbf16>, vector<16x32xbf16>, vector<16x16xf32> -> vector<16x16xf32>
    %cst_86 = arith.constant dense<0xFF800000> : vector<16xf32>
    %182 = vector.multi_reduction <maximumf>, %181, %cst_86 [1] : vector<16x16xf32> to vector<16xf32>
    %183 = vector.shape_cast %182 : vector<16xf32> to vector<16x1xf32>
    %184 = vector.broadcast %183 : vector<16x1xf32> to vector<16x16xf32>
    %185 = arith.subf %181, %184 : vector<16x16xf32>
    %186 = math.exp %185 : vector<16x16xf32>
    %cst_87 = arith.constant dense<0.000000e+00> : vector<16xf32>
    %187 = vector.multi_reduction <add>, %186, %cst_87 [1] : vector<16x16xf32> to vector<16xf32>
    %188 = vector.shape_cast %187 : vector<16xf32> to vector<16x1xf32>
    %cst_88 = arith.constant 9.79795932 : f32
    %189 = vector.broadcast %cst_88 : f32 to vector<16x1xf32>
    %190 = arith.mulf %188, %189 : vector<16x1xf32>
    %191 = tpu.reciprocal %190 {approx = true} : vector<16x1xf32> -> vector<16x1xf32>
    %192 = vector.broadcast %191 : vector<16x1xf32> to vector<16x16xf32>
    %193 = arith.mulf %186, %192 : vector<16x16xf32>
    %194 = arith.truncf %193 : vector<16x16xf32> to vector<16x16xbf16>
    %cst_89 = arith.constant dense<0.000000e+00> : vector<16x32xf32>
    %195 = tpu.matmul %194, %180, %cst_89 {dimension_numbers = #tpu.dot_dimension_numbers<[1], [0], [0], [1], [0, 0, 1, 1], [], []>} : vector<16x16xbf16>, vector<16x32xbf16>, vector<16x32xf32> -> vector<16x32xf32>
    %196 = tpu.concatenate %159, %177, %195 in 1 : vector<16x32xf32>, vector<16x32xf32>, vector<16x32xf32> -> vector<16x96xf32>
    %197 = vector.extract_strided_slice %59 {offsets = [48, 0], sizes = [32, 96], strides = [1, 1]} : vector<96x96xf32> to vector<32x96xf32>
    %198 = arith.truncf %197 : vector<32x96xf32> to vector<32x96xbf16>
    %199 = vector.extract_strided_slice %62 {offsets = [48, 0], sizes = [32, 96], strides = [1, 1]} : vector<96x96xf32> to vector<32x96xf32>
    %200 = arith.truncf %199 : vector<32x96xf32> to vector<32x96xbf16>
    %201 = vector.extract_strided_slice %65 {offsets = [48, 0], sizes = [32, 96], strides = [1, 1]} : vector<96x96xf32> to vector<32x96xf32>
    %202 = arith.truncf %201 : vector<32x96xf32> to vector<32x96xbf16>
    %203 = tpu.iota {dimensions = array<i32: 1>} : vector<32x32xi32>
    %c26_i32_90 = arith.constant 26 : i32
    %204 = vector.broadcast %c26_i32_90 : i32 to vector<32x32xi32>
    %205 = arith.cmpi slt, %203, %204 : vector<32x32xi32>
    %206 = vector.extract_strided_slice %198 {offsets = [0, 0], sizes = [32, 32], strides = [1, 1]} : vector<32x96xbf16> to vector<32x32xbf16>
    %207 = vector.extract_strided_slice %200 {offsets = [0, 0], sizes = [32, 32], strides = [1, 1]} : vector<32x96xbf16> to vector<32x32xbf16>
    %208 = vector.extract_strided_slice %202 {offsets = [0, 0], sizes = [32, 32], strides = [1, 1]} : vector<32x96xbf16> to vector<32x32xbf16>
    %cst_91 = arith.constant dense<0.000000e+00> : vector<32x32xf32>
    %209 = tpu.matmul %206, %207, %cst_91 {dimension_numbers = #tpu.dot_dimension_numbers<[1], [1], [0], [0], [0, 0, 1, 0], [], []>} : vector<32x32xbf16>, vector<32x32xbf16>, vector<32x32xf32> -> vector<32x32xf32>
    %cst_92 = arith.constant -1.000000e+30 : f32
    %210 = vector.broadcast %cst_92 : f32 to vector<32x32xf32>
    %211 = arith.select %205, %209, %210 : vector<32x32xi1>, vector<32x32xf32>
    %cst_93 = arith.constant dense<0xFF800000> : vector<32xf32>
    %212 = vector.multi_reduction <maximumf>, %211, %cst_93 [1] : vector<32x32xf32> to vector<32xf32>
    %213 = vector.shape_cast %212 : vector<32xf32> to vector<32x1xf32>
    %214 = vector.broadcast %213 : vector<32x1xf32> to vector<32x32xf32>
    %215 = arith.subf %211, %214 : vector<32x32xf32>
    %216 = math.exp %215 : vector<32x32xf32>
    %cst_94 = arith.constant dense<0.000000e+00> : vector<32xf32>
    %217 = vector.multi_reduction <add>, %216, %cst_94 [1] : vector<32x32xf32> to vector<32xf32>
    %218 = vector.shape_cast %217 : vector<32xf32> to vector<32x1xf32>
    %cst_95 = arith.constant 9.79795932 : f32
    %219 = vector.broadcast %cst_95 : f32 to vector<32x1xf32>
    %220 = arith.mulf %218, %219 : vector<32x1xf32>
    %221 = tpu.reciprocal %220 {approx = true} : vector<32x1xf32> -> vector<32x1xf32>
    %222 = vector.broadcast %221 : vector<32x1xf32> to vector<32x32xf32>
    %223 = arith.mulf %216, %222 : vector<32x32xf32>
    %224 = arith.truncf %223 : vector<32x32xf32> to vector<32x32xbf16>
    %cst_96 = arith.constant dense<0.000000e+00> : vector<32x32xf32>
    %225 = tpu.matmul %224, %208, %cst_96 {dimension_numbers = #tpu.dot_dimension_numbers<[1], [0], [0], [1], [0, 0, 1, 1], [], []>} : vector<32x32xbf16>, vector<32x32xbf16>, vector<32x32xf32> -> vector<32x32xf32>
    %226 = vector.extract_strided_slice %198 {offsets = [0, 32], sizes = [32, 32], strides = [1, 1]} : vector<32x96xbf16> to vector<32x32xbf16>
    %227 = vector.extract_strided_slice %200 {offsets = [0, 32], sizes = [32, 32], strides = [1, 1]} : vector<32x96xbf16> to vector<32x32xbf16>
    %228 = vector.extract_strided_slice %202 {offsets = [0, 32], sizes = [32, 32], strides = [1, 1]} : vector<32x96xbf16> to vector<32x32xbf16>
    %cst_97 = arith.constant dense<0.000000e+00> : vector<32x32xf32>
    %229 = tpu.matmul %226, %227, %cst_97 {dimension_numbers = #tpu.dot_dimension_numbers<[1], [1], [0], [0], [0, 0, 1, 0], [], []>} : vector<32x32xbf16>, vector<32x32xbf16>, vector<32x32xf32> -> vector<32x32xf32>
    %cst_98 = arith.constant -1.000000e+30 : f32
    %230 = vector.broadcast %cst_98 : f32 to vector<32x32xf32>
    %231 = arith.select %205, %229, %230 : vector<32x32xi1>, vector<32x32xf32>
    %cst_99 = arith.constant dense<0xFF800000> : vector<32xf32>
    %232 = vector.multi_reduction <maximumf>, %231, %cst_99 [1] : vector<32x32xf32> to vector<32xf32>
    %233 = vector.shape_cast %232 : vector<32xf32> to vector<32x1xf32>
    %234 = vector.broadcast %233 : vector<32x1xf32> to vector<32x32xf32>
    %235 = arith.subf %231, %234 : vector<32x32xf32>
    %236 = math.exp %235 : vector<32x32xf32>
    %cst_100 = arith.constant dense<0.000000e+00> : vector<32xf32>
    %237 = vector.multi_reduction <add>, %236, %cst_100 [1] : vector<32x32xf32> to vector<32xf32>
    %238 = vector.shape_cast %237 : vector<32xf32> to vector<32x1xf32>
    %cst_101 = arith.constant 9.79795932 : f32
    %239 = vector.broadcast %cst_101 : f32 to vector<32x1xf32>
    %240 = arith.mulf %238, %239 : vector<32x1xf32>
    %241 = tpu.reciprocal %240 {approx = true} : vector<32x1xf32> -> vector<32x1xf32>
    %242 = vector.broadcast %241 : vector<32x1xf32> to vector<32x32xf32>
    %243 = arith.mulf %236, %242 : vector<32x32xf32>
    %244 = arith.truncf %243 : vector<32x32xf32> to vector<32x32xbf16>
    %cst_102 = arith.constant dense<0.000000e+00> : vector<32x32xf32>
    %245 = tpu.matmul %244, %228, %cst_102 {dimension_numbers = #tpu.dot_dimension_numbers<[1], [0], [0], [1], [0, 0, 1, 1], [], []>} : vector<32x32xbf16>, vector<32x32xbf16>, vector<32x32xf32> -> vector<32x32xf32>
    %246 = vector.extract_strided_slice %198 {offsets = [0, 64], sizes = [32, 32], strides = [1, 1]} : vector<32x96xbf16> to vector<32x32xbf16>
    %247 = vector.extract_strided_slice %200 {offsets = [0, 64], sizes = [32, 32], strides = [1, 1]} : vector<32x96xbf16> to vector<32x32xbf16>
    %248 = vector.extract_strided_slice %202 {offsets = [0, 64], sizes = [32, 32], strides = [1, 1]} : vector<32x96xbf16> to vector<32x32xbf16>
    %cst_103 = arith.constant dense<0.000000e+00> : vector<32x32xf32>
    %249 = tpu.matmul %246, %247, %cst_103 {dimension_numbers = #tpu.dot_dimension_numbers<[1], [1], [0], [0], [0, 0, 1, 0], [], []>} : vector<32x32xbf16>, vector<32x32xbf16>, vector<32x32xf32> -> vector<32x32xf32>
    %cst_104 = arith.constant -1.000000e+30 : f32
    %250 = vector.broadcast %cst_104 : f32 to vector<32x32xf32>
    %251 = arith.select %205, %249, %250 : vector<32x32xi1>, vector<32x32xf32>
    %cst_105 = arith.constant dense<0xFF800000> : vector<32xf32>
    %252 = vector.multi_reduction <maximumf>, %251, %cst_105 [1] : vector<32x32xf32> to vector<32xf32>
    %253 = vector.shape_cast %252 : vector<32xf32> to vector<32x1xf32>
    %254 = vector.broadcast %253 : vector<32x1xf32> to vector<32x32xf32>
    %255 = arith.subf %251, %254 : vector<32x32xf32>
    %256 = math.exp %255 : vector<32x32xf32>
    %cst_106 = arith.constant dense<0.000000e+00> : vector<32xf32>
    %257 = vector.multi_reduction <add>, %256, %cst_106 [1] : vector<32x32xf32> to vector<32xf32>
    %258 = vector.shape_cast %257 : vector<32xf32> to vector<32x1xf32>
    %cst_107 = arith.constant 9.79795932 : f32
    %259 = vector.broadcast %cst_107 : f32 to vector<32x1xf32>
    %260 = arith.mulf %258, %259 : vector<32x1xf32>
    %261 = tpu.reciprocal %260 {approx = true} : vector<32x1xf32> -> vector<32x1xf32>
    %262 = vector.broadcast %261 : vector<32x1xf32> to vector<32x32xf32>
    %263 = arith.mulf %256, %262 : vector<32x32xf32>
    %264 = arith.truncf %263 : vector<32x32xf32> to vector<32x32xbf16>
    %cst_108 = arith.constant dense<0.000000e+00> : vector<32x32xf32>
    %265 = tpu.matmul %264, %248, %cst_108 {dimension_numbers = #tpu.dot_dimension_numbers<[1], [0], [0], [1], [0, 0, 1, 1], [], []>} : vector<32x32xbf16>, vector<32x32xbf16>, vector<32x32xf32> -> vector<32x32xf32>
    %266 = tpu.concatenate %225, %245, %265 in 1 : vector<32x32xf32>, vector<32x32xf32>, vector<32x32xf32> -> vector<32x96xf32>
    %267 = vector.extract_strided_slice %59 {offsets = [80, 0], sizes = [16, 96], strides = [1, 1]} : vector<96x96xf32> to vector<16x96xf32>
    %268 = arith.truncf %267 : vector<16x96xf32> to vector<16x96xbf16>
    %269 = vector.extract_strided_slice %62 {offsets = [80, 0], sizes = [16, 96], strides = [1, 1]} : vector<96x96xf32> to vector<16x96xf32>
    %270 = arith.truncf %269 : vector<16x96xf32> to vector<16x96xbf16>
    %271 = vector.extract_strided_slice %65 {offsets = [80, 0], sizes = [16, 96], strides = [1, 1]} : vector<96x96xf32> to vector<16x96xf32>
    %272 = arith.truncf %271 : vector<16x96xf32> to vector<16x96xbf16>
    %273 = vector.extract_strided_slice %268 {offsets = [0, 0], sizes = [16, 32], strides = [1, 1]} : vector<16x96xbf16> to vector<16x32xbf16>
    %274 = vector.extract_strided_slice %270 {offsets = [0, 0], sizes = [16, 32], strides = [1, 1]} : vector<16x96xbf16> to vector<16x32xbf16>
    %275 = vector.extract_strided_slice %272 {offsets = [0, 0], sizes = [16, 32], strides = [1, 1]} : vector<16x96xbf16> to vector<16x32xbf16>
    %cst_109 = arith.constant dense<0.000000e+00> : vector<16x16xf32>
    %276 = tpu.matmul %273, %274, %cst_109 {dimension_numbers = #tpu.dot_dimension_numbers<[1], [1], [0], [0], [0, 0, 1, 0], [], []>} : vector<16x32xbf16>, vector<16x32xbf16>, vector<16x16xf32> -> vector<16x16xf32>
    %cst_110 = arith.constant dense<0xFF800000> : vector<16xf32>
    %277 = vector.multi_reduction <maximumf>, %276, %cst_110 [1] : vector<16x16xf32> to vector<16xf32>
    %278 = vector.shape_cast %277 : vector<16xf32> to vector<16x1xf32>
    %279 = vector.broadcast %278 : vector<16x1xf32> to vector<16x16xf32>
    %280 = arith.subf %276, %279 : vector<16x16xf32>
    %281 = math.exp %280 : vector<16x16xf32>
    %cst_111 = arith.constant dense<0.000000e+00> : vector<16xf32>
    %282 = vector.multi_reduction <add>, %281, %cst_111 [1] : vector<16x16xf32> to vector<16xf32>
    %283 = vector.shape_cast %282 : vector<16xf32> to vector<16x1xf32>
    %cst_112 = arith.constant 9.79795932 : f32
    %284 = vector.broadcast %cst_112 : f32 to vector<16x1xf32>
    %285 = arith.mulf %283, %284 : vector<16x1xf32>
    %286 = tpu.reciprocal %285 {approx = true} : vector<16x1xf32> -> vector<16x1xf32>
    %287 = vector.broadcast %286 : vector<16x1xf32> to vector<16x16xf32>
    %288 = arith.mulf %281, %287 : vector<16x16xf32>
    %289 = arith.truncf %288 : vector<16x16xf32> to vector<16x16xbf16>
    %cst_113 = arith.constant dense<0.000000e+00> : vector<16x32xf32>
    %290 = tpu.matmul %289, %275, %cst_113 {dimension_numbers = #tpu.dot_dimension_numbers<[1], [0], [0], [1], [0, 0, 1, 1], [], []>} : vector<16x16xbf16>, vector<16x32xbf16>, vector<16x32xf32> -> vector<16x32xf32>
    %291 = vector.extract_strided_slice %268 {offsets = [0, 32], sizes = [16, 32], strides = [1, 1]} : vector<16x96xbf16> to vector<16x32xbf16>
    %292 = vector.extract_strided_slice %270 {offsets = [0, 32], sizes = [16, 32], strides = [1, 1]} : vector<16x96xbf16> to vector<16x32xbf16>
    %293 = vector.extract_strided_slice %272 {offsets = [0, 32], sizes = [16, 32], strides = [1, 1]} : vector<16x96xbf16> to vector<16x32xbf16>
    %cst_114 = arith.constant dense<0.000000e+00> : vector<16x16xf32>
    %294 = tpu.matmul %291, %292, %cst_114 {dimension_numbers = #tpu.dot_dimension_numbers<[1], [1], [0], [0], [0, 0, 1, 0], [], []>} : vector<16x32xbf16>, vector<16x32xbf16>, vector<16x16xf32> -> vector<16x16xf32>
    %cst_115 = arith.constant dense<0xFF800000> : vector<16xf32>
    %295 = vector.multi_reduction <maximumf>, %294, %cst_115 [1] : vector<16x16xf32> to vector<16xf32>
    %296 = vector.shape_cast %295 : vector<16xf32> to vector<16x1xf32>
    %297 = vector.broadcast %296 : vector<16x1xf32> to vector<16x16xf32>
    %298 = arith.subf %294, %297 : vector<16x16xf32>
    %299 = math.exp %298 : vector<16x16xf32>
    %cst_116 = arith.constant dense<0.000000e+00> : vector<16xf32>
    %300 = vector.multi_reduction <add>, %299, %cst_116 [1] : vector<16x16xf32> to vector<16xf32>
    %301 = vector.shape_cast %300 : vector<16xf32> to vector<16x1xf32>
    %cst_117 = arith.constant 9.79795932 : f32
    %302 = vector.broadcast %cst_117 : f32 to vector<16x1xf32>
    %303 = arith.mulf %301, %302 : vector<16x1xf32>
    %304 = tpu.reciprocal %303 {approx = true} : vector<16x1xf32> -> vector<16x1xf32>
    %305 = vector.broadcast %304 : vector<16x1xf32> to vector<16x16xf32>
    %306 = arith.mulf %299, %305 : vector<16x16xf32>
    %307 = arith.truncf %306 : vector<16x16xf32> to vector<16x16xbf16>
    %cst_118 = arith.constant dense<0.000000e+00> : vector<16x32xf32>
    %308 = tpu.matmul %307, %293, %cst_118 {dimension_numbers = #tpu.dot_dimension_numbers<[1], [0], [0], [1], [0, 0, 1, 1], [], []>} : vector<16x16xbf16>, vector<16x32xbf16>, vector<16x32xf32> -> vector<16x32xf32>
    %309 = vector.extract_strided_slice %268 {offsets = [0, 64], sizes = [16, 32], strides = [1, 1]} : vector<16x96xbf16> to vector<16x32xbf16>
    %310 = vector.extract_strided_slice %270 {offsets = [0, 64], sizes = [16, 32], strides = [1, 1]} : vector<16x96xbf16> to vector<16x32xbf16>
    %311 = vector.extract_strided_slice %272 {offsets = [0, 64], sizes = [16, 32], strides = [1, 1]} : vector<16x96xbf16> to vector<16x32xbf16>
    %cst_119 = arith.constant dense<0.000000e+00> : vector<16x16xf32>
    %312 = tpu.matmul %309, %310, %cst_119 {dimension_numbers = #tpu.dot_dimension_numbers<[1], [1], [0], [0], [0, 0, 1, 0], [], []>} : vector<16x32xbf16>, vector<16x32xbf16>, vector<16x16xf32> -> vector<16x16xf32>
    %cst_120 = arith.constant dense<0xFF800000> : vector<16xf32>
    %313 = vector.multi_reduction <maximumf>, %312, %cst_120 [1] : vector<16x16xf32> to vector<16xf32>
    %314 = vector.shape_cast %313 : vector<16xf32> to vector<16x1xf32>
    %315 = vector.broadcast %314 : vector<16x1xf32> to vector<16x16xf32>
    %316 = arith.subf %312, %315 : vector<16x16xf32>
    %317 = math.exp %316 : vector<16x16xf32>
    %cst_121 = arith.constant dense<0.000000e+00> : vector<16xf32>
    %318 = vector.multi_reduction <add>, %317, %cst_121 [1] : vector<16x16xf32> to vector<16xf32>
    %319 = vector.shape_cast %318 : vector<16xf32> to vector<16x1xf32>
    %cst_122 = arith.constant 9.79795932 : f32
    %320 = vector.broadcast %cst_122 : f32 to vector<16x1xf32>
    %321 = arith.mulf %319, %320 : vector<16x1xf32>
    %322 = tpu.reciprocal %321 {approx = true} : vector<16x1xf32> -> vector<16x1xf32>
    %323 = vector.broadcast %322 : vector<16x1xf32> to vector<16x16xf32>
    %324 = arith.mulf %317, %323 : vector<16x16xf32>
    %325 = arith.truncf %324 : vector<16x16xf32> to vector<16x16xbf16>
    %cst_123 = arith.constant dense<0.000000e+00> : vector<16x32xf32>
    %326 = tpu.matmul %325, %311, %cst_123 {dimension_numbers = #tpu.dot_dimension_numbers<[1], [0], [0], [1], [0, 0, 1, 1], [], []>} : vector<16x16xbf16>, vector<16x32xbf16>, vector<16x32xf32> -> vector<16x32xf32>
    %327 = tpu.concatenate %290, %308, %326 in 1 : vector<16x32xf32>, vector<16x32xf32>, vector<16x32xf32> -> vector<16x96xf32>
    %328 = tpu.concatenate %135, %196, %266, %327 in 0 : vector<32x96xf32>, vector<16x96xf32>, vector<32x96xf32>, vector<16x96xf32> -> vector<96x96xf32>
    %329 = arith.truncf %328 : vector<96x96xf32> to vector<96x96xbf16>
    %cst_124 = arith.constant dense<0.000000e+00> : vector<96x96xf32>
    %330 = tpu.matmul %329, %21, %cst_124 {dimension_numbers = #tpu.dot_dimension_numbers<[1], [0], [0], [1], [0, 0, 1, 1], [], []>} : vector<96x96xbf16>, vector<96x96xbf16>, vector<96x96xf32> -> vector<96x96xf32>
    %331 = arith.addf %3, %330 : vector<96x96xf32>
    %332 = vector.broadcast %23 : vector<1x96xf32> to vector<96x96xf32>
    %333 = arith.addf %331, %332 : vector<96x96xf32>
    %cst_125 = arith.constant dense<0.000000e+00> : vector<96xf32>
    %334 = vector.multi_reduction <add>, %333, %cst_125 [1] : vector<96x96xf32> to vector<96xf32>
    %335 = vector.shape_cast %334 : vector<96xf32> to vector<96x1xf32>
    %cst_126 = arith.constant 9.600000e+01 : f32
    %336 = vector.broadcast %cst_126 : f32 to vector<96x1xf32>
    %337 = arith.divf %335, %336 : vector<96x1xf32>
    %338 = vector.broadcast %337 : vector<96x1xf32> to vector<96x96xf32>
    %339 = arith.subf %333, %338 : vector<96x96xf32>
    %340 = arith.mulf %339, %339 : vector<96x96xf32>
    %cst_127 = arith.constant dense<0.000000e+00> : vector<96xf32>
    %341 = vector.multi_reduction <add>, %340, %cst_127 [1] : vector<96x96xf32> to vector<96xf32>
    %342 = vector.shape_cast %341 : vector<96xf32> to vector<96x1xf32>
    %cst_128 = arith.constant 9.600000e+01 : f32
    %343 = vector.broadcast %cst_128 : f32 to vector<96x1xf32>
    %344 = arith.divf %342, %343 : vector<96x1xf32>
    %cst_129 = arith.constant 9.99999974E-6 : f32
    %345 = vector.broadcast %cst_129 : f32 to vector<96x1xf32>
    %346 = arith.addf %344, %345 : vector<96x1xf32>
    %347 = math.rsqrt %346 : vector<96x1xf32>
    %348 = vector.broadcast %347 : vector<96x1xf32> to vector<96x96xf32>
    %349 = arith.mulf %339, %348 : vector<96x96xf32>
    %350 = vector.broadcast %25 : vector<1x96xf32> to vector<96x96xf32>
    %351 = arith.mulf %349, %350 : vector<96x96xf32>
    %352 = vector.broadcast %27 : vector<1x96xf32> to vector<96x96xf32>
    %353 = arith.addf %351, %352 : vector<96x96xf32>
    %354 = arith.truncf %353 : vector<96x96xf32> to vector<96x96xbf16>
    %cst_130 = arith.constant dense<0.000000e+00> : vector<96x192xf32>
    %355 = tpu.matmul %354, %29, %cst_130 {dimension_numbers = #tpu.dot_dimension_numbers<[1], [0], [0], [1], [0, 0, 1, 1], [], []>} : vector<96x96xbf16>, vector<96x192xbf16>, vector<96x192xf32> -> vector<96x192xf32>
    %356 = vector.broadcast %31 : vector<1x192xf32> to vector<96x192xf32>
    %357 = arith.addf %355, %356 : vector<96x192xf32>
    %cst_131 = arith.constant 5.000000e-01 : f32
    %358 = vector.broadcast %cst_131 : f32 to vector<96x192xf32>
    %359 = arith.mulf %358, %357 : vector<96x192xf32>
    %cst_132 = arith.constant 0.707106769 : f32
    %360 = vector.broadcast %cst_132 : f32 to vector<96x192xf32>
    %361 = arith.mulf %357, %360 : vector<96x192xf32>
    %362 = math.absf %361 : vector<96x192xf32>
    %cst_133 = arith.constant 0.327591091 : f32
    %363 = vector.broadcast %cst_133 : f32 to vector<96x192xf32>
    %364 = arith.mulf %363, %362 : vector<96x192xf32>
    %cst_134 = arith.constant 1.000000e+00 : f32
    %365 = vector.broadcast %cst_134 : f32 to vector<96x192xf32>
    %366 = arith.addf %365, %364 : vector<96x192xf32>
    %cst_135 = arith.constant 1.000000e+00 : f32
    %367 = vector.broadcast %cst_135 : f32 to vector<96x192xf32>
    %368 = arith.divf %367, %366 : vector<96x192xf32>
    %cst_136 = arith.constant 1.06140542 : f32
    %369 = vector.broadcast %cst_136 : f32 to vector<96x192xf32>
    %370 = arith.mulf %369, %368 : vector<96x192xf32>
    %cst_137 = arith.constant 1.45315206 : f32
    %371 = vector.broadcast %cst_137 : f32 to vector<96x192xf32>
    %372 = arith.subf %370, %371 : vector<96x192xf32>
    %373 = arith.mulf %372, %368 : vector<96x192xf32>
    %cst_138 = arith.constant 1.42141378 : f32
    %374 = vector.broadcast %cst_138 : f32 to vector<96x192xf32>
    %375 = arith.addf %373, %374 : vector<96x192xf32>
    %376 = arith.mulf %375, %368 : vector<96x192xf32>
    %cst_139 = arith.constant 0.284496725 : f32
    %377 = vector.broadcast %cst_139 : f32 to vector<96x192xf32>
    %378 = arith.subf %376, %377 : vector<96x192xf32>
    %379 = arith.mulf %378, %368 : vector<96x192xf32>
    %cst_140 = arith.constant 0.254829586 : f32
    %380 = vector.broadcast %cst_140 : f32 to vector<96x192xf32>
    %381 = arith.addf %379, %380 : vector<96x192xf32>
    %382 = arith.mulf %381, %368 : vector<96x192xf32>
    %cst_141 = arith.constant 0.000000e+00 : f32
    %383 = vector.broadcast %cst_141 : f32 to vector<96x192xf32>
    %384 = arith.subf %383, %361 : vector<96x192xf32>
    %385 = arith.mulf %384, %361 : vector<96x192xf32>
    %386 = math.exp %385 : vector<96x192xf32>
    %387 = arith.mulf %382, %386 : vector<96x192xf32>
    %cst_142 = arith.constant 1.000000e+00 : f32
    %388 = vector.broadcast %cst_142 : f32 to vector<96x192xf32>
    %389 = arith.subf %388, %387 : vector<96x192xf32>
    %cst_143 = arith.constant 0.000000e+00 : f32
    %390 = vector.broadcast %cst_143 : f32 to vector<96x192xf32>
    %391 = arith.cmpf oge, %361, %390 : vector<96x192xf32>
    %cst_144 = arith.constant 0.000000e+00 : f32
    %392 = vector.broadcast %cst_144 : f32 to vector<96x192xf32>
    %393 = arith.subf %392, %389 : vector<96x192xf32>
    %394 = arith.select %391, %389, %393 : vector<96x192xi1>, vector<96x192xf32>
    %cst_145 = arith.constant 1.000000e+00 : f32
    %395 = vector.broadcast %cst_145 : f32 to vector<96x192xf32>
    %396 = arith.addf %395, %394 : vector<96x192xf32>
    %397 = arith.mulf %359, %396 : vector<96x192xf32>
    %398 = arith.truncf %397 : vector<96x192xf32> to vector<96x192xbf16>
    %cst_146 = arith.constant dense<0.000000e+00> : vector<96x96xf32>
    %399 = tpu.matmul %398, %33, %cst_146 {dimension_numbers = #tpu.dot_dimension_numbers<[1], [0], [0], [1], [0, 0, 1, 1], [], []>} : vector<96x192xbf16>, vector<192x96xbf16>, vector<96x96xf32> -> vector<96x96xf32>
    %400 = vector.broadcast %35 : vector<1x96xf32> to vector<96x96xf32>
    %401 = arith.addf %399, %400 : vector<96x96xf32>
    %402 = arith.addf %333, %401 : vector<96x96xf32>
    %c0_147 = arith.constant 0 : index
    %c0_148 = arith.constant 0 : index
    %403 = vector.load %arg20[%c0_147, %c0_148] : memref<96x96xf32, #tpu.memory_space<vmem>>, vector<96x96xf32>
    tpu.vector_store %arg20[%c0_147, %c0_148], %402 {strides = array<i32>} : memref<96x96xf32, #tpu.memory_space<vmem>>, vector<96x96xf32>,
    return
  }
  func.func @transform_0(%arg0: i32) -> (i32, i32) {
    %c0_i32 = arith.constant 0 : i32
    %c0_i32_0 = arith.constant 0 : i32
    %c0_i32_1 = arith.constant 0 : i32
    return %c0_i32, %c0_i32_0 : i32, i32
  }
  func.func @transform_1(%arg0: i32) -> (i32, i32) {
    %c0_i32 = arith.constant 0 : i32
    %c0_i32_0 = arith.constant 0 : i32
    %c0_i32_1 = arith.constant 0 : i32
    return %c0_i32, %c0_i32_0 : i32, i32
  }
  func.func @transform_2(%arg0: i32) -> (i32, i32) {
    %c0_i32 = arith.constant 0 : i32
    %c0_i32_0 = arith.constant 0 : i32
    %c0_i32_1 = arith.constant 0 : i32
    return %c0_i32, %c0_i32_0 : i32, i32
  }
  func.func @transform_3(%arg0: i32) -> (i32, i32, i32) {
    %c0_i32 = arith.constant 0 : i32
    %c0_i32_0 = arith.constant 0 : i32
    %c0_i32_1 = arith.constant 0 : i32
    return %arg0, %c0_i32, %c0_i32_0 : i32, i32, i32
  }
  func.func @transform_4(%arg0: i32) -> (i32, i32, i32) {
    %c0_i32 = arith.constant 0 : i32
    %c0_i32_0 = arith.constant 0 : i32
    %c0_i32_1 = arith.constant 0 : i32
    return %arg0, %c0_i32, %c0_i32_0 : i32, i32, i32
  }
  func.func @transform_5(%arg0: i32) -> (i32, i32, i32) {
    %c0_i32 = arith.constant 0 : i32
    %c0_i32_0 = arith.constant 0 : i32
    %c0_i32_1 = arith.constant 0 : i32
    return %arg0, %c0_i32, %c0_i32_0 : i32, i32, i32
  }
  func.func @transform_6(%arg0: i32) -> (i32, i32, i32) {
    %c0_i32 = arith.constant 0 : i32
    %c0_i32_0 = arith.constant 0 : i32
    %c0_i32_1 = arith.constant 0 : i32
    return %arg0, %c0_i32, %c0_i32_0 : i32, i32, i32
  }
  func.func @transform_7(%arg0: i32) -> (i32, i32, i32) {
    %c0_i32 = arith.constant 0 : i32
    %c0_i32_0 = arith.constant 0 : i32
    %c0_i32_1 = arith.constant 0 : i32
    return %arg0, %c0_i32, %c0_i32_0 : i32, i32, i32
  }
  func.func @transform_8(%arg0: i32) -> (i32, i32, i32) {
    %c0_i32 = arith.constant 0 : i32
    %c0_i32_0 = arith.constant 0 : i32
    %c0_i32_1 = arith.constant 0 : i32
    return %arg0, %c0_i32, %c0_i32_0 : i32, i32, i32
  }
  func.func @transform_9(%arg0: i32) -> (i32, i32, i32) {
    %c0_i32 = arith.constant 0 : i32
    %c0_i32_0 = arith.constant 0 : i32
    %c0_i32_1 = arith.constant 0 : i32
    return %arg0, %c0_i32, %c0_i32_0 : i32, i32, i32
  }
  func.func @transform_10(%arg0: i32) -> (i32, i32, i32) {
    %c0_i32 = arith.constant 0 : i32
    %c0_i32_0 = arith.constant 0 : i32
    %c0_i32_1 = arith.constant 0 : i32
    return %arg0, %c0_i32, %c0_i32_0 : i32, i32, i32
  }
  func.func @transform_11(%arg0: i32) -> (i32, i32, i32) {
    %c0_i32 = arith.constant 0 : i32
    %c0_i32_0 = arith.constant 0 : i32
    %c0_i32_1 = arith.constant 0 : i32
    return %arg0, %c0_i32, %c0_i32_0 : i32, i32, i32
  }
  func.func @transform_12(%arg0: i32) -> (i32, i32, i32) {
    %c0_i32 = arith.constant 0 : i32
    %c0_i32_0 = arith.constant 0 : i32
    %c0_i32_1 = arith.constant 0 : i32
    return %arg0, %c0_i32, %c0_i32_0 : i32, i32, i32
  }
  func.func @transform_13(%arg0: i32) -> (i32, i32, i32) {
    %c0_i32 = arith.constant 0 : i32
    %c0_i32_0 = arith.constant 0 : i32
    %c0_i32_1 = arith.constant 0 : i32
    return %arg0, %c0_i32, %c0_i32_0 : i32, i32, i32
  }
  func.func @transform_14(%arg0: i32) -> (i32, i32, i32) {
    %c0_i32 = arith.constant 0 : i32
    %c0_i32_0 = arith.constant 0 : i32
    %c0_i32_1 = arith.constant 0 : i32
    return %arg0, %c0_i32, %c0_i32_0 : i32, i32, i32
  }
  func.func @transform_15(%arg0: i32) -> (i32, i32, i32) {
    %c0_i32 = arith.constant 0 : i32
    %c0_i32_0 = arith.constant 0 : i32
    %c0_i32_1 = arith.constant 0 : i32
    return %arg0, %c0_i32, %c0_i32_0 : i32, i32, i32
  }
  func.func @transform_16(%arg0: i32) -> (i32, i32, i32) {
    %c0_i32 = arith.constant 0 : i32
    %c0_i32_0 = arith.constant 0 : i32
    %c0_i32_1 = arith.constant 0 : i32
    return %arg0, %c0_i32, %c0_i32_0 : i32, i32, i32
  }
  func.func @transform_17(%arg0: i32) -> (i32, i32, i32) {
    %c0_i32 = arith.constant 0 : i32
    %c0_i32_0 = arith.constant 0 : i32
    %c0_i32_1 = arith.constant 0 : i32
    return %arg0, %c0_i32, %c0_i32_0 : i32, i32, i32
  }
  func.func @transform_18(%arg0: i32) -> (i32, i32, i32) {
    %c0_i32 = arith.constant 0 : i32
    %c0_i32_0 = arith.constant 0 : i32
    %c0_i32_1 = arith.constant 0 : i32
    return %arg0, %c0_i32, %c0_i32_0 : i32, i32, i32
  }
  func.func @transform_19(%arg0: i32) -> (i32, i32) {
    %c0_i32 = arith.constant 0 : i32
    %c0_i32_0 = arith.constant 0 : i32
    %c0_i32_1 = arith.constant 0 : i32
    return %c0_i32, %c0_i32_0 : i32, i32
  }
}

module attributes {stable_mosaic.version = 11 : i64} {
  func.func @_tr1_heads_kernel(%arg0: i32, %arg1: memref<96x96xf32, #tpu.memory_space<vmem>>, %arg2: memref<4x96xf32, #tpu.memory_space<vmem>>, %arg3: memref<1x1x96xf32, #tpu.memory_space<vmem>>, %arg4: memref<1x1x96xf32, #tpu.memory_space<vmem>>, %arg5: memref<1x96x96xbf16, #tpu.memory_space<vmem>>, %arg6: memref<1x1x96xf32, #tpu.memory_space<vmem>>, %arg7: memref<1x96x96xbf16, #tpu.memory_space<vmem>>, %arg8: memref<1x1x96xf32, #tpu.memory_space<vmem>>, %arg9: memref<1x96x96xbf16, #tpu.memory_space<vmem>>, %arg10: memref<1x1x96xf32, #tpu.memory_space<vmem>>, %arg11: memref<1x96x96xbf16, #tpu.memory_space<vmem>>, %arg12: memref<1x1x96xf32, #tpu.memory_space<vmem>>, %arg13: memref<1x1x96xf32, #tpu.memory_space<vmem>>, %arg14: memref<1x1x96xf32, #tpu.memory_space<vmem>>, %arg15: memref<1x96x192xbf16, #tpu.memory_space<vmem>>, %arg16: memref<1x1x192xf32, #tpu.memory_space<vmem>>, %arg17: memref<1x192x96xbf16, #tpu.memory_space<vmem>>, %arg18: memref<1x1x96xf32, #tpu.memory_space<vmem>>, %arg19: memref<3x1x96xf32, #tpu.memory_space<vmem>>, %arg20: memref<3x1x96xf32, #tpu.memory_space<vmem>>, %arg21: memref<3x96x128xbf16, #tpu.memory_space<vmem>>, %arg22: memref<3x1x128xf32, #tpu.memory_space<vmem>>, %arg23: memref<6x128xf32, #tpu.memory_space<vmem>>, %arg24: memref<96x96xf32, #tpu.memory_space<vmem>>) attributes {dimension_semantics = [#tpu.dimension_semantics<arbitrary>], iteration_bounds = array<i64: 1>, scalar_prefetch = 0 : i64, scratch_operands = 1 : i64, tpu.core_type = #tpu.core_type<tc>, window_params = [{pipeline_mode = #tpu.pipeline_mode<synchronous>, transform_indices = @transform_0, window_bounds = array<i64: 96, 96>}, {pipeline_mode = #tpu.pipeline_mode<synchronous>, transform_indices = @transform_1, window_bounds = array<i64: 4, 96>}, {transform_indices = @transform_2, window_bounds = array<i64: 1, 1, 96>}, {transform_indices = @transform_3, window_bounds = array<i64: 1, 1, 96>}, {transform_indices = @transform_4, window_bounds = array<i64: 1, 96, 96>}, {transform_indices = @transform_5, window_bounds = array<i64: 1, 1, 96>}, {transform_indices = @transform_6, window_bounds = array<i64: 1, 96, 96>}, {transform_indices = @transform_7, window_bounds = array<i64: 1, 1, 96>}, {transform_indices = @transform_8, window_bounds = array<i64: 1, 96, 96>}, {transform_indices = @transform_9, window_bounds = array<i64: 1, 1, 96>}, {transform_indices = @transform_10, window_bounds = array<i64: 1, 96, 96>}, {transform_indices = @transform_11, window_bounds = array<i64: 1, 1, 96>}, {transform_indices = @transform_12, window_bounds = array<i64: 1, 1, 96>}, {transform_indices = @transform_13, window_bounds = array<i64: 1, 1, 96>}, {transform_indices = @transform_14, window_bounds = array<i64: 1, 96, 192>}, {transform_indices = @transform_15, window_bounds = array<i64: 1, 1, 192>}, {transform_indices = @transform_16, window_bounds = array<i64: 1, 192, 96>}, {transform_indices = @transform_17, window_bounds = array<i64: 1, 1, 96>}, {pipeline_mode = #tpu.pipeline_mode<synchronous>, transform_indices = @transform_18, window_bounds = array<i64: 3, 1, 96>}, {pipeline_mode = #tpu.pipeline_mode<synchronous>, transform_indices = @transform_19, window_bounds = array<i64: 3, 1, 96>}, {pipeline_mode = #tpu.pipeline_mode<synchronous>, transform_indices = @transform_20, window_bounds = array<i64: 3, 96, 128>}, {pipeline_mode = #tpu.pipeline_mode<synchronous>, transform_indices = @transform_21, window_bounds = array<i64: 3, 1, 128>}, {pipeline_mode = #tpu.pipeline_mode<synchronous>, transform_indices = @transform_22, window_bounds = array<i64: 6, 128>}]} {
    %c0_i32 = arith.constant 0 : i32
    %0 = arith.cmpi eq, %arg0, %c0_i32 : i32
    %1 = arith.extui %0 : i1 to i32
    %c0_i32_0 = arith.constant 0 : i32
    %2 = arith.cmpi ne, %1, %c0_i32_0 : i32
    scf.if %2 {
      %c0_121 = arith.constant 0 : index
      %c0_122 = arith.constant 0 : index
      %285 = vector.load %arg1[%c0_121, %c0_122] : memref<96x96xf32, #tpu.memory_space<vmem>>, vector<96x96xf32>
      %c0_123 = arith.constant 0 : index
      %c0_124 = arith.constant 0 : index
      %286 = vector.load %arg24[%c0_123, %c0_124] : memref<96x96xf32, #tpu.memory_space<vmem>>, vector<96x96xf32>
      tpu.vector_store %arg24[%c0_123, %c0_124], %285 {strides = array<i32>} : memref<96x96xf32, #tpu.memory_space<vmem>>, vector<96x96xf32>,
    } else {
    }
    %c0 = arith.constant 0 : index
    %c0_1 = arith.constant 0 : index
    %3 = vector.load %arg24[%c0, %c0_1] : memref<96x96xf32, #tpu.memory_space<vmem>>, vector<96x96xf32>
    %c0_2 = arith.constant 0 : index
    %c0_3 = arith.constant 0 : index
    %c0_4 = arith.constant 0 : index
    %4 = vector.load %arg3[%c0_2, %c0_3, %c0_4] : memref<1x1x96xf32, #tpu.memory_space<vmem>>, vector<1x1x96xf32>
    %5 = vector.shape_cast %4 : vector<1x1x96xf32> to vector<1x96xf32>
    %c0_5 = arith.constant 0 : index
    %c0_6 = arith.constant 0 : index
    %c0_7 = arith.constant 0 : index
    %6 = vector.load %arg4[%c0_5, %c0_6, %c0_7] : memref<1x1x96xf32, #tpu.memory_space<vmem>>, vector<1x1x96xf32>
    %7 = vector.shape_cast %6 : vector<1x1x96xf32> to vector<1x96xf32>
    %c0_8 = arith.constant 0 : index
    %c0_9 = arith.constant 0 : index
    %c0_10 = arith.constant 0 : index
    %8 = vector.load %arg5[%c0_8, %c0_9, %c0_10] : memref<1x96x96xbf16, #tpu.memory_space<vmem>>, vector<1x96x96xbf16>
    %9 = vector.shape_cast %8 : vector<1x96x96xbf16> to vector<96x96xbf16>
    %c0_11 = arith.constant 0 : index
    %c0_12 = arith.constant 0 : index
    %c0_13 = arith.constant 0 : index
    %10 = vector.load %arg6[%c0_11, %c0_12, %c0_13] : memref<1x1x96xf32, #tpu.memory_space<vmem>>, vector<1x1x96xf32>
    %11 = vector.shape_cast %10 : vector<1x1x96xf32> to vector<1x96xf32>
    %c0_14 = arith.constant 0 : index
    %c0_15 = arith.constant 0 : index
    %c0_16 = arith.constant 0 : index
    %12 = vector.load %arg7[%c0_14, %c0_15, %c0_16] : memref<1x96x96xbf16, #tpu.memory_space<vmem>>, vector<1x96x96xbf16>
    %13 = vector.shape_cast %12 : vector<1x96x96xbf16> to vector<96x96xbf16>
    %c0_17 = arith.constant 0 : index
    %c0_18 = arith.constant 0 : index
    %c0_19 = arith.constant 0 : index
    %14 = vector.load %arg8[%c0_17, %c0_18, %c0_19] : memref<1x1x96xf32, #tpu.memory_space<vmem>>, vector<1x1x96xf32>
    %15 = vector.shape_cast %14 : vector<1x1x96xf32> to vector<1x96xf32>
    %c0_20 = arith.constant 0 : index
    %c0_21 = arith.constant 0 : index
    %c0_22 = arith.constant 0 : index
    %16 = vector.load %arg9[%c0_20, %c0_21, %c0_22] : memref<1x96x96xbf16, #tpu.memory_space<vmem>>, vector<1x96x96xbf16>
    %17 = vector.shape_cast %16 : vector<1x96x96xbf16> to vector<96x96xbf16>
    %c0_23 = arith.constant 0 : index
    %c0_24 = arith.constant 0 : index
    %c0_25 = arith.constant 0 : index
    %18 = vector.load %arg10[%c0_23, %c0_24, %c0_25] : memref<1x1x96xf32, #tpu.memory_space<vmem>>, vector<1x1x96xf32>
    %19 = vector.shape_cast %18 : vector<1x1x96xf32> to vector<1x96xf32>
    %c0_26 = arith.constant 0 : index
    %c0_27 = arith.constant 0 : index
    %c0_28 = arith.constant 0 : index
    %20 = vector.load %arg11[%c0_26, %c0_27, %c0_28] : memref<1x96x96xbf16, #tpu.memory_space<vmem>>, vector<1x96x96xbf16>
    %21 = vector.shape_cast %20 : vector<1x96x96xbf16> to vector<96x96xbf16>
    %c0_29 = arith.constant 0 : index
    %c0_30 = arith.constant 0 : index
    %c0_31 = arith.constant 0 : index
    %22 = vector.load %arg12[%c0_29, %c0_30, %c0_31] : memref<1x1x96xf32, #tpu.memory_space<vmem>>, vector<1x1x96xf32>
    %23 = vector.shape_cast %22 : vector<1x1x96xf32> to vector<1x96xf32>
    %c0_32 = arith.constant 0 : index
    %c0_33 = arith.constant 0 : index
    %c0_34 = arith.constant 0 : index
    %24 = vector.load %arg13[%c0_32, %c0_33, %c0_34] : memref<1x1x96xf32, #tpu.memory_space<vmem>>, vector<1x1x96xf32>
    %25 = vector.shape_cast %24 : vector<1x1x96xf32> to vector<1x96xf32>
    %c0_35 = arith.constant 0 : index
    %c0_36 = arith.constant 0 : index
    %c0_37 = arith.constant 0 : index
    %26 = vector.load %arg14[%c0_35, %c0_36, %c0_37] : memref<1x1x96xf32, #tpu.memory_space<vmem>>, vector<1x1x96xf32>
    %27 = vector.shape_cast %26 : vector<1x1x96xf32> to vector<1x96xf32>
    %c0_38 = arith.constant 0 : index
    %c0_39 = arith.constant 0 : index
    %c0_40 = arith.constant 0 : index
    %28 = vector.load %arg15[%c0_38, %c0_39, %c0_40] : memref<1x96x192xbf16, #tpu.memory_space<vmem>>, vector<1x96x192xbf16>
    %29 = vector.shape_cast %28 : vector<1x96x192xbf16> to vector<96x192xbf16>
    %c0_41 = arith.constant 0 : index
    %c0_42 = arith.constant 0 : index
    %c0_43 = arith.constant 0 : index
    %30 = vector.load %arg16[%c0_41, %c0_42, %c0_43] : memref<1x1x192xf32, #tpu.memory_space<vmem>>, vector<1x1x192xf32>
    %31 = vector.shape_cast %30 : vector<1x1x192xf32> to vector<1x192xf32>
    %c0_44 = arith.constant 0 : index
    %c0_45 = arith.constant 0 : index
    %c0_46 = arith.constant 0 : index
    %32 = vector.load %arg17[%c0_44, %c0_45, %c0_46] : memref<1x192x96xbf16, #tpu.memory_space<vmem>>, vector<1x192x96xbf16>
    %33 = vector.shape_cast %32 : vector<1x192x96xbf16> to vector<192x96xbf16>
    %c0_47 = arith.constant 0 : index
    %c0_48 = arith.constant 0 : index
    %c0_49 = arith.constant 0 : index
    %34 = vector.load %arg18[%c0_47, %c0_48, %c0_49] : memref<1x1x96xf32, #tpu.memory_space<vmem>>, vector<1x1x96xf32>
    %35 = vector.shape_cast %34 : vector<1x1x96xf32> to vector<1x96xf32>
    %cst = arith.constant dense<0.000000e+00> : vector<96xf32>
    %36 = vector.multi_reduction <add>, %3, %cst [1] : vector<96x96xf32> to vector<96xf32>
    %37 = vector.shape_cast %36 : vector<96xf32> to vector<96x1xf32>
    %cst_50 = arith.constant 9.600000e+01 : f32
    %38 = vector.broadcast %cst_50 : f32 to vector<96x1xf32>
    %39 = arith.divf %37, %38 : vector<96x1xf32>
    %40 = vector.broadcast %39 : vector<96x1xf32> to vector<96x96xf32>
    %41 = arith.subf %3, %40 : vector<96x96xf32>
    %42 = arith.mulf %41, %41 : vector<96x96xf32>
    %cst_51 = arith.constant dense<0.000000e+00> : vector<96xf32>
    %43 = vector.multi_reduction <add>, %42, %cst_51 [1] : vector<96x96xf32> to vector<96xf32>
    %44 = vector.shape_cast %43 : vector<96xf32> to vector<96x1xf32>
    %cst_52 = arith.constant 9.600000e+01 : f32
    %45 = vector.broadcast %cst_52 : f32 to vector<96x1xf32>
    %46 = arith.divf %44, %45 : vector<96x1xf32>
    %cst_53 = arith.constant 9.99999974E-6 : f32
    %47 = vector.broadcast %cst_53 : f32 to vector<96x1xf32>
    %48 = arith.addf %46, %47 : vector<96x1xf32>
    %49 = math.rsqrt %48 : vector<96x1xf32>
    %50 = vector.broadcast %49 : vector<96x1xf32> to vector<96x96xf32>
    %51 = arith.mulf %41, %50 : vector<96x96xf32>
    %52 = vector.broadcast %5 : vector<1x96xf32> to vector<96x96xf32>
    %53 = arith.mulf %51, %52 : vector<96x96xf32>
    %54 = vector.broadcast %7 : vector<1x96xf32> to vector<96x96xf32>
    %55 = arith.addf %53, %54 : vector<96x96xf32>
    %56 = arith.truncf %55 : vector<96x96xf32> to vector<96x96xbf16>
    %cst_54 = arith.constant dense<0.000000e+00> : vector<96x96xf32>
    %57 = tpu.matmul %56, %9, %cst_54 {dimension_numbers = #tpu.dot_dimension_numbers<[1], [0], [0], [1], [0, 0, 1, 1], [], []>} : vector<96x96xbf16>, vector<96x96xbf16>, vector<96x96xf32> -> vector<96x96xf32>
    %58 = vector.broadcast %11 : vector<1x96xf32> to vector<96x96xf32>
    %59 = arith.addf %57, %58 : vector<96x96xf32>
    %cst_55 = arith.constant dense<0.000000e+00> : vector<96x96xf32>
    %60 = tpu.matmul %56, %13, %cst_55 {dimension_numbers = #tpu.dot_dimension_numbers<[1], [0], [0], [1], [0, 0, 1, 1], [], []>} : vector<96x96xbf16>, vector<96x96xbf16>, vector<96x96xf32> -> vector<96x96xf32>
    %61 = vector.broadcast %15 : vector<1x96xf32> to vector<96x96xf32>
    %62 = arith.addf %60, %61 : vector<96x96xf32>
    %cst_56 = arith.constant dense<0.000000e+00> : vector<96x96xf32>
    %63 = tpu.matmul %56, %17, %cst_56 {dimension_numbers = #tpu.dot_dimension_numbers<[1], [0], [0], [1], [0, 0, 1, 1], [], []>} : vector<96x96xbf16>, vector<96x96xbf16>, vector<96x96xf32> -> vector<96x96xf32>
    %64 = vector.broadcast %19 : vector<1x96xf32> to vector<96x96xf32>
    %65 = arith.addf %63, %64 : vector<96x96xf32>
    %66 = vector.extract_strided_slice %59 {offsets = [0, 0], sizes = [48, 96], strides = [1, 1]} : vector<96x96xf32> to vector<48x96xf32>
    %67 = arith.truncf %66 : vector<48x96xf32> to vector<48x96xbf16>
    %68 = vector.extract_strided_slice %62 {offsets = [0, 0], sizes = [48, 96], strides = [1, 1]} : vector<96x96xf32> to vector<48x96xf32>
    %69 = arith.truncf %68 : vector<48x96xf32> to vector<48x96xbf16>
    %70 = vector.extract_strided_slice %65 {offsets = [0, 0], sizes = [48, 96], strides = [1, 1]} : vector<96x96xf32> to vector<48x96xf32>
    %71 = arith.truncf %70 : vector<48x96xf32> to vector<48x96xbf16>
    %72 = tpu.iota {dimensions = array<i32: 1>} : vector<48x48xi32>
    %c41_i32 = arith.constant 41 : i32
    %73 = vector.broadcast %c41_i32 : i32 to vector<48x48xi32>
    %74 = arith.cmpi slt, %72, %73 : vector<48x48xi32>
    %75 = vector.extract_strided_slice %67 {offsets = [0, 0], sizes = [48, 32], strides = [1, 1]} : vector<48x96xbf16> to vector<48x32xbf16>
    %76 = vector.extract_strided_slice %69 {offsets = [0, 0], sizes = [48, 32], strides = [1, 1]} : vector<48x96xbf16> to vector<48x32xbf16>
    %77 = vector.extract_strided_slice %71 {offsets = [0, 0], sizes = [48, 32], strides = [1, 1]} : vector<48x96xbf16> to vector<48x32xbf16>
    %cst_57 = arith.constant dense<0.000000e+00> : vector<48x48xf32>
    %78 = tpu.matmul %75, %76, %cst_57 {dimension_numbers = #tpu.dot_dimension_numbers<[1], [1], [0], [0], [0, 0, 1, 0], [], []>} : vector<48x32xbf16>, vector<48x32xbf16>, vector<48x48xf32> -> vector<48x48xf32>
    %cst_58 = arith.constant -1.000000e+30 : f32
    %79 = vector.broadcast %cst_58 : f32 to vector<48x48xf32>
    %80 = arith.select %74, %78, %79 : vector<48x48xi1>, vector<48x48xf32>
    %cst_59 = arith.constant dense<0xFF800000> : vector<48xf32>
    %81 = vector.multi_reduction <maximumf>, %80, %cst_59 [1] : vector<48x48xf32> to vector<48xf32>
    %82 = vector.shape_cast %81 : vector<48xf32> to vector<48x1xf32>
    %83 = vector.broadcast %82 : vector<48x1xf32> to vector<48x48xf32>
    %84 = arith.subf %80, %83 : vector<48x48xf32>
    %85 = math.exp %84 : vector<48x48xf32>
    %cst_60 = arith.constant dense<0.000000e+00> : vector<48xf32>
    %86 = vector.multi_reduction <add>, %85, %cst_60 [1] : vector<48x48xf32> to vector<48xf32>
    %87 = vector.shape_cast %86 : vector<48xf32> to vector<48x1xf32>
    %cst_61 = arith.constant 9.79795932 : f32
    %88 = vector.broadcast %cst_61 : f32 to vector<48x1xf32>
    %89 = arith.mulf %87, %88 : vector<48x1xf32>
    %90 = tpu.reciprocal %89 {approx = true} : vector<48x1xf32> -> vector<48x1xf32>
    %91 = vector.broadcast %90 : vector<48x1xf32> to vector<48x48xf32>
    %92 = arith.mulf %85, %91 : vector<48x48xf32>
    %93 = arith.truncf %92 : vector<48x48xf32> to vector<48x48xbf16>
    %cst_62 = arith.constant dense<0.000000e+00> : vector<48x32xf32>
    %94 = tpu.matmul %93, %77, %cst_62 {dimension_numbers = #tpu.dot_dimension_numbers<[1], [0], [0], [1], [0, 0, 1, 1], [], []>} : vector<48x48xbf16>, vector<48x32xbf16>, vector<48x32xf32> -> vector<48x32xf32>
    %95 = vector.extract_strided_slice %67 {offsets = [0, 32], sizes = [48, 32], strides = [1, 1]} : vector<48x96xbf16> to vector<48x32xbf16>
    %96 = vector.extract_strided_slice %69 {offsets = [0, 32], sizes = [48, 32], strides = [1, 1]} : vector<48x96xbf16> to vector<48x32xbf16>
    %97 = vector.extract_strided_slice %71 {offsets = [0, 32], sizes = [48, 32], strides = [1, 1]} : vector<48x96xbf16> to vector<48x32xbf16>
    %cst_63 = arith.constant dense<0.000000e+00> : vector<48x48xf32>
    %98 = tpu.matmul %95, %96, %cst_63 {dimension_numbers = #tpu.dot_dimension_numbers<[1], [1], [0], [0], [0, 0, 1, 0], [], []>} : vector<48x32xbf16>, vector<48x32xbf16>, vector<48x48xf32> -> vector<48x48xf32>
    %cst_64 = arith.constant -1.000000e+30 : f32
    %99 = vector.broadcast %cst_64 : f32 to vector<48x48xf32>
    %100 = arith.select %74, %98, %99 : vector<48x48xi1>, vector<48x48xf32>
    %cst_65 = arith.constant dense<0xFF800000> : vector<48xf32>
    %101 = vector.multi_reduction <maximumf>, %100, %cst_65 [1] : vector<48x48xf32> to vector<48xf32>
    %102 = vector.shape_cast %101 : vector<48xf32> to vector<48x1xf32>
    %103 = vector.broadcast %102 : vector<48x1xf32> to vector<48x48xf32>
    %104 = arith.subf %100, %103 : vector<48x48xf32>
    %105 = math.exp %104 : vector<48x48xf32>
    %cst_66 = arith.constant dense<0.000000e+00> : vector<48xf32>
    %106 = vector.multi_reduction <add>, %105, %cst_66 [1] : vector<48x48xf32> to vector<48xf32>
    %107 = vector.shape_cast %106 : vector<48xf32> to vector<48x1xf32>
    %cst_67 = arith.constant 9.79795932 : f32
    %108 = vector.broadcast %cst_67 : f32 to vector<48x1xf32>
    %109 = arith.mulf %107, %108 : vector<48x1xf32>
    %110 = tpu.reciprocal %109 {approx = true} : vector<48x1xf32> -> vector<48x1xf32>
    %111 = vector.broadcast %110 : vector<48x1xf32> to vector<48x48xf32>
    %112 = arith.mulf %105, %111 : vector<48x48xf32>
    %113 = arith.truncf %112 : vector<48x48xf32> to vector<48x48xbf16>
    %cst_68 = arith.constant dense<0.000000e+00> : vector<48x32xf32>
    %114 = tpu.matmul %113, %97, %cst_68 {dimension_numbers = #tpu.dot_dimension_numbers<[1], [0], [0], [1], [0, 0, 1, 1], [], []>} : vector<48x48xbf16>, vector<48x32xbf16>, vector<48x32xf32> -> vector<48x32xf32>
    %115 = vector.extract_strided_slice %67 {offsets = [0, 64], sizes = [48, 32], strides = [1, 1]} : vector<48x96xbf16> to vector<48x32xbf16>
    %116 = vector.extract_strided_slice %69 {offsets = [0, 64], sizes = [48, 32], strides = [1, 1]} : vector<48x96xbf16> to vector<48x32xbf16>
    %117 = vector.extract_strided_slice %71 {offsets = [0, 64], sizes = [48, 32], strides = [1, 1]} : vector<48x96xbf16> to vector<48x32xbf16>
    %cst_69 = arith.constant dense<0.000000e+00> : vector<48x48xf32>
    %118 = tpu.matmul %115, %116, %cst_69 {dimension_numbers = #tpu.dot_dimension_numbers<[1], [1], [0], [0], [0, 0, 1, 0], [], []>} : vector<48x32xbf16>, vector<48x32xbf16>, vector<48x48xf32> -> vector<48x48xf32>
    %cst_70 = arith.constant -1.000000e+30 : f32
    %119 = vector.broadcast %cst_70 : f32 to vector<48x48xf32>
    %120 = arith.select %74, %118, %119 : vector<48x48xi1>, vector<48x48xf32>
    %cst_71 = arith.constant dense<0xFF800000> : vector<48xf32>
    %121 = vector.multi_reduction <maximumf>, %120, %cst_71 [1] : vector<48x48xf32> to vector<48xf32>
    %122 = vector.shape_cast %121 : vector<48xf32> to vector<48x1xf32>
    %123 = vector.broadcast %122 : vector<48x1xf32> to vector<48x48xf32>
    %124 = arith.subf %120, %123 : vector<48x48xf32>
    %125 = math.exp %124 : vector<48x48xf32>
    %cst_72 = arith.constant dense<0.000000e+00> : vector<48xf32>
    %126 = vector.multi_reduction <add>, %125, %cst_72 [1] : vector<48x48xf32> to vector<48xf32>
    %127 = vector.shape_cast %126 : vector<48xf32> to vector<48x1xf32>
    %cst_73 = arith.constant 9.79795932 : f32
    %128 = vector.broadcast %cst_73 : f32 to vector<48x1xf32>
    %129 = arith.mulf %127, %128 : vector<48x1xf32>
    %130 = tpu.reciprocal %129 {approx = true} : vector<48x1xf32> -> vector<48x1xf32>
    %131 = vector.broadcast %130 : vector<48x1xf32> to vector<48x48xf32>
    %132 = arith.mulf %125, %131 : vector<48x48xf32>
    %133 = arith.truncf %132 : vector<48x48xf32> to vector<48x48xbf16>
    %cst_74 = arith.constant dense<0.000000e+00> : vector<48x32xf32>
    %134 = tpu.matmul %133, %117, %cst_74 {dimension_numbers = #tpu.dot_dimension_numbers<[1], [0], [0], [1], [0, 0, 1, 1], [], []>} : vector<48x48xbf16>, vector<48x32xbf16>, vector<48x32xf32> -> vector<48x32xf32>
    %135 = tpu.concatenate %94, %114, %134 in 1 : vector<48x32xf32>, vector<48x32xf32>, vector<48x32xf32> -> vector<48x96xf32>
    %136 = vector.extract_strided_slice %59 {offsets = [48, 0], sizes = [48, 96], strides = [1, 1]} : vector<96x96xf32> to vector<48x96xf32>
    %137 = arith.truncf %136 : vector<48x96xf32> to vector<48x96xbf16>
    %138 = vector.extract_strided_slice %62 {offsets = [48, 0], sizes = [48, 96], strides = [1, 1]} : vector<96x96xf32> to vector<48x96xf32>
    %139 = arith.truncf %138 : vector<48x96xf32> to vector<48x96xbf16>
    %140 = vector.extract_strided_slice %65 {offsets = [48, 0], sizes = [48, 96], strides = [1, 1]} : vector<96x96xf32> to vector<48x96xf32>
    %141 = arith.truncf %140 : vector<48x96xf32> to vector<48x96xbf16>
    %142 = tpu.iota {dimensions = array<i32: 1>} : vector<48x48xi32>
    %c41_i32_75 = arith.constant 41 : i32
    %143 = vector.broadcast %c41_i32_75 : i32 to vector<48x48xi32>
    %144 = arith.cmpi slt, %142, %143 : vector<48x48xi32>
    %145 = vector.extract_strided_slice %137 {offsets = [0, 0], sizes = [48, 32], strides = [1, 1]} : vector<48x96xbf16> to vector<48x32xbf16>
    %146 = vector.extract_strided_slice %139 {offsets = [0, 0], sizes = [48, 32], strides = [1, 1]} : vector<48x96xbf16> to vector<48x32xbf16>
    %147 = vector.extract_strided_slice %141 {offsets = [0, 0], sizes = [48, 32], strides = [1, 1]} : vector<48x96xbf16> to vector<48x32xbf16>
    %cst_76 = arith.constant dense<0.000000e+00> : vector<48x48xf32>
    %148 = tpu.matmul %145, %146, %cst_76 {dimension_numbers = #tpu.dot_dimension_numbers<[1], [1], [0], [0], [0, 0, 1, 0], [], []>} : vector<48x32xbf16>, vector<48x32xbf16>, vector<48x48xf32> -> vector<48x48xf32>
    %cst_77 = arith.constant -1.000000e+30 : f32
    %149 = vector.broadcast %cst_77 : f32 to vector<48x48xf32>
    %150 = arith.select %144, %148, %149 : vector<48x48xi1>, vector<48x48xf32>
    %cst_78 = arith.constant dense<0xFF800000> : vector<48xf32>
    %151 = vector.multi_reduction <maximumf>, %150, %cst_78 [1] : vector<48x48xf32> to vector<48xf32>
    %152 = vector.shape_cast %151 : vector<48xf32> to vector<48x1xf32>
    %153 = vector.broadcast %152 : vector<48x1xf32> to vector<48x48xf32>
    %154 = arith.subf %150, %153 : vector<48x48xf32>
    %155 = math.exp %154 : vector<48x48xf32>
    %cst_79 = arith.constant dense<0.000000e+00> : vector<48xf32>
    %156 = vector.multi_reduction <add>, %155, %cst_79 [1] : vector<48x48xf32> to vector<48xf32>
    %157 = vector.shape_cast %156 : vector<48xf32> to vector<48x1xf32>
    %cst_80 = arith.constant 9.79795932 : f32
    %158 = vector.broadcast %cst_80 : f32 to vector<48x1xf32>
    %159 = arith.mulf %157, %158 : vector<48x1xf32>
    %160 = tpu.reciprocal %159 {approx = true} : vector<48x1xf32> -> vector<48x1xf32>
    %161 = vector.broadcast %160 : vector<48x1xf32> to vector<48x48xf32>
    %162 = arith.mulf %155, %161 : vector<48x48xf32>
    %163 = arith.truncf %162 : vector<48x48xf32> to vector<48x48xbf16>
    %cst_81 = arith.constant dense<0.000000e+00> : vector<48x32xf32>
    %164 = tpu.matmul %163, %147, %cst_81 {dimension_numbers = #tpu.dot_dimension_numbers<[1], [0], [0], [1], [0, 0, 1, 1], [], []>} : vector<48x48xbf16>, vector<48x32xbf16>, vector<48x32xf32> -> vector<48x32xf32>
    %165 = vector.extract_strided_slice %137 {offsets = [0, 32], sizes = [48, 32], strides = [1, 1]} : vector<48x96xbf16> to vector<48x32xbf16>
    %166 = vector.extract_strided_slice %139 {offsets = [0, 32], sizes = [48, 32], strides = [1, 1]} : vector<48x96xbf16> to vector<48x32xbf16>
    %167 = vector.extract_strided_slice %141 {offsets = [0, 32], sizes = [48, 32], strides = [1, 1]} : vector<48x96xbf16> to vector<48x32xbf16>
    %cst_82 = arith.constant dense<0.000000e+00> : vector<48x48xf32>
    %168 = tpu.matmul %165, %166, %cst_82 {dimension_numbers = #tpu.dot_dimension_numbers<[1], [1], [0], [0], [0, 0, 1, 0], [], []>} : vector<48x32xbf16>, vector<48x32xbf16>, vector<48x48xf32> -> vector<48x48xf32>
    %cst_83 = arith.constant -1.000000e+30 : f32
    %169 = vector.broadcast %cst_83 : f32 to vector<48x48xf32>
    %170 = arith.select %144, %168, %169 : vector<48x48xi1>, vector<48x48xf32>
    %cst_84 = arith.constant dense<0xFF800000> : vector<48xf32>
    %171 = vector.multi_reduction <maximumf>, %170, %cst_84 [1] : vector<48x48xf32> to vector<48xf32>
    %172 = vector.shape_cast %171 : vector<48xf32> to vector<48x1xf32>
    %173 = vector.broadcast %172 : vector<48x1xf32> to vector<48x48xf32>
    %174 = arith.subf %170, %173 : vector<48x48xf32>
    %175 = math.exp %174 : vector<48x48xf32>
    %cst_85 = arith.constant dense<0.000000e+00> : vector<48xf32>
    %176 = vector.multi_reduction <add>, %175, %cst_85 [1] : vector<48x48xf32> to vector<48xf32>
    %177 = vector.shape_cast %176 : vector<48xf32> to vector<48x1xf32>
    %cst_86 = arith.constant 9.79795932 : f32
    %178 = vector.broadcast %cst_86 : f32 to vector<48x1xf32>
    %179 = arith.mulf %177, %178 : vector<48x1xf32>
    %180 = tpu.reciprocal %179 {approx = true} : vector<48x1xf32> -> vector<48x1xf32>
    %181 = vector.broadcast %180 : vector<48x1xf32> to vector<48x48xf32>
    %182 = arith.mulf %175, %181 : vector<48x48xf32>
    %183 = arith.truncf %182 : vector<48x48xf32> to vector<48x48xbf16>
    %cst_87 = arith.constant dense<0.000000e+00> : vector<48x32xf32>
    %184 = tpu.matmul %183, %167, %cst_87 {dimension_numbers = #tpu.dot_dimension_numbers<[1], [0], [0], [1], [0, 0, 1, 1], [], []>} : vector<48x48xbf16>, vector<48x32xbf16>, vector<48x32xf32> -> vector<48x32xf32>
    %185 = vector.extract_strided_slice %137 {offsets = [0, 64], sizes = [48, 32], strides = [1, 1]} : vector<48x96xbf16> to vector<48x32xbf16>
    %186 = vector.extract_strided_slice %139 {offsets = [0, 64], sizes = [48, 32], strides = [1, 1]} : vector<48x96xbf16> to vector<48x32xbf16>
    %187 = vector.extract_strided_slice %141 {offsets = [0, 64], sizes = [48, 32], strides = [1, 1]} : vector<48x96xbf16> to vector<48x32xbf16>
    %cst_88 = arith.constant dense<0.000000e+00> : vector<48x48xf32>
    %188 = tpu.matmul %185, %186, %cst_88 {dimension_numbers = #tpu.dot_dimension_numbers<[1], [1], [0], [0], [0, 0, 1, 0], [], []>} : vector<48x32xbf16>, vector<48x32xbf16>, vector<48x48xf32> -> vector<48x48xf32>
    %cst_89 = arith.constant -1.000000e+30 : f32
    %189 = vector.broadcast %cst_89 : f32 to vector<48x48xf32>
    %190 = arith.select %144, %188, %189 : vector<48x48xi1>, vector<48x48xf32>
    %cst_90 = arith.constant dense<0xFF800000> : vector<48xf32>
    %191 = vector.multi_reduction <maximumf>, %190, %cst_90 [1] : vector<48x48xf32> to vector<48xf32>
    %192 = vector.shape_cast %191 : vector<48xf32> to vector<48x1xf32>
    %193 = vector.broadcast %192 : vector<48x1xf32> to vector<48x48xf32>
    %194 = arith.subf %190, %193 : vector<48x48xf32>
    %195 = math.exp %194 : vector<48x48xf32>
    %cst_91 = arith.constant dense<0.000000e+00> : vector<48xf32>
    %196 = vector.multi_reduction <add>, %195, %cst_91 [1] : vector<48x48xf32> to vector<48xf32>
    %197 = vector.shape_cast %196 : vector<48xf32> to vector<48x1xf32>
    %cst_92 = arith.constant 9.79795932 : f32
    %198 = vector.broadcast %cst_92 : f32 to vector<48x1xf32>
    %199 = arith.mulf %197, %198 : vector<48x1xf32>
    %200 = tpu.reciprocal %199 {approx = true} : vector<48x1xf32> -> vector<48x1xf32>
    %201 = vector.broadcast %200 : vector<48x1xf32> to vector<48x48xf32>
    %202 = arith.mulf %195, %201 : vector<48x48xf32>
    %203 = arith.truncf %202 : vector<48x48xf32> to vector<48x48xbf16>
    %cst_93 = arith.constant dense<0.000000e+00> : vector<48x32xf32>
    %204 = tpu.matmul %203, %187, %cst_93 {dimension_numbers = #tpu.dot_dimension_numbers<[1], [0], [0], [1], [0, 0, 1, 1], [], []>} : vector<48x48xbf16>, vector<48x32xbf16>, vector<48x32xf32> -> vector<48x32xf32>
    %205 = tpu.concatenate %164, %184, %204 in 1 : vector<48x32xf32>, vector<48x32xf32>, vector<48x32xf32> -> vector<48x96xf32>
    %206 = tpu.concatenate %135, %205 in 0 : vector<48x96xf32>, vector<48x96xf32> -> vector<96x96xf32>
    %207 = arith.truncf %206 : vector<96x96xf32> to vector<96x96xbf16>
    %cst_94 = arith.constant dense<0.000000e+00> : vector<96x96xf32>
    %208 = tpu.matmul %207, %21, %cst_94 {dimension_numbers = #tpu.dot_dimension_numbers<[1], [0], [0], [1], [0, 0, 1, 1], [], []>} : vector<96x96xbf16>, vector<96x96xbf16>, vector<96x96xf32> -> vector<96x96xf32>
    %209 = arith.addf %3, %208 : vector<96x96xf32>
    %210 = vector.broadcast %23 : vector<1x96xf32> to vector<96x96xf32>
    %211 = arith.addf %209, %210 : vector<96x96xf32>
    %cst_95 = arith.constant dense<0.000000e+00> : vector<96xf32>
    %212 = vector.multi_reduction <add>, %211, %cst_95 [1] : vector<96x96xf32> to vector<96xf32>
    %213 = vector.shape_cast %212 : vector<96xf32> to vector<96x1xf32>
    %cst_96 = arith.constant 9.600000e+01 : f32
    %214 = vector.broadcast %cst_96 : f32 to vector<96x1xf32>
    %215 = arith.divf %213, %214 : vector<96x1xf32>
    %216 = vector.broadcast %215 : vector<96x1xf32> to vector<96x96xf32>
    %217 = arith.subf %211, %216 : vector<96x96xf32>
    %218 = arith.mulf %217, %217 : vector<96x96xf32>
    %cst_97 = arith.constant dense<0.000000e+00> : vector<96xf32>
    %219 = vector.multi_reduction <add>, %218, %cst_97 [1] : vector<96x96xf32> to vector<96xf32>
    %220 = vector.shape_cast %219 : vector<96xf32> to vector<96x1xf32>
    %cst_98 = arith.constant 9.600000e+01 : f32
    %221 = vector.broadcast %cst_98 : f32 to vector<96x1xf32>
    %222 = arith.divf %220, %221 : vector<96x1xf32>
    %cst_99 = arith.constant 9.99999974E-6 : f32
    %223 = vector.broadcast %cst_99 : f32 to vector<96x1xf32>
    %224 = arith.addf %222, %223 : vector<96x1xf32>
    %225 = math.rsqrt %224 : vector<96x1xf32>
    %226 = vector.broadcast %225 : vector<96x1xf32> to vector<96x96xf32>
    %227 = arith.mulf %217, %226 : vector<96x96xf32>
    %228 = vector.broadcast %25 : vector<1x96xf32> to vector<96x96xf32>
    %229 = arith.mulf %227, %228 : vector<96x96xf32>
    %230 = vector.broadcast %27 : vector<1x96xf32> to vector<96x96xf32>
    %231 = arith.addf %229, %230 : vector<96x96xf32>
    %232 = arith.truncf %231 : vector<96x96xf32> to vector<96x96xbf16>
    %cst_100 = arith.constant dense<0.000000e+00> : vector<96x192xf32>
    %233 = tpu.matmul %232, %29, %cst_100 {dimension_numbers = #tpu.dot_dimension_numbers<[1], [0], [0], [1], [0, 0, 1, 1], [], []>} : vector<96x96xbf16>, vector<96x192xbf16>, vector<96x192xf32> -> vector<96x192xf32>
    %234 = vector.broadcast %31 : vector<1x192xf32> to vector<96x192xf32>
    %235 = arith.addf %233, %234 : vector<96x192xf32>
    %cst_101 = arith.constant 5.000000e-01 : f32
    %236 = vector.broadcast %cst_101 : f32 to vector<96x192xf32>
    %237 = arith.mulf %236, %235 : vector<96x192xf32>
    %cst_102 = arith.constant 0.707106769 : f32
    %238 = vector.broadcast %cst_102 : f32 to vector<96x192xf32>
    %239 = arith.mulf %235, %238 : vector<96x192xf32>
    %240 = math.absf %239 : vector<96x192xf32>
    %cst_103 = arith.constant 0.327591091 : f32
    %241 = vector.broadcast %cst_103 : f32 to vector<96x192xf32>
    %242 = arith.mulf %241, %240 : vector<96x192xf32>
    %cst_104 = arith.constant 1.000000e+00 : f32
    %243 = vector.broadcast %cst_104 : f32 to vector<96x192xf32>
    %244 = arith.addf %243, %242 : vector<96x192xf32>
    %cst_105 = arith.constant 1.000000e+00 : f32
    %245 = vector.broadcast %cst_105 : f32 to vector<96x192xf32>
    %246 = arith.divf %245, %244 : vector<96x192xf32>
    %cst_106 = arith.constant 1.06140542 : f32
    %247 = vector.broadcast %cst_106 : f32 to vector<96x192xf32>
    %248 = arith.mulf %247, %246 : vector<96x192xf32>
    %cst_107 = arith.constant 1.45315206 : f32
    %249 = vector.broadcast %cst_107 : f32 to vector<96x192xf32>
    %250 = arith.subf %248, %249 : vector<96x192xf32>
    %251 = arith.mulf %250, %246 : vector<96x192xf32>
    %cst_108 = arith.constant 1.42141378 : f32
    %252 = vector.broadcast %cst_108 : f32 to vector<96x192xf32>
    %253 = arith.addf %251, %252 : vector<96x192xf32>
    %254 = arith.mulf %253, %246 : vector<96x192xf32>
    %cst_109 = arith.constant 0.284496725 : f32
    %255 = vector.broadcast %cst_109 : f32 to vector<96x192xf32>
    %256 = arith.subf %254, %255 : vector<96x192xf32>
    %257 = arith.mulf %256, %246 : vector<96x192xf32>
    %cst_110 = arith.constant 0.254829586 : f32
    %258 = vector.broadcast %cst_110 : f32 to vector<96x192xf32>
    %259 = arith.addf %257, %258 : vector<96x192xf32>
    %260 = arith.mulf %259, %246 : vector<96x192xf32>
    %cst_111 = arith.constant 0.000000e+00 : f32
    %261 = vector.broadcast %cst_111 : f32 to vector<96x192xf32>
    %262 = arith.subf %261, %239 : vector<96x192xf32>
    %263 = arith.mulf %262, %239 : vector<96x192xf32>
    %264 = math.exp %263 : vector<96x192xf32>
    %265 = arith.mulf %260, %264 : vector<96x192xf32>
    %cst_112 = arith.constant 1.000000e+00 : f32
    %266 = vector.broadcast %cst_112 : f32 to vector<96x192xf32>
    %267 = arith.subf %266, %265 : vector<96x192xf32>
    %cst_113 = arith.constant 0.000000e+00 : f32
    %268 = vector.broadcast %cst_113 : f32 to vector<96x192xf32>
    %269 = arith.cmpf oge, %239, %268 : vector<96x192xf32>
    %cst_114 = arith.constant 0.000000e+00 : f32
    %270 = vector.broadcast %cst_114 : f32 to vector<96x192xf32>
    %271 = arith.subf %270, %267 : vector<96x192xf32>
    %272 = arith.select %269, %267, %271 : vector<96x192xi1>, vector<96x192xf32>
    %cst_115 = arith.constant 1.000000e+00 : f32
    %273 = vector.broadcast %cst_115 : f32 to vector<96x192xf32>
    %274 = arith.addf %273, %272 : vector<96x192xf32>
    %275 = arith.mulf %237, %274 : vector<96x192xf32>
    %276 = arith.truncf %275 : vector<96x192xf32> to vector<96x192xbf16>
    %cst_116 = arith.constant dense<0.000000e+00> : vector<96x96xf32>
    %277 = tpu.matmul %276, %33, %cst_116 {dimension_numbers = #tpu.dot_dimension_numbers<[1], [0], [0], [1], [0, 0, 1, 1], [], []>} : vector<96x192xbf16>, vector<192x96xbf16>, vector<96x96xf32> -> vector<96x96xf32>
    %278 = vector.broadcast %35 : vector<1x96xf32> to vector<96x96xf32>
    %279 = arith.addf %277, %278 : vector<96x96xf32>
    %280 = arith.addf %211, %279 : vector<96x96xf32>
    %c0_117 = arith.constant 0 : index
    %c0_118 = arith.constant 0 : index
    %281 = vector.load %arg24[%c0_117, %c0_118] : memref<96x96xf32, #tpu.memory_space<vmem>>, vector<96x96xf32>
    tpu.vector_store %arg24[%c0_117, %c0_118], %280 {strides = array<i32>} : memref<96x96xf32, #tpu.memory_space<vmem>>, vector<96x96xf32>,
    %c0_i32_119 = arith.constant 0 : i32
    %282 = arith.cmpi eq, %arg0, %c0_i32_119 : i32
    %283 = arith.extui %282 : i1 to i32
    %c0_i32_120 = arith.constant 0 : i32
    %284 = arith.cmpi ne, %283, %c0_i32_120 : i32
    scf.if %284 {
      %c0_121 = arith.constant 0 : index
      %c0_122 = arith.constant 0 : index
      %285 = vector.load %arg24[%c0_121, %c0_122] : memref<96x96xf32, #tpu.memory_space<vmem>>, vector<96x96xf32>
      %286 = vector.extract_strided_slice %285 {offsets = [0, 0], sizes = [1, 96], strides = [1, 1]} : vector<96x96xf32> to vector<1x96xf32>
      %287 = vector.extract_strided_slice %285 {offsets = [48, 0], sizes = [1, 96], strides = [1, 1]} : vector<96x96xf32> to vector<1x96xf32>
      %288 = tpu.concatenate %286, %287 in 0 : vector<1x96xf32>, vector<1x96xf32> -> vector<2x96xf32>
      %c0_123 = arith.constant 0 : index
      %c0_124 = arith.constant 0 : index
      %289 = vector.load %arg2[%c0_123, %c0_124] : memref<4x96xf32, #tpu.memory_space<vmem>>, vector<4x96xf32>
      %290 = tpu.concatenate %288, %289 in 0 : vector<2x96xf32>, vector<4x96xf32> -> vector<6x96xf32>
      %291 = vector.extract_strided_slice %290 {offsets = [0, 0], sizes = [2, 96], strides = [1, 1]} : vector<6x96xf32> to vector<2x96xf32>
      %c0_125 = arith.constant 0 : index
      %c0_126 = arith.constant 0 : index
      %c0_127 = arith.constant 0 : index
      %292 = vector.load %arg19[%c0_125, %c0_126, %c0_127] : memref<3x1x96xf32, #tpu.memory_space<vmem>>, vector<1x1x96xf32>
      %293 = vector.shape_cast %292 : vector<1x1x96xf32> to vector<1x96xf32>
      %c0_128 = arith.constant 0 : index
      %c0_129 = arith.constant 0 : index
      %c0_130 = arith.constant 0 : index
      %294 = vector.load %arg20[%c0_128, %c0_129, %c0_130] : memref<3x1x96xf32, #tpu.memory_space<vmem>>, vector<1x1x96xf32>
      %295 = vector.shape_cast %294 : vector<1x1x96xf32> to vector<1x96xf32>
      %cst_131 = arith.constant dense<0.000000e+00> : vector<2xf32>
      %296 = vector.multi_reduction <add>, %291, %cst_131 [1] : vector<2x96xf32> to vector<2xf32>
      %297 = vector.shape_cast %296 : vector<2xf32> to vector<2x1xf32>
      %cst_132 = arith.constant 9.600000e+01 : f32
      %298 = vector.broadcast %cst_132 : f32 to vector<2x1xf32>
      %299 = arith.divf %297, %298 : vector<2x1xf32>
      %300 = vector.broadcast %299 : vector<2x1xf32> to vector<2x96xf32>
      %301 = arith.subf %291, %300 : vector<2x96xf32>
      %302 = arith.mulf %301, %301 : vector<2x96xf32>
      %cst_133 = arith.constant dense<0.000000e+00> : vector<2xf32>
      %303 = vector.multi_reduction <add>, %302, %cst_133 [1] : vector<2x96xf32> to vector<2xf32>
      %304 = vector.shape_cast %303 : vector<2xf32> to vector<2x1xf32>
      %cst_134 = arith.constant 9.600000e+01 : f32
      %305 = vector.broadcast %cst_134 : f32 to vector<2x1xf32>
      %306 = arith.divf %304, %305 : vector<2x1xf32>
      %cst_135 = arith.constant 9.99999974E-6 : f32
      %307 = vector.broadcast %cst_135 : f32 to vector<2x1xf32>
      %308 = arith.addf %306, %307 : vector<2x1xf32>
      %309 = math.rsqrt %308 : vector<2x1xf32>
      %310 = vector.broadcast %309 : vector<2x1xf32> to vector<2x96xf32>
      %311 = arith.mulf %301, %310 : vector<2x96xf32>
      %312 = vector.broadcast %293 : vector<1x96xf32> to vector<2x96xf32>
      %313 = arith.mulf %311, %312 : vector<2x96xf32>
      %314 = vector.broadcast %295 : vector<1x96xf32> to vector<2x96xf32>
      %315 = arith.addf %313, %314 : vector<2x96xf32>
      %316 = arith.truncf %315 : vector<2x96xf32> to vector<2x96xbf16>
      %c0_136 = arith.constant 0 : index
      %c0_137 = arith.constant 0 : index
      %c0_138 = arith.constant 0 : index
      %317 = vector.load %arg21[%c0_136, %c0_137, %c0_138] : memref<3x96x128xbf16, #tpu.memory_space<vmem>>, vector<1x96x128xbf16>
      %318 = vector.shape_cast %317 : vector<1x96x128xbf16> to vector<96x128xbf16>
      %cst_139 = arith.constant dense<0.000000e+00> : vector<2x128xf32>
      %319 = tpu.matmul %316, %318, %cst_139 {dimension_numbers = #tpu.dot_dimension_numbers<[1], [0], [0], [1], [0, 0, 1, 1], [], []>} : vector<2x96xbf16>, vector<96x128xbf16>, vector<2x128xf32> -> vector<2x128xf32>
      %c0_140 = arith.constant 0 : index
      %c0_141 = arith.constant 0 : index
      %c0_142 = arith.constant 0 : index
      %320 = vector.load %arg22[%c0_140, %c0_141, %c0_142] : memref<3x1x128xf32, #tpu.memory_space<vmem>>, vector<1x1x128xf32>
      %321 = vector.shape_cast %320 : vector<1x1x128xf32> to vector<1x128xf32>
      %322 = vector.broadcast %321 : vector<1x128xf32> to vector<2x128xf32>
      %323 = arith.addf %319, %322 : vector<2x128xf32>
      %324 = vector.extract_strided_slice %290 {offsets = [2, 0], sizes = [2, 96], strides = [1, 1]} : vector<6x96xf32> to vector<2x96xf32>
      %c1 = arith.constant 1 : index
      %c0_143 = arith.constant 0 : index
      %c0_144 = arith.constant 0 : index
      %325 = vector.load %arg19[%c1, %c0_143, %c0_144] : memref<3x1x96xf32, #tpu.memory_space<vmem>>, vector<1x1x96xf32>
      %326 = vector.shape_cast %325 : vector<1x1x96xf32> to vector<1x96xf32>
      %c1_145 = arith.constant 1 : index
      %c0_146 = arith.constant 0 : index
      %c0_147 = arith.constant 0 : index
      %327 = vector.load %arg20[%c1_145, %c0_146, %c0_147] : memref<3x1x96xf32, #tpu.memory_space<vmem>>, vector<1x1x96xf32>
      %328 = vector.shape_cast %327 : vector<1x1x96xf32> to vector<1x96xf32>
      %cst_148 = arith.constant dense<0.000000e+00> : vector<2xf32>
      %329 = vector.multi_reduction <add>, %324, %cst_148 [1] : vector<2x96xf32> to vector<2xf32>
      %330 = vector.shape_cast %329 : vector<2xf32> to vector<2x1xf32>
      %cst_149 = arith.constant 9.600000e+01 : f32
      %331 = vector.broadcast %cst_149 : f32 to vector<2x1xf32>
      %332 = arith.divf %330, %331 : vector<2x1xf32>
      %333 = vector.broadcast %332 : vector<2x1xf32> to vector<2x96xf32>
      %334 = arith.subf %324, %333 : vector<2x96xf32>
      %335 = arith.mulf %334, %334 : vector<2x96xf32>
      %cst_150 = arith.constant dense<0.000000e+00> : vector<2xf32>
      %336 = vector.multi_reduction <add>, %335, %cst_150 [1] : vector<2x96xf32> to vector<2xf32>
      %337 = vector.shape_cast %336 : vector<2xf32> to vector<2x1xf32>
      %cst_151 = arith.constant 9.600000e+01 : f32
      %338 = vector.broadcast %cst_151 : f32 to vector<2x1xf32>
      %339 = arith.divf %337, %338 : vector<2x1xf32>
      %cst_152 = arith.constant 9.99999974E-6 : f32
      %340 = vector.broadcast %cst_152 : f32 to vector<2x1xf32>
      %341 = arith.addf %339, %340 : vector<2x1xf32>
      %342 = math.rsqrt %341 : vector<2x1xf32>
      %343 = vector.broadcast %342 : vector<2x1xf32> to vector<2x96xf32>
      %344 = arith.mulf %334, %343 : vector<2x96xf32>
      %345 = vector.broadcast %326 : vector<1x96xf32> to vector<2x96xf32>
      %346 = arith.mulf %344, %345 : vector<2x96xf32>
      %347 = vector.broadcast %328 : vector<1x96xf32> to vector<2x96xf32>
      %348 = arith.addf %346, %347 : vector<2x96xf32>
      %349 = arith.truncf %348 : vector<2x96xf32> to vector<2x96xbf16>
      %c1_153 = arith.constant 1 : index
      %c0_154 = arith.constant 0 : index
      %c0_155 = arith.constant 0 : index
      %350 = vector.load %arg21[%c1_153, %c0_154, %c0_155] : memref<3x96x128xbf16, #tpu.memory_space<vmem>>, vector<1x96x128xbf16>
      %351 = vector.shape_cast %350 : vector<1x96x128xbf16> to vector<96x128xbf16>
      %cst_156 = arith.constant dense<0.000000e+00> : vector<2x128xf32>
      %352 = tpu.matmul %349, %351, %cst_156 {dimension_numbers = #tpu.dot_dimension_numbers<[1], [0], [0], [1], [0, 0, 1, 1], [], []>} : vector<2x96xbf16>, vector<96x128xbf16>, vector<2x128xf32> -> vector<2x128xf32>
      %c1_157 = arith.constant 1 : index
      %c0_158 = arith.constant 0 : index
      %c0_159 = arith.constant 0 : index
      %353 = vector.load %arg22[%c1_157, %c0_158, %c0_159] : memref<3x1x128xf32, #tpu.memory_space<vmem>>, vector<1x1x128xf32>
      %354 = vector.shape_cast %353 : vector<1x1x128xf32> to vector<1x128xf32>
      %355 = vector.broadcast %354 : vector<1x128xf32> to vector<2x128xf32>
      %356 = arith.addf %352, %355 : vector<2x128xf32>
      %357 = vector.extract_strided_slice %290 {offsets = [4, 0], sizes = [2, 96], strides = [1, 1]} : vector<6x96xf32> to vector<2x96xf32>
      %c2 = arith.constant 2 : index
      %c0_160 = arith.constant 0 : index
      %c0_161 = arith.constant 0 : index
      %358 = vector.load %arg19[%c2, %c0_160, %c0_161] : memref<3x1x96xf32, #tpu.memory_space<vmem>>, vector<1x1x96xf32>
      %359 = vector.shape_cast %358 : vector<1x1x96xf32> to vector<1x96xf32>
      %c2_162 = arith.constant 2 : index
      %c0_163 = arith.constant 0 : index
      %c0_164 = arith.constant 0 : index
      %360 = vector.load %arg20[%c2_162, %c0_163, %c0_164] : memref<3x1x96xf32, #tpu.memory_space<vmem>>, vector<1x1x96xf32>
      %361 = vector.shape_cast %360 : vector<1x1x96xf32> to vector<1x96xf32>
      %cst_165 = arith.constant dense<0.000000e+00> : vector<2xf32>
      %362 = vector.multi_reduction <add>, %357, %cst_165 [1] : vector<2x96xf32> to vector<2xf32>
      %363 = vector.shape_cast %362 : vector<2xf32> to vector<2x1xf32>
      %cst_166 = arith.constant 9.600000e+01 : f32
      %364 = vector.broadcast %cst_166 : f32 to vector<2x1xf32>
      %365 = arith.divf %363, %364 : vector<2x1xf32>
      %366 = vector.broadcast %365 : vector<2x1xf32> to vector<2x96xf32>
      %367 = arith.subf %357, %366 : vector<2x96xf32>
      %368 = arith.mulf %367, %367 : vector<2x96xf32>
      %cst_167 = arith.constant dense<0.000000e+00> : vector<2xf32>
      %369 = vector.multi_reduction <add>, %368, %cst_167 [1] : vector<2x96xf32> to vector<2xf32>
      %370 = vector.shape_cast %369 : vector<2xf32> to vector<2x1xf32>
      %cst_168 = arith.constant 9.600000e+01 : f32
      %371 = vector.broadcast %cst_168 : f32 to vector<2x1xf32>
      %372 = arith.divf %370, %371 : vector<2x1xf32>
      %cst_169 = arith.constant 9.99999974E-6 : f32
      %373 = vector.broadcast %cst_169 : f32 to vector<2x1xf32>
      %374 = arith.addf %372, %373 : vector<2x1xf32>
      %375 = math.rsqrt %374 : vector<2x1xf32>
      %376 = vector.broadcast %375 : vector<2x1xf32> to vector<2x96xf32>
      %377 = arith.mulf %367, %376 : vector<2x96xf32>
      %378 = vector.broadcast %359 : vector<1x96xf32> to vector<2x96xf32>
      %379 = arith.mulf %377, %378 : vector<2x96xf32>
      %380 = vector.broadcast %361 : vector<1x96xf32> to vector<2x96xf32>
      %381 = arith.addf %379, %380 : vector<2x96xf32>
      %382 = arith.truncf %381 : vector<2x96xf32> to vector<2x96xbf16>
      %c2_170 = arith.constant 2 : index
      %c0_171 = arith.constant 0 : index
      %c0_172 = arith.constant 0 : index
      %383 = vector.load %arg21[%c2_170, %c0_171, %c0_172] : memref<3x96x128xbf16, #tpu.memory_space<vmem>>, vector<1x96x128xbf16>
      %384 = vector.shape_cast %383 : vector<1x96x128xbf16> to vector<96x128xbf16>
      %cst_173 = arith.constant dense<0.000000e+00> : vector<2x128xf32>
      %385 = tpu.matmul %382, %384, %cst_173 {dimension_numbers = #tpu.dot_dimension_numbers<[1], [0], [0], [1], [0, 0, 1, 1], [], []>} : vector<2x96xbf16>, vector<96x128xbf16>, vector<2x128xf32> -> vector<2x128xf32>
      %c2_174 = arith.constant 2 : index
      %c0_175 = arith.constant 0 : index
      %c0_176 = arith.constant 0 : index
      %386 = vector.load %arg22[%c2_174, %c0_175, %c0_176] : memref<3x1x128xf32, #tpu.memory_space<vmem>>, vector<1x1x128xf32>
      %387 = vector.shape_cast %386 : vector<1x1x128xf32> to vector<1x128xf32>
      %388 = vector.broadcast %387 : vector<1x128xf32> to vector<2x128xf32>
      %389 = arith.addf %385, %388 : vector<2x128xf32>
      %390 = tpu.concatenate %323, %356, %389 in 0 : vector<2x128xf32>, vector<2x128xf32>, vector<2x128xf32> -> vector<6x128xf32>
      %c0_177 = arith.constant 0 : index
      %c0_178 = arith.constant 0 : index
      %391 = vector.load %arg23[%c0_177, %c0_178] : memref<6x128xf32, #tpu.memory_space<vmem>>, vector<6x128xf32>
      tpu.vector_store %arg23[%c0_177, %c0_178], %390 {strides = array<i32>} : memref<6x128xf32, #tpu.memory_space<vmem>>, vector<6x128xf32>,
    } else {
    }
    return
  }
  func.func @transform_0(%arg0: i32) -> (i32, i32) {
    %c0_i32 = arith.constant 0 : i32
    %c0_i32_0 = arith.constant 0 : i32
    %c0_i32_1 = arith.constant 0 : i32
    return %c0_i32, %c0_i32_0 : i32, i32
  }
  func.func @transform_1(%arg0: i32) -> (i32, i32) {
    %c0_i32 = arith.constant 0 : i32
    %c0_i32_0 = arith.constant 0 : i32
    %c0_i32_1 = arith.constant 0 : i32
    return %c0_i32, %c0_i32_0 : i32, i32
  }
  func.func @transform_2(%arg0: i32) -> (i32, i32, i32) {
    %c0_i32 = arith.constant 0 : i32
    %c0_i32_0 = arith.constant 0 : i32
    %c0_i32_1 = arith.constant 0 : i32
    return %arg0, %c0_i32, %c0_i32_0 : i32, i32, i32
  }
  func.func @transform_3(%arg0: i32) -> (i32, i32, i32) {
    %c0_i32 = arith.constant 0 : i32
    %c0_i32_0 = arith.constant 0 : i32
    %c0_i32_1 = arith.constant 0 : i32
    return %arg0, %c0_i32, %c0_i32_0 : i32, i32, i32
  }
  func.func @transform_4(%arg0: i32) -> (i32, i32, i32) {
    %c0_i32 = arith.constant 0 : i32
    %c0_i32_0 = arith.constant 0 : i32
    %c0_i32_1 = arith.constant 0 : i32
    return %arg0, %c0_i32, %c0_i32_0 : i32, i32, i32
  }
  func.func @transform_5(%arg0: i32) -> (i32, i32, i32) {
    %c0_i32 = arith.constant 0 : i32
    %c0_i32_0 = arith.constant 0 : i32
    %c0_i32_1 = arith.constant 0 : i32
    return %arg0, %c0_i32, %c0_i32_0 : i32, i32, i32
  }
  func.func @transform_6(%arg0: i32) -> (i32, i32, i32) {
    %c0_i32 = arith.constant 0 : i32
    %c0_i32_0 = arith.constant 0 : i32
    %c0_i32_1 = arith.constant 0 : i32
    return %arg0, %c0_i32, %c0_i32_0 : i32, i32, i32
  }
  func.func @transform_7(%arg0: i32) -> (i32, i32, i32) {
    %c0_i32 = arith.constant 0 : i32
    %c0_i32_0 = arith.constant 0 : i32
    %c0_i32_1 = arith.constant 0 : i32
    return %arg0, %c0_i32, %c0_i32_0 : i32, i32, i32
  }
  func.func @transform_8(%arg0: i32) -> (i32, i32, i32) {
    %c0_i32 = arith.constant 0 : i32
    %c0_i32_0 = arith.constant 0 : i32
    %c0_i32_1 = arith.constant 0 : i32
    return %arg0, %c0_i32, %c0_i32_0 : i32, i32, i32
  }
  func.func @transform_9(%arg0: i32) -> (i32, i32, i32) {
    %c0_i32 = arith.constant 0 : i32
    %c0_i32_0 = arith.constant 0 : i32
    %c0_i32_1 = arith.constant 0 : i32
    return %arg0, %c0_i32, %c0_i32_0 : i32, i32, i32
  }
  func.func @transform_10(%arg0: i32) -> (i32, i32, i32) {
    %c0_i32 = arith.constant 0 : i32
    %c0_i32_0 = arith.constant 0 : i32
    %c0_i32_1 = arith.constant 0 : i32
    return %arg0, %c0_i32, %c0_i32_0 : i32, i32, i32
  }
  func.func @transform_11(%arg0: i32) -> (i32, i32, i32) {
    %c0_i32 = arith.constant 0 : i32
    %c0_i32_0 = arith.constant 0 : i32
    %c0_i32_1 = arith.constant 0 : i32
    return %arg0, %c0_i32, %c0_i32_0 : i32, i32, i32
  }
  func.func @transform_12(%arg0: i32) -> (i32, i32, i32) {
    %c0_i32 = arith.constant 0 : i32
    %c0_i32_0 = arith.constant 0 : i32
    %c0_i32_1 = arith.constant 0 : i32
    return %arg0, %c0_i32, %c0_i32_0 : i32, i32, i32
  }
  func.func @transform_13(%arg0: i32) -> (i32, i32, i32) {
    %c0_i32 = arith.constant 0 : i32
    %c0_i32_0 = arith.constant 0 : i32
    %c0_i32_1 = arith.constant 0 : i32
    return %arg0, %c0_i32, %c0_i32_0 : i32, i32, i32
  }
  func.func @transform_14(%arg0: i32) -> (i32, i32, i32) {
    %c0_i32 = arith.constant 0 : i32
    %c0_i32_0 = arith.constant 0 : i32
    %c0_i32_1 = arith.constant 0 : i32
    return %arg0, %c0_i32, %c0_i32_0 : i32, i32, i32
  }
  func.func @transform_15(%arg0: i32) -> (i32, i32, i32) {
    %c0_i32 = arith.constant 0 : i32
    %c0_i32_0 = arith.constant 0 : i32
    %c0_i32_1 = arith.constant 0 : i32
    return %arg0, %c0_i32, %c0_i32_0 : i32, i32, i32
  }
  func.func @transform_16(%arg0: i32) -> (i32, i32, i32) {
    %c0_i32 = arith.constant 0 : i32
    %c0_i32_0 = arith.constant 0 : i32
    %c0_i32_1 = arith.constant 0 : i32
    return %arg0, %c0_i32, %c0_i32_0 : i32, i32, i32
  }
  func.func @transform_17(%arg0: i32) -> (i32, i32, i32) {
    %c0_i32 = arith.constant 0 : i32
    %c0_i32_0 = arith.constant 0 : i32
    %c0_i32_1 = arith.constant 0 : i32
    return %arg0, %c0_i32, %c0_i32_0 : i32, i32, i32
  }
  func.func @transform_18(%arg0: i32) -> (i32, i32, i32) {
    %c0_i32 = arith.constant 0 : i32
    %c0_i32_0 = arith.constant 0 : i32
    %c0_i32_1 = arith.constant 0 : i32
    %c0_i32_2 = arith.constant 0 : i32
    return %c0_i32, %c0_i32_0, %c0_i32_1 : i32, i32, i32
  }
  func.func @transform_19(%arg0: i32) -> (i32, i32, i32) {
    %c0_i32 = arith.constant 0 : i32
    %c0_i32_0 = arith.constant 0 : i32
    %c0_i32_1 = arith.constant 0 : i32
    %c0_i32_2 = arith.constant 0 : i32
    return %c0_i32, %c0_i32_0, %c0_i32_1 : i32, i32, i32
  }
  func.func @transform_20(%arg0: i32) -> (i32, i32, i32) {
    %c0_i32 = arith.constant 0 : i32
    %c0_i32_0 = arith.constant 0 : i32
    %c0_i32_1 = arith.constant 0 : i32
    %c0_i32_2 = arith.constant 0 : i32
    return %c0_i32, %c0_i32_0, %c0_i32_1 : i32, i32, i32
  }
  func.func @transform_21(%arg0: i32) -> (i32, i32, i32) {
    %c0_i32 = arith.constant 0 : i32
    %c0_i32_0 = arith.constant 0 : i32
    %c0_i32_1 = arith.constant 0 : i32
    %c0_i32_2 = arith.constant 0 : i32
    return %c0_i32, %c0_i32_0, %c0_i32_1 : i32, i32, i32
  }
  func.func @transform_22(%arg0: i32) -> (i32, i32) {
    %c0_i32 = arith.constant 0 : i32
    %c0_i32_0 = arith.constant 0 : i32
    %c0_i32_1 = arith.constant 0 : i32
    return %c0_i32, %c0_i32_0 : i32, i32
  }
}

</mosaic_0001>

<llo_original>
// kernel: trans_rppg_forward.2
$region0: #{trans_rppg_forward.2}
  #allocation0 [shape = 'u32[]', space=smem, size = 0x4, offset = 0x4, fixed_abs, tag = 'smem constant byte address 0x4 - core index']
  #allocation1 [shape = 'u32[144,128]{1,0:T(1,128)}', space=vmem, size = 0x12000, scoped, tag = 'internal scratch']
  %s0 = inlined_call_operand.vmem [shape: f32[96,72], index: 0, kind: input, shape index: {}]
  %s1 = inlined_call_operand.vmem [shape: bf16[72,96], index: 1, kind: input, shape index: {}]
  %s2 = inlined_call_operand.vmem [shape: f32[96,96], index: 2, kind: input, shape index: {}]
  %s3 = inlined_call_operand.vmem [shape: f32[6,1,96], index: 3, kind: input, shape index: {}]
  %s4 = inlined_call_operand.vmem [shape: f32[6,1,96], index: 4, kind: input, shape index: {}]
  %s5 = inlined_call_operand.vmem [shape: bf16[6,96,96], index: 5, kind: input, shape index: {}]
  %s6 = inlined_call_operand.vmem [shape: f32[6,1,96], index: 6, kind: input, shape index: {}]
  %s7 = inlined_call_operand.vmem [shape: bf16[6,96,96], index: 7, kind: input, shape index: {}]
  %s8 = inlined_call_operand.vmem [shape: f32[6,1,96], index: 8, kind: input, shape index: {}]
  %s9 = inlined_call_operand.vmem [shape: bf16[6,96,96], index: 9, kind: input, shape index: {}]
  %s10 = inlined_call_operand.vmem [shape: f32[6,1,96], index: 10, kind: input, shape index: {}]
  %s11 = inlined_call_operand.vmem [shape: bf16[6,96,96], index: 11, kind: input, shape index: {}]
  %s12 = inlined_call_operand.vmem [shape: f32[6,1,96], index: 12, kind: input, shape index: {}]
  %s13 = inlined_call_operand.vmem [shape: f32[6,1,96], index: 13, kind: input, shape index: {}]
  %s14 = inlined_call_operand.vmem [shape: f32[6,1,96], index: 14, kind: input, shape index: {}]
  %s15 = inlined_call_operand.vmem [shape: bf16[6,96,192], index: 15, kind: input, shape index: {}]
  %s16 = inlined_call_operand.vmem [shape: f32[6,1,192], index: 16, kind: input, shape index: {}]
  %s17 = inlined_call_operand.vmem [shape: bf16[6,192,96], index: 17, kind: input, shape index: {}]
  %s18 = inlined_call_operand.vmem [shape: f32[6,1,96], index: 18, kind: input, shape index: {}]
  %s19 = inlined_call_operand.vmem [shape: f32[96,96], index: 19, kind: output, shape index: {}]
  %s20 = sld [smem:[#allocation0]]
  $region113: #{trans_rppg_forward.2} parent=0
    _
  %s22 = ssub.s32 1, %s20
  %s23 = scalar_select 0, %s22, %s20
  loop: start=0, step=1, limit=8
  $region2: #{trans_rppg_forward.2} parent=0 // loop_pre_header
    _
  $region3: #{trans_rppg_forward.2} parent=0 // loop_header
    %s25 = sphi 0, %s29
    %p26 = scmp.ge.s32.totalorder %s25, 8
    %s33 = sphi 0, %s33
    %s35 = sphi 0, %s33
    %s36 = sphi 0, %s35
    %s50 = sphi 0, %s36
    %s54 = sphi 0, %s54
    %s56 = sphi 0, %s54
    %s57 = sphi 0, %s56
    %s71 = sphi 0, %s57
    %s75 = sphi 0, %s75
    %s77 = sphi 0, %s75
    %s78 = sphi 0, %s77
    %s92 = sphi 0, %s78
    %s98 = sphi 0, %s100
    %s101 = sphi 0, %s98
    %s102 = sphi 0, %s101
    %s118 = sphi 0, %s102
    %s124 = sphi 0, %s126
    %s127 = sphi 0, %s124
    %s128 = sphi 0, %s127
    %s144 = sphi 0, %s128
    %s150 = sphi 0, %s152
    %s153 = sphi 0, %s150
    %s154 = sphi 0, %s153
    %s170 = sphi 0, %s154
    %s176 = sphi 0, %s178
    %s179 = sphi 0, %s176
    %s180 = sphi 0, %s179
    %s196 = sphi 0, %s180
    %s202 = sphi 0, %s204
    %s205 = sphi 0, %s202
    %s206 = sphi 0, %s205
    %s222 = sphi 0, %s206
    %s228 = sphi 0, %s230
    %s231 = sphi 0, %s228
    %s232 = sphi 0, %s231
    %s248 = sphi 0, %s232
    %s254 = sphi 0, %s256
    %s257 = sphi 0, %s254
    %s258 = sphi 0, %s257
    %s274 = sphi 0, %s258
    %s280 = sphi 0, %s282
    %s283 = sphi 0, %s280
    %s284 = sphi 0, %s283
    %s300 = sphi 0, %s284
    %s306 = sphi 0, %s308
    %s309 = sphi 0, %s306
    %s310 = sphi 0, %s309
    %s326 = sphi 0, %s310
    %s332 = sphi 0, %s334
    %s335 = sphi 0, %s332
    %s336 = sphi 0, %s335
    %s352 = sphi 0, %s336
    %s358 = sphi 0, %s360
    %s361 = sphi 0, %s358
    %s362 = sphi 0, %s361
    %s378 = sphi 0, %s362
    %s384 = sphi 0, %s386
    %s387 = sphi 0, %s384
    %s388 = sphi 0, %s387
    %s404 = sphi 0, %s388
    %s410 = sphi 0, %s412
    %s413 = sphi 0, %s410
    %s414 = sphi 0, %s413
    %s430 = sphi 0, %s414
    %s436 = sphi 0, %s438
    %s439 = sphi 0, %s436
    %s440 = sphi 0, %s439
    %s456 = sphi 0, %s440
    %s462 = sphi 0, %s464
    %s465 = sphi 0, %s462
    %s466 = sphi 0, %s465
    %s482 = sphi 0, %s466
    %s488 = sphi 0, %s490
    %s491 = sphi 0, %s488
    %s492 = sphi 0, %s491
    %s508 = sphi 0, %s492
    %s512 = sphi 0, %s512
    %s514 = sphi 0, %s512
    %s515 = sphi 0, %s514
    %s529 = sphi 0, %s515
  $region4: #{trans_rppg_forward.2} parent=0 // loop_header_branch
    %28 = sbr.rel (%p26) target = $region8
  $region5: #{trans_rppg_forward.2} parent=0 // loop_body
    %s30 = ssub.s32 %s25, 1
    %s31 = ssub.s32 %s25, 2
    %s32 = sadd.s32 %s25, 1
    %s34 = sadd.s32 %s33, 1
    %p37 = scmp.eq.s32.totalorder %s25, 5
    %p38 = scmp.ne.s32.totalorder %s33, %s35
    %p39 = scmp.eq.s32.totalorder %s25, 0
    %p40 = por %p38, %p39
    %p41 = scmp.ne.s32.totalorder %s33, %s35
    %p42 = scmp.eq.s32.totalorder %s30, 5
    %p43 = por %p41, %p42
    %p44 = scmp.ne.s32.totalorder %s35, %s36
    %p45 = scmp.eq.s32.totalorder %s30, 0
    %p46 = por %p44, %p45
    %p47 = scmp.ne.s32.totalorder %s35, %s36
    %p48 = scmp.eq.s32.totalorder %s31, 5
    %p49 = por %p47, %p48
    %p51 = scmp.ne.s32.totalorder %s36, %s50
    %p52 = scmp.eq.s32.totalorder %s31, 0
    %p53 = por %p51, %p52
    %s55 = sadd.s32 %s54, 1
    %p58 = scmp.eq.s32.totalorder %s25, 5
    %p59 = scmp.ne.s32.totalorder %s54, %s56
    %p60 = scmp.eq.s32.totalorder %s25, 0
    %p61 = por %p59, %p60
    %p62 = scmp.ne.s32.totalorder %s54, %s56
    %p63 = scmp.eq.s32.totalorder %s30, 5
    %p64 = por %p62, %p63
    %p65 = scmp.ne.s32.totalorder %s56, %s57
    %p66 = scmp.eq.s32.totalorder %s30, 0
    %p67 = por %p65, %p66
    %p68 = scmp.ne.s32.totalorder %s56, %s57
    %p69 = scmp.eq.s32.totalorder %s31, 5
    %p70 = por %p68, %p69
    %p72 = scmp.ne.s32.totalorder %s57, %s71
    %p73 = scmp.eq.s32.totalorder %s31, 0
    %p74 = por %p72, %p73
    %s76 = sadd.s32 %s75, 1
    %p79 = scmp.eq.s32.totalorder %s25, 5
    %p80 = scmp.ne.s32.totalorder %s75, %s77
    %p81 = scmp.eq.s32.totalorder %s25, 0
    %p82 = por %p80, %p81
    %p83 = scmp.ne.s32.totalorder %s75, %s77
    %p84 = scmp.eq.s32.totalorder %s30, 5
    %p85 = por %p83, %p84
    %p86 = scmp.ne.s32.totalorder %s77, %s78
    %p87 = scmp.eq.s32.totalorder %s30, 0
    %p88 = por %p86, %p87
    %p89 = scmp.ne.s32.totalorder %s77, %s78
    %p90 = scmp.eq.s32.totalorder %s31, 5
    %p91 = por %p89, %p90
    %p93 = scmp.ne.s32.totalorder %s78, %s92
    %p94 = scmp.eq.s32.totalorder %s31, 0
    %p95 = por %p93, %p94
    %s96 = ssub.s32 %s25, %s32
    %p97 = scmp.eq.s32.totalorder %s96, 0
    %s99 = sadd.s32 %s98, 1
    %s100 = scalar_select %p97, %s98, %s99
    %p103 = pneg %p97
    %p104 = scmp.eq.s32.totalorder %s25, 5
    %p105 = por %p103, %p104
    %p106 = scmp.ne.s32.totalorder %s98, %s101
    %p107 = scmp.eq.s32.totalorder %s25, 0
    %p108 = por %p106, %p107
    %p109 = scmp.ne.s32.totalorder %s98, %s101
    %p110 = scmp.eq.s32.totalorder %s30, 5
    %p111 = por %p109, %p110
    %p112 = scmp.ne.s32.totalorder %s101, %s102
    %p113 = scmp.eq.s32.totalorder %s30, 0
    %p114 = por %p112, %p113
    %p115 = scmp.ne.s32.totalorder %s101, %s102
    %p116 = scmp.eq.s32.totalorder %s31, 5
    %p117 = por %p115, %p116
    %p119 = scmp.ne.s32.totalorder %s102, %s118
    %p120 = scmp.eq.s32.totalorder %s31, 0
    %p121 = por %p119, %p120
    %s122 = ssub.s32 %s25, %s32
    %p123 = scmp.eq.s32.totalorder %s122, 0
    %s125 = sadd.s32 %s124, 1
    %s126 = scalar_select %p123, %s124, %s125
    %p129 = pneg %p123
    %p130 = scmp.eq.s32.totalorder %s25, 5
    %p131 = por %p129, %p130
    %p132 = scmp.ne.s32.totalorder %s124, %s127
    %p133 = scmp.eq.s32.totalorder %s25, 0
    %p134 = por %p132, %p133
    %p135 = scmp.ne.s32.totalorder %s124, %s127
    %p136 = scmp.eq.s32.totalorder %s30, 5
    %p137 = por %p135, %p136
    %p138 = scmp.ne.s32.totalorder %s127, %s128
    %p139 = scmp.eq.s32.totalorder %s30, 0
    %p140 = por %p138, %p139
    %p141 = scmp.ne.s32.totalorder %s127, %s128
    %p142 = scmp.eq.s32.totalorder %s31, 5
    %p143 = por %p141, %p142
    %p145 = scmp.ne.s32.totalorder %s128, %s144
    %p146 = scmp.eq.s32.totalorder %s31, 0
    %p147 = por %p145, %p146
    %s148 = ssub.s32 %s25, %s32
    %p149 = scmp.eq.s32.totalorder %s148, 0
    %s151 = sadd.s32 %s150, 1
    %s152 = scalar_select %p149, %s150, %s151
    %p155 = pneg %p149
    %p156 = scmp.eq.s32.totalorder %s25, 5
    %p157 = por %p155, %p156
    %p158 = scmp.ne.s32.totalorder %s150, %s153
    %p159 = scmp.eq.s32.totalorder %s25, 0
    %p160 = por %p158, %p159
    %p161 = scmp.ne.s32.totalorder %s150, %s153
    %p162 = scmp.eq.s32.totalorder %s30, 5
    %p163 = por %p161, %p162
    %p164 = scmp.ne.s32.totalorder %s153, %s154
    %p165 = scmp.eq.s32.totalorder %s30, 0
    %p166 = por %p164, %p165
    %p167 = scmp.ne.s32.totalorder %s153, %s154
    %p168 = scmp.eq.s32.totalorder %s31, 5
    %p169 = por %p167, %p168
    %p171 = scmp.ne.s32.totalorder %s154, %s170
    %p172 = scmp.eq.s32.totalorder %s31, 0
    %p173 = por %p171, %p172
    %s174 = ssub.s32 %s25, %s32
    %p175 = scmp.eq.s32.totalorder %s174, 0
    %s177 = sadd.s32 %s176, 1
    %s178 = scalar_select %p175, %s176, %s177
    %p181 = pneg %p175
    %p182 = scmp.eq.s32.totalorder %s25, 5
    %p183 = por %p181, %p182
    %p184 = scmp.ne.s32.totalorder %s176, %s179
    %p185 = scmp.eq.s32.totalorder %s25, 0
    %p186 = por %p184, %p185
    %p187 = scmp.ne.s32.totalorder %s176, %s179
    %p188 = scmp.eq.s32.totalorder %s30, 5
    %p189 = por %p187, %p188
    %p190 = scmp.ne.s32.totalorder %s179, %s180
    %p191 = scmp.eq.s32.totalorder %s30, 0
    %p192 = por %p190, %p191
    %p193 = scmp.ne.s32.totalorder %s179, %s180
    %p194 = scmp.eq.s32.totalorder %s31, 5
    %p195 = por %p193, %p194
    %p197 = scmp.ne.s32.totalorder %s180, %s196
    %p198 = scmp.eq.s32.totalorder %s31, 0
    %p199 = por %p197, %p198
    %s200 = ssub.s32 %s25, %s32
    %p201 = scmp.eq.s32.totalorder %s200, 0
    %s203 = sadd.s32 %s202, 1
    %s204 = scalar_select %p201, %s202, %s203
    %p207 = pneg %p201
    %p208 = scmp.eq.s32.totalorder %s25, 5
    %p209 = por %p207, %p208
    %p210 = scmp.ne.s32.totalorder %s202, %s205
    %p211 = scmp.eq.s32.totalorder %s25, 0
    %p212 = por %p210, %p211
    %p213 = scmp.ne.s32.totalorder %s202, %s205
    %p214 = scmp.eq.s32.totalorder %s30, 5
    %p215 = por %p213, %p214
    %p216 = scmp.ne.s32.totalorder %s205, %s206
    %p217 = scmp.eq.s32.totalorder %s30, 0
    %p218 = por %p216, %p217
    %p219 = scmp.ne.s32.totalorder %s205, %s206
    %p220 = scmp.eq.s32.totalorder %s31, 5
    %p221 = por %p219, %p220
    %p223 = scmp.ne.s32.totalorder %s206, %s222
    %p224 = scmp.eq.s32.totalorder %s31, 0
    %p225 = por %p223, %p224
    %s226 = ssub.s32 %s25, %s32
    %p227 = scmp.eq.s32.totalorder %s226, 0
    %s229 = sadd.s32 %s228, 1
    %s230 = scalar_select %p227, %s228, %s229
    %p233 = pneg %p227
    %p234 = scmp.eq.s32.totalorder %s25, 5
    %p235 = por %p233, %p234
    %p236 = scmp.ne.s32.totalorder %s228, %s231
    %p237 = scmp.eq.s32.totalorder %s25, 0
    %p238 = por %p236, %p237
    %p239 = scmp.ne.s32.totalorder %s228, %s231
    %p240 = scmp.eq.s32.totalorder %s30, 5
    %p241 = por %p239, %p240
    %p242 = scmp.ne.s32.totalorder %s231, %s232
    %p243 = scmp.eq.s32.totalorder %s30, 0
    %p244 = por %p242, %p243
    %p245 = scmp.ne.s32.totalorder %s231, %s232
    %p246 = scmp.eq.s32.totalorder %s31, 5
    %p247 = por %p245, %p246
    %p249 = scmp.ne.s32.totalorder %s232, %s248
    %p250 = scmp.eq.s32.totalorder %s31, 0
    %p251 = por %p249, %p250
    %s252 = ssub.s32 %s25, %s32
    %p253 = scmp.eq.s32.totalorder %s252, 0
    %s255 = sadd.s32 %s254, 1
    %s256 = scalar_select %p253, %s254, %s255
    %p259 = pneg %p253
    %p260 = scmp.eq.s32.totalorder %s25, 5
    %p261 = por %p259, %p260
    %p262 = scmp.ne.s32.totalorder %s254, %s257
    %p263 = scmp.eq.s32.totalorder %s25, 0
    %p264 = por %p262, %p263
    %p265 = scmp.ne.s32.totalorder %s254, %s257
    %p266 = scmp.eq.s32.totalorder %s30, 5
    %p267 = por %p265, %p266
    %p268 = scmp.ne.s32.totalorder %s257, %s258
    %p269 = scmp.eq.s32.totalorder %s30, 0
    %p270 = por %p268, %p269
    %p271 = scmp.ne.s32.totalorder %s257, %s258
    %p272 = scmp.eq.s32.totalorder %s31, 5
    %p273 = por %p271, %p272
    %p275 = scmp.ne.s32.totalorder %s258, %s274
    %p276 = scmp.eq.s32.totalorder %s31, 0
    %p277 = por %p275, %p276
    %s278 = ssub.s32 %s25, %s32
    %p279 = scmp.eq.s32.totalorder %s278, 0
    %s281 = sadd.s32 %s280, 1
    %s282 = scalar_select %p279, %s280, %s281
    %p285 = pneg %p279
    %p286 = scmp.eq.s32.totalorder %s25, 5
    %p287 = por %p285, %p286
    %p288 = scmp.ne.s32.totalorder %s280, %s283
    %p289 = scmp.eq.s32.totalorder %s25, 0
    %p290 = por %p288, %p289
    %p291 = scmp.ne.s32.totalorder %s280, %s283
    %p292 = scmp.eq.s32.totalorder %s30, 5
    %p293 = por %p291, %p292
    %p294 = scmp.ne.s32.totalorder %s283, %s284
    %p295 = scmp.eq.s32.totalorder %s30, 0
    %p296 = por %p294, %p295
    %p297 = scmp.ne.s32.totalorder %s283, %s284
    %p298 = scmp.eq.s32.totalorder %s31, 5
    %p299 = por %p297, %p298
    %p301 = scmp.ne.s32.totalorder %s284, %s300
    %p302 = scmp.eq.s32.totalorder %s31, 0
    %p303 = por %p301, %p302
    %s304 = ssub.s32 %s25, %s32
    %p305 = scmp.eq.s32.totalorder %s304, 0
    %s307 = sadd.s32 %s306, 1
    %s308 = scalar_select %p305, %s306, %s307
    %p311 = pneg %p305
    %p312 = scmp.eq.s32.totalorder %s25, 5
    %p313 = por %p311, %p312
    %p314 = scmp.ne.s32.totalorder %s306, %s309
    %p315 = scmp.eq.s32.totalorder %s25, 0
    %p316 = por %p314, %p315
    %p317 = scmp.ne.s32.totalorder %s306, %s309
    %p318 = scmp.eq.s32.totalorder %s30, 5
    %p319 = por %p317, %p318
    %p320 = scmp.ne.s32.totalorder %s309, %s310
    %p321 = scmp.eq.s32.totalorder %s30, 0
    %p322 = por %p320, %p321
    %p323 = scmp.ne.s32.totalorder %s309, %s310
    %p324 = scmp.eq.s32.totalorder %s31, 5
    %p325 = por %p323, %p324
    %p327 = scmp.ne.s32.totalorder %s310, %s326
    %p328 = scmp.eq.s32.totalorder %s31, 0
    %p329 = por %p327, %p328
    %s330 = ssub.s32 %s25, %s32
    %p331 = scmp.eq.s32.totalorder %s330, 0
    %s333 = sadd.s32 %s332, 1
    %s334 = scalar_select %p331, %s332, %s333
    %p337 = pneg %p331
    %p338 = scmp.eq.s32.totalorder %s25, 5
    %p339 = por %p337, %p338
    %p340 = scmp.ne.s32.totalorder %s332, %s335
    %p341 = scmp.eq.s32.totalorder %s25, 0
    %p342 = por %p340, %p341
    %p343 = scmp.ne.s32.totalorder %s332, %s335
    %p344 = scmp.eq.s32.totalorder %s30, 5
    %p345 = por %p343, %p344
    %p346 = scmp.ne.s32.totalorder %s335, %s336
    %p347 = scmp.eq.s32.totalorder %s30, 0
    %p348 = por %p346, %p347
    %p349 = scmp.ne.s32.totalorder %s335, %s336
    %p350 = scmp.eq.s32.totalorder %s31, 5
    %p351 = por %p349, %p350
    %p353 = scmp.ne.s32.totalorder %s336, %s352
    %p354 = scmp.eq.s32.totalorder %s31, 0
    %p355 = por %p353, %p354
    %s356 = ssub.s32 %s25, %s32
    %p357 = scmp.eq.s32.totalorder %s356, 0
    %s359 = sadd.s32 %s358, 1
    %s360 = scalar_select %p357, %s358, %s359
    %p363 = pneg %p357
    %p364 = scmp.eq.s32.totalorder %s25, 5
    %p365 = por %p363, %p364
    %p366 = scmp.ne.s32.totalorder %s358, %s361
    %p367 = scmp.eq.s32.totalorder %s25, 0
    %p368 = por %p366, %p367
    %p369 = scmp.ne.s32.totalorder %s358, %s361
    %p370 = scmp.eq.s32.totalorder %s30, 5
    %p371 = por %p369, %p370
    %p372 = scmp.ne.s32.totalorder %s361, %s362
    %p373 = scmp.eq.s32.totalorder %s30, 0
    %p374 = por %p372, %p373
    %p375 = scmp.ne.s32.totalorder %s361, %s362
    %p376 = scmp.eq.s32.totalorder %s31, 5
    %p377 = por %p375, %p376
    %p379 = scmp.ne.s32.totalorder %s362, %s378
    %p380 = scmp.eq.s32.totalorder %s31, 0
    %p381 = por %p379, %p380
    %s382 = ssub.s32 %s25, %s32
    %p383 = scmp.eq.s32.totalorder %s382, 0
    %s385 = sadd.s32 %s384, 1
    %s386 = scalar_select %p383, %s384, %s385
    %p389 = pneg %p383
    %p390 = scmp.eq.s32.totalorder %s25, 5
    %p391 = por %p389, %p390
    %p392 = scmp.ne.s32.totalorder %s384, %s387
    %p393 = scmp.eq.s32.totalorder %s25, 0
    %p394 = por %p392, %p393
    %p395 = scmp.ne.s32.totalorder %s384, %s387
    %p396 = scmp.eq.s32.totalorder %s30, 5
    %p397 = por %p395, %p396
    %p398 = scmp.ne.s32.totalorder %s387, %s388
    %p399 = scmp.eq.s32.totalorder %s30, 0
    %p400 = por %p398, %p399
    %p401 = scmp.ne.s32.totalorder %s387, %s388
    %p402 = scmp.eq.s32.totalorder %s31, 5
    %p403 = por %p401, %p402
    %p405 = scmp.ne.s32.totalorder %s388, %s404
    %p406 = scmp.eq.s32.totalorder %s31, 0
    %p407 = por %p405, %p406
    %s408 = ssub.s32 %s25, %s32
    %p409 = scmp.eq.s32.totalorder %s408, 0
    %s411 = sadd.s32 %s410, 1
    %s412 = scalar_select %p409, %s410, %s411
    %p415 = pneg %p409
    %p416 = scmp.eq.s32.totalorder %s25, 5
    %p417 = por %p415, %p416
    %p418 = scmp.ne.s32.totalorder %s410, %s413
    %p419 = scmp.eq.s32.totalorder %s25, 0
    %p420 = por %p418, %p419
    %p421 = scmp.ne.s32.totalorder %s410, %s413
    %p422 = scmp.eq.s32.totalorder %s30, 5
    %p423 = por %p421, %p422
    %p424 = scmp.ne.s32.totalorder %s413, %s414
    %p425 = scmp.eq.s32.totalorder %s30, 0
    %p426 = por %p424, %p425
    %p427 = scmp.ne.s32.totalorder %s413, %s414
    %p428 = scmp.eq.s32.totalorder %s31, 5
    %p429 = por %p427, %p428
    %p431 = scmp.ne.s32.totalorder %s414, %s430
    %p432 = scmp.eq.s32.totalorder %s31, 0
    %p433 = por %p431, %p432
    %s434 = ssub.s32 %s25, %s32
    %p435 = scmp.eq.s32.totalorder %s434, 0
    %s437 = sadd.s32 %s436, 1
    %s438 = scalar_select %p435, %s436, %s437
    %p441 = pneg %p435
    %p442 = scmp.eq.s32.totalorder %s25, 5
    %p443 = por %p441, %p442
    %p444 = scmp.ne.s32.totalorder %s436, %s439
    %p445 = scmp.eq.s32.totalorder %s25, 0
    %p446 = por %p444, %p445
    %p447 = scmp.ne.s32.totalorder %s436, %s439
    %p448 = scmp.eq.s32.totalorder %s30, 5
    %p449 = por %p447, %p448
    %p450 = scmp.ne.s32.totalorder %s439, %s440
    %p451 = scmp.eq.s32.totalorder %s30, 0
    %p452 = por %p450, %p451
    %p453 = scmp.ne.s32.totalorder %s439, %s440
    %p454 = scmp.eq.s32.totalorder %s31, 5
    %p455 = por %p453, %p454
    %p457 = scmp.ne.s32.totalorder %s440, %s456
    %p458 = scmp.eq.s32.totalorder %s31, 0
    %p459 = por %p457, %p458
    %s460 = ssub.s32 %s25, %s32
    %p461 = scmp.eq.s32.totalorder %s460, 0
    %s463 = sadd.s32 %s462, 1
    %s464 = scalar_select %p461, %s462, %s463
    %p467 = pneg %p461
    %p468 = scmp.eq.s32.totalorder %s25, 5
    %p469 = por %p467, %p468
    %p470 = scmp.ne.s32.totalorder %s462, %s465
    %p471 = scmp.eq.s32.totalorder %s25, 0
    %p472 = por %p470, %p471
    %p473 = scmp.ne.s32.totalorder %s462, %s465
    %p474 = scmp.eq.s32.totalorder %s30, 5
    %p475 = por %p473, %p474
    %p476 = scmp.ne.s32.totalorder %s465, %s466
    %p477 = scmp.eq.s32.totalorder %s30, 0
    %p478 = por %p476, %p477
    %p479 = scmp.ne.s32.totalorder %s465, %s466
    %p480 = scmp.eq.s32.totalorder %s31, 5
    %p481 = por %p479, %p480
    %p483 = scmp.ne.s32.totalorder %s466, %s482
    %p484 = scmp.eq.s32.totalorder %s31, 0
    %p485 = por %p483, %p484
    %s486 = ssub.s32 %s25, %s32
    %p487 = scmp.eq.s32.totalorder %s486, 0
    %s489 = sadd.s32 %s488, 1
    %s490 = scalar_select %p487, %s488, %s489
    %p493 = pneg %p487
    %p494 = scmp.eq.s32.totalorder %s25, 5
    %p495 = por %p493, %p494
    %p496 = scmp.ne.s32.totalorder %s488, %s491
    %p497 = scmp.eq.s32.totalorder %s25, 0
    %p498 = por %p496, %p497
    %p499 = scmp.ne.s32.totalorder %s488, %s491
    %p500 = scmp.eq.s32.totalorder %s30, 5
    %p501 = por %p499, %p500
    %p502 = scmp.ne.s32.totalorder %s491, %s492
    %p503 = scmp.eq.s32.totalorder %s30, 0
    %p504 = por %p502, %p503
    %p505 = scmp.ne.s32.totalorder %s491, %s492
    %p506 = scmp.eq.s32.totalorder %s31, 5
    %p507 = por %p505, %p506
    %p509 = scmp.ne.s32.totalorder %s492, %s508
    %p510 = scmp.eq.s32.totalorder %s31, 0
    %p511 = por %p509, %p510
    %s513 = sadd.s32 %s512, 1
    %p516 = scmp.eq.s32.totalorder %s25, 5
    %p517 = scmp.ne.s32.totalorder %s512, %s514
    %p518 = scmp.eq.s32.totalorder %s25, 0
    %p519 = por %p517, %p518
    %p520 = scmp.ne.s32.totalorder %s512, %s514
    %p521 = scmp.eq.s32.totalorder %s30, 5
    %p522 = por %p520, %p521
    %p523 = scmp.ne.s32.totalorder %s514, %s515
    %p524 = scmp.eq.s32.totalorder %s30, 0
    %p525 = por %p523, %p524
    %p526 = scmp.ne.s32.totalorder %s514, %s515
    %p527 = scmp.eq.s32.totalorder %s31, 5
    %p528 = por %p526, %p527
    %p530 = scmp.ne.s32.totalorder %s515, %s529
    %p531 = scmp.eq.s32.totalorder %s31, 0
    %p532 = por %p530, %p531
    %p533 = scmp.le.s32.totalorder 1, %s25
    %p534 = scmp.lt.s32.totalorder %s25, 7
    %p535 = pnand %p533, %p534
    %p536 = pneg %p535
    // Predicated region
    $region9: #{trans_rppg_forward.2} parent=5 // pred_check
      _
    $region10: #{trans_rppg_forward.2} parent=5 // pred_check_branch
      %538 = sbr.rel (%p535) target = $region12
    $region11: #{trans_rppg_forward.2} parent=5 // pred_region
      %s539 = ssub.s32 %s25, 1
      // Predicated region
      $region13: #{trans_rppg_forward.2} parent=11 // pred_check
        %p540 = pneg %p46
      $region14: #{trans_rppg_forward.2} parent=11 // pred_check_branch
        %542 = sbr.rel (%p540) target = $region16
      $region15: #{trans_rppg_forward.2} parent=11 // pred_region
        _
      $region16: #{trans_rppg_forward.2} parent=11 // pred_fallthru
        _
      // Predicated region
      $region17: #{trans_rppg_forward.2} parent=11 // pred_check
        %p543 = pneg %p67
      $region18: #{trans_rppg_forward.2} parent=11 // pred_check_branch
        %545 = sbr.rel (%p543) target = $region20
      $region19: #{trans_rppg_forward.2} parent=11 // pred_region
        _
      $region20: #{trans_rppg_forward.2} parent=11 // pred_fallthru
        _
      // Predicated region
      $region21: #{trans_rppg_forward.2} parent=11 // pred_check
        %p546 = pneg %p88
      $region22: #{trans_rppg_forward.2} parent=11 // pred_check_branch
        %548 = sbr.rel (%p546) target = $region24
      $region23: #{trans_rppg_forward.2} parent=11 // pred_region
        _
      $region24: #{trans_rppg_forward.2} parent=11 // pred_fallthru
        _
    $region12: #{trans_rppg_forward.2} parent=5 // pred_fallthru
      _
    %p549 = scmp.lt.s32.totalorder %s25, 6
    // Predicated region
    $region25: #{trans_rppg_forward.2} parent=5 // pred_check
      %p550 = pneg %p549
    $region26: #{trans_rppg_forward.2} parent=5 // pred_check_branch
      %552 = sbr.rel (%p550) target = $region28
    $region27: #{trans_rppg_forward.2} parent=5 // pred_region
      // Predicated region
      $region29: #{trans_rppg_forward.2} parent=27 // pred_check
        %p553 = pneg %p108
      $region30: #{trans_rppg_forward.2} parent=27 // pred_check_branch
        %555 = sbr.rel (%p553) target = $region32
      $region31: #{trans_rppg_forward.2} parent=27 // pred_region
        %p556 = scmp.lt.s32.totalorder %s25, 5
        %s557 = scalar_select %p556, %s25, 5
        %s558 = scalar_lea.vmem %s3, %s557
      $region32: #{trans_rppg_forward.2} parent=27 // pred_fallthru
        _
      // Predicated region
      $region33: #{trans_rppg_forward.2} parent=27 // pred_check
        %p559 = pneg %p134
      $region34: #{trans_rppg_forward.2} parent=27 // pred_check_branch
        %561 = sbr.rel (%p559) target = $region36
      $region35: #{trans_rppg_forward.2} parent=27 // pred_region
        %p562 = scmp.lt.s32.totalorder %s25, 5
        %s563 = scalar_select %p562, %s25, 5
        %s564 = scalar_lea.vmem %s4, %s563
      $region36: #{trans_rppg_forward.2} parent=27 // pred_fallthru
        _
      // Predicated region
      $region37: #{trans_rppg_forward.2} parent=27 // pred_check
        %p565 = pneg %p160
      $region38: #{trans_rppg_forward.2} parent=27 // pred_check_branch
        %567 = sbr.rel (%p565) target = $region40
      $region39: #{trans_rppg_forward.2} parent=27 // pred_region
        %p568 = scmp.lt.s32.totalorder %s25, 5
        %s569 = scalar_select %p568, %s25, 5
        %s570 = smul.addr %s569, 12
        %s571 = smul.addr %s570, 4
        %s572 = scalar_lea.vmem %s5, %s571
      $region40: #{trans_rppg_forward.2} parent=27 // pred_fallthru
        _
      // Predicated region
      $region41: #{trans_rppg_forward.2} parent=27 // pred_check
        %p573 = pneg %p186
      $region42: #{trans_rppg_forward.2} parent=27 // pred_check_branch
        %575 = sbr.rel (%p573) target = $region44
      $region43: #{trans_rppg_forward.2} parent=27 // pred_region
        %p576 = scmp.lt.s32.totalorder %s25, 5
        %s577 = scalar_select %p576, %s25, 5
        %s578 = scalar_lea.vmem %s6, %s577
      $region44: #{trans_rppg_forward.2} parent=27 // pred_fallthru
        _
      // Predicated region
      $region45: #{trans_rppg_forward.2} parent=27 // pred_check
        %p579 = pneg %p212
      $region46: #{trans_rppg_forward.2} parent=27 // pred_check_branch
        %581 = sbr.rel (%p579) target = $region48
      $region47: #{trans_rppg_forward.2} parent=27 // pred_region
        %p582 = scmp.lt.s32.totalorder %s25, 5
        %s583 = scalar_select %p582, %s25, 5
        %s584 = smul.addr %s583, 12
        %s585 = smul.addr %s584, 4
        %s586 = scalar_lea.vmem %s7, %s585
      $region48: #{trans_rppg_forward.2} parent=27 // pred_fallthru
        _
      // Predicated region
      $region49: #{trans_rppg_forward.2} parent=27 // pred_check
        %p587 = pneg %p238
      $region50: #{trans_rppg_forward.2} parent=27 // pred_check_branch
        %589 = sbr.rel (%p587) target = $region52
      $region51: #{trans_rppg_forward.2} parent=27 // pred_region
        %p590 = scmp.lt.s32.totalorder %s25, 5
        %s591 = scalar_select %p590, %s25, 5
        %s592 = scalar_lea.vmem %s8, %s591
      $region52: #{trans_rppg_forward.2} parent=27 // pred_fallthru
        _
      // Predicated region
      $region53: #{trans_rppg_forward.2} parent=27 // pred_check
        %p593 = pneg %p264
      $region54: #{trans_rppg_forward.2} parent=27 // pred_check_branch
        %595 = sbr.rel (%p593) target = $region56
      $region55: #{trans_rppg_forward.2} parent=27 // pred_region
        %p596 = scmp.lt.s32.totalorder %s25, 5
        %s597 = scalar_select %p596, %s25, 5
        %s598 = smul.addr %s597, 12
        %s599 = smul.addr %s598, 4
        %s600 = scalar_lea.vmem %s9, %s599
      $region56: #{trans_rppg_forward.2} parent=27 // pred_fallthru
        _
      // Predicated region
      $region57: #{trans_rppg_forward.2} parent=27 // pred_check
        %p601 = pneg %p290
      $region58: #{trans_rppg_forward.2} parent=27 // pred_check_branch
        %603 = sbr.rel (%p601) target = $region60
      $region59: #{trans_rppg_forward.2} parent=27 // pred_region
        %p604 = scmp.lt.s32.totalorder %s25, 5
        %s605 = scalar_select %p604, %s25, 5
        %s606 = scalar_lea.vmem %s10, %s605
      $region60: #{trans_rppg_forward.2} parent=27 // pred_fallthru
        _
      // Predicated region
      $region61: #{trans_rppg_forward.2} parent=27 // pred_check
        %p607 = pneg %p316
      $region62: #{trans_rppg_forward.2} parent=27 // pred_check_branch
        %609 = sbr.rel (%p607) target = $region64
      $region63: #{trans_rppg_forward.2} parent=27 // pred_region
        %p610 = scmp.lt.s32.totalorder %s25, 5
        %s611 = scalar_select %p610, %s25, 5
        %s612 = smul.addr %s611, 12
        %s613 = smul.addr %s612, 4
        %s614 = scalar_lea.vmem %s11, %s613
      $region64: #{trans_rppg_forward.2} parent=27 // pred_fallthru
        _
      // Predicated region
      $region65: #{trans_rppg_forward.2} parent=27 // pred_check
        %p615 = pneg %p342
      $region66: #{trans_rppg_forward.2} parent=27 // pred_check_branch
        %617 = sbr.rel (%p615) target = $region68
      $region67: #{trans_rppg_forward.2} parent=27 // pred_region
        %p618 = scmp.lt.s32.totalorder %s25, 5
        %s619 = scalar_select %p618, %s25, 5
        %s620 = scalar_lea.vmem %s12, %s619
      $region68: #{trans_rppg_forward.2} parent=27 // pred_fallthru
        _
      // Predicated region
      $region69: #{trans_rppg_forward.2} parent=27 // pred_check
        %p621 = pneg %p368
      $region70: #{trans_rppg_forward.2} parent=27 // pred_check_branch
        %623 = sbr.rel (%p621) target = $region72
      $region71: #{trans_rppg_forward.2} parent=27 // pred_region
        %p624 = scmp.lt.s32.totalorder %s25, 5
        %s625 = scalar_select %p624, %s25, 5
        %s626 = scalar_lea.vmem %s13, %s625
      $region72: #{trans_rppg_forward.2} parent=27 // pred_fallthru
        _
      // Predicated region
      $region73: #{trans_rppg_forward.2} parent=27 // pred_check
        %p627 = pneg %p394
      $region74: #{trans_rppg_forward.2} parent=27 // pred_check_branch
        %629 = sbr.rel (%p627) target = $region76
      $region75: #{trans_rppg_forward.2} parent=27 // pred_region
        %p630 = scmp.lt.s32.totalorder %s25, 5
        %s631 = scalar_select %p630, %s25, 5
        %s632 = scalar_lea.vmem %s14, %s631
      $region76: #{trans_rppg_forward.2} parent=27 // pred_fallthru
        _
      // Predicated region
      $region77: #{trans_rppg_forward.2} parent=27 // pred_check
        %p633 = pneg %p420
      $region78: #{trans_rppg_forward.2} parent=27 // pred_check_branch
        %635 = sbr.rel (%p633) target = $region80
      $region79: #{trans_rppg_forward.2} parent=27 // pred_region
        %p636 = scmp.lt.s32.totalorder %s25, 5
        %s637 = scalar_select %p636, %s25, 5
        %s638 = smul.addr %s637, 24
        %s639 = smul.addr %s638, 4
        %s640 = scalar_lea.vmem %s15, %s639
      $region80: #{trans_rppg_forward.2} parent=27 // pred_fallthru
        _
      // Predicated region
      $region81: #{trans_rppg_forward.2} parent=27 // pred_check
        %p641 = pneg %p446
      $region82: #{trans_rppg_forward.2} parent=27 // pred_check_branch
        %643 = sbr.rel (%p641) target = $region84
      $region83: #{trans_rppg_forward.2} parent=27 // pred_region
        %p644 = scmp.lt.s32.totalorder %s25, 5
        %s645 = scalar_select %p644, %s25, 5
        %s646 = smul.addr %s645, 2
        %s647 = scalar_lea.vmem %s16, %s646
      $region84: #{trans_rppg_forward.2} parent=27 // pred_fallthru
        _
      // Predicated region
      $region85: #{trans_rppg_forward.2} parent=27 // pred_check
        %p648 = pneg %p472
      $region86: #{trans_rppg_forward.2} parent=27 // pred_check_branch
        %650 = sbr.rel (%p648) target = $region88
      $region87: #{trans_rppg_forward.2} parent=27 // pred_region
        %p651 = scmp.lt.s32.totalorder %s25, 5
        %s652 = scalar_select %p651, %s25, 5
        %s653 = smul.addr %s652, 24
        %s654 = smul.addr %s653, 4
        %s655 = scalar_lea.vmem %s17, %s654
      $region88: #{trans_rppg_forward.2} parent=27 // pred_fallthru
        _
      // Predicated region
      $region89: #{trans_rppg_forward.2} parent=27 // pred_check
        %p656 = pneg %p498
      $region90: #{trans_rppg_forward.2} parent=27 // pred_check_branch
        %658 = sbr.rel (%p656) target = $region92
      $region91: #{trans_rppg_forward.2} parent=27 // pred_region
        %p659 = scmp.lt.s32.totalorder %s25, 5
        %s660 = scalar_select %p659, %s25, 5
        %s661 = scalar_lea.vmem %s18, %s660
      $region92: #{trans_rppg_forward.2} parent=27 // pred_fallthru
        _
    $region28: #{trans_rppg_forward.2} parent=5 // pred_fallthru
      _
    %p662 = scmp.le.s32.totalorder 1, %s25
    %p663 = scmp.lt.s32.totalorder %s25, 7
    %p664 = pnand %p662, %p663
    %p665 = pneg %p664
    // Predicated region
    $region93: #{trans_rppg_forward.2} parent=5 // pred_check
      _
    $region94: #{trans_rppg_forward.2} parent=5 // pred_check_branch
      %667 = sbr.rel (%p664) target = $region96
    $region95: #{trans_rppg_forward.2} parent=5 // pred_region
      %s668 = ssub.s32 %s25, 1
      %p669 = pneg %p46
      %p670 = pneg %p43
      %p671 = pneg %p67
      %p672 = pneg %p64
      %p673 = pneg %p88
      %p674 = pneg %p85
      %p675 = scmp.lt.s32.totalorder %s30, 5
      %s676 = scalar_select %p675, %s30, 5
      %s677 = scalar_lea.vmem %s3, %s676
      %p678 = pneg %p114
      %p679 = pneg %p111
      %p680 = scmp.lt.s32.totalorder %s30, 5
      %s681 = scalar_select %p680, %s30, 5
      %s682 = scalar_lea.vmem %s4, %s681
      %p683 = pneg %p140
      %p684 = pneg %p137
      %p685 = scmp.lt.s32.totalorder %s30, 5
      %s686 = scalar_select %p685, %s30, 5
      %s687 = smul.addr %s686, 12
      %s688 = smul.addr %s687, 4
      %s689 = scalar_lea.vmem %s5, %s688
      %p690 = pneg %p166
      %p691 = pneg %p163
      %p692 = scmp.lt.s32.totalorder %s30, 5
      %s693 = scalar_select %p692, %s30, 5
      %s694 = scalar_lea.vmem %s6, %s693
      %p695 = pneg %p192
      %p696 = pneg %p189
      %p697 = scmp.lt.s32.totalorder %s30, 5
      %s698 = scalar_select %p697, %s30, 5
      %s699 = smul.addr %s698, 12
      %s700 = smul.addr %s699, 4
      %s701 = scalar_lea.vmem %s7, %s700
      %p702 = pneg %p218
      %p703 = pneg %p215
      %p704 = scmp.lt.s32.totalorder %s30, 5
      %s705 = scalar_select %p704, %s30, 5
      %s706 = scalar_lea.vmem %s8, %s705
      %p707 = pneg %p244
      %p708 = pneg %p241
      %p709 = scmp.lt.s32.totalorder %s30, 5
      %s710 = scalar_select %p709, %s30, 5
      %s711 = smul.addr %s710, 12
      %s712 = smul.addr %s711, 4
      %s713 = scalar_lea.vmem %s9, %s712
      %p714 = pneg %p270
      %p715 = pneg %p267
      %p716 = scmp.lt.s32.totalorder %s30, 5
      %s717 = scalar_select %p716, %s30, 5
      %s718 = scalar_lea.vmem %s10, %s717
      %p719 = pneg %p296
      %p720 = pneg %p293
      %p721 = scmp.lt.s32.totalorder %s30, 5
      %s722 = scalar_select %p721, %s30, 5
      %s723 = smul.addr %s722, 12
      %s724 = smul.addr %s723, 4
      %s725 = scalar_lea.vmem %s11, %s724
      %p726 = pneg %p322
      %p727 = pneg %p319
      %p728 = scmp.lt.s32.totalorder %s30, 5
      %s729 = scalar_select %p728, %s30, 5
      %s730 = scalar_lea.vmem %s12, %s729
      %p731 = pneg %p348
      %p732 = pneg %p345
      %p733 = scmp.lt.s32.totalorder %s30, 5
      %s734 = scalar_select %p733, %s30, 5
      %s735 = scalar_lea.vmem %s13, %s734
      %p736 = pneg %p374
      %p737 = pneg %p371
      %p738 = scmp.lt.s32.totalorder %s30, 5
      %s739 = scalar_select %p738, %s30, 5
      %s740 = scalar_lea.vmem %s14, %s739
      %p741 = pneg %p400
      %p742 = pneg %p397
      %p743 = scmp.lt.s32.totalorder %s30, 5
      %s744 = scalar_select %p743, %s30, 5
      %s745 = smul.addr %s744, 24
      %s746 = smul.addr %s745, 4
      %s747 = scalar_lea.vmem %s15, %s746
      %p748 = pneg %p426
      %p749 = pneg %p423
      %p750 = scmp.lt.s32.totalorder %s30, 5
      %s751 = scalar_select %p750, %s30, 5
      %s752 = smul.addr %s751, 2
      %s753 = scalar_lea.vmem %s16, %s752
      %p754 = pneg %p452
      %p755 = pneg %p449
      %p756 = scmp.lt.s32.totalorder %s30, 5
      %s757 = scalar_select %p756, %s30, 5
      %s758 = smul.addr %s757, 24
      %s759 = smul.addr %s758, 4
      %s760 = scalar_lea.vmem %s17, %s759
      %p761 = pneg %p478
      %p762 = pneg %p475
      %p763 = scmp.lt.s32.totalorder %s30, 5
      %s764 = scalar_select %p763, %s30, 5
      %s765 = scalar_lea.vmem %s18, %s764
      %p766 = pneg %p504
      %p767 = pneg %p501
      %p768 = pneg %p525
      %p769 = pneg %p522
      %p770 = scmp.lt.s32.totalorder %s30, 5
      %s771 = scalar_select %p770, %s30, 5
      %s772 = scalar_lea.vmem %s3, %s771
      %p773 = scmp.lt.s32.totalorder %s30, 5
      %s774 = scalar_select %p773, %s30, 5
      %s775 = scalar_lea.vmem %s4, %s774
      %p776 = scmp.lt.s32.totalorder %s30, 5
      %s777 = scalar_select %p776, %s30, 5
      %s778 = smul.addr %s777, 12
      %s779 = smul.addr %s778, 4
      %s780 = scalar_lea.vmem %s5, %s779
      %p781 = scmp.lt.s32.totalorder %s30, 5
      %s782 = scalar_select %p781, %s30, 5
      %s783 = scalar_lea.vmem %s6, %s782
      %p784 = scmp.lt.s32.totalorder %s30, 5
      %s785 = scalar_select %p784, %s30, 5
      %s786 = smul.addr %s785, 12
      %s787 = smul.addr %s786, 4
      %s788 = scalar_lea.vmem %s7, %s787
      %p789 = scmp.lt.s32.totalorder %s30, 5
      %s790 = scalar_select %p789, %s30, 5
      %s791 = scalar_lea.vmem %s8, %s790
      %p792 = scmp.lt.s32.totalorder %s30, 5
      %s793 = scalar_select %p792, %s30, 5
      %s794 = smul.addr %s793, 12
      %s795 = smul.addr %s794, 4
      %s796 = scalar_lea.vmem %s9, %s795
      %p797 = scmp.lt.s32.totalorder %s30, 5
      %s798 = scalar_select %p797, %s30, 5
      %s799 = scalar_lea.vmem %s10, %s798
      %p800 = scmp.lt.s32.totalorder %s30, 5
      %s801 = scalar_select %p800, %s30, 5
      %s802 = smul.addr %s801, 12
      %s803 = smul.addr %s802, 4
      %s804 = scalar_lea.vmem %s11, %s803
      %p805 = scmp.lt.s32.totalorder %s30, 5
      %s806 = scalar_select %p805, %s30, 5
      %s807 = scalar_lea.vmem %s12, %s806
      %p808 = scmp.lt.s32.totalorder %s30, 5
      %s809 = scalar_select %p808, %s30, 5
      %s810 = scalar_lea.vmem %s13, %s809
      %p811 = scmp.lt.s32.totalorder %s30, 5
      %s812 = scalar_select %p811, %s30, 5
      %s813 = scalar_lea.vmem %s14, %s812
      %p814 = scmp.lt.s32.totalorder %s30, 5
      %s815 = scalar_select %p814, %s30, 5
      %s816 = smul.addr %s815, 24
      %s817 = smul.addr %s816, 4
      %s818 = scalar_lea.vmem %s15, %s817
      %p819 = scmp.lt.s32.totalorder %s30, 5
      %s820 = scalar_select %p819, %s30, 5
      %s821 = smul.addr %s820, 2
      %s822 = scalar_lea.vmem %s16, %s821
      %p823 = scmp.lt.s32.totalorder %s30, 5
      %s824 = scalar_select %p823, %s30, 5
      %s825 = smul.addr %s824, 24
      %s826 = smul.addr %s825, 4
      %s827 = scalar_lea.vmem %s17, %s826
      %p828 = scmp.lt.s32.totalorder %s30, 5
      %s829 = scalar_select %p828, %s30, 5
      %s830 = scalar_lea.vmem %s18, %s829
      %p832 = scmp.eq.s32.totalorder %s30, 0
      // Predicated region
      $region97: #{trans_rppg_forward.2} parent=95 // pred_check
        %p833 = pneg %p832
      $region98: #{trans_rppg_forward.2} parent=95 // pred_check_branch
        %835 = sbr.rel (%p833) target = $region100
      $region99: #{trans_rppg_forward.2} parent=95 // pred_region
        %v836 = vld [vmem:[%s0] sm:$0xff]
        %v837 = vld [vmem:[%s0 + $0x8] sm:$0xff]
        %v838 = vld [vmem:[%s0 + $0x10] sm:$0xff]
        %v839 = vld [vmem:[%s0 + $0x18] sm:$0xff]
        %v840 = vld [vmem:[%s0 + $0x20] sm:$0xff]
        %v841 = vld [vmem:[%s0 + $0x28] sm:$0xff]
        %v842 = vld [vmem:[%s0 + $0x30] sm:$0xff]
        %v843 = vld [vmem:[%s0 + $0x38] sm:$0xff]
        %v844 = vld [vmem:[%s0 + $0x40] sm:$0xff]
        %v845 = vld [vmem:[%s0 + $0x48] sm:$0xff]
        %v846 = vld [vmem:[%s0 + $0x50] sm:$0xff]
        %v847 = vld [vmem:[%s0 + $0x58] sm:$0xff]
        %v848 = vpack.c.bf16 %v837, %v836
        %v849 = vpack.c.bf16 %v839, %v838
        %v850 = vpack.c.bf16 %v841, %v840
        %v851 = vpack.c.bf16 %v843, %v842
        %v852 = vpack.c.bf16 %v845, %v844
        %v853 = vpack.c.bf16 %v847, %v846
        %v854 = vld [vmem:[%s1] sm:$0xf]
        %v855 = vld [vmem:[%s1 + $0x4] sm:$0xf]
        %v856 = vld [vmem:[%s1 + $0x8] sm:$0xf]
        %v857 = vld [vmem:[%s1 + $0xc] sm:$0xf]
        %v858 = vld [vmem:[%s1 + $0x10] sm:$0xf]
        %v859 = vld [vmem:[%s1 + $0x14] sm:$0xf]
        %v860 = vld [vmem:[%s1 + $0x18] sm:$0xf]
        %v861 = vld [vmem:[%s1 + $0x1c] sm:$0xf]
        %v862 = vld [vmem:[%s1 + $0x20] sm:$0xf]
        %v863 = vld [vmem:[%s2] sm:$0xff]
        %v864 = vld [vmem:[%s2 + $0x8] sm:$0xff]
        %v865 = vld [vmem:[%s2 + $0x10] sm:$0xff]
        %v866 = vld [vmem:[%s2 + $0x18] sm:$0xff]
        %v867 = vld [vmem:[%s2 + $0x20] sm:$0xff]
        %v868 = vld [vmem:[%s2 + $0x28] sm:$0xff]
        %v869 = vld [vmem:[%s2 + $0x30] sm:$0xff]
        %v870 = vld [vmem:[%s2 + $0x38] sm:$0xff]
        %v871 = vld [vmem:[%s2 + $0x40] sm:$0xff]
        %v872 = vld [vmem:[%s2 + $0x48] sm:$0xff]
        %v873 = vld [vmem:[%s2 + $0x50] sm:$0xff]
        %v874 = vld [vmem:[%s2 + $0x58] sm:$0xff]
        %v884 = vunpack.c.l.b16 %v854
        %v885 = vunpack.c.l.b16 %v855
        %v886 = vunpack.c.l.b16 %v856
        %v887 = vunpack.c.l.b16 %v857
        %v888 = vunpack.c.l.b16 %v858
        %v889 = vunpack.c.l.b16 %v859
        %v890 = vunpack.c.l.b16 %v860
        %v891 = vunpack.c.l.b16 %v861
        %v892 = vunpack.c.l.b16 %v862
        %v893 = vpack.c.b16 %v885, %v884
        %v894 = vpack.c.b16 %v887, %v886
        %v895 = vpack.c.b16 %v889, %v888
        %v896 = vpack.c.b16 %v891, %v890
        %v897 = vpack.c.b16 %v892, %v892
        %vm902 = vcmask 588800
        %v904 = vsel %vm902, %v848, 0
        %v907 = vsel %vm902, %v849, 0
        %v910 = vsel %vm902, %v850, 0
        %v913 = vsel %vm902, %v851, 0
        %v916 = vsel %vm902, %v852, 0
        %v919 = vsel %vm902, %v853, 0
        %vm921 = vcmask 1043456
        %v923 = vsel %vm921, %v897, 0
        %925 = vmatprep.subr.bf16.mxu0 0
        %926 = vmatpush1.bf16.msra.mxu0 %v893
        %927 = vmatprep.subr.bf16.mxu0 0
        %928 = vmatpush1.bf16.msra.mxu0 %v894
        %929 = vmatprep.subr.bf16.mxu0 0
        %930 = vmatpush1.bf16.msra.mxu0 %v895
        %931 = vmatprep.subr.bf16.mxu0 0
        %932 = vmatpush1.bf16.msra.mxu0 %v896
        %933 = vmatprep.subr.bf16.mxu0 0
        %934 = vmatpush1.bf16.msra.mxu0 %v923
        %935 = vmatprep.subr.bf16.mxu0 0
        %936 = vmatpush1.bf16.msra.mxu0 0
        %937 = vmatprep.subr.bf16.mxu0 0
        %938 = vmatpush1.bf16.msra.mxu0 0
        %939 = vmatprep.subr.bf16.mxu0 0
        %940 = vmatpush1.bf16.msra.mxu0 0
        %941 = vmatprep.subr.bf16.mxu0 0
        %942 = vmatpush1.bf16.msra.mxu0 0
        %943 = vmatprep.subr.bf16.mxu0 0
        %944 = vmatpush1.bf16.msra.mxu0 0
        %945 = vmatprep.subr.bf16.mxu0 0
        %946 = vmatpush1.bf16.msra.mxu0 0
        %947 = vmatprep.subr.bf16.mxu0 0
        %948 = vmatpush1.bf16.msra.mxu0 0
        %949 = vmatprep.subr.bf16.mxu0 0
        %950 = vmatpush1.bf16.msra.mxu0 0
        %951 = vmatprep.subr.bf16.mxu0 0
        %952 = vmatpush1.bf16.msra.mxu0 0
        %953 = vmatprep.subr.bf16.mxu0 0
        %954 = vmatpush1.bf16.msra.mxu0 0
        %955 = vmatprep.subr.bf16.mxu0 0
        %956 = vmatpush1.bf16.msra.mxu0 0
        %957 = vmatprep.mubr.bf16.mxu0 0
        %958 = vmatmul.mubr.bf16.gmra.mrb[0].mxu0 %v904
        %v959 = vpop.f32.mrb[0].mxu0
        %v960 = vadd.f32 %v863, %v959
        %v961 = vpop.f32.mrb[0].mxu0
        %v962 = vpop.f32.mrb[0].mxu0
        %v963 = vadd.f32 %v864, %v962
        %v964 = vpop.f32.mrb[0].mxu0
        %965 = vmatprep.mubr.bf16.mxu0 0
        %966 = vmatmul.mubr.bf16.gmra.mrb[0].mxu0 %v907
        %v967 = vpop.f32.mrb[0].mxu0
        %v968 = vadd.f32 %v865, %v967
        %v969 = vpop.f32.mrb[0].mxu0
        %v970 = vpop.f32.mrb[0].mxu0
        %v971 = vadd.f32 %v866, %v970
        %v972 = vpop.f32.mrb[0].mxu0
        %973 = vmatprep.mubr.bf16.mxu0 0
        %974 = vmatmul.mubr.bf16.gmra.mrb[0].mxu0 %v910
        %v975 = vpop.f32.mrb[0].mxu0
        %v976 = vadd.f32 %v867, %v975
        %v977 = vpop.f32.mrb[0].mxu0
        %v978 = vpop.f32.mrb[0].mxu0
        %v979 = vadd.f32 %v868, %v978
        %v980 = vpop.f32.mrb[0].mxu0
        %981 = vmatprep.mubr.bf16.mxu0 0
        %982 = vmatmul.mubr.bf16.gmra.mrb[0].mxu0 %v913
        %v983 = vpop.f32.mrb[0].mxu0
        %v984 = vadd.f32 %v869, %v983
        %v985 = vpop.f32.mrb[0].mxu0
        %v986 = vpop.f32.mrb[0].mxu0
        %v987 = vadd.f32 %v870, %v986
        %v988 = vpop.f32.mrb[0].mxu0
        %989 = vmatprep.mubr.bf16.mxu0 0
        %990 = vmatmul.mubr.bf16.gmra.mrb[0].mxu0 %v916
        %v991 = vpop.f32.mrb[0].mxu0
        %v992 = vadd.f32 %v871, %v991
        %v993 = vpop.f32.mrb[0].mxu0
        %v994 = vpop.f32.mrb[0].mxu0
        %v995 = vadd.f32 %v872, %v994
        %v996 = vpop.f32.mrb[0].mxu0
        %997 = vmatprep.mubr.bf16.mxu0 0
        %998 = vmatmul.mubr.bf16.gmra.mrb[0].mxu0 %v919
        %v999 = vpop.f32.mrb[0].mxu0
        %v1000 = vadd.f32 %v873, %v999
        %v1001 = vpop.f32.mrb[0].mxu0
        %v1002 = vpop.f32.mrb[0].mxu0
        %v1003 = vadd.f32 %v874, %v1002
        %v1004 = vpop.f32.mrb[0].mxu0
        %1005 = vdwg.mxu0
        %vm1006 = vcmask 785408
        %1007 = vst.msk [vmem:[%s19] sm:$0xff] %vm1006, %v960
        %1008 = vst.msk [vmem:[%s19 + $0x8] sm:$0xff] %vm1006, %v963
        %1009 = vst.msk [vmem:[%s19 + $0x10] sm:$0xff] %vm1006, %v968
        %1010 = vst.msk [vmem:[%s19 + $0x18] sm:$0xff] %vm1006, %v971
        %1011 = vst.msk [vmem:[%s19 + $0x20] sm:$0xff] %vm1006, %v976
        %1012 = vst.msk [vmem:[%s19 + $0x28] sm:$0xff] %vm1006, %v979
        %1013 = vst.msk [vmem:[%s19 + $0x30] sm:$0xff] %vm1006, %v984
        %1014 = vst.msk [vmem:[%s19 + $0x38] sm:$0xff] %vm1006, %v987
        %1015 = vst.msk [vmem:[%s19 + $0x40] sm:$0xff] %vm1006, %v992
        %1016 = vst.msk [vmem:[%s19 + $0x48] sm:$0xff] %vm1006, %v995
        %1017 = vst.msk [vmem:[%s19 + $0x50] sm:$0xff] %vm1006, %v1000
        %1018 = vst.msk [vmem:[%s19 + $0x58] sm:$0xff] %vm1006, %v1003
      $region100: #{trans_rppg_forward.2} parent=95 // pred_fallthru
        _
      %v1019 = vld [vmem:[%s19] sm:$0xff]
      %v1020 = vld [vmem:[%s19 + $0x8] sm:$0xff]
      %v1021 = vld [vmem:[%s19 + $0x10] sm:$0xff]
      %v1022 = vld [vmem:[%s19 + $0x18] sm:$0xff]
      %v1023 = vld [vmem:[%s19 + $0x20] sm:$0xff]
      %v1024 = vld [vmem:[%s19 + $0x28] sm:$0xff]
      %v1025 = vld [vmem:[%s19 + $0x30] sm:$0xff]
      %v1026 = vld [vmem:[%s19 + $0x38] sm:$0xff]
      %v1027 = vld [vmem:[%s19 + $0x40] sm:$0xff]
      %v1028 = vld [vmem:[%s19 + $0x48] sm:$0xff]
      %v1029 = vld [vmem:[%s19 + $0x50] sm:$0xff]
      %v1030 = vld [vmem:[%s19 + $0x58] sm:$0xff]
      %v1031 = vld [vmem:[%s772] sm:$0x1]
      %v1032 = vld [vmem:[%s775] sm:$0x1]
      %v1033 = vld [vmem:[%s780] sm:$0xf]
      %v1034 = vld [vmem:[%s780 + $0x4] sm:$0xf]
      %v1035 = vld [vmem:[%s780 + $0x8] sm:$0xf]
      %v1036 = vld [vmem:[%s780 + $0xc] sm:$0xf]
      %v1037 = vld [vmem:[%s780 + $0x10] sm:$0xf]
      %v1038 = vld [vmem:[%s780 + $0x14] sm:$0xf]
      %v1039 = vld [vmem:[%s780 + $0x18] sm:$0xf]
      %v1040 = vld [vmem:[%s780 + $0x1c] sm:$0xf]
      %v1041 = vld [vmem:[%s780 + $0x20] sm:$0xf]
      %v1042 = vld [vmem:[%s780 + $0x24] sm:$0xf]
      %v1043 = vld [vmem:[%s780 + $0x28] sm:$0xf]
      %v1044 = vld [vmem:[%s780 + $0x2c] sm:$0xf]
      %v1045 = vld [vmem:[%s783] sm:$0x1]
      %v1046 = vld [vmem:[%s788] sm:$0xf]
      %v1047 = vld [vmem:[%s788 + $0x4] sm:$0xf]
      %v1048 = vld [vmem:[%s788 + $0x8] sm:$0xf]
      %v1049 = vld [vmem:[%s788 + $0xc] sm:$0xf]
      %v1050 = vld [vmem:[%s788 + $0x10] sm:$0xf]
      %v1051 = vld [vmem:[%s788 + $0x14] sm:$0xf]
      %v1052 = vld [vmem:[%s788 + $0x18] sm:$0xf]
      %v1053 = vld [vmem:[%s788 + $0x1c] sm:$0xf]
      %v1054 = vld [vmem:[%s788 + $0x20] sm:$0xf]
      %v1055 = vld [vmem:[%s788 + $0x24] sm:$0xf]
      %v1056 = vld [vmem:[%s788 + $0x28] sm:$0xf]
      %v1057 = vld [vmem:[%s788 + $0x2c] sm:$0xf]
      %v1058 = vld [vmem:[%s791] sm:$0x1]
      %v1059 = vld [vmem:[%s796] sm:$0xf]
      %v1060 = vld [vmem:[%s796 + $0x4] sm:$0xf]
      %v1061 = vld [vmem:[%s796 + $0x8] sm:$0xf]
      %v1062 = vld [vmem:[%s796 + $0xc] sm:$0xf]
      %v1063 = vld [vmem:[%s796 + $0x10] sm:$0xf]
      %v1064 = vld [vmem:[%s796 + $0x14] sm:$0xf]
      %v1065 = vld [vmem:[%s796 + $0x18] sm:$0xf]
      %v1066 = vld [vmem:[%s796 + $0x1c] sm:$0xf]
      %v1067 = vld [vmem:[%s796 + $0x20] sm:$0xf]
      %v1068 = vld [vmem:[%s796 + $0x24] sm:$0xf]
      %v1069 = vld [vmem:[%s796 + $0x28] sm:$0xf]
      %v1070 = vld [vmem:[%s796 + $0x2c] sm:$0xf]
      %v1071 = vld [vmem:[%s799] sm:$0x1]
      %v1072 = vld [vmem:[%s804] sm:$0xf]
      %v1073 = vld [vmem:[%s804 + $0x4] sm:$0xf]
      %v1074 = vld [vmem:[%s804 + $0x8] sm:$0xf]
      %v1075 = vld [vmem:[%s804 + $0xc] sm:$0xf]
      %v1076 = vld [vmem:[%s804 + $0x10] sm:$0xf]
      %v1077 = vld [vmem:[%s804 + $0x14] sm:$0xf]
      %v1078 = vld [vmem:[%s804 + $0x18] sm:$0xf]
      %v1079 = vld [vmem:[%s804 + $0x1c] sm:$0xf]
      %v1080 = vld [vmem:[%s804 + $0x20] sm:$0xf]
      %v1081 = vld [vmem:[%s804 + $0x24] sm:$0xf]
      %v1082 = vld [vmem:[%s804 + $0x28] sm:$0xf]
      %v1083 = vld [vmem:[%s804 + $0x2c] sm:$0xf]
      %v1084 = vld [vmem:[%s807] sm:$0x1]
      %v1085 = vld [vmem:[%s810] sm:$0x1]
      %v1086 = vld [vmem:[%s813] sm:$0x1]
      %v1087 = vld [vmem:[%s818] sm:$0xff]
      %v1088 = vld [vmem:[%s818 + $0x8] sm:$0xff]
      %v1089 = vld [vmem:[%s818 + $0x10] sm:$0xff]
      %v1090 = vld [vmem:[%s818 + $0x18] sm:$0xff]
      %v1091 = vld [vmem:[%s818 + $0x20] sm:$0xff]
      %v1092 = vld [vmem:[%s818 + $0x28] sm:$0xff]
      %v1093 = vld [vmem:[%s818 + $0x30] sm:$0xff]
      %v1094 = vld [vmem:[%s818 + $0x38] sm:$0xff]
      %v1095 = vld [vmem:[%s818 + $0x40] sm:$0xff]
      %v1096 = vld [vmem:[%s818 + $0x48] sm:$0xff]
      %v1097 = vld [vmem:[%s818 + $0x50] sm:$0xff]
      %v1098 = vld [vmem:[%s818 + $0x58] sm:$0xff]
      %v1099 = vld [vmem:[%s822] sm:$0x3]
      %v1100 = vld [vmem:[%s827] sm:$0xf]
      %v1101 = vld [vmem:[%s827 + $0x4] sm:$0xf]
      %v1102 = vld [vmem:[%s827 + $0x8] sm:$0xf]
      %v1103 = vld [vmem:[%s827 + $0xc] sm:$0xf]
      %v1104 = vld [vmem:[%s827 + $0x10] sm:$0xf]
      %v1105 = vld [vmem:[%s827 + $0x14] sm:$0xf]
      %v1106 = vld [vmem:[%s827 + $0x18] sm:$0xf]
      %v1107 = vld [vmem:[%s827 + $0x1c] sm:$0xf]
      %v1108 = vld [vmem:[%s827 + $0x20] sm:$0xf]
      %v1109 = vld [vmem:[%s827 + $0x24] sm:$0xf]
      %v1110 = vld [vmem:[%s827 + $0x28] sm:$0xf]
      %v1111 = vld [vmem:[%s827 + $0x2c] sm:$0xf]
      %v1112 = vld [vmem:[%s827 + $0x30] sm:$0xf]
      %v1113 = vld [vmem:[%s827 + $0x34] sm:$0xf]
      %v1114 = vld [vmem:[%s827 + $0x38] sm:$0xf]
      %v1115 = vld [vmem:[%s827 + $0x3c] sm:$0xf]
      %v1116 = vld [vmem:[%s827 + $0x40] sm:$0xf]
      %v1117 = vld [vmem:[%s827 + $0x44] sm:$0xf]
      %v1118 = vld [vmem:[%s827 + $0x48] sm:$0xf]
      %v1119 = vld [vmem:[%s827 + $0x4c] sm:$0xf]
      %v1120 = vld [vmem:[%s827 + $0x50] sm:$0xf]
      %v1121 = vld [vmem:[%s827 + $0x54] sm:$0xf]
      %v1122 = vld [vmem:[%s827 + $0x58] sm:$0xf]
      %v1123 = vld [vmem:[%s827 + $0x5c] sm:$0xf]
      %v1124 = vld [vmem:[%s830] sm:$0x1]
      %vm1125 = vcmask 785408
      %v1126 = vsel %vm1125, %v1019, 0.0
      %1127 = vadd.xlane.f32.xlu0 %v1126
      %v1128 = vpop.xlane.xlu0 %1127
      %v1129 = vsel %vm1125, %v1020, 0.0
      %1130 = vadd.xlane.f32.xlu0 %v1129
      %v1131 = vpop.xlane.xlu0 %1130
      %v1132 = vsel %vm1125, %v1021, 0.0
      %1133 = vadd.xlane.f32.xlu0 %v1132
      %v1134 = vpop.xlane.xlu0 %1133
      %v1135 = vsel %vm1125, %v1022, 0.0
      %1136 = vadd.xlane.f32.xlu0 %v1135
      %v1137 = vpop.xlane.xlu0 %1136
      %v1138 = vsel %vm1125, %v1023, 0.0
      %1139 = vadd.xlane.f32.xlu0 %v1138
      %v1140 = vpop.xlane.xlu0 %1139
      %v1141 = vsel %vm1125, %v1024, 0.0
      %1142 = vadd.xlane.f32.xlu0 %v1141
      %v1143 = vpop.xlane.xlu0 %1142
      %v1144 = vsel %vm1125, %v1025, 0.0
      %1145 = vadd.xlane.f32.xlu0 %v1144
      %v1146 = vpop.xlane.xlu0 %1145
      %v1147 = vsel %vm1125, %v1026, 0.0
      %1148 = vadd.xlane.f32.xlu0 %v1147
      %v1149 = vpop.xlane.xlu0 %1148
      %v1150 = vsel %vm1125, %v1027, 0.0
      %1151 = vadd.xlane.f32.xlu0 %v1150
      %v1152 = vpop.xlane.xlu0 %1151
      %v1153 = vsel %vm1125, %v1028, 0.0
      %1154 = vadd.xlane.f32.xlu0 %v1153
      %v1155 = vpop.xlane.xlu0 %1154
      %v1156 = vsel %vm1125, %v1029, 0.0
      %1157 = vadd.xlane.f32.xlu0 %v1156
      %v1158 = vpop.xlane.xlu0 %1157
      %v1159 = vsel %vm1125, %v1030, 0.0
      %1160 = vadd.xlane.f32.xlu0 %v1159
      %v1161 = vpop.xlane.xlu0 %1160
      %v1162 = vrcp.pop 96.0
      %v1163 = vmul.f32 %v1128, %v1162
      %v1164 = vmul.f32 %v1131, %v1162
      %v1165 = vmul.f32 %v1134, %v1162
      %v1166 = vmul.f32 %v1137, %v1162
      %v1167 = vmul.f32 %v1140, %v1162
      %v1168 = vmul.f32 %v1143, %v1162
      %v1169 = vmul.f32 %v1146, %v1162
      %v1170 = vmul.f32 %v1149, %v1162
      %v1171 = vmul.f32 %v1152, %v1162
      %v1172 = vmul.f32 %v1155, %v1162
      %v1173 = vmul.f32 %v1158, %v1162
      %v1174 = vmul.f32 %v1161, %v1162
      %v1175 = vsub.f32 %v1019, %v1163
      %v1176 = vsub.f32 %v1020, %v1164
      %v1177 = vsub.f32 %v1021, %v1165
      %v1178 = vsub.f32 %v1022, %v1166
      %v1179 = vsub.f32 %v1023, %v1167
      %v1180 = vsub.f32 %v1024, %v1168
      %v1181 = vsub.f32 %v1025, %v1169
      %v1182 = vsub.f32 %v1026, %v1170
      %v1183 = vsub.f32 %v1027, %v1171
      %v1184 = vsub.f32 %v1028, %v1172
      %v1185 = vsub.f32 %v1029, %v1173
      %v1186 = vsub.f32 %v1030, %v1174
      %v1187 = vmul.f32 %v1175, %v1175
      %v1188 = vmul.f32 %v1176, %v1176
      %v1189 = vmul.f32 %v1177, %v1177
      %v1190 = vmul.f32 %v1178, %v1178
      %v1191 = vmul.f32 %v1179, %v1179
      %v1192 = vmul.f32 %v1180, %v1180
      %v1193 = vmul.f32 %v1181, %v1181
      %v1194 = vmul.f32 %v1182, %v1182
      %v1195 = vmul.f32 %v1183, %v1183
      %v1196 = vmul.f32 %v1184, %v1184
      %v1197 = vmul.f32 %v1185, %v1185
      %v1198 = vmul.f32 %v1186, %v1186
      %v1199 = vsel %vm1125, %v1187, 0.0
      %1200 = vadd.xlane.f32.xlu0 %v1199
      %v1201 = vpop.xlane.xlu0 %1200
      %v1202 = vsel %vm1125, %v1188, 0.0
      %1203 = vadd.xlane.f32.xlu0 %v1202
      %v1204 = vpop.xlane.xlu0 %1203
      %v1205 = vsel %vm1125, %v1189, 0.0
      %1206 = vadd.xlane.f32.xlu0 %v1205
      %v1207 = vpop.xlane.xlu0 %1206
      %v1208 = vsel %vm1125, %v1190, 0.0
      %1209 = vadd.xlane.f32.xlu0 %v1208
      %v1210 = vpop.xlane.xlu0 %1209
      %v1211 = vsel %vm1125, %v1191, 0.0
      %1212 = vadd.xlane.f32.xlu0 %v1211
      %v1213 = vpop.xlane.xlu0 %1212
      %v1214 = vsel %vm1125, %v1192, 0.0
      %1215 = vadd.xlane.f32.xlu0 %v1214
      %v1216 = vpop.xlane.xlu0 %1215
      %v1217 = vsel %vm1125, %v1193, 0.0
      %1218 = vadd.xlane.f32.xlu0 %v1217
      %v1219 = vpop.xlane.xlu0 %1218
      %v1220 = vsel %vm1125, %v1194, 0.0
      %1221 = vadd.xlane.f32.xlu0 %v1220
      %v1222 = vpop.xlane.xlu0 %1221
      %v1223 = vsel %vm1125, %v1195, 0.0
      %1224 = vadd.xlane.f32.xlu0 %v1223
      %v1225 = vpop.xlane.xlu0 %1224
      %v1226 = vsel %vm1125, %v1196, 0.0
      %1227 = vadd.xlane.f32.xlu0 %v1226
      %v1228 = vpop.xlane.xlu0 %1227
      %v1229 = vsel %vm1125, %v1197, 0.0
      %1230 = vadd.xlane.f32.xlu0 %v1229
      %v1231 = vpop.xlane.xlu0 %1230
      %v1232 = vsel %vm1125, %v1198, 0.0
      %1233 = vadd.xlane.f32.xlu0 %v1232
      %v1234 = vpop.xlane.xlu0 %1233
      %v1235 = vmul.f32 %v1201, %v1162
      %v1236 = vmul.f32 %v1204, %v1162
      %v1237 = vmul.f32 %v1207, %v1162
      %v1238 = vmul.f32 %v1210, %v1162
      %v1239 = vmul.f32 %v1213, %v1162
      %v1240 = vmul.f32 %v1216, %v1162
      %v1241 = vmul.f32 %v1219, %v1162
      %v1242 = vmul.f32 %v1222, %v1162
      %v1243 = vmul.f32 %v1225, %v1162
      %v1244 = vmul.f32 %v1228, %v1162
      %v1245 = vmul.f32 %v1231, %v1162
      %v1246 = vmul.f32 %v1234, %v1162
      %v1247 = vadd.f32 %v1235, 1e-05
      %v1248 = vadd.f32 %v1236, 1e-05
      %v1249 = vadd.f32 %v1237, 1e-05
      %v1250 = vadd.f32 %v1238, 1e-05
      %v1251 = vadd.f32 %v1239, 1e-05
      %v1252 = vadd.f32 %v1240, 1e-05
      %v1253 = vadd.f32 %v1241, 1e-05
      %v1254 = vadd.f32 %v1242, 1e-05
      %v1255 = vadd.f32 %v1243, 1e-05
      %v1256 = vadd.f32 %v1244, 1e-05
      %v1257 = vadd.f32 %v1245, 1e-05
      %v1258 = vadd.f32 %v1246, 1e-05
      %v1259 = vrsqrt.pop %v1247
      %v1260 = vrsqrt.pop %v1248
      %v1261 = vrsqrt.pop %v1249
      %v1262 = vrsqrt.pop %v1250
      %v1263 = vrsqrt.pop %v1251
      %v1264 = vrsqrt.pop %v1252
      %v1265 = vrsqrt.pop %v1253
      %v1266 = vrsqrt.pop %v1254
      %v1267 = vrsqrt.pop %v1255
      %v1268 = vrsqrt.pop %v1256
      %v1269 = vrsqrt.pop %v1257
      %v1270 = vrsqrt.pop %v1258
      %v1271 = vmul.f32 %v1175, %v1259
      %v1272 = vmul.f32 %v1176, %v1260
      %v1273 = vmul.f32 %v1177, %v1261
      %v1274 = vmul.f32 %v1178, %v1262
      %v1275 = vmul.f32 %v1179, %v1263
      %v1276 = vmul.f32 %v1180, %v1264
      %v1277 = vmul.f32 %v1181, %v1265
      %v1278 = vmul.f32 %v1182, %v1266
      %v1279 = vmul.f32 %v1183, %v1267
      %v1280 = vmul.f32 %v1184, %v1268
      %v1281 = vmul.f32 %v1185, %v1269
      %v1282 = vmul.f32 %v1186, %v1270
      %v1284 = vlaneseq
      %v1285 = vshrl.u32 %v1284, 7
      %v1286 = vsub.s32 0, %v1285
      %v1287 = vrot.slane %v1031, %v1286
      %v1289 = vmul.f32 %v1271, %v1287
      %v1290 = vmul.f32 %v1272, %v1287
      %v1291 = vmul.f32 %v1273, %v1287
      %v1292 = vmul.f32 %v1274, %v1287
      %v1293 = vmul.f32 %v1275, %v1287
      %v1294 = vmul.f32 %v1276, %v1287
      %v1295 = vmul.f32 %v1277, %v1287
      %v1296 = vmul.f32 %v1278, %v1287
      %v1297 = vmul.f32 %v1279, %v1287
      %v1298 = vmul.f32 %v1280, %v1287
      %v1299 = vmul.f32 %v1281, %v1287
      %v1300 = vmul.f32 %v1282, %v1287
      %v1302 = vlaneseq
      %v1303 = vshrl.u32 %v1302, 7
      %v1304 = vsub.s32 0, %v1303
      %v1305 = vrot.slane %v1032, %v1304
      %v1307 = vadd.f32 %v1289, %v1305
      %v1308 = vadd.f32 %v1290, %v1305
      %v1309 = vadd.f32 %v1291, %v1305
      %v1310 = vadd.f32 %v1292, %v1305
      %v1311 = vadd.f32 %v1293, %v1305
      %v1312 = vadd.f32 %v1294, %v1305
      %v1313 = vadd.f32 %v1295, %v1305
      %v1314 = vadd.f32 %v1296, %v1305
      %v1315 = vadd.f32 %v1297, %v1305
      %v1316 = vadd.f32 %v1298, %v1305
      %v1317 = vadd.f32 %v1299, %v1305
      %v1318 = vadd.f32 %v1300, %v1305
      %v1319 = vpack.c.bf16 %v1308, %v1307
      %v1320 = vpack.c.bf16 %v1310, %v1309
      %v1321 = vpack.c.bf16 %v1312, %v1311
      %v1322 = vpack.c.bf16 %v1314, %v1313
      %v1323 = vpack.c.bf16 %v1316, %v1315
      %v1324 = vpack.c.bf16 %v1318, %v1317
      %v1326 = vlaneseq
      %v1327 = vshrl.u32 %v1326, 7
      %v1328 = vsub.s32 0, %v1327
      %v1329 = vrot.slane %v1045, %v1328
      %v1343 = vunpack.c.l.b16 %v1033
      %v1344 = vunpack.c.l.b16 %v1034
      %v1345 = vunpack.c.l.b16 %v1035
      %v1346 = vunpack.c.l.b16 %v1036
      %v1347 = vunpack.c.l.b16 %v1037
      %v1348 = vunpack.c.l.b16 %v1038
      %v1349 = vunpack.c.l.b16 %v1039
      %v1350 = vunpack.c.l.b16 %v1040
      %v1351 = vunpack.c.l.b16 %v1041
      %v1352 = vunpack.c.l.b16 %v1042
      %v1353 = vunpack.c.l.b16 %v1043
      %v1354 = vunpack.c.l.b16 %v1044
      %v1355 = vpack.c.b16 %v1344, %v1343
      %v1356 = vpack.c.b16 %v1346, %v1345
      %v1357 = vpack.c.b16 %v1348, %v1347
      %v1358 = vpack.c.b16 %v1350, %v1349
      %v1359 = vpack.c.b16 %v1352, %v1351
      %v1360 = vpack.c.b16 %v1354, %v1353
      %v1368 = vsel %vm1125, %v1319, 0
      %v1371 = vsel %vm1125, %v1320, 0
      %v1374 = vsel %vm1125, %v1321, 0
      %v1377 = vsel %vm1125, %v1322, 0
      %v1380 = vsel %vm1125, %v1323, 0
      %v1383 = vsel %vm1125, %v1324, 0
      %1385 = vmatprep.subr.bf16.mxu0 0
      %1386 = vmatpush1.bf16.msra.mxu0 %v1355
      %1387 = vmatprep.subr.bf16.mxu0 0
      %1388 = vmatpush1.bf16.msra.mxu0 %v1356
      %1389 = vmatprep.subr.bf16.mxu0 0
      %1390 = vmatpush1.bf16.msra.mxu0 %v1357
      %1391 = vmatprep.subr.bf16.mxu0 0
      %1392 = vmatpush1.bf16.msra.mxu0 %v1358
      %1393 = vmatprep.subr.bf16.mxu0 0
      %1394 = vmatpush1.bf16.msra.mxu0 %v1359
      %1395 = vmatprep.subr.bf16.mxu0 0
      %1396 = vmatpush1.bf16.msra.mxu0 %v1360
      %1397 = vmatprep.subr.bf16.mxu0 0
      %1398 = vmatpush1.bf16.msra.mxu0 0
      %1399 = vmatprep.subr.bf16.mxu0 0
      %1400 = vmatpush1.bf16.msra.mxu0 0
      %1401 = vmatprep.subr.bf16.mxu0 0
      %1402 = vmatpush1.bf16.msra.mxu0 0
      %1403 = vmatprep.subr.bf16.mxu0 0
      %1404 = vmatpush1.bf16.msra.mxu0 0
      %1405 = vmatprep.subr.bf16.mxu0 0
      %1406 = vmatpush1.bf16.msra.mxu0 0
      %1407 = vmatprep.subr.bf16.mxu0 0
      %1408 = vmatpush1.bf16.msra.mxu0 0
      %1409 = vmatprep.subr.bf16.mxu0 0
      %1410 = vmatpush1.bf16.msra.mxu0 0
      %1411 = vmatprep.subr.bf16.mxu0 0
      %1412 = vmatpush1.bf16.msra.mxu0 0
      %1413 = vmatprep.subr.bf16.mxu0 0
      %1414 = vmatpush1.bf16.msra.mxu0 0
      %1415 = vmatprep.subr.bf16.mxu0 0
      %1416 = vmatpush1.bf16.msra.mxu0 0
      %1417 = vmatprep.mubr.bf16.mxu0 0
      %1418 = vmatmul.mubr.bf16.gmra.mrb[0].mxu0 %v1368
      %v1419 = vpop.f32.mrb[0].mxu0
      %v1420 = vadd.f32 %v1329, %v1419
      %v1421 = vpop.f32.mrb[0].mxu0
      %v1422 = vpop.f32.mrb[0].mxu0
      %v1423 = vadd.f32 %v1329, %v1422
      %v1424 = vpop.f32.mrb[0].mxu0
      %1425 = vmatprep.mubr.bf16.mxu0 0
      %1426 = vmatmul.mubr.bf16.gmra.mrb[0].mxu0 %v1371
      %v1427 = vpop.f32.mrb[0].mxu0
      %v1428 = vadd.f32 %v1329, %v1427
      %v1429 = vpop.f32.mrb[0].mxu0
      %v1430 = vpop.f32.mrb[0].mxu0
      %v1431 = vadd.f32 %v1329, %v1430
      %v1432 = vpop.f32.mrb[0].mxu0
      %1433 = vmatprep.mubr.bf16.mxu0 0
      %1434 = vmatmul.mubr.bf16.gmra.mrb[0].mxu0 %v1374
      %v1435 = vpop.f32.mrb[0].mxu0
      %v1436 = vadd.f32 %v1329, %v1435
      %v1437 = vpop.f32.mrb[0].mxu0
      %v1438 = vpop.f32.mrb[0].mxu0
      %v1439 = vadd.f32 %v1329, %v1438
      %v1440 = vpop.f32.mrb[0].mxu0
      %1441 = vmatprep.mubr.bf16.mxu0 0
      %1442 = vmatmul.mubr.bf16.gmra.mrb[0].mxu0 %v1377
      %v1443 = vpop.f32.mrb[0].mxu0
      %v1444 = vadd.f32 %v1329, %v1443
      %v1445 = vpop.f32.mrb[0].mxu0
      %v1446 = vpop.f32.mrb[0].mxu0
      %v1447 = vadd.f32 %v1329, %v1446
      %v1448 = vpop.f32.mrb[0].mxu0
      %1449 = vmatprep.mubr.bf16.mxu0 0
      %1450 = vmatmul.mubr.bf16.gmra.mrb[0].mxu0 %v1380
      %v1451 = vpop.f32.mrb[0].mxu0
      %v1452 = vadd.f32 %v1329, %v1451
      %v1453 = vpop.f32.mrb[0].mxu0
      %v1454 = vpop.f32.mrb[0].mxu0
      %v1455 = vadd.f32 %v1329, %v1454
      %v1456 = vpop.f32.mrb[0].mxu0
      %1457 = vmatprep.mubr.bf16.mxu0 0
      %1458 = vmatmul.mubr.bf16.gmra.mrb[0].mxu0 %v1383
      %v1459 = vpop.f32.mrb[0].mxu0
      %v1460 = vadd.f32 %v1329, %v1459
      %v1461 = vpop.f32.mrb[0].mxu0
      %v1462 = vpop.f32.mrb[0].mxu0
      %v1463 = vadd.f32 %v1329, %v1462
      %v1464 = vpop.f32.mrb[0].mxu0
      %1465 = vdwg.mxu0
      %v1467 = vlaneseq
      %v1468 = vshrl.u32 %v1467, 7
      %v1469 = vsub.s32 0, %v1468
      %v1470 = vrot.slane %v1058, %v1469
      %v1484 = vunpack.c.l.b16 %v1046
      %v1485 = vunpack.c.l.b16 %v1047
      %v1486 = vunpack.c.l.b16 %v1048
      %v1487 = vunpack.c.l.b16 %v1049
      %v1488 = vunpack.c.l.b16 %v1050
      %v1489 = vunpack.c.l.b16 %v1051
      %v1490 = vunpack.c.l.b16 %v1052
      %v1491 = vunpack.c.l.b16 %v1053
      %v1492 = vunpack.c.l.b16 %v1054
      %v1493 = vunpack.c.l.b16 %v1055
      %v1494 = vunpack.c.l.b16 %v1056
      %v1495 = vunpack.c.l.b16 %v1057
      %v1496 = vpack.c.b16 %v1485, %v1484
      %v1497 = vpack.c.b16 %v1487, %v1486
      %v1498 = vpack.c.b16 %v1489, %v1488
      %v1499 = vpack.c.b16 %v1491, %v1490
      %v1500 = vpack.c.b16 %v1493, %v1492
      %v1501 = vpack.c.b16 %v1495, %v1494
      %1508 = vmatprep.subr.bf16.mxu0 0
      %1509 = vmatpush1.bf16.msra.mxu0 %v1496
      %1510 = vmatprep.subr.bf16.mxu0 0
      %1511 = vmatpush1.bf16.msra.mxu0 %v1497
      %1512 = vmatprep.subr.bf16.mxu0 0
      %1513 = vmatpush1.bf16.msra.mxu0 %v1498
      %1514 = vmatprep.subr.bf16.mxu0 0
      %1515 = vmatpush1.bf16.msra.mxu0 %v1499
      %1516 = vmatprep.subr.bf16.mxu0 0
      %1517 = vmatpush1.bf16.msra.mxu0 %v1500
      %1518 = vmatprep.subr.bf16.mxu0 0
      %1519 = vmatpush1.bf16.msra.mxu0 %v1501
      %1520 = vmatprep.subr.bf16.mxu0 0
      %1521 = vmatpush1.bf16.msra.mxu0 0
      %1522 = vmatprep.subr.bf16.mxu0 0
      %1523 = vmatpush1.bf16.msra.mxu0 0
      %1524 = vmatprep.subr.bf16.mxu0 0
      %1525 = vmatpush1.bf16.msra.mxu0 0
      %1526 = vmatprep.subr.bf16.mxu0 0
      %1527 = vmatpush1.bf16.msra.mxu0 0
      %1528 = vmatprep.subr.bf16.mxu0 0
      %1529 = vmatpush1.bf16.msra.mxu0 0
      %1530 = vmatprep.subr.bf16.mxu0 0
      %1531 = vmatpush1.bf16.msra.mxu0 0
      %1532 = vmatprep.subr.bf16.mxu0 0
      %1533 = vmatpush1.bf16.msra.mxu0 0
      %1534 = vmatprep.subr.bf16.mxu0 0
      %1535 = vmatpush1.bf16.msra.mxu0 0
      %1536 = vmatprep.subr.bf16.mxu0 0
      %1537 = vmatpush1.bf16.msra.mxu0 0
      %1538 = vmatprep.subr.bf16.mxu0 0
      %1539 = vmatpush1.bf16.msra.mxu0 0
      %1540 = vmatprep.mubr.bf16.mxu0 0
      %1541 = vmatmul.mubr.bf16.gmra.mrb[0].mxu0 %v1368
      %v1542 = vpop.f32.mrb[0].mxu0
      %v1543 = vadd.f32 %v1470, %v1542
      %v1544 = vpop.f32.mrb[0].mxu0
      %v1545 = vpop.f32.mrb[0].mxu0
      %v1546 = vadd.f32 %v1470, %v1545
      %v1547 = vpop.f32.mrb[0].mxu0
      %1548 = vmatprep.mubr.bf16.mxu0 0
      %1549 = vmatmul.mubr.bf16.gmra.mrb[0].mxu0 %v1371
      %v1550 = vpop.f32.mrb[0].mxu0
      %v1551 = vadd.f32 %v1470, %v1550
      %v1552 = vpop.f32.mrb[0].mxu0
      %v1553 = vpop.f32.mrb[0].mxu0
      %v1554 = vadd.f32 %v1470, %v1553
      %v1555 = vpop.f32.mrb[0].mxu0
      %1556 = vmatprep.mubr.bf16.mxu0 0
      %1557 = vmatmul.mubr.bf16.gmra.mrb[0].mxu0 %v1374
      %v1558 = vpop.f32.mrb[0].mxu0
      %v1559 = vadd.f32 %v1470, %v1558
      %v1560 = vpop.f32.mrb[0].mxu0
      %v1561 = vpop.f32.mrb[0].mxu0
      %v1562 = vadd.f32 %v1470, %v1561
      %v1563 = vpop.f32.mrb[0].mxu0
      %1564 = vmatprep.mubr.bf16.mxu0 0
      %1565 = vmatmul.mubr.bf16.gmra.mrb[0].mxu0 %v1377
      %v1566 = vpop.f32.mrb[0].mxu0
      %v1567 = vadd.f32 %v1470, %v1566
      %v1568 = vpop.f32.mrb[0].mxu0
      %v1569 = vpop.f32.mrb[0].mxu0
      %v1570 = vadd.f32 %v1470, %v1569
      %v1571 = vpop.f32.mrb[0].mxu0
      %1572 = vmatprep.mubr.bf16.mxu0 0
      %1573 = vmatmul.mubr.bf16.gmra.mrb[0].mxu0 %v1380
      %v1574 = vpop.f32.mrb[0].mxu0
      %v1575 = vadd.f32 %v1470, %v1574
      %v1576 = vpop.f32.mrb[0].mxu0
      %v1577 = vpop.f32.mrb[0].mxu0
      %v1578 = vadd.f32 %v1470, %v1577
      %v1579 = vpop.f32.mrb[0].mxu0
      %1580 = vmatprep.mubr.bf16.mxu0 0
      %1581 = vmatmul.mubr.bf16.gmra.mrb[0].mxu0 %v1383
      %v1582 = vpop.f32.mrb[0].mxu0
      %v1583 = vadd.f32 %v1470, %v1582
      %v1584 = vpop.f32.mrb[0].mxu0
      %v1585 = vpop.f32.mrb[0].mxu0
      %v1586 = vadd.f32 %v1470, %v1585
      %v1587 = vpop.f32.mrb[0].mxu0
      %1588 = vdwg.mxu0
      %v1590 = vlaneseq
      %v1591 = vshrl.u32 %v1590, 7
      %v1592 = vsub.s32 0, %v1591
      %v1593 = vrot.slane %v1071, %v1592
      %v1607 = vunpack.c.l.b16 %v1059
      %v1608 = vunpack.c.l.b16 %v1060
      %v1609 = vunpack.c.l.b16 %v1061
      %v1610 = vunpack.c.l.b16 %v1062
      %v1611 = vunpack.c.l.b16 %v1063
      %v1612 = vunpack.c.l.b16 %v1064
      %v1613 = vunpack.c.l.b16 %v1065
      %v1614 = vunpack.c.l.b16 %v1066
      %v1615 = vunpack.c.l.b16 %v1067
      %v1616 = vunpack.c.l.b16 %v1068
      %v1617 = vunpack.c.l.b16 %v1069
      %v1618 = vunpack.c.l.b16 %v1070
      %v1619 = vpack.c.b16 %v1608, %v1607
      %v1620 = vpack.c.b16 %v1610, %v1609
      %v1621 = vpack.c.b16 %v1612, %v1611
      %v1622 = vpack.c.b16 %v1614, %v1613
      %v1623 = vpack.c.b16 %v1616, %v1615
      %v1624 = vpack.c.b16 %v1618, %v1617
      %1631 = vmatprep.subr.bf16.mxu0 0
      %1632 = vmatpush1.bf16.msra.mxu0 %v1619
      %1633 = vmatprep.subr.bf16.mxu0 0
      %1634 = vmatpush1.bf16.msra.mxu0 %v1620
      %1635 = vmatprep.subr.bf16.mxu0 0
      %1636 = vmatpush1.bf16.msra.mxu0 %v1621
      %1637 = vmatprep.subr.bf16.mxu0 0
      %1638 = vmatpush1.bf16.msra.mxu0 %v1622
      %1639 = vmatprep.subr.bf16.mxu0 0
      %1640 = vmatpush1.bf16.msra.mxu0 %v1623
      %1641 = vmatprep.subr.bf16.mxu0 0
      %1642 = vmatpush1.bf16.msra.mxu0 %v1624
      %1643 = vmatprep.subr.bf16.mxu0 0
      %1644 = vmatpush1.bf16.msra.mxu0 0
      %1645 = vmatprep.subr.bf16.mxu0 0
      %1646 = vmatpush1.bf16.msra.mxu0 0
      %1647 = vmatprep.subr.bf16.mxu0 0
      %1648 = vmatpush1.bf16.msra.mxu0 0
      %1649 = vmatprep.subr.bf16.mxu0 0
      %1650 = vmatpush1.bf16.msra.mxu0 0
      %1651 = vmatprep.subr.bf16.mxu0 0
      %1652 = vmatpush1.bf16.msra.mxu0 0
      %1653 = vmatprep.subr.bf16.mxu0 0
      %1654 = vmatpush1.bf16.msra.mxu0 0
      %1655 = vmatprep.subr.bf16.mxu0 0
      %1656 = vmatpush1.bf16.msra.mxu0 0
      %1657 = vmatprep.subr.bf16.mxu0 0
      %1658 = vmatpush1.bf16.msra.mxu0 0
      %1659 = vmatprep.subr.bf16.mxu0 0
      %1660 = vmatpush1.bf16.msra.mxu0 0
      %1661 = vmatprep.subr.bf16.mxu0 0
      %1662 = vmatpush1.bf16.msra.mxu0 0
      %1663 = vmatprep.mubr.bf16.mxu0 0
      %1664 = vmatmul.mubr.bf16.gmra.mrb[0].mxu0 %v1368
      %v1665 = vpop.f32.mrb[0].mxu0
      %v1666 = vadd.f32 %v1593, %v1665
      %v1667 = vpop.f32.mrb[0].mxu0
      %v1668 = vpop.f32.mrb[0].mxu0
      %v1669 = vadd.f32 %v1593, %v1668
      %v1670 = vpop.f32.mrb[0].mxu0
      %1671 = vmatprep.mubr.bf16.mxu0 0
      %1672 = vmatmul.mubr.bf16.gmra.mrb[0].mxu0 %v1371
      %v1673 = vpop.f32.mrb[0].mxu0
      %v1674 = vadd.f32 %v1593, %v1673
      %v1675 = vpop.f32.mrb[0].mxu0
      %v1676 = vpop.f32.mrb[0].mxu0
      %v1677 = vadd.f32 %v1593, %v1676
      %v1678 = vpop.f32.mrb[0].mxu0
      %1679 = vmatprep.mubr.bf16.mxu0 0
      %1680 = vmatmul.mubr.bf16.gmra.mrb[0].mxu0 %v1374
      %v1681 = vpop.f32.mrb[0].mxu0
      %v1682 = vadd.f32 %v1593, %v1681
      %v1683 = vpop.f32.mrb[0].mxu0
      %v1684 = vpop.f32.mrb[0].mxu0
      %v1685 = vadd.f32 %v1593, %v1684
      %v1686 = vpop.f32.mrb[0].mxu0
      %1687 = vmatprep.mubr.bf16.mxu0 0
      %1688 = vmatmul.mubr.bf16.gmra.mrb[0].mxu0 %v1377
      %v1689 = vpop.f32.mrb[0].mxu0
      %v1690 = vadd.f32 %v1593, %v1689
      %v1691 = vpop.f32.mrb[0].mxu0
      %v1692 = vpop.f32.mrb[0].mxu0
      %v1693 = vadd.f32 %v1593, %v1692
      %v1694 = vpop.f32.mrb[0].mxu0
      %1695 = vmatprep.mubr.bf16.mxu0 0
      %1696 = vmatmul.mubr.bf16.gmra.mrb[0].mxu0 %v1380
      %v1697 = vpop.f32.mrb[0].mxu0
      %v1698 = vadd.f32 %v1593, %v1697
      %v1699 = vpop.f32.mrb[0].mxu0
      %v1700 = vpop.f32.mrb[0].mxu0
      %v1701 = vadd.f32 %v1593, %v1700
      %v1702 = vpop.f32.mrb[0].mxu0
      %1703 = vmatprep.mubr.bf16.mxu0 0
      %1704 = vmatmul.mubr.bf16.gmra.mrb[0].mxu0 %v1383
      %v1705 = vpop.f32.mrb[0].mxu0
      %v1706 = vadd.f32 %v1593, %v1705
      %v1707 = vpop.f32.mrb[0].mxu0
      %v1708 = vpop.f32.mrb[0].mxu0
      %v1709 = vadd.f32 %v1593, %v1708
      %v1710 = vpop.f32.mrb[0].mxu0
      %1711 = vdwg.mxu0
      %v1712 = vpack.c.bf16 %v1423, %v1420
      %v1713 = vpack.c.bf16 %v1431, %v1428
      %v1714 = vpack.c.bf16 %v1546, %v1543
      %v1715 = vpack.c.bf16 %v1554, %v1551
      %v1716 = vpack.c.bf16 %v1669, %v1666
      %v1717 = vpack.c.bf16 %v1677, %v1674
      %v1718 = vlaneseq
      %v1719 = vand.u32 %v1718, 127
      %vm1720 = vcmp.lt.s32.totalorder %v1719, 26
      %vm1721 = vcmask 261120
      %v1723 = vsel %vm1721, %v1712, 0
      %v1726 = vsel %vm1721, %v1713, 0
      %v1729 = vsel %vm1721, %v1714, 0
      %v1732 = vsel %vm1721, %v1715, 0
      %1734 = vmatprep.subr.bf16.mxu0 0
      %1735 = vmatpush1.bf16.xpose.msra.mxu0 %v1729
      %1736 = vmatprep.subr.bf16.mxu0 0
      %1737 = vmatpush1.bf16.xpose.msra.mxu0 %v1732
      %1738 = vmatprep.subr.bf16.mxu0 0
      %1739 = vmatpush1.bf16.xpose.msra.mxu0 0
      %1740 = vmatprep.subr.bf16.mxu0 0
      %1741 = vmatpush1.bf16.xpose.msra.mxu0 0
      %1742 = vmatprep.subr.bf16.mxu0 0
      %1743 = vmatpush1.bf16.xpose.msra.mxu0 0
      %1744 = vmatprep.subr.bf16.mxu0 0
      %1745 = vmatpush1.bf16.xpose.msra.mxu0 0
      %1746 = vmatprep.subr.bf16.mxu0 0
      %1747 = vmatpush1.bf16.xpose.msra.mxu0 0
      %1748 = vmatprep.subr.bf16.mxu0 0
      %1749 = vmatpush1.bf16.xpose.msra.mxu0 0
      %1750 = vmatprep.subr.bf16.mxu0 0
      %1751 = vmatpush1.bf16.xpose.msra.mxu0 0
      %1752 = vmatprep.subr.bf16.mxu0 0
      %1753 = vmatpush1.bf16.xpose.msra.mxu0 0
      %1754 = vmatprep.subr.bf16.mxu0 0
      %1755 = vmatpush1.bf16.xpose.msra.mxu0 0
      %1756 = vmatprep.subr.bf16.mxu0 0
      %1757 = vmatpush1.bf16.xpose.msra.mxu0 0
      %1758 = vmatprep.subr.bf16.mxu0 0
      %1759 = vmatpush1.bf16.xpose.msra.mxu0 0
      %1760 = vmatprep.subr.bf16.mxu0 0
      %1761 = vmatpush1.bf16.xpose.msra.mxu0 0
      %1762 = vmatprep.subr.bf16.mxu0 0
      %1763 = vmatpush1.bf16.xpose.msra.mxu0 0
      %1764 = vmatprep.subr.bf16.mxu0 0
      %1765 = vmatpush1.bf16.xpose.msra.mxu0 0
      %1766 = vmatprep.mubr.bf16.mxu0 0
      %1767 = vmatmul.mubr.bf16.gmra.mrb[0].mxu0 %v1723
      %v1768 = vpop.f32.mrb[0].mxu0
      %v1769 = vadd.f32 0.0, %v1768
      %v1770 = vpop.f32.mrb[0].mxu0
      %v1771 = vpop.f32.mrb[0].mxu0
      %v1772 = vadd.f32 0.0, %v1771
      %v1773 = vpop.f32.mrb[0].mxu0
      %1774 = vmatprep.mubr.bf16.mxu0 0
      %1775 = vmatmul.mubr.bf16.gmra.mrb[0].mxu0 %v1726
      %v1776 = vpop.f32.mrb[0].mxu0
      %v1777 = vadd.f32 0.0, %v1776
      %v1778 = vpop.f32.mrb[0].mxu0
      %v1779 = vpop.f32.mrb[0].mxu0
      %v1780 = vadd.f32 0.0, %v1779
      %v1781 = vpop.f32.mrb[0].mxu0
      %1782 = vdwg.mxu0
      %v1783 = vsel %vm1720, %v1769, -1e+30
      %v1784 = vsel %vm1720, %v1772, -1e+30
      %v1785 = vsel %vm1720, %v1777, -1e+30
      %v1786 = vsel %vm1720, %v1780, -1e+30
      %v1787 = vsel %vm1721, %v1783, -inf
      %1788 = vmax.xlane.f32.xlu0 %v1787
      %v1789 = vpop.xlane.xlu0 %1788
      %v1790 = vsel %vm1721, %v1784, -inf
      %1791 = vmax.xlane.f32.xlu0 %v1790
      %v1792 = vpop.xlane.xlu0 %1791
      %v1793 = vsel %vm1721, %v1785, -inf
      %1794 = vmax.xlane.f32.xlu0 %v1793
      %v1795 = vpop.xlane.xlu0 %1794
      %v1796 = vsel %vm1721, %v1786, -inf
      %1797 = vmax.xlane.f32.xlu0 %v1796
      %v1798 = vpop.xlane.xlu0 %1797
      %v1799 = vsub.f32 %v1783, %v1789
      %v1800 = vsub.f32 %v1784, %v1792
      %v1801 = vsub.f32 %v1785, %v1795
      %v1802 = vsub.f32 %v1786, %v1798
      %v1803 = vmul.f32 %v1799, 1.442695
      %v1804 = vpow.pop %v1803
      %v1805 = vmul.f32 %v1800, 1.442695
      %v1806 = vpow.pop %v1805
      %v1807 = vmul.f32 %v1801, 1.442695
      %v1808 = vpow.pop %v1807
      %v1809 = vmul.f32 %v1802, 1.442695
      %v1810 = vpow.pop %v1809
      %v1811 = vsel %vm1721, %v1804, 0.0
      %1812 = vadd.xlane.f32.xlu0 %v1811
      %v1813 = vpop.xlane.xlu0 %1812
      %v1814 = vsel %vm1721, %v1806, 0.0
      %1815 = vadd.xlane.f32.xlu0 %v1814
      %v1816 = vpop.xlane.xlu0 %1815
      %v1817 = vsel %vm1721, %v1808, 0.0
      %1818 = vadd.xlane.f32.xlu0 %v1817
      %v1819 = vpop.xlane.xlu0 %1818
      %v1820 = vsel %vm1721, %v1810, 0.0
      %1821 = vadd.xlane.f32.xlu0 %v1820
      %v1822 = vpop.xlane.xlu0 %1821
      %v1823 = vmul.f32 %v1813, 9.797959
      %v1824 = vmul.f32 %v1816, 9.797959
      %v1825 = vmul.f32 %v1819, 9.797959
      %v1826 = vmul.f32 %v1822, 9.797959
      %v1827 = vrcp.pop %v1823
      %v1828 = vrcp.pop %v1824
      %v1829 = vrcp.pop %v1825
      %v1830 = vrcp.pop %v1826
      %v1831 = vmul.f32 %v1804, %v1827
      %v1832 = vmul.f32 %v1806, %v1828
      %v1833 = vmul.f32 %v1808, %v1829
      %v1834 = vmul.f32 %v1810, %v1830
      %v1835 = vpack.c.bf16 %v1832, %v1831
      %v1836 = vpack.c.bf16 %v1834, %v1833
      %v1838 = vsel %vm1721, %v1835, 0
      %v1841 = vsel %vm1721, %v1836, 0
      %1843 = vmatprep.subr.bf16.mxu0 0
      %1844 = vmatpush1.bf16.msra.mxu0 %v1716
      %1845 = vmatprep.subr.bf16.mxu0 0
      %1846 = vmatpush1.bf16.msra.mxu0 %v1717
      %1847 = vmatprep.subr.bf16.mxu0 0
      %1848 = vmatpush1.bf16.msra.mxu0 0
      %1849 = vmatprep.subr.bf16.mxu0 0
      %1850 = vmatpush1.bf16.msra.mxu0 0
      %1851 = vmatprep.subr.bf16.mxu0 0
      %1852 = vmatpush1.bf16.msra.mxu0 0
      %1853 = vmatprep.subr.bf16.mxu0 0
      %1854 = vmatpush1.bf16.msra.mxu0 0
      %1855 = vmatprep.subr.bf16.mxu0 0
      %1856 = vmatpush1.bf16.msra.mxu0 0
      %1857 = vmatprep.subr.bf16.mxu0 0
      %1858 = vmatpush1.bf16.msra.mxu0 0
      %1859 = vmatprep.subr.bf16.mxu0 0
      %1860 = vmatpush1.bf16.msra.mxu0 0
      %1861 = vmatprep.subr.bf16.mxu0 0
      %1862 = vmatpush1.bf16.msra.mxu0 0
      %1863 = vmatprep.subr.bf16.mxu0 0
      %1864 = vmatpush1.bf16.msra.mxu0 0
      %1865 = vmatprep.subr.bf16.mxu0 0
      %1866 = vmatpush1.bf16.msra.mxu0 0
      %1867 = vmatprep.subr.bf16.mxu0 0
      %1868 = vmatpush1.bf16.msra.mxu0 0
      %1869 = vmatprep.subr.bf16.mxu0 0
      %1870 = vmatpush1.bf16.msra.mxu0 0
      %1871 = vmatprep.subr.bf16.mxu0 0
      %1872 = vmatpush1.bf16.msra.mxu0 0
      %1873 = vmatprep.subr.bf16.mxu0 0
      %1874 = vmatpush1.bf16.msra.mxu0 0
      %1875 = vmatprep.mubr.bf16.mxu0 0
      %1876 = vmatmul.mubr.bf16.gmra.mrb[0].mxu0 %v1838
      %v1877 = vpop.f32.mrb[0].mxu0
      %v1878 = vadd.f32 0.0, %v1877
      %v1879 = vpop.f32.mrb[0].mxu0
      %v1880 = vpop.f32.mrb[0].mxu0
      %v1881 = vadd.f32 0.0, %v1880
      %v1882 = vpop.f32.mrb[0].mxu0
      %1883 = vmatprep.mubr.bf16.mxu0 0
      %1884 = vmatmul.mubr.bf16.gmra.mrb[0].mxu0 %v1841
      %v1885 = vpop.f32.mrb[0].mxu0
      %v1886 = vadd.f32 0.0, %v1885
      %v1887 = vpop.f32.mrb[0].mxu0
      %v1888 = vpop.f32.mrb[0].mxu0
      %v1889 = vadd.f32 0.0, %v1888
      %v1890 = vpop.f32.mrb[0].mxu0
      %1891 = vdwg.mxu0
      %1894 = vrot.lane.b32.xlu0 %v1712, 96
      %v1895 = vpop.permute.xlu0 %1894
      %1896 = vrot.lane.b32.xlu0 %v1713, 96
      %v1897 = vpop.permute.xlu0 %1896
      %1900 = vrot.lane.b32.xlu0 %v1714, 96
      %v1901 = vpop.permute.xlu0 %1900
      %1902 = vrot.lane.b32.xlu0 %v1715, 96
      %v1903 = vpop.permute.xlu0 %1902
      %v1905 = vsel %vm1721, %v1895, 0
      %v1908 = vsel %vm1721, %v1897, 0
      %v1911 = vsel %vm1721, %v1901, 0
      %v1914 = vsel %vm1721, %v1903, 0
      %1916 = vmatprep.subr.bf16.mxu0 0
      %1917 = vmatpush1.bf16.xpose.msra.mxu0 %v1911
      %1918 = vmatprep.subr.bf16.mxu0 0
      %1919 = vmatpush1.bf16.xpose.msra.mxu0 %v1914
      %1920 = vmatprep.subr.bf16.mxu0 0
      %1921 = vmatpush1.bf16.xpose.msra.mxu0 0
      %1922 = vmatprep.subr.bf16.mxu0 0
      %1923 = vmatpush1.bf16.xpose.msra.mxu0 0
      %1924 = vmatprep.subr.bf16.mxu0 0
      %1925 = vmatpush1.bf16.xpose.msra.mxu0 0
      %1926 = vmatprep.subr.bf16.mxu0 0
      %1927 = vmatpush1.bf16.xpose.msra.mxu0 0
      %1928 = vmatprep.subr.bf16.mxu0 0
      %1929 = vmatpush1.bf16.xpose.msra.mxu0 0
      %1930 = vmatprep.subr.bf16.mxu0 0
      %1931 = vmatpush1.bf16.xpose.msra.mxu0 0
      %1932 = vmatprep.subr.bf16.mxu0 0
      %1933 = vmatpush1.bf16.xpose.msra.mxu0 0
      %1934 = vmatprep.subr.bf16.mxu0 0
      %1935 = vmatpush1.bf16.xpose.msra.mxu0 0
      %1936 = vmatprep.subr.bf16.mxu0 0
      %1937 = vmatpush1.bf16.xpose.msra.mxu0 0
      %1938 = vmatprep.subr.bf16.mxu0 0
      %1939 = vmatpush1.bf16.xpose.msra.mxu0 0
      %1940 = vmatprep.subr.bf16.mxu0 0
      %1941 = vmatpush1.bf16.xpose.msra.mxu0 0
      %1942 = vmatprep.subr.bf16.mxu0 0
      %1943 = vmatpush1.bf16.xpose.msra.mxu0 0
      %1944 = vmatprep.subr.bf16.mxu0 0
      %1945 = vmatpush1.bf16.xpose.msra.mxu0 0
      %1946 = vmatprep.subr.bf16.mxu0 0
      %1947 = vmatpush1.bf16.xpose.msra.mxu0 0
      %1948 = vmatprep.mubr.bf16.mxu0 0
      %1949 = vmatmul.mubr.bf16.gmra.mrb[0].mxu0 %v1905
      %v1950 = vpop.f32.mrb[0].mxu0
      %v1951 = vadd.f32 0.0, %v1950
      %v1952 = vpop.f32.mrb[0].mxu0
      %v1953 = vpop.f32.mrb[0].mxu0
      %v1954 = vadd.f32 0.0, %v1953
      %v1955 = vpop.f32.mrb[0].mxu0
      %1956 = vmatprep.mubr.bf16.mxu0 0
      %1957 = vmatmul.mubr.bf16.gmra.mrb[0].mxu0 %v1908
      %v1958 = vpop.f32.mrb[0].mxu0
      %v1959 = vadd.f32 0.0, %v1958
      %v1960 = vpop.f32.mrb[0].mxu0
      %v1961 = vpop.f32.mrb[0].mxu0
      %v1962 = vadd.f32 0.0, %v1961
      %v1963 = vpop.f32.mrb[0].mxu0
      %1964 = vdwg.mxu0
      %v1965 = vsel %vm1720, %v1951, -1e+30
      %v1966 = vsel %vm1720, %v1954, -1e+30
      %v1967 = vsel %vm1720, %v1959, -1e+30
      %v1968 = vsel %vm1720, %v1962, -1e+30
      %v1969 = vsel %vm1721, %v1965, -inf
      %1970 = vmax.xlane.f32.xlu0 %v1969
      %v1971 = vpop.xlane.xlu0 %1970
      %v1972 = vsel %vm1721, %v1966, -inf
      %1973 = vmax.xlane.f32.xlu0 %v1972
      %v1974 = vpop.xlane.xlu0 %1973
      %v1975 = vsel %vm1721, %v1967, -inf
      %1976 = vmax.xlane.f32.xlu0 %v1975
      %v1977 = vpop.xlane.xlu0 %1976
      %v1978 = vsel %vm1721, %v1968, -inf
      %1979 = vmax.xlane.f32.xlu0 %v1978
      %v1980 = vpop.xlane.xlu0 %1979
      %v1981 = vsub.f32 %v1965, %v1971
      %v1982 = vsub.f32 %v1966, %v1974
      %v1983 = vsub.f32 %v1967, %v1977
      %v1984 = vsub.f32 %v1968, %v1980
      %v1985 = vmul.f32 %v1981, 1.442695
      %v1986 = vpow.pop %v1985
      %v1987 = vmul.f32 %v1982, 1.442695
      %v1988 = vpow.pop %v1987
      %v1989 = vmul.f32 %v1983, 1.442695
      %v1990 = vpow.pop %v1989
      %v1991 = vmul.f32 %v1984, 1.442695
      %v1992 = vpow.pop %v1991
      %v1993 = vsel %vm1721, %v1986, 0.0
      %1994 = vadd.xlane.f32.xlu0 %v1993
      %v1995 = vpop.xlane.xlu0 %1994
      %v1996 = vsel %vm1721, %v1988, 0.0
      %1997 = vadd.xlane.f32.xlu0 %v1996
      %v1998 = vpop.xlane.xlu0 %1997
      %v1999 = vsel %vm1721, %v1990, 0.0
      %2000 = vadd.xlane.f32.xlu0 %v1999
      %v2001 = vpop.xlane.xlu0 %2000
      %v2002 = vsel %vm1721, %v1992, 0.0
      %2003 = vadd.xlane.f32.xlu0 %v2002
      %v2004 = vpop.xlane.xlu0 %2003
      %v2005 = vmul.f32 %v1995, 9.797959
      %v2006 = vmul.f32 %v1998, 9.797959
      %v2007 = vmul.f32 %v2001, 9.797959
      %v2008 = vmul.f32 %v2004, 9.797959
      %v2009 = vrcp.pop %v2005
      %v2010 = vrcp.pop %v2006
      %v2011 = vrcp.pop %v2007
      %v2012 = vrcp.pop %v2008
      %v2013 = vmul.f32 %v1986, %v2009
      %v2014 = vmul.f32 %v1988, %v2010
      %v2015 = vmul.f32 %v1990, %v2011
      %v2016 = vmul.f32 %v1992, %v2012
      %v2017 = vpack.c.bf16 %v2014, %v2013
      %v2018 = vpack.c.bf16 %v2016, %v2015
      %2021 = vrot.lane.b32.xlu0 %v1716, 96
      %v2022 = vpop.permute.xlu0 %2021
      %2023 = vrot.lane.b32.xlu0 %v1717, 96
      %v2024 = vpop.permute.xlu0 %2023
      %v2028 = vsel %vm1721, %v2017, 0
      %v2031 = vsel %vm1721, %v2018, 0
      %2033 = vmatprep.subr.bf16.mxu0 0
      %2034 = vmatpush1.bf16.msra.mxu0 %v2022
      %2035 = vmatprep.subr.bf16.mxu0 0
      %2036 = vmatpush1.bf16.msra.mxu0 %v2024
      %2037 = vmatprep.subr.bf16.mxu0 0
      %2038 = vmatpush1.bf16.msra.mxu0 0
      %2039 = vmatprep.subr.bf16.mxu0 0
      %2040 = vmatpush1.bf16.msra.mxu0 0
      %2041 = vmatprep.subr.bf16.mxu0 0
      %2042 = vmatpush1.bf16.msra.mxu0 0
      %2043 = vmatprep.subr.bf16.mxu0 0
      %2044 = vmatpush1.bf16.msra.mxu0 0
      %2045 = vmatprep.subr.bf16.mxu0 0
      %2046 = vmatpush1.bf16.msra.mxu0 0
      %2047 = vmatprep.subr.bf16.mxu0 0
      %2048 = vmatpush1.bf16.msra.mxu0 0
      %2049 = vmatprep.subr.bf16.mxu0 0
      %2050 = vmatpush1.bf16.msra.mxu0 0
      %2051 = vmatprep.subr.bf16.mxu0 0
      %2052 = vmatpush1.bf16.msra.mxu0 0
      %2053 = vmatprep.subr.bf16.mxu0 0
      %2054 = vmatpush1.bf16.msra.mxu0 0
      %2055 = vmatprep.subr.bf16.mxu0 0
      %2056 = vmatpush1.bf16.msra.mxu0 0
      %2057 = vmatprep.subr.bf16.mxu0 0
      %2058 = vmatpush1.bf16.msra.mxu0 0
      %2059 = vmatprep.subr.bf16.mxu0 0
      %2060 = vmatpush1.bf16.msra.mxu0 0
      %2061 = vmatprep.subr.bf16.mxu0 0
      %2062 = vmatpush1.bf16.msra.mxu0 0
      %2063 = vmatprep.subr.bf16.mxu0 0
      %2064 = vmatpush1.bf16.msra.mxu0 0
      %2065 = vmatprep.mubr.bf16.mxu0 0
      %2066 = vmatmul.mubr.bf16.gmra.mrb[0].mxu0 %v2028
      %v2067 = vpop.f32.mrb[0].mxu0
      %v2068 = vadd.f32 0.0, %v2067
      %v2069 = vpop.f32.mrb[0].mxu0
      %v2070 = vpop.f32.mrb[0].mxu0
      %v2071 = vadd.f32 0.0, %v2070
      %v2072 = vpop.f32.mrb[0].mxu0
      %2073 = vmatprep.mubr.bf16.mxu0 0
      %2074 = vmatmul.mubr.bf16.gmra.mrb[0].mxu0 %v2031
      %v2075 = vpop.f32.mrb[0].mxu0
      %v2076 = vadd.f32 0.0, %v2075
      %v2077 = vpop.f32.mrb[0].mxu0
      %v2078 = vpop.f32.mrb[0].mxu0
      %v2079 = vadd.f32 0.0, %v2078
      %v2080 = vpop.f32.mrb[0].mxu0
      %2081 = vdwg.mxu0
      %2082 = vrot.lane.b32.xlu0 %v1712, 64
      %v2083 = vpop.permute.xlu0 %2082
      %2084 = vrot.lane.b32.xlu0 %v1713, 64
      %v2085 = vpop.permute.xlu0 %2084
      %2086 = vrot.lane.b32.xlu0 %v1714, 64
      %v2087 = vpop.permute.xlu0 %2086
      %2088 = vrot.lane.b32.xlu0 %v1715, 64
      %v2089 = vpop.permute.xlu0 %2088
      %v2091 = vsel %vm1721, %v2083, 0
      %v2094 = vsel %vm1721, %v2085, 0
      %v2097 = vsel %vm1721, %v2087, 0
      %v2100 = vsel %vm1721, %v2089, 0
      %2102 = vmatprep.subr.bf16.mxu0 0
      %2103 = vmatpush1.bf16.xpose.msra.mxu0 %v2097
      %2104 = vmatprep.subr.bf16.mxu0 0
      %2105 = vmatpush1.bf16.xpose.msra.mxu0 %v2100
      %2106 = vmatprep.subr.bf16.mxu0 0
      %2107 = vmatpush1.bf16.xpose.msra.mxu0 0
      %2108 = vmatprep.subr.bf16.mxu0 0
      %2109 = vmatpush1.bf16.xpose.msra.mxu0 0
      %2110 = vmatprep.subr.bf16.mxu0 0
      %2111 = vmatpush1.bf16.xpose.msra.mxu0 0
      %2112 = vmatprep.subr.bf16.mxu0 0
      %2113 = vmatpush1.bf16.xpose.msra.mxu0 0
      %2114 = vmatprep.subr.bf16.mxu0 0
      %2115 = vmatpush1.bf16.xpose.msra.mxu0 0
      %2116 = vmatprep.subr.bf16.mxu0 0
      %2117 = vmatpush1.bf16.xpose.msra.mxu0 0
      %2118 = vmatprep.subr.bf16.mxu0 0
      %2119 = vmatpush1.bf16.xpose.msra.mxu0 0
      %2120 = vmatprep.subr.bf16.mxu0 0
      %2121 = vmatpush1.bf16.xpose.msra.mxu0 0
      %2122 = vmatprep.subr.bf16.mxu0 0
      %2123 = vmatpush1.bf16.xpose.msra.mxu0 0
      %2124 = vmatprep.subr.bf16.mxu0 0
      %2125 = vmatpush1.bf16.xpose.msra.mxu0 0
      %2126 = vmatprep.subr.bf16.mxu0 0
      %2127 = vmatpush1.bf16.xpose.msra.mxu0 0
      %2128 = vmatprep.subr.bf16.mxu0 0
      %2129 = vmatpush1.bf16.xpose.msra.mxu0 0
      %2130 = vmatprep.subr.bf16.mxu0 0
      %2131 = vmatpush1.bf16.xpose.msra.mxu0 0
      %2132 = vmatprep.subr.bf16.mxu0 0
      %2133 = vmatpush1.bf16.xpose.msra.mxu0 0
      %2134 = vmatprep.mubr.bf16.mxu0 0
      %2135 = vmatmul.mubr.bf16.gmra.mrb[0].mxu0 %v2091
      %v2136 = vpop.f32.mrb[0].mxu0
      %v2137 = vadd.f32 0.0, %v2136
      %v2138 = vpop.f32.mrb[0].mxu0
      %v2139 = vpop.f32.mrb[0].mxu0
      %v2140 = vadd.f32 0.0, %v2139
      %v2141 = vpop.f32.mrb[0].mxu0
      %2142 = vmatprep.mubr.bf16.mxu0 0
      %2143 = vmatmul.mubr.bf16.gmra.mrb[0].mxu0 %v2094
      %v2144 = vpop.f32.mrb[0].mxu0
      %v2145 = vadd.f32 0.0, %v2144
      %v2146 = vpop.f32.mrb[0].mxu0
      %v2147 = vpop.f32.mrb[0].mxu0
      %v2148 = vadd.f32 0.0, %v2147
      %v2149 = vpop.f32.mrb[0].mxu0
      %2150 = vdwg.mxu0
      %v2151 = vsel %vm1720, %v2137, -1e+30
      %v2152 = vsel %vm1720, %v2140, -1e+30
      %v2153 = vsel %vm1720, %v2145, -1e+30
      %v2154 = vsel %vm1720, %v2148, -1e+30
      %v2155 = vsel %vm1721, %v2151, -inf
      %2156 = vmax.xlane.f32.xlu0 %v2155
      %v2157 = vpop.xlane.xlu0 %2156
      %v2158 = vsel %vm1721, %v2152, -inf
      %2159 = vmax.xlane.f32.xlu0 %v2158
      %v2160 = vpop.xlane.xlu0 %2159
      %v2161 = vsel %vm1721, %v2153, -inf
      %2162 = vmax.xlane.f32.xlu0 %v2161
      %v2163 = vpop.xlane.xlu0 %2162
      %v2164 = vsel %vm1721, %v2154, -inf
      %2165 = vmax.xlane.f32.xlu0 %v2164
      %v2166 = vpop.xlane.xlu0 %2165
      %v2167 = vsub.f32 %v2151, %v2157
      %v2168 = vsub.f32 %v2152, %v2160
      %v2169 = vsub.f32 %v2153, %v2163
      %v2170 = vsub.f32 %v2154, %v2166
      %v2171 = vmul.f32 %v2167, 1.442695
      %v2172 = vpow.pop %v2171
      %v2173 = vmul.f32 %v2168, 1.442695
      %v2174 = vpow.pop %v2173
      %v2175 = vmul.f32 %v2169, 1.442695
      %v2176 = vpow.pop %v2175
      %v2177 = vmul.f32 %v2170, 1.442695
      %v2178 = vpow.pop %v2177
      %v2179 = vsel %vm1721, %v2172, 0.0
      %2180 = vadd.xlane.f32.xlu0 %v2179
      %v2181 = vpop.xlane.xlu0 %2180
      %v2182 = vsel %vm1721, %v2174, 0.0
      %2183 = vadd.xlane.f32.xlu0 %v2182
      %v2184 = vpop.xlane.xlu0 %2183
      %v2185 = vsel %vm1721, %v2176, 0.0
      %2186 = vadd.xlane.f32.xlu0 %v2185
      %v2187 = vpop.xlane.xlu0 %2186
      %v2188 = vsel %vm1721, %v2178, 0.0
      %2189 = vadd.xlane.f32.xlu0 %v2188
      %v2190 = vpop.xlane.xlu0 %2189
      %v2191 = vmul.f32 %v2181, 9.797959
      %v2192 = vmul.f32 %v2184, 9.797959
      %v2193 = vmul.f32 %v2187, 9.797959
      %v2194 = vmul.f32 %v2190, 9.797959
      %v2195 = vrcp.pop %v2191
      %v2196 = vrcp.pop %v2192
      %v2197 = vrcp.pop %v2193
      %v2198 = vrcp.pop %v2194
      %v2199 = vmul.f32 %v2172, %v2195
      %v2200 = vmul.f32 %v2174, %v2196
      %v2201 = vmul.f32 %v2176, %v2197
      %v2202 = vmul.f32 %v2178, %v2198
      %v2203 = vpack.c.bf16 %v2200, %v2199
      %v2204 = vpack.c.bf16 %v2202, %v2201
      %2205 = vrot.lane.b32.xlu0 %v1716, 64
      %v2206 = vpop.permute.xlu0 %2205
      %2207 = vrot.lane.b32.xlu0 %v1717, 64
      %v2208 = vpop.permute.xlu0 %2207
      %v2212 = vsel %vm1721, %v2203, 0
      %v2215 = vsel %vm1721, %v2204, 0
      %2217 = vmatprep.subr.bf16.mxu0 0
      %2218 = vmatpush1.bf16.msra.mxu0 %v2206
      %2219 = vmatprep.subr.bf16.mxu0 0
      %2220 = vmatpush1.bf16.msra.mxu0 %v2208
      %2221 = vmatprep.subr.bf16.mxu0 0
      %2222 = vmatpush1.bf16.msra.mxu0 0
      %2223 = vmatprep.subr.bf16.mxu0 0
      %2224 = vmatpush1.bf16.msra.mxu0 0
      %2225 = vmatprep.subr.bf16.mxu0 0
      %2226 = vmatpush1.bf16.msra.mxu0 0
      %2227 = vmatprep.subr.bf16.mxu0 0
      %2228 = vmatpush1.bf16.msra.mxu0 0
      %2229 = vmatprep.subr.bf16.mxu0 0
      %2230 = vmatpush1.bf16.msra.mxu0 0
      %2231 = vmatprep.subr.bf16.mxu0 0
      %2232 = vmatpush1.bf16.msra.mxu0 0
      %2233 = vmatprep.subr.bf16.mxu0 0
      %2234 = vmatpush1.bf16.msra.mxu0 0
      %2235 = vmatprep.subr.bf16.mxu0 0
      %2236 = vmatpush1.bf16.msra.mxu0 0
      %2237 = vmatprep.subr.bf16.mxu0 0
      %2238 = vmatpush1.bf16.msra.mxu0 0
      %2239 = vmatprep.subr.bf16.mxu0 0
      %2240 = vmatpush1.bf16.msra.mxu0 0
      %2241 = vmatprep.subr.bf16.mxu0 0
      %2242 = vmatpush1.bf16.msra.mxu0 0
      %2243 = vmatprep.subr.bf16.mxu0 0
      %2244 = vmatpush1.bf16.msra.mxu0 0
      %2245 = vmatprep.subr.bf16.mxu0 0
      %2246 = vmatpush1.bf16.msra.mxu0 0
      %2247 = vmatprep.subr.bf16.mxu0 0
      %2248 = vmatpush1.bf16.msra.mxu0 0
      %2249 = vmatprep.mubr.bf16.mxu0 0
      %2250 = vmatmul.mubr.bf16.gmra.mrb[0].mxu0 %v2212
      %v2251 = vpop.f32.mrb[0].mxu0
      %v2252 = vadd.f32 0.0, %v2251
      %v2253 = vpop.f32.mrb[0].mxu0
      %v2254 = vpop.f32.mrb[0].mxu0
      %v2255 = vadd.f32 0.0, %v2254
      %v2256 = vpop.f32.mrb[0].mxu0
      %2257 = vmatprep.mubr.bf16.mxu0 0
      %2258 = vmatmul.mubr.bf16.gmra.mrb[0].mxu0 %v2215
      %v2259 = vpop.f32.mrb[0].mxu0
      %v2260 = vadd.f32 0.0, %v2259
      %v2261 = vpop.f32.mrb[0].mxu0
      %v2262 = vpop.f32.mrb[0].mxu0
      %v2263 = vadd.f32 0.0, %v2262
      %v2264 = vpop.f32.mrb[0].mxu0
      %2265 = vdwg.mxu0
      %2270 = vrot.lane.b32.xlu0 %v2068, 32
      %v2271 = vpop.permute.xlu0 %2270
      %2272 = vrot.lane.b32.xlu0 %v2071, 32
      %v2273 = vpop.permute.xlu0 %2272
      %2274 = vrot.lane.b32.xlu0 %v2076, 32
      %v2275 = vpop.permute.xlu0 %2274
      %2276 = vrot.lane.b32.xlu0 %v2079, 32
      %v2277 = vpop.permute.xlu0 %2276
      %2286 = vrot.lane.b32.xlu0 %v2252, 64
      %v2287 = vpop.permute.xlu0 %2286
      %2288 = vrot.lane.b32.xlu0 %v2255, 64
      %v2289 = vpop.permute.xlu0 %2288
      %2290 = vrot.lane.b32.xlu0 %v2260, 64
      %v2291 = vpop.permute.xlu0 %2290
      %2292 = vrot.lane.b32.xlu0 %v2263, 64
      %v2293 = vpop.permute.xlu0 %2292
      %v2298 = vsel %vm1721, %v1878, %v2271
      %v2299 = vsel %vm1721, %v1881, %v2273
      %v2300 = vsel %vm1721, %v1886, %v2275
      %v2301 = vsel %vm1721, %v1889, %v2277
      %vm2302 = vcmask 523264
      %v2303 = vsel %vm2302, %v2298, %v2287
      %v2304 = vsel %vm2302, %v2299, %v2289
      %v2305 = vsel %vm2302, %v2300, %v2291
      %v2306 = vsel %vm2302, %v2301, %v2293
      %v2307 = vpack.c.bf16 %v1439, %v1436
      %v2308 = vpack.c.bf16 %v1562, %v1559
      %v2309 = vpack.c.bf16 %v1685, %v1682
      %v2311 = vsel %vm1721, %v2307, 0
      %v2314 = vsel %vm1721, %v2308, 0
      %2316 = vmatprep.subr.bf16.mxu0 0
      %2317 = vmatpush1.bf16.xpose.msra.mxu0 %v2314
      %2318 = vmatprep.subr.bf16.mxu0 0
      %2319 = vmatpush1.bf16.xpose.msra.mxu0 0
      %2320 = vmatprep.subr.bf16.mxu0 0
      %2321 = vmatpush1.bf16.xpose.msra.mxu0 0
      %2322 = vmatprep.subr.bf16.mxu0 0
      %2323 = vmatpush1.bf16.xpose.msra.mxu0 0
      %2324 = vmatprep.subr.bf16.mxu0 0
      %2325 = vmatpush1.bf16.xpose.msra.mxu0 0
      %2326 = vmatprep.subr.bf16.mxu0 0
      %2327 = vmatpush1.bf16.xpose.msra.mxu0 0
      %2328 = vmatprep.subr.bf16.mxu0 0
      %2329 = vmatpush1.bf16.xpose.msra.mxu0 0
      %2330 = vmatprep.subr.bf16.mxu0 0
      %2331 = vmatpush1.bf16.xpose.msra.mxu0 0
      %2332 = vmatprep.subr.bf16.mxu0 0
      %2333 = vmatpush1.bf16.xpose.msra.mxu0 0
      %2334 = vmatprep.subr.bf16.mxu0 0
      %2335 = vmatpush1.bf16.xpose.msra.mxu0 0
      %2336 = vmatprep.subr.bf16.mxu0 0
      %2337 = vmatpush1.bf16.xpose.msra.mxu0 0
      %2338 = vmatprep.subr.bf16.mxu0 0
      %2339 = vmatpush1.bf16.xpose.msra.mxu0 0
      %2340 = vmatprep.subr.bf16.mxu0 0
      %2341 = vmatpush1.bf16.xpose.msra.mxu0 0
      %2342 = vmatprep.subr.bf16.mxu0 0
      %2343 = vmatpush1.bf16.xpose.msra.mxu0 0
      %2344 = vmatprep.subr.bf16.mxu0 0
      %2345 = vmatpush1.bf16.xpose.msra.mxu0 0
      %2346 = vmatprep.subr.bf16.mxu0 0
      %2347 = vmatpush1.bf16.xpose.msra.mxu0 0
      %2348 = vmatprep.mubr.bf16.mxu0 0
      %2349 = vmatmul.mubr.bf16.gmra.mrb[0].mxu0 %v2311
      %v2350 = vpop.f32.mrb[0].mxu0
      %v2351 = vadd.f32 0.0, %v2350
      %v2352 = vpop.f32.mrb[0].mxu0
      %v2353 = vpop.f32.mrb[0].mxu0
      %v2354 = vadd.f32 0.0, %v2353
      %v2355 = vpop.f32.mrb[0].mxu0
      %2356 = vdwg.mxu0
      %vm2357 = vcmask 130048
      %v2358 = vsel %vm2357, %v2351, -inf
      %2359 = vmax.xlane.f32.xlu0 %v2358
      %v2360 = vpop.xlane.xlu0 %2359
      %v2361 = vsel %vm2357, %v2354, -inf
      %2362 = vmax.xlane.f32.xlu0 %v2361
      %v2363 = vpop.xlane.xlu0 %2362
      %v2364 = vsub.f32 %v2351, %v2360
      %v2365 = vsub.f32 %v2354, %v2363
      %v2366 = vmul.f32 %v2364, 1.442695
      %v2367 = vpow.pop %v2366
      %v2368 = vmul.f32 %v2365, 1.442695
      %v2369 = vpow.pop %v2368
      %v2370 = vsel %vm2357, %v2367, 0.0
      %2371 = vadd.xlane.f32.xlu0 %v2370
      %v2372 = vpop.xlane.xlu0 %2371
      %v2373 = vsel %vm2357, %v2369, 0.0
      %2374 = vadd.xlane.f32.xlu0 %v2373
      %v2375 = vpop.xlane.xlu0 %2374
      %v2376 = vmul.f32 %v2372, 9.797959
      %v2377 = vmul.f32 %v2375, 9.797959
      %v2378 = vrcp.pop %v2376
      %v2379 = vrcp.pop %v2377
      %v2380 = vmul.f32 %v2367, %v2378
      %v2381 = vmul.f32 %v2369, %v2379
      %v2382 = vpack.c.bf16 %v2381, %v2380
      %v2384 = vsel %vm2357, %v2382, 0
      %2386 = vmatprep.subr.bf16.mxu0 0
      %2387 = vmatpush1.bf16.msra.mxu0 %v2309
      %2388 = vmatprep.subr.bf16.mxu0 0
      %2389 = vmatpush1.bf16.msra.mxu0 0
      %2390 = vmatprep.subr.bf16.mxu0 0
      %2391 = vmatpush1.bf16.msra.mxu0 0
      %2392 = vmatprep.subr.bf16.mxu0 0
      %2393 = vmatpush1.bf16.msra.mxu0 0
      %2394 = vmatprep.subr.bf16.mxu0 0
      %2395 = vmatpush1.bf16.msra.mxu0 0
      %2396 = vmatprep.subr.bf16.mxu0 0
      %2397 = vmatpush1.bf16.msra.mxu0 0
      %2398 = vmatprep.subr.bf16.mxu0 0
      %2399 = vmatpush1.bf16.msra.mxu0 0
      %2400 = vmatprep.subr.bf16.mxu0 0
      %2401 = vmatpush1.bf16.msra.mxu0 0
      %2402 = vmatprep.subr.bf16.mxu0 0
      %2403 = vmatpush1.bf16.msra.mxu0 0
      %2404 = vmatprep.subr.bf16.mxu0 0
      %2405 = vmatpush1.bf16.msra.mxu0 0
      %2406 = vmatprep.subr.bf16.mxu0 0
      %2407 = vmatpush1.bf16.msra.mxu0 0
      %2408 = vmatprep.subr.bf16.mxu0 0
      %2409 = vmatpush1.bf16.msra.mxu0 0
      %2410 = vmatprep.subr.bf16.mxu0 0
      %2411 = vmatpush1.bf16.msra.mxu0 0
      %2412 = vmatprep.subr.bf16.mxu0 0
      %2413 = vmatpush1.bf16.msra.mxu0 0
      %2414 = vmatprep.subr.bf16.mxu0 0
      %2415 = vmatpush1.bf16.msra.mxu0 0
      %2416 = vmatprep.subr.bf16.mxu0 0
      %2417 = vmatpush1.bf16.msra.mxu0 0
      %2418 = vmatprep.mubr.bf16.mxu0 0
      %2419 = vmatmul.mubr.bf16.gmra.mrb[0].mxu0 %v2384
      %v2420 = vpop.f32.mrb[0].mxu0
      %v2421 = vadd.f32 0.0, %v2420
      %v2422 = vpop.f32.mrb[0].mxu0
      %v2423 = vpop.f32.mrb[0].mxu0
      %v2424 = vadd.f32 0.0, %v2423
      %v2425 = vpop.f32.mrb[0].mxu0
      %2426 = vdwg.mxu0
      %2428 = vrot.lane.b32.xlu0 %v2307, 96
      %v2429 = vpop.permute.xlu0 %2428
      %2431 = vrot.lane.b32.xlu0 %v2308, 96
      %v2432 = vpop.permute.xlu0 %2431
      %v2434 = vsel %vm1721, %v2429, 0
      %v2437 = vsel %vm1721, %v2432, 0
      %2439 = vmatprep.subr.bf16.mxu0 0
      %2440 = vmatpush1.bf16.xpose.msra.mxu0 %v2437
      %2441 = vmatprep.subr.bf16.mxu0 0
      %2442 = vmatpush1.bf16.xpose.msra.mxu0 0
      %2443 = vmatprep.subr.bf16.mxu0 0
      %2444 = vmatpush1.bf16.xpose.msra.mxu0 0
      %2445 = vmatprep.subr.bf16.mxu0 0
      %2446 = vmatpush1.bf16.xpose.msra.mxu0 0
      %2447 = vmatprep.subr.bf16.mxu0 0
      %2448 = vmatpush1.bf16.xpose.msra.mxu0 0
      %2449 = vmatprep.subr.bf16.mxu0 0
      %2450 = vmatpush1.bf16.xpose.msra.mxu0 0
      %2451 = vmatprep.subr.bf16.mxu0 0
      %2452 = vmatpush1.bf16.xpose.msra.mxu0 0
      %2453 = vmatprep.subr.bf16.mxu0 0
      %2454 = vmatpush1.bf16.xpose.msra.mxu0 0
      %2455 = vmatprep.subr.bf16.mxu0 0
      %2456 = vmatpush1.bf16.xpose.msra.mxu0 0
      %2457 = vmatprep.subr.bf16.mxu0 0
      %2458 = vmatpush1.bf16.xpose.msra.mxu0 0
      %2459 = vmatprep.subr.bf16.mxu0 0
      %2460 = vmatpush1.bf16.xpose.msra.mxu0 0
      %2461 = vmatprep.subr.bf16.mxu0 0
      %2462 = vmatpush1.bf16.xpose.msra.mxu0 0
      %2463 = vmatprep.subr.bf16.mxu0 0
      %2464 = vmatpush1.bf16.xpose.msra.mxu0 0
      %2465 = vmatprep.subr.bf16.mxu0 0
      %2466 = vmatpush1.bf16.xpose.msra.mxu0 0
      %2467 = vmatprep.subr.bf16.mxu0 0
      %2468 = vmatpush1.bf16.xpose.msra.mxu0 0
      %2469 = vmatprep.subr.bf16.mxu0 0
      %2470 = vmatpush1.bf16.xpose.msra.mxu0 0
      %2471 = vmatprep.mubr.bf16.mxu0 0
      %2472 = vmatmul.mubr.bf16.gmra.mrb[0].mxu0 %v2434
      %v2473 = vpop.f32.mrb[0].mxu0
      %v2474 = vadd.f32 0.0, %v2473
      %v2475 = vpop.f32.mrb[0].mxu0
      %v2476 = vpop.f32.mrb[0].mxu0
      %v2477 = vadd.f32 0.0, %v2476
      %v2478 = vpop.f32.mrb[0].mxu0
      %2479 = vdwg.mxu0
      %v2480 = vsel %vm2357, %v2474, -inf
      %2481 = vmax.xlane.f32.xlu0 %v2480
      %v2482 = vpop.xlane.xlu0 %2481
      %v2483 = vsel %vm2357, %v2477, -inf
      %2484 = vmax.xlane.f32.xlu0 %v2483
      %v2485 = vpop.xlane.xlu0 %2484
      %v2486 = vsub.f32 %v2474, %v2482
      %v2487 = vsub.f32 %v2477, %v2485
      %v2488 = vmul.f32 %v2486, 1.442695
      %v2489 = vpow.pop %v2488
      %v2490 = vmul.f32 %v2487, 1.442695
      %v2491 = vpow.pop %v2490
      %v2492 = vsel %vm2357, %v2489, 0.0
      %2493 = vadd.xlane.f32.xlu0 %v2492
      %v2494 = vpop.xlane.xlu0 %2493
      %v2495 = vsel %vm2357, %v2491, 0.0
      %2496 = vadd.xlane.f32.xlu0 %v2495
      %v2497 = vpop.xlane.xlu0 %2496
      %v2498 = vmul.f32 %v2494, 9.797959
      %v2499 = vmul.f32 %v2497, 9.797959
      %v2500 = vrcp.pop %v2498
      %v2501 = vrcp.pop %v2499
      %v2502 = vmul.f32 %v2489, %v2500
      %v2503 = vmul.f32 %v2491, %v2501
      %v2504 = vpack.c.bf16 %v2503, %v2502
      %2506 = vrot.lane.b32.xlu0 %v2309, 96
      %v2507 = vpop.permute.xlu0 %2506
      %v2510 = vsel %vm2357, %v2504, 0
      %2512 = vmatprep.subr.bf16.mxu0 0
      %2513 = vmatpush1.bf16.msra.mxu0 %v2507
      %2514 = vmatprep.subr.bf16.mxu0 0
      %2515 = vmatpush1.bf16.msra.mxu0 0
      %2516 = vmatprep.subr.bf16.mxu0 0
      %2517 = vmatpush1.bf16.msra.mxu0 0
      %2518 = vmatprep.subr.bf16.mxu0 0
      %2519 = vmatpush1.bf16.msra.mxu0 0
      %2520 = vmatprep.subr.bf16.mxu0 0
      %2521 = vmatpush1.bf16.msra.mxu0 0
      %2522 = vmatprep.subr.bf16.mxu0 0
      %2523 = vmatpush1.bf16.msra.mxu0 0
      %2524 = vmatprep.subr.bf16.mxu0 0
      %2525 = vmatpush1.bf16.msra.mxu0 0
      %2526 = vmatprep.subr.bf16.mxu0 0
      %2527 = vmatpush1.bf16.msra.mxu0 0
      %2528 = vmatprep.subr.bf16.mxu0 0
      %2529 = vmatpush1.bf16.msra.mxu0 0
      %2530 = vmatprep.subr.bf16.mxu0 0
      %2531 = vmatpush1.bf16.msra.mxu0 0
      %2532 = vmatprep.subr.bf16.mxu0 0
      %2533 = vmatpush1.bf16.msra.mxu0 0
      %2534 = vmatprep.subr.bf16.mxu0 0
      %2535 = vmatpush1.bf16.msra.mxu0 0
      %2536 = vmatprep.subr.bf16.mxu0 0
      %2537 = vmatpush1.bf16.msra.mxu0 0
      %2538 = vmatprep.subr.bf16.mxu0 0
      %2539 = vmatpush1.bf16.msra.mxu0 0
      %2540 = vmatprep.subr.bf16.mxu0 0
      %2541 = vmatpush1.bf16.msra.mxu0 0
      %2542 = vmatprep.subr.bf16.mxu0 0
      %2543 = vmatpush1.bf16.msra.mxu0 0
      %2544 = vmatprep.mubr.bf16.mxu0 0
      %2545 = vmatmul.mubr.bf16.gmra.mrb[0].mxu0 %v2510
      %v2546 = vpop.f32.mrb[0].mxu0
      %v2547 = vadd.f32 0.0, %v2546
      %v2548 = vpop.f32.mrb[0].mxu0
      %v2549 = vpop.f32.mrb[0].mxu0
      %v2550 = vadd.f32 0.0, %v2549
      %v2551 = vpop.f32.mrb[0].mxu0
      %2552 = vdwg.mxu0
      %2553 = vrot.lane.b32.xlu0 %v2307, 64
      %v2554 = vpop.permute.xlu0 %2553
      %2555 = vrot.lane.b32.xlu0 %v2308, 64
      %v2556 = vpop.permute.xlu0 %2555
      %v2558 = vsel %vm1721, %v2554, 0
      %v2561 = vsel %vm1721, %v2556, 0
      %2563 = vmatprep.subr.bf16.mxu0 0
      %2564 = vmatpush1.bf16.xpose.msra.mxu0 %v2561
      %2565 = vmatprep.subr.bf16.mxu0 0
      %2566 = vmatpush1.bf16.xpose.msra.mxu0 0
      %2567 = vmatprep.subr.bf16.mxu0 0
      %2568 = vmatpush1.bf16.xpose.msra.mxu0 0
      %2569 = vmatprep.subr.bf16.mxu0 0
      %2570 = vmatpush1.bf16.xpose.msra.mxu0 0
      %2571 = vmatprep.subr.bf16.mxu0 0
      %2572 = vmatpush1.bf16.xpose.msra.mxu0 0
      %2573 = vmatprep.subr.bf16.mxu0 0
      %2574 = vmatpush1.bf16.xpose.msra.mxu0 0
      %2575 = vmatprep.subr.bf16.mxu0 0
      %2576 = vmatpush1.bf16.xpose.msra.mxu0 0
      %2577 = vmatprep.subr.bf16.mxu0 0
      %2578 = vmatpush1.bf16.xpose.msra.mxu0 0
      %2579 = vmatprep.subr.bf16.mxu0 0
      %2580 = vmatpush1.bf16.xpose.msra.mxu0 0
      %2581 = vmatprep.subr.bf16.mxu0 0
      %2582 = vmatpush1.bf16.xpose.msra.mxu0 0
      %2583 = vmatprep.subr.bf16.mxu0 0
      %2584 = vmatpush1.bf16.xpose.msra.mxu0 0
      %2585 = vmatprep.subr.bf16.mxu0 0
      %2586 = vmatpush1.bf16.xpose.msra.mxu0 0
      %2587 = vmatprep.subr.bf16.mxu0 0
      %2588 = vmatpush1.bf16.xpose.msra.mxu0 0
      %2589 = vmatprep.subr.bf16.mxu0 0
      %2590 = vmatpush1.bf16.xpose.msra.mxu0 0
      %2591 = vmatprep.subr.bf16.mxu0 0
      %2592 = vmatpush1.bf16.xpose.msra.mxu0 0
      %2593 = vmatprep.subr.bf16.mxu0 0
      %2594 = vmatpush1.bf16.xpose.msra.mxu0 0
      %2595 = vmatprep.mubr.bf16.mxu0 0
      %2596 = vmatmul.mubr.bf16.gmra.mrb[0].mxu0 %v2558
      %v2597 = vpop.f32.mrb[0].mxu0
      %v2598 = vadd.f32 0.0, %v2597
      %v2599 = vpop.f32.mrb[0].mxu0
      %v2600 = vpop.f32.mrb[0].mxu0
      %v2601 = vadd.f32 0.0, %v2600
      %v2602 = vpop.f32.mrb[0].mxu0
      %2603 = vdwg.mxu0
      %v2604 = vsel %vm2357, %v2598, -inf
      %2605 = vmax.xlane.f32.xlu0 %v2604
      %v2606 = vpop.xlane.xlu0 %2605
      %v2607 = vsel %vm2357, %v2601, -inf
      %2608 = vmax.xlane.f32.xlu0 %v2607
      %v2609 = vpop.xlane.xlu0 %2608
      %v2610 = vsub.f32 %v2598, %v2606
      %v2611 = vsub.f32 %v2601, %v2609
      %v2612 = vmul.f32 %v2610, 1.442695
      %v2613 = vpow.pop %v2612
      %v2614 = vmul.f32 %v2611, 1.442695
      %v2615 = vpow.pop %v2614
      %v2616 = vsel %vm2357, %v2613, 0.0
      %2617 = vadd.xlane.f32.xlu0 %v2616
      %v2618 = vpop.xlane.xlu0 %2617
      %v2619 = vsel %vm2357, %v2615, 0.0
      %2620 = vadd.xlane.f32.xlu0 %v2619
      %v2621 = vpop.xlane.xlu0 %2620
      %v2622 = vmul.f32 %v2618, 9.797959
      %v2623 = vmul.f32 %v2621, 9.797959
      %v2624 = vrcp.pop %v2622
      %v2625 = vrcp.pop %v2623
      %v2626 = vmul.f32 %v2613, %v2624
      %v2627 = vmul.f32 %v2615, %v2625
      %v2628 = vpack.c.bf16 %v2627, %v2626
      %2629 = vrot.lane.b32.xlu0 %v2309, 64
      %v2630 = vpop.permute.xlu0 %2629
      %v2633 = vsel %vm2357, %v2628, 0
      %2635 = vmatprep.subr.bf16.mxu0 0
      %2636 = vmatpush1.bf16.msra.mxu0 %v2630
      %2637 = vmatprep.subr.bf16.mxu0 0
      %2638 = vmatpush1.bf16.msra.mxu0 0
      %2639 = vmatprep.subr.bf16.mxu0 0
      %2640 = vmatpush1.bf16.msra.mxu0 0
      %2641 = vmatprep.subr.bf16.mxu0 0
      %2642 = vmatpush1.bf16.msra.mxu0 0
      %2643 = vmatprep.subr.bf16.mxu0 0
      %2644 = vmatpush1.bf16.msra.mxu0 0
      %2645 = vmatprep.subr.bf16.mxu0 0
      %2646 = vmatpush1.bf16.msra.mxu0 0
      %2647 = vmatprep.subr.bf16.mxu0 0
      %2648 = vmatpush1.bf16.msra.mxu0 0
      %2649 = vmatprep.subr.bf16.mxu0 0
      %2650 = vmatpush1.bf16.msra.mxu0 0
      %2651 = vmatprep.subr.bf16.mxu0 0
      %2652 = vmatpush1.bf16.msra.mxu0 0
      %2653 = vmatprep.subr.bf16.mxu0 0
      %2654 = vmatpush1.bf16.msra.mxu0 0
      %2655 = vmatprep.subr.bf16.mxu0 0
      %2656 = vmatpush1.bf16.msra.mxu0 0
      %2657 = vmatprep.subr.bf16.mxu0 0
      %2658 = vmatpush1.bf16.msra.mxu0 0
      %2659 = vmatprep.subr.bf16.mxu0 0
      %2660 = vmatpush1.bf16.msra.mxu0 0
      %2661 = vmatprep.subr.bf16.mxu0 0
      %2662 = vmatpush1.bf16.msra.mxu0 0
      %2663 = vmatprep.subr.bf16.mxu0 0
      %2664 = vmatpush1.bf16.msra.mxu0 0
      %2665 = vmatprep.subr.bf16.mxu0 0
      %2666 = vmatpush1.bf16.msra.mxu0 0
      %2667 = vmatprep.mubr.bf16.mxu0 0
      %2668 = vmatmul.mubr.bf16.gmra.mrb[0].mxu0 %v2633
      %v2669 = vpop.f32.mrb[0].mxu0
      %v2670 = vadd.f32 0.0, %v2669
      %v2671 = vpop.f32.mrb[0].mxu0
      %v2672 = vpop.f32.mrb[0].mxu0
      %v2673 = vadd.f32 0.0, %v2672
      %v2674 = vpop.f32.mrb[0].mxu0
      %2675 = vdwg.mxu0
      %2678 = vrot.lane.b32.xlu0 %v2547, 32
      %v2679 = vpop.permute.xlu0 %2678
      %2680 = vrot.lane.b32.xlu0 %v2550, 32
      %v2681 = vpop.permute.xlu0 %2680
      %2686 = vrot.lane.b32.xlu0 %v2670, 64
      %v2687 = vpop.permute.xlu0 %2686
      %2688 = vrot.lane.b32.xlu0 %v2673, 64
      %v2689 = vpop.permute.xlu0 %2688
      %v2692 = vsel %vm1721, %v2421, %v2679
      %v2693 = vsel %vm1721, %v2424, %v2681
      %v2694 = vsel %vm2302, %v2692, %v2687
      %v2695 = vsel %vm2302, %v2693, %v2689
      %v2696 = vpack.c.bf16 %v1447, %v1444
      %v2697 = vpack.c.bf16 %v1455, %v1452
      %v2698 = vpack.c.bf16 %v1570, %v1567
      %v2699 = vpack.c.bf16 %v1578, %v1575
      %v2700 = vpack.c.bf16 %v1693, %v1690
      %v2701 = vpack.c.bf16 %v1701, %v1698
      %v2703 = vsel %vm1721, %v2696, 0
      %v2706 = vsel %vm1721, %v2697, 0
      %v2709 = vsel %vm1721, %v2698, 0
      %v2712 = vsel %vm1721, %v2699, 0
      %2714 = vmatprep.subr.bf16.mxu0 0
      %2715 = vmatpush1.bf16.xpose.msra.mxu0 %v2709
      %2716 = vmatprep.subr.bf16.mxu0 0
      %2717 = vmatpush1.bf16.xpose.msra.mxu0 %v2712
      %2718 = vmatprep.subr.bf16.mxu0 0
      %2719 = vmatpush1.bf16.xpose.msra.mxu0 0
      %2720 = vmatprep.subr.bf16.mxu0 0
      %2721 = vmatpush1.bf16.xpose.msra.mxu0 0
      %2722 = vmatprep.subr.bf16.mxu0 0
      %2723 = vmatpush1.bf16.xpose.msra.mxu0 0
      %2724 = vmatprep.subr.bf16.mxu0 0
      %2725 = vmatpush1.bf16.xpose.msra.mxu0 0
      %2726 = vmatprep.subr.bf16.mxu0 0
      %2727 = vmatpush1.bf16.xpose.msra.mxu0 0
      %2728 = vmatprep.subr.bf16.mxu0 0
      %2729 = vmatpush1.bf16.xpose.msra.mxu0 0
      %2730 = vmatprep.subr.bf16.mxu0 0
      %2731 = vmatpush1.bf16.xpose.msra.mxu0 0
      %2732 = vmatprep.subr.bf16.mxu0 0
      %2733 = vmatpush1.bf16.xpose.msra.mxu0 0
      %2734 = vmatprep.subr.bf16.mxu0 0
      %2735 = vmatpush1.bf16.xpose.msra.mxu0 0
      %2736 = vmatprep.subr.bf16.mxu0 0
      %2737 = vmatpush1.bf16.xpose.msra.mxu0 0
      %2738 = vmatprep.subr.bf16.mxu0 0
      %2739 = vmatpush1.bf16.xpose.msra.mxu0 0
      %2740 = vmatprep.subr.bf16.mxu0 0
      %2741 = vmatpush1.bf16.xpose.msra.mxu0 0
      %2742 = vmatprep.subr.bf16.mxu0 0
      %2743 = vmatpush1.bf16.xpose.msra.mxu0 0
      %2744 = vmatprep.subr.bf16.mxu0 0
      %2745 = vmatpush1.bf16.xpose.msra.mxu0 0
      %2746 = vmatprep.mubr.bf16.mxu0 0
      %2747 = vmatmul.mubr.bf16.gmra.mrb[0].mxu0 %v2703
      %v2748 = vpop.f32.mrb[0].mxu0
      %v2749 = vadd.f32 0.0, %v2748
      %v2750 = vpop.f32.mrb[0].mxu0
      %v2751 = vpop.f32.mrb[0].mxu0
      %v2752 = vadd.f32 0.0, %v2751
      %v2753 = vpop.f32.mrb[0].mxu0
      %2754 = vmatprep.mubr.bf16.mxu0 0
      %2755 = vmatmul.mubr.bf16.gmra.mrb[0].mxu0 %v2706
      %v2756 = vpop.f32.mrb[0].mxu0
      %v2757 = vadd.f32 0.0, %v2756
      %v2758 = vpop.f32.mrb[0].mxu0
      %v2759 = vpop.f32.mrb[0].mxu0
      %v2760 = vadd.f32 0.0, %v2759
      %v2761 = vpop.f32.mrb[0].mxu0
      %2762 = vdwg.mxu0
      %v2763 = vsel %vm1720, %v2749, -1e+30
      %v2764 = vsel %vm1720, %v2752, -1e+30
      %v2765 = vsel %vm1720, %v2757, -1e+30
      %v2766 = vsel %vm1720, %v2760, -1e+30
      %v2767 = vsel %vm1721, %v2763, -inf
      %2768 = vmax.xlane.f32.xlu0 %v2767
      %v2769 = vpop.xlane.xlu0 %2768
      %v2770 = vsel %vm1721, %v2764, -inf
      %2771 = vmax.xlane.f32.xlu0 %v2770
      %v2772 = vpop.xlane.xlu0 %2771
      %v2773 = vsel %vm1721, %v2765, -inf
      %2774 = vmax.xlane.f32.xlu0 %v2773
      %v2775 = vpop.xlane.xlu0 %2774
      %v2776 = vsel %vm1721, %v2766, -inf
      %2777 = vmax.xlane.f32.xlu0 %v2776
      %v2778 = vpop.xlane.xlu0 %2777
      %v2779 = vsub.f32 %v2763, %v2769
      %v2780 = vsub.f32 %v2764, %v2772
      %v2781 = vsub.f32 %v2765, %v2775
      %v2782 = vsub.f32 %v2766, %v2778
      %v2783 = vmul.f32 %v2779, 1.442695
      %v2784 = vpow.pop %v2783
      %v2785 = vmul.f32 %v2780, 1.442695
      %v2786 = vpow.pop %v2785
      %v2787 = vmul.f32 %v2781, 1.442695
      %v2788 = vpow.pop %v2787
      %v2789 = vmul.f32 %v2782, 1.442695
      %v2790 = vpow.pop %v2789
      %v2791 = vsel %vm1721, %v2784, 0.0
      %2792 = vadd.xlane.f32.xlu0 %v2791
      %v2793 = vpop.xlane.xlu0 %2792
      %v2794 = vsel %vm1721, %v2786, 0.0
      %2795 = vadd.xlane.f32.xlu0 %v2794
      %v2796 = vpop.xlane.xlu0 %2795
      %v2797 = vsel %vm1721, %v2788, 0.0
      %2798 = vadd.xlane.f32.xlu0 %v2797
      %v2799 = vpop.xlane.xlu0 %2798
      %v2800 = vsel %vm1721, %v2790, 0.0
      %2801 = vadd.xlane.f32.xlu0 %v2800
      %v2802 = vpop.xlane.xlu0 %2801
      %v2803 = vmul.f32 %v2793, 9.797959
      %v2804 = vmul.f32 %v2796, 9.797959
      %v2805 = vmul.f32 %v2799, 9.797959
      %v2806 = vmul.f32 %v2802, 9.797959
      %v2807 = vrcp.pop %v2803
      %v2808 = vrcp.pop %v2804
      %v2809 = vrcp.pop %v2805
      %v2810 = vrcp.pop %v2806
      %v2811 = vmul.f32 %v2784, %v2807
      %v2812 = vmul.f32 %v2786, %v2808
      %v2813 = vmul.f32 %v2788, %v2809
      %v2814 = vmul.f32 %v2790, %v2810
      %v2815 = vpack.c.bf16 %v2812, %v2811
      %v2816 = vpack.c.bf16 %v2814, %v2813
      %v2818 = vsel %vm1721, %v2815, 0
      %v2821 = vsel %vm1721, %v2816, 0
      %2823 = vmatprep.subr.bf16.mxu0 0
      %2824 = vmatpush1.bf16.msra.mxu0 %v2700
      %2825 = vmatprep.subr.bf16.mxu0 0
      %2826 = vmatpush1.bf16.msra.mxu0 %v2701
      %2827 = vmatprep.subr.bf16.mxu0 0
      %2828 = vmatpush1.bf16.msra.mxu0 0
      %2829 = vmatprep.subr.bf16.mxu0 0
      %2830 = vmatpush1.bf16.msra.mxu0 0
      %2831 = vmatprep.subr.bf16.mxu0 0
      %2832 = vmatpush1.bf16.msra.mxu0 0
      %2833 = vmatprep.subr.bf16.mxu0 0
      %2834 = vmatpush1.bf16.msra.mxu0 0
      %2835 = vmatprep.subr.bf16.mxu0 0
      %2836 = vmatpush1.bf16.msra.mxu0 0
      %2837 = vmatprep.subr.bf16.mxu0 0
      %2838 = vmatpush1.bf16.msra.mxu0 0
      %2839 = vmatprep.subr.bf16.mxu0 0
      %2840 = vmatpush1.bf16.msra.mxu0 0
      %2841 = vmatprep.subr.bf16.mxu0 0
      %2842 = vmatpush1.bf16.msra.mxu0 0
      %2843 = vmatprep.subr.bf16.mxu0 0
      %2844 = vmatpush1.bf16.msra.mxu0 0
      %2845 = vmatprep.subr.bf16.mxu0 0
      %2846 = vmatpush1.bf16.msra.mxu0 0
      %2847 = vmatprep.subr.bf16.mxu0 0
      %2848 = vmatpush1.bf16.msra.mxu0 0
      %2849 = vmatprep.subr.bf16.mxu0 0
      %2850 = vmatpush1.bf16.msra.mxu0 0
      %2851 = vmatprep.subr.bf16.mxu0 0
      %2852 = vmatpush1.bf16.msra.mxu0 0
      %2853 = vmatprep.subr.bf16.mxu0 0
      %2854 = vmatpush1.bf16.msra.mxu0 0
      %2855 = vmatprep.mubr.bf16.mxu0 0
      %2856 = vmatmul.mubr.bf16.gmra.mrb[0].mxu0 %v2818
      %v2857 = vpop.f32.mrb[0].mxu0
      %v2858 = vadd.f32 0.0, %v2857
      %v2859 = vpop.f32.mrb[0].mxu0
      %v2860 = vpop.f32.mrb[0].mxu0
      %v2861 = vadd.f32 0.0, %v2860
      %v2862 = vpop.f32.mrb[0].mxu0
      %2863 = vmatprep.mubr.bf16.mxu0 0
      %2864 = vmatmul.mubr.bf16.gmra.mrb[0].mxu0 %v2821
      %v2865 = vpop.f32.mrb[0].mxu0
      %v2866 = vadd.f32 0.0, %v2865
      %v2867 = vpop.f32.mrb[0].mxu0
      %v2868 = vpop.f32.mrb[0].mxu0
      %v2869 = vadd.f32 0.0, %v2868
      %v2870 = vpop.f32.mrb[0].mxu0
      %2871 = vdwg.mxu0
      %2874 = vrot.lane.b32.xlu0 %v2696, 96
      %v2875 = vpop.permute.xlu0 %2874
      %2876 = vrot.lane.b32.xlu0 %v2697, 96
      %v2877 = vpop.permute.xlu0 %2876
      %2880 = vrot.lane.b32.xlu0 %v2698, 96
      %v2881 = vpop.permute.xlu0 %2880
      %2882 = vrot.lane.b32.xlu0 %v2699, 96
      %v2883 = vpop.permute.xlu0 %2882
      %v2885 = vsel %vm1721, %v2875, 0
      %v2888 = vsel %vm1721, %v2877, 0
      %v2891 = vsel %vm1721, %v2881, 0
      %v2894 = vsel %vm1721, %v2883, 0
      %2896 = vmatprep.subr.bf16.mxu0 0
      %2897 = vmatpush1.bf16.xpose.msra.mxu0 %v2891
      %2898 = vmatprep.subr.bf16.mxu0 0
      %2899 = vmatpush1.bf16.xpose.msra.mxu0 %v2894
      %2900 = vmatprep.subr.bf16.mxu0 0
      %2901 = vmatpush1.bf16.xpose.msra.mxu0 0
      %2902 = vmatprep.subr.bf16.mxu0 0
      %2903 = vmatpush1.bf16.xpose.msra.mxu0 0
      %2904 = vmatprep.subr.bf16.mxu0 0
      %2905 = vmatpush1.bf16.xpose.msra.mxu0 0
      %2906 = vmatprep.subr.bf16.mxu0 0
      %2907 = vmatpush1.bf16.xpose.msra.mxu0 0
      %2908 = vmatprep.subr.bf16.mxu0 0
      %2909 = vmatpush1.bf16.xpose.msra.mxu0 0
      %2910 = vmatprep.subr.bf16.mxu0 0
      %2911 = vmatpush1.bf16.xpose.msra.mxu0 0
      %2912 = vmatprep.subr.bf16.mxu0 0
      %2913 = vmatpush1.bf16.xpose.msra.mxu0 0
      %2914 = vmatprep.subr.bf16.mxu0 0
      %2915 = vmatpush1.bf16.xpose.msra.mxu0 0
      %2916 = vmatprep.subr.bf16.mxu0 0
      %2917 = vmatpush1.bf16.xpose.msra.mxu0 0
      %2918 = vmatprep.subr.bf16.mxu0 0
      %2919 = vmatpush1.bf16.xpose.msra.mxu0 0
      %2920 = vmatprep.subr.bf16.mxu0 0
      %2921 = vmatpush1.bf16.xpose.msra.mxu0 0
      %2922 = vmatprep.subr.bf16.mxu0 0
      %2923 = vmatpush1.bf16.xpose.msra.mxu0 0
      %2924 = vmatprep.subr.bf16.mxu0 0
      %2925 = vmatpush1.bf16.xpose.msra.mxu0 0
      %2926 = vmatprep.subr.bf16.mxu0 0
      %2927 = vmatpush1.bf16.xpose.msra.mxu0 0
      %2928 = vmatprep.mubr.bf16.mxu0 0
      %2929 = vmatmul.mubr.bf16.gmra.mrb[0].mxu0 %v2885
      %v2930 = vpop.f32.mrb[0].mxu0
      %v2931 = vadd.f32 0.0, %v2930
      %v2932 = vpop.f32.mrb[0].mxu0
      %v2933 = vpop.f32.mrb[0].mxu0
      %v2934 = vadd.f32 0.0, %v2933
      %v2935 = vpop.f32.mrb[0].mxu0
      %2936 = vmatprep.mubr.bf16.mxu0 0
      %2937 = vmatmul.mubr.bf16.gmra.mrb[0].mxu0 %v2888
      %v2938 = vpop.f32.mrb[0].mxu0
      %v2939 = vadd.f32 0.0, %v2938
      %v2940 = vpop.f32.mrb[0].mxu0
      %v2941 = vpop.f32.mrb[0].mxu0
      %v2942 = vadd.f32 0.0, %v2941
      %v2943 = vpop.f32.mrb[0].mxu0
      %2944 = vdwg.mxu0
      %v2945 = vsel %vm1720, %v2931, -1e+30
      %v2946 = vsel %vm1720, %v2934, -1e+30
      %v2947 = vsel %vm1720, %v2939, -1e+30
      %v2948 = vsel %vm1720, %v2942, -1e+30
      %v2949 = vsel %vm1721, %v2945, -inf
      %2950 = vmax.xlane.f32.xlu0 %v2949
      %v2951 = vpop.xlane.xlu0 %2950
      %v2952 = vsel %vm1721, %v2946, -inf
      %2953 = vmax.xlane.f32.xlu0 %v2952
      %v2954 = vpop.xlane.xlu0 %2953
      %v2955 = vsel %vm1721, %v2947, -inf
      %2956 = vmax.xlane.f32.xlu0 %v2955
      %v2957 = vpop.xlane.xlu0 %2956
      %v2958 = vsel %vm1721, %v2948, -inf
      %2959 = vmax.xlane.f32.xlu0 %v2958
      %v2960 = vpop.xlane.xlu0 %2959
      %v2961 = vsub.f32 %v2945, %v2951
      %v2962 = vsub.f32 %v2946, %v2954
      %v2963 = vsub.f32 %v2947, %v2957
      %v2964 = vsub.f32 %v2948, %v2960
      %v2965 = vmul.f32 %v2961, 1.442695
      %v2966 = vpow.pop %v2965
      %v2967 = vmul.f32 %v2962, 1.442695
      %v2968 = vpow.pop %v2967
      %v2969 = vmul.f32 %v2963, 1.442695
      %v2970 = vpow.pop %v2969
      %v2971 = vmul.f32 %v2964, 1.442695
      %v2972 = vpow.pop %v2971
      %v2973 = vsel %vm1721, %v2966, 0.0
      %2974 = vadd.xlane.f32.xlu0 %v2973
      %v2975 = vpop.xlane.xlu0 %2974
      %v2976 = vsel %vm1721, %v2968, 0.0
      %2977 = vadd.xlane.f32.xlu0 %v2976
      %v2978 = vpop.xlane.xlu0 %2977
      %v2979 = vsel %vm1721, %v2970, 0.0
      %2980 = vadd.xlane.f32.xlu0 %v2979
      %v2981 = vpop.xlane.xlu0 %2980
      %v2982 = vsel %vm1721, %v2972, 0.0
      %2983 = vadd.xlane.f32.xlu0 %v2982
      %v2984 = vpop.xlane.xlu0 %2983
      %v2985 = vmul.f32 %v2975, 9.797959
      %v2986 = vmul.f32 %v2978, 9.797959
      %v2987 = vmul.f32 %v2981, 9.797959
      %v2988 = vmul.f32 %v2984, 9.797959
      %v2989 = vrcp.pop %v2985
      %v2990 = vrcp.pop %v2986
      %v2991 = vrcp.pop %v2987
      %v2992 = vrcp.pop %v2988
      %v2993 = vmul.f32 %v2966, %v2989
      %v2994 = vmul.f32 %v2968, %v2990
      %v2995 = vmul.f32 %v2970, %v2991
      %v2996 = vmul.f32 %v2972, %v2992
      %v2997 = vpack.c.bf16 %v2994, %v2993
      %v2998 = vpack.c.bf16 %v2996, %v2995
      %3001 = vrot.lane.b32.xlu0 %v2700, 96
      %v3002 = vpop.permute.xlu0 %3001
      %3003 = vrot.lane.b32.xlu0 %v2701, 96
      %v3004 = vpop.permute.xlu0 %3003
      %v3008 = vsel %vm1721, %v2997, 0
      %v3011 = vsel %vm1721, %v2998, 0
      %3013 = vmatprep.subr.bf16.mxu0 0
      %3014 = vmatpush1.bf16.msra.mxu0 %v3002
      %3015 = vmatprep.subr.bf16.mxu0 0
      %3016 = vmatpush1.bf16.msra.mxu0 %v3004
      %3017 = vmatprep.subr.bf16.mxu0 0
      %3018 = vmatpush1.bf16.msra.mxu0 0
      %3019 = vmatprep.subr.bf16.mxu0 0
      %3020 = vmatpush1.bf16.msra.mxu0 0
      %3021 = vmatprep.subr.bf16.mxu0 0
      %3022 = vmatpush1.bf16.msra.mxu0 0
      %3023 = vmatprep.subr.bf16.mxu0 0
      %3024 = vmatpush1.bf16.msra.mxu0 0
      %3025 = vmatprep.subr.bf16.mxu0 0
      %3026 = vmatpush1.bf16.msra.mxu0 0
      %3027 = vmatprep.subr.bf16.mxu0 0
      %3028 = vmatpush1.bf16.msra.mxu0 0
      %3029 = vmatprep.subr.bf16.mxu0 0
      %3030 = vmatpush1.bf16.msra.mxu0 0
      %3031 = vmatprep.subr.bf16.mxu0 0
      %3032 = vmatpush1.bf16.msra.mxu0 0
      %3033 = vmatprep.subr.bf16.mxu0 0
      %3034 = vmatpush1.bf16.msra.mxu0 0
      %3035 = vmatprep.subr.bf16.mxu0 0
      %3036 = vmatpush1.bf16.msra.mxu0 0
      %3037 = vmatprep.subr.bf16.mxu0 0
      %3038 = vmatpush1.bf16.msra.mxu0 0
      %3039 = vmatprep.subr.bf16.mxu0 0
      %3040 = vmatpush1.bf16.msra.mxu0 0
      %3041 = vmatprep.subr.bf16.mxu0 0
      %3042 = vmatpush1.bf16.msra.mxu0 0
      %3043 = vmatprep.subr.bf16.mxu0 0
      %3044 = vmatpush1.bf16.msra.mxu0 0
      %3045 = vmatprep.mubr.bf16.mxu0 0
      %3046 = vmatmul.mubr.bf16.gmra.mrb[0].mxu0 %v3008
      %v3047 = vpop.f32.mrb[0].mxu0
      %v3048 = vadd.f32 0.0, %v3047
      %v3049 = vpop.f32.mrb[0].mxu0
      %v3050 = vpop.f32.mrb[0].mxu0
      %v3051 = vadd.f32 0.0, %v3050
      %v3052 = vpop.f32.mrb[0].mxu0
      %3053 = vmatprep.mubr.bf16.mxu0 0
      %3054 = vmatmul.mubr.bf16.gmra.mrb[0].mxu0 %v3011
      %v3055 = vpop.f32.mrb[0].mxu0
      %v3056 = vadd.f32 0.0, %v3055
      %v3057 = vpop.f32.mrb[0].mxu0
      %v3058 = vpop.f32.mrb[0].mxu0
      %v3059 = vadd.f32 0.0, %v3058
      %v3060 = vpop.f32.mrb[0].mxu0
      %3061 = vdwg.mxu0
      %3062 = vrot.lane.b32.xlu0 %v2696, 64
      %v3063 = vpop.permute.xlu0 %3062
      %3064 = vrot.lane.b32.xlu0 %v2697, 64
      %v3065 = vpop.permute.xlu0 %3064
      %3066 = vrot.lane.b32.xlu0 %v2698, 64
      %v3067 = vpop.permute.xlu0 %3066
      %3068 = vrot.lane.b32.xlu0 %v2699, 64
      %v3069 = vpop.permute.xlu0 %3068
      %v3071 = vsel %vm1721, %v3063, 0
      %v3074 = vsel %vm1721, %v3065, 0
      %v3077 = vsel %vm1721, %v3067, 0
      %v3080 = vsel %vm1721, %v3069, 0
      %3082 = vmatprep.subr.bf16.mxu0 0
      %3083 = vmatpush1.bf16.xpose.msra.mxu0 %v3077
      %3084 = vmatprep.subr.bf16.mxu0 0
      %3085 = vmatpush1.bf16.xpose.msra.mxu0 %v3080
      %3086 = vmatprep.subr.bf16.mxu0 0
      %3087 = vmatpush1.bf16.xpose.msra.mxu0 0
      %3088 = vmatprep.subr.bf16.mxu0 0
      %3089 = vmatpush1.bf16.xpose.msra.mxu0 0
      %3090 = vmatprep.subr.bf16.mxu0 0
      %3091 = vmatpush1.bf16.xpose.msra.mxu0 0
      %3092 = vmatprep.subr.bf16.mxu0 0
      %3093 = vmatpush1.bf16.xpose.msra.mxu0 0
      %3094 = vmatprep.subr.bf16.mxu0 0
      %3095 = vmatpush1.bf16.xpose.msra.mxu0 0
      %3096 = vmatprep.subr.bf16.mxu0 0
      %3097 = vmatpush1.bf16.xpose.msra.mxu0 0
      %3098 = vmatprep.subr.bf16.mxu0 0
      %3099 = vmatpush1.bf16.xpose.msra.mxu0 0
      %3100 = vmatprep.subr.bf16.mxu0 0
      %3101 = vmatpush1.bf16.xpose.msra.mxu0 0
      %3102 = vmatprep.subr.bf16.mxu0 0
      %3103 = vmatpush1.bf16.xpose.msra.mxu0 0
      %3104 = vmatprep.subr.bf16.mxu0 0
      %3105 = vmatpush1.bf16.xpose.msra.mxu0 0
      %3106 = vmatprep.subr.bf16.mxu0 0
      %3107 = vmatpush1.bf16.xpose.msra.mxu0 0
      %3108 = vmatprep.subr.bf16.mxu0 0
      %3109 = vmatpush1.bf16.xpose.msra.mxu0 0
      %3110 = vmatprep.subr.bf16.mxu0 0
      %3111 = vmatpush1.bf16.xpose.msra.mxu0 0
      %3112 = vmatprep.subr.bf16.mxu0 0
      %3113 = vmatpush1.bf16.xpose.msra.mxu0 0
      %3114 = vmatprep.mubr.bf16.mxu0 0
      %3115 = vmatmul.mubr.bf16.gmra.mrb[0].mxu0 %v3071
      %v3116 = vpop.f32.mrb[0].mxu0
      %v3117 = vadd.f32 0.0, %v3116
      %v3118 = vpop.f32.mrb[0].mxu0
      %v3119 = vpop.f32.mrb[0].mxu0
      %v3120 = vadd.f32 0.0, %v3119
      %v3121 = vpop.f32.mrb[0].mxu0
      %3122 = vmatprep.mubr.bf16.mxu0 0
      %3123 = vmatmul.mubr.bf16.gmra.mrb[0].mxu0 %v3074
      %v3124 = vpop.f32.mrb[0].mxu0
      %v3125 = vadd.f32 0.0, %v3124
      %v3126 = vpop.f32.mrb[0].mxu0
      %v3127 = vpop.f32.mrb[0].mxu0
      %v3128 = vadd.f32 0.0, %v3127
      %v3129 = vpop.f32.mrb[0].mxu0
      %3130 = vdwg.mxu0
      %v3131 = vsel %vm1720, %v3117, -1e+30
      %v3132 = vsel %vm1720, %v3120, -1e+30
      %v3133 = vsel %vm1720, %v3125, -1e+30
      %v3134 = vsel %vm1720, %v3128, -1e+30
      %v3135 = vsel %vm1721, %v3131, -inf
      %3136 = vmax.xlane.f32.xlu0 %v3135
      %v3137 = vpop.xlane.xlu0 %3136
      %v3138 = vsel %vm1721, %v3132, -inf
      %3139 = vmax.xlane.f32.xlu0 %v3138
      %v3140 = vpop.xlane.xlu0 %3139
      %v3141 = vsel %vm1721, %v3133, -inf
      %3142 = vmax.xlane.f32.xlu0 %v3141
      %v3143 = vpop.xlane.xlu0 %3142
      %v3144 = vsel %vm1721, %v3134, -inf
      %3145 = vmax.xlane.f32.xlu0 %v3144
      %v3146 = vpop.xlane.xlu0 %3145
      %v3147 = vsub.f32 %v3131, %v3137
      %v3148 = vsub.f32 %v3132, %v3140
      %v3149 = vsub.f32 %v3133, %v3143
      %v3150 = vsub.f32 %v3134, %v3146
      %v3151 = vmul.f32 %v3147, 1.442695
      %v3152 = vpow.pop %v3151
      %v3153 = vmul.f32 %v3148, 1.442695
      %v3154 = vpow.pop %v3153
      %v3155 = vmul.f32 %v3149, 1.442695
      %v3156 = vpow.pop %v3155
      %v3157 = vmul.f32 %v3150, 1.442695
      %v3158 = vpow.pop %v3157
      %v3159 = vsel %vm1721, %v3152, 0.0
      %3160 = vadd.xlane.f32.xlu0 %v3159
      %v3161 = vpop.xlane.xlu0 %3160
      %v3162 = vsel %vm1721, %v3154, 0.0
      %3163 = vadd.xlane.f32.xlu0 %v3162
      %v3164 = vpop.xlane.xlu0 %3163
      %v3165 = vsel %vm1721, %v3156, 0.0
      %3166 = vadd.xlane.f32.xlu0 %v3165
      %v3167 = vpop.xlane.xlu0 %3166
      %v3168 = vsel %vm1721, %v3158, 0.0
      %3169 = vadd.xlane.f32.xlu0 %v3168
      %v3170 = vpop.xlane.xlu0 %3169
      %v3171 = vmul.f32 %v3161, 9.797959
      %v3172 = vmul.f32 %v3164, 9.797959
      %v3173 = vmul.f32 %v3167, 9.797959
      %v3174 = vmul.f32 %v3170, 9.797959
      %v3175 = vrcp.pop %v3171
      %v3176 = vrcp.pop %v3172
      %v3177 = vrcp.pop %v3173
      %v3178 = vrcp.pop %v3174
      %v3179 = vmul.f32 %v3152, %v3175
      %v3180 = vmul.f32 %v3154, %v3176
      %v3181 = vmul.f32 %v3156, %v3177
      %v3182 = vmul.f32 %v3158, %v3178
      %v3183 = vpack.c.bf16 %v3180, %v3179
      %v3184 = vpack.c.bf16 %v3182, %v3181
      %3185 = vrot.lane.b32.xlu0 %v2700, 64
      %v3186 = vpop.permute.xlu0 %3185
      %3187 = vrot.lane.b32.xlu0 %v2701, 64
      %v3188 = vpop.permute.xlu0 %3187
      %v3192 = vsel %vm1721, %v3183, 0
      %v3195 = vsel %vm1721, %v3184, 0
      %3197 = vmatprep.subr.bf16.mxu0 0
      %3198 = vmatpush1.bf16.msra.mxu0 %v3186
      %3199 = vmatprep.subr.bf16.mxu0 0
      %3200 = vmatpush1.bf16.msra.mxu0 %v3188
      %3201 = vmatprep.subr.bf16.mxu0 0
      %3202 = vmatpush1.bf16.msra.mxu0 0
      %3203 = vmatprep.subr.bf16.mxu0 0
      %3204 = vmatpush1.bf16.msra.mxu0 0
      %3205 = vmatprep.subr.bf16.mxu0 0
      %3206 = vmatpush1.bf16.msra.mxu0 0
      %3207 = vmatprep.subr.bf16.mxu0 0
      %3208 = vmatpush1.bf16.msra.mxu0 0
      %3209 = vmatprep.subr.bf16.mxu0 0
      %3210 = vmatpush1.bf16.msra.mxu0 0
      %3211 = vmatprep.subr.bf16.mxu0 0
      %3212 = vmatpush1.bf16.msra.mxu0 0
      %3213 = vmatprep.subr.bf16.mxu0 0
      %3214 = vmatpush1.bf16.msra.mxu0 0
      %3215 = vmatprep.subr.bf16.mxu0 0
      %3216 = vmatpush1.bf16.msra.mxu0 0
      %3217 = vmatprep.subr.bf16.mxu0 0
      %3218 = vmatpush1.bf16.msra.mxu0 0
      %3219 = vmatprep.subr.bf16.mxu0 0
      %3220 = vmatpush1.bf16.msra.mxu0 0
      %3221 = vmatprep.subr.bf16.mxu0 0
      %3222 = vmatpush1.bf16.msra.mxu0 0
      %3223 = vmatprep.subr.bf16.mxu0 0
      %3224 = vmatpush1.bf16.msra.mxu0 0
      %3225 = vmatprep.subr.bf16.mxu0 0
      %3226 = vmatpush1.bf16.msra.mxu0 0
      %3227 = vmatprep.subr.bf16.mxu0 0
      %3228 = vmatpush1.bf16.msra.mxu0 0
      %3229 = vmatprep.mubr.bf16.mxu0 0
      %3230 = vmatmul.mubr.bf16.gmra.mrb[0].mxu0 %v3192
      %v3231 = vpop.f32.mrb[0].mxu0
      %v3232 = vadd.f32 0.0, %v3231
      %v3233 = vpop.f32.mrb[0].mxu0
      %v3234 = vpop.f32.mrb[0].mxu0
      %v3235 = vadd.f32 0.0, %v3234
      %v3236 = vpop.f32.mrb[0].mxu0
      %3237 = vmatprep.mubr.bf16.mxu0 0
      %3238 = vmatmul.mubr.bf16.gmra.mrb[0].mxu0 %v3195
      %v3239 = vpop.f32.mrb[0].mxu0
      %v3240 = vadd.f32 0.0, %v3239
      %v3241 = vpop.f32.mrb[0].mxu0
      %v3242 = vpop.f32.mrb[0].mxu0
      %v3243 = vadd.f32 0.0, %v3242
      %v3244 = vpop.f32.mrb[0].mxu0
      %3245 = vdwg.mxu0
      %3250 = vrot.lane.b32.xlu0 %v3048, 32
      %v3251 = vpop.permute.xlu0 %3250
      %3252 = vrot.lane.b32.xlu0 %v3051, 32
      %v3253 = vpop.permute.xlu0 %3252
      %3254 = vrot.lane.b32.xlu0 %v3056, 32
      %v3255 = vpop.permute.xlu0 %3254
      %3256 = vrot.lane.b32.xlu0 %v3059, 32
      %v3257 = vpop.permute.xlu0 %3256
      %3266 = vrot.lane.b32.xlu0 %v3232, 64
      %v3267 = vpop.permute.xlu0 %3266
      %3268 = vrot.lane.b32.xlu0 %v3235, 64
      %v3269 = vpop.permute.xlu0 %3268
      %3270 = vrot.lane.b32.xlu0 %v3240, 64
      %v3271 = vpop.permute.xlu0 %3270
      %3272 = vrot.lane.b32.xlu0 %v3243, 64
      %v3273 = vpop.permute.xlu0 %3272
      %v3278 = vsel %vm1721, %v2858, %v3251
      %v3279 = vsel %vm1721, %v2861, %v3253
      %v3280 = vsel %vm1721, %v2866, %v3255
      %v3281 = vsel %vm1721, %v2869, %v3257
      %v3282 = vsel %vm2302, %v3278, %v3267
      %v3283 = vsel %vm2302, %v3279, %v3269
      %v3284 = vsel %vm2302, %v3280, %v3271
      %v3285 = vsel %vm2302, %v3281, %v3273
      %v3286 = vpack.c.bf16 %v1463, %v1460
      %v3287 = vpack.c.bf16 %v1586, %v1583
      %v3288 = vpack.c.bf16 %v1709, %v1706
      %v3290 = vsel %vm1721, %v3286, 0
      %v3293 = vsel %vm1721, %v3287, 0
      %3295 = vmatprep.subr.bf16.mxu0 0
      %3296 = vmatpush1.bf16.xpose.msra.mxu0 %v3293
      %3297 = vmatprep.subr.bf16.mxu0 0
      %3298 = vmatpush1.bf16.xpose.msra.mxu0 0
      %3299 = vmatprep.subr.bf16.mxu0 0
      %3300 = vmatpush1.bf16.xpose.msra.mxu0 0
      %3301 = vmatprep.subr.bf16.mxu0 0
      %3302 = vmatpush1.bf16.xpose.msra.mxu0 0
      %3303 = vmatprep.subr.bf16.mxu0 0
      %3304 = vmatpush1.bf16.xpose.msra.mxu0 0
      %3305 = vmatprep.subr.bf16.mxu0 0
      %3306 = vmatpush1.bf16.xpose.msra.mxu0 0
      %3307 = vmatprep.subr.bf16.mxu0 0
      %3308 = vmatpush1.bf16.xpose.msra.mxu0 0
      %3309 = vmatprep.subr.bf16.mxu0 0
      %3310 = vmatpush1.bf16.xpose.msra.mxu0 0
      %3311 = vmatprep.subr.bf16.mxu0 0
      %3312 = vmatpush1.bf16.xpose.msra.mxu0 0
      %3313 = vmatprep.subr.bf16.mxu0 0
      %3314 = vmatpush1.bf16.xpose.msra.mxu0 0
      %3315 = vmatprep.subr.bf16.mxu0 0
      %3316 = vmatpush1.bf16.xpose.msra.mxu0 0
      %3317 = vmatprep.subr.bf16.mxu0 0
      %3318 = vmatpush1.bf16.xpose.msra.mxu0 0
      %3319 = vmatprep.subr.bf16.mxu0 0
      %3320 = vmatpush1.bf16.xpose.msra.mxu0 0
      %3321 = vmatprep.subr.bf16.mxu0 0
      %3322 = vmatpush1.bf16.xpose.msra.mxu0 0
      %3323 = vmatprep.subr.bf16.mxu0 0
      %3324 = vmatpush1.bf16.xpose.msra.mxu0 0
      %3325 = vmatprep.subr.bf16.mxu0 0
      %3326 = vmatpush1.bf16.xpose.msra.mxu0 0
      %3327 = vmatprep.mubr.bf16.mxu0 0
      %3328 = vmatmul.mubr.bf16.gmra.mrb[0].mxu0 %v3290
      %v3329 = vpop.f32.mrb[0].mxu0
      %v3330 = vadd.f32 0.0, %v3329
      %v3331 = vpop.f32.mrb[0].mxu0
      %v3332 = vpop.f32.mrb[0].mxu0
      %v3333 = vadd.f32 0.0, %v3332
      %v3334 = vpop.f32.mrb[0].mxu0
      %3335 = vdwg.mxu0
      %v3336 = vsel %vm2357, %v3330, -inf
      %3337 = vmax.xlane.f32.xlu0 %v3336
      %v3338 = vpop.xlane.xlu0 %3337
      %v3339 = vsel %vm2357, %v3333, -inf
      %3340 = vmax.xlane.f32.xlu0 %v3339
      %v3341 = vpop.xlane.xlu0 %3340
      %v3342 = vsub.f32 %v3330, %v3338
      %v3343 = vsub.f32 %v3333, %v3341
      %v3344 = vmul.f32 %v3342, 1.442695
      %v3345 = vpow.pop %v3344
      %v3346 = vmul.f32 %v3343, 1.442695
      %v3347 = vpow.pop %v3346
      %v3348 = vsel %vm2357, %v3345, 0.0
      %3349 = vadd.xlane.f32.xlu0 %v3348
      %v3350 = vpop.xlane.xlu0 %3349
      %v3351 = vsel %vm2357, %v3347, 0.0
      %3352 = vadd.xlane.f32.xlu0 %v3351
      %v3353 = vpop.xlane.xlu0 %3352
      %v3354 = vmul.f32 %v3350, 9.797959
      %v3355 = vmul.f32 %v3353, 9.797959
      %v3356 = vrcp.pop %v3354
      %v3357 = vrcp.pop %v3355
      %v3358 = vmul.f32 %v3345, %v3356
      %v3359 = vmul.f32 %v3347, %v3357
      %v3360 = vpack.c.bf16 %v3359, %v3358
      %v3362 = vsel %vm2357, %v3360, 0
      %3364 = vmatprep.subr.bf16.mxu0 0
      %3365 = vmatpush1.bf16.msra.mxu0 %v3288
      %3366 = vmatprep.subr.bf16.mxu0 0
      %3367 = vmatpush1.bf16.msra.mxu0 0
      %3368 = vmatprep.subr.bf16.mxu0 0
      %3369 = vmatpush1.bf16.msra.mxu0 0
      %3370 = vmatprep.subr.bf16.mxu0 0
      %3371 = vmatpush1.bf16.msra.mxu0 0
      %3372 = vmatprep.subr.bf16.mxu0 0
      %3373 = vmatpush1.bf16.msra.mxu0 0
      %3374 = vmatprep.subr.bf16.mxu0 0
      %3375 = vmatpush1.bf16.msra.mxu0 0
      %3376 = vmatprep.subr.bf16.mxu0 0
      %3377 = vmatpush1.bf16.msra.mxu0 0
      %3378 = vmatprep.subr.bf16.mxu0 0
      %3379 = vmatpush1.bf16.msra.mxu0 0
      %3380 = vmatprep.subr.bf16.mxu0 0
      %3381 = vmatpush1.bf16.msra.mxu0 0
      %3382 = vmatprep.subr.bf16.mxu0 0
      %3383 = vmatpush1.bf16.msra.mxu0 0
      %3384 = vmatprep.subr.bf16.mxu0 0
      %3385 = vmatpush1.bf16.msra.mxu0 0
      %3386 = vmatprep.subr.bf16.mxu0 0
      %3387 = vmatpush1.bf16.msra.mxu0 0
      %3388 = vmatprep.subr.bf16.mxu0 0
      %3389 = vmatpush1.bf16.msra.mxu0 0
      %3390 = vmatprep.subr.bf16.mxu0 0
      %3391 = vmatpush1.bf16.msra.mxu0 0
      %3392 = vmatprep.subr.bf16.mxu0 0
      %3393 = vmatpush1.bf16.msra.mxu0 0
      %3394 = vmatprep.subr.bf16.mxu0 0
      %3395 = vmatpush1.bf16.msra.mxu0 0
      %3396 = vmatprep.mubr.bf16.mxu0 0
      %3397 = vmatmul.mubr.bf16.gmra.mrb[0].mxu0 %v3362
      %v3398 = vpop.f32.mrb[0].mxu0
      %v3399 = vadd.f32 0.0, %v3398
      %v3400 = vpop.f32.mrb[0].mxu0
      %v3401 = vpop.f32.mrb[0].mxu0
      %v3402 = vadd.f32 0.0, %v3401
      %v3403 = vpop.f32.mrb[0].mxu0
      %3404 = vdwg.mxu0
      %3406 = vrot.lane.b32.xlu0 %v3286, 96
      %v3407 = vpop.permute.xlu0 %3406
      %3409 = vrot.lane.b32.xlu0 %v3287, 96
      %v3410 = vpop.permute.xlu0 %3409
      %v3412 = vsel %vm1721, %v3407, 0
      %v3415 = vsel %vm1721, %v3410, 0
      %3417 = vmatprep.subr.bf16.mxu0 0
      %3418 = vmatpush1.bf16.xpose.msra.mxu0 %v3415
      %3419 = vmatprep.subr.bf16.mxu0 0
      %3420 = vmatpush1.bf16.xpose.msra.mxu0 0
      %3421 = vmatprep.subr.bf16.mxu0 0
      %3422 = vmatpush1.bf16.xpose.msra.mxu0 0
      %3423 = vmatprep.subr.bf16.mxu0 0
      %3424 = vmatpush1.bf16.xpose.msra.mxu0 0
      %3425 = vmatprep.subr.bf16.mxu0 0
      %3426 = vmatpush1.bf16.xpose.msra.mxu0 0
      %3427 = vmatprep.subr.bf16.mxu0 0
      %3428 = vmatpush1.bf16.xpose.msra.mxu0 0
      %3429 = vmatprep.subr.bf16.mxu0 0
      %3430 = vmatpush1.bf16.xpose.msra.mxu0 0
      %3431 = vmatprep.subr.bf16.mxu0 0
      %3432 = vmatpush1.bf16.xpose.msra.mxu0 0
      %3433 = vmatprep.subr.bf16.mxu0 0
      %3434 = vmatpush1.bf16.xpose.msra.mxu0 0
      %3435 = vmatprep.subr.bf16.mxu0 0
      %3436 = vmatpush1.bf16.xpose.msra.mxu0 0
      %3437 = vmatprep.subr.bf16.mxu0 0
      %3438 = vmatpush1.bf16.xpose.msra.mxu0 0
      %3439 = vmatprep.subr.bf16.mxu0 0
      %3440 = vmatpush1.bf16.xpose.msra.mxu0 0
      %3441 = vmatprep.subr.bf16.mxu0 0
      %3442 = vmatpush1.bf16.xpose.msra.mxu0 0
      %3443 = vmatprep.subr.bf16.mxu0 0
      %3444 = vmatpush1.bf16.xpose.msra.mxu0 0
      %3445 = vmatprep.subr.bf16.mxu0 0
      %3446 = vmatpush1.bf16.xpose.msra.mxu0 0
      %3447 = vmatprep.subr.bf16.mxu0 0
      %3448 = vmatpush1.bf16.xpose.msra.mxu0 0
      %3449 = vmatprep.mubr.bf16.mxu0 0
      %3450 = vmatmul.mubr.bf16.gmra.mrb[0].mxu0 %v3412
      %v3451 = vpop.f32.mrb[0].mxu0
      %v3452 = vadd.f32 0.0, %v3451
      %v3453 = vpop.f32.mrb[0].mxu0
      %v3454 = vpop.f32.mrb[0].mxu0
      %v3455 = vadd.f32 0.0, %v3454
      %v3456 = vpop.f32.mrb[0].mxu0
      %3457 = vdwg.mxu0
      %v3458 = vsel %vm2357, %v3452, -inf
      %3459 = vmax.xlane.f32.xlu0 %v3458
      %v3460 = vpop.xlane.xlu0 %3459
      %v3461 = vsel %vm2357, %v3455, -inf
      %3462 = vmax.xlane.f32.xlu0 %v3461
      %v3463 = vpop.xlane.xlu0 %3462
      %v3464 = vsub.f32 %v3452, %v3460
      %v3465 = vsub.f32 %v3455, %v3463
      %v3466 = vmul.f32 %v3464, 1.442695
      %v3467 = vpow.pop %v3466
      %v3468 = vmul.f32 %v3465, 1.442695
      %v3469 = vpow.pop %v3468
      %v3470 = vsel %vm2357, %v3467, 0.0
      %3471 = vadd.xlane.f32.xlu0 %v3470
      %v3472 = vpop.xlane.xlu0 %3471
      %v3473 = vsel %vm2357, %v3469, 0.0
      %3474 = vadd.xlane.f32.xlu0 %v3473
      %v3475 = vpop.xlane.xlu0 %3474
      %v3476 = vmul.f32 %v3472, 9.797959
      %v3477 = vmul.f32 %v3475, 9.797959
      %v3478 = vrcp.pop %v3476
      %v3479 = vrcp.pop %v3477
      %v3480 = vmul.f32 %v3467, %v3478
      %v3481 = vmul.f32 %v3469, %v3479
      %v3482 = vpack.c.bf16 %v3481, %v3480
      %3484 = vrot.lane.b32.xlu0 %v3288, 96
      %v3485 = vpop.permute.xlu0 %3484
      %v3488 = vsel %vm2357, %v3482, 0
      %3490 = vmatprep.subr.bf16.mxu0 0
      %3491 = vmatpush1.bf16.msra.mxu0 %v3485
      %3492 = vmatprep.subr.bf16.mxu0 0
      %3493 = vmatpush1.bf16.msra.mxu0 0
      %3494 = vmatprep.subr.bf16.mxu0 0
      %3495 = vmatpush1.bf16.msra.mxu0 0
      %3496 = vmatprep.subr.bf16.mxu0 0
      %3497 = vmatpush1.bf16.msra.mxu0 0
      %3498 = vmatprep.subr.bf16.mxu0 0
      %3499 = vmatpush1.bf16.msra.mxu0 0
      %3500 = vmatprep.subr.bf16.mxu0 0
      %3501 = vmatpush1.bf16.msra.mxu0 0
      %3502 = vmatprep.subr.bf16.mxu0 0
      %3503 = vmatpush1.bf16.msra.mxu0 0
      %3504 = vmatprep.subr.bf16.mxu0 0
      %3505 = vmatpush1.bf16.msra.mxu0 0
      %3506 = vmatprep.subr.bf16.mxu0 0
      %3507 = vmatpush1.bf16.msra.mxu0 0
      %3508 = vmatprep.subr.bf16.mxu0 0
      %3509 = vmatpush1.bf16.msra.mxu0 0
      %3510 = vmatprep.subr.bf16.mxu0 0
      %3511 = vmatpush1.bf16.msra.mxu0 0
      %3512 = vmatprep.subr.bf16.mxu0 0
      %3513 = vmatpush1.bf16.msra.mxu0 0
      %3514 = vmatprep.subr.bf16.mxu0 0
      %3515 = vmatpush1.bf16.msra.mxu0 0
      %3516 = vmatprep.subr.bf16.mxu0 0
      %3517 = vmatpush1.bf16.msra.mxu0 0
      %3518 = vmatprep.subr.bf16.mxu0 0
      %3519 = vmatpush1.bf16.msra.mxu0 0
      %3520 = vmatprep.subr.bf16.mxu0 0
      %3521 = vmatpush1.bf16.msra.mxu0 0
      %3522 = vmatprep.mubr.bf16.mxu0 0
      %3523 = vmatmul.mubr.bf16.gmra.mrb[0].mxu0 %v3488
      %v3524 = vpop.f32.mrb[0].mxu0
      %v3525 = vadd.f32 0.0, %v3524
      %v3526 = vpop.f32.mrb[0].mxu0
      %v3527 = vpop.f32.mrb[0].mxu0
      %v3528 = vadd.f32 0.0, %v3527
      %v3529 = vpop.f32.mrb[0].mxu0
      %3530 = vdwg.mxu0
      %3531 = vrot.lane.b32.xlu0 %v3286, 64
      %v3532 = vpop.permute.xlu0 %3531
      %3533 = vrot.lane.b32.xlu0 %v3287, 64
      %v3534 = vpop.permute.xlu0 %3533
      %v3536 = vsel %vm1721, %v3532, 0
      %v3539 = vsel %vm1721, %v3534, 0
      %3541 = vmatprep.subr.bf16.mxu0 0
      %3542 = vmatpush1.bf16.xpose.msra.mxu0 %v3539
      %3543 = vmatprep.subr.bf16.mxu0 0
      %3544 = vmatpush1.bf16.xpose.msra.mxu0 0
      %3545 = vmatprep.subr.bf16.mxu0 0
      %3546 = vmatpush1.bf16.xpose.msra.mxu0 0
      %3547 = vmatprep.subr.bf16.mxu0 0
      %3548 = vmatpush1.bf16.xpose.msra.mxu0 0
      %3549 = vmatprep.subr.bf16.mxu0 0
      %3550 = vmatpush1.bf16.xpose.msra.mxu0 0
      %3551 = vmatprep.subr.bf16.mxu0 0
      %3552 = vmatpush1.bf16.xpose.msra.mxu0 0
      %3553 = vmatprep.subr.bf16.mxu0 0
      %3554 = vmatpush1.bf16.xpose.msra.mxu0 0
      %3555 = vmatprep.subr.bf16.mxu0 0
      %3556 = vmatpush1.bf16.xpose.msra.mxu0 0
      %3557 = vmatprep.subr.bf16.mxu0 0
      %3558 = vmatpush1.bf16.xpose.msra.mxu0 0
      %3559 = vmatprep.subr.bf16.mxu0 0
      %3560 = vmatpush1.bf16.xpose.msra.mxu0 0
      %3561 = vmatprep.subr.bf16.mxu0 0
      %3562 = vmatpush1.bf16.xpose.msra.mxu0 0
      %3563 = vmatprep.subr.bf16.mxu0 0
      %3564 = vmatpush1.bf16.xpose.msra.mxu0 0
      %3565 = vmatprep.subr.bf16.mxu0 0
      %3566 = vmatpush1.bf16.xpose.msra.mxu0 0
      %3567 = vmatprep.subr.bf16.mxu0 0
      %3568 = vmatpush1.bf16.xpose.msra.mxu0 0
      %3569 = vmatprep.subr.bf16.mxu0 0
      %3570 = vmatpush1.bf16.xpose.msra.mxu0 0
      %3571 = vmatprep.subr.bf16.mxu0 0
      %3572 = vmatpush1.bf16.xpose.msra.mxu0 0
      %3573 = vmatprep.mubr.bf16.mxu0 0
      %3574 = vmatmul.mubr.bf16.gmra.mrb[0].mxu0 %v3536
      %v3575 = vpop.f32.mrb[0].mxu0
      %v3576 = vadd.f32 0.0, %v3575
      %v3577 = vpop.f32.mrb[0].mxu0
      %v3578 = vpop.f32.mrb[0].mxu0
      %v3579 = vadd.f32 0.0, %v3578
      %v3580 = vpop.f32.mrb[0].mxu0
      %3581 = vdwg.mxu0
      %v3582 = vsel %vm2357, %v3576, -inf
      %3583 = vmax.xlane.f32.xlu0 %v3582
      %v3584 = vpop.xlane.xlu0 %3583
      %v3585 = vsel %vm2357, %v3579, -inf
      %3586 = vmax.xlane.f32.xlu0 %v3585
      %v3587 = vpop.xlane.xlu0 %3586
      %v3588 = vsub.f32 %v3576, %v3584
      %v3589 = vsub.f32 %v3579, %v3587
      %v3590 = vmul.f32 %v3588, 1.442695
      %v3591 = vpow.pop %v3590
      %v3592 = vmul.f32 %v3589, 1.442695
      %v3593 = vpow.pop %v3592
      %v3594 = vsel %vm2357, %v3591, 0.0
      %3595 = vadd.xlane.f32.xlu0 %v3594
      %v3596 = vpop.xlane.xlu0 %3595
      %v3597 = vsel %vm2357, %v3593, 0.0
      %3598 = vadd.xlane.f32.xlu0 %v3597
      %v3599 = vpop.xlane.xlu0 %3598
      %v3600 = vmul.f32 %v3596, 9.797959
      %v3601 = vmul.f32 %v3599, 9.797959
      %v3602 = vrcp.pop %v3600
      %v3603 = vrcp.pop %v3601
      %v3604 = vmul.f32 %v3591, %v3602
      %v3605 = vmul.f32 %v3593, %v3603
      %v3606 = vpack.c.bf16 %v3605, %v3604
      %3607 = vrot.lane.b32.xlu0 %v3288, 64
      %v3608 = vpop.permute.xlu0 %3607
      %v3611 = vsel %vm2357, %v3606, 0
      %3613 = vmatprep.subr.bf16.mxu0 0
      %3614 = vmatpush1.bf16.msra.mxu0 %v3608
      %3615 = vmatprep.subr.bf16.mxu0 0
      %3616 = vmatpush1.bf16.msra.mxu0 0
      %3617 = vmatprep.subr.bf16.mxu0 0
      %3618 = vmatpush1.bf16.msra.mxu0 0
      %3619 = vmatprep.subr.bf16.mxu0 0
      %3620 = vmatpush1.bf16.msra.mxu0 0
      %3621 = vmatprep.subr.bf16.mxu0 0
      %3622 = vmatpush1.bf16.msra.mxu0 0
      %3623 = vmatprep.subr.bf16.mxu0 0
      %3624 = vmatpush1.bf16.msra.mxu0 0
      %3625 = vmatprep.subr.bf16.mxu0 0
      %3626 = vmatpush1.bf16.msra.mxu0 0
      %3627 = vmatprep.subr.bf16.mxu0 0
      %3628 = vmatpush1.bf16.msra.mxu0 0
      %3629 = vmatprep.subr.bf16.mxu0 0
      %3630 = vmatpush1.bf16.msra.mxu0 0
      %3631 = vmatprep.subr.bf16.mxu0 0
      %3632 = vmatpush1.bf16.msra.mxu0 0
      %3633 = vmatprep.subr.bf16.mxu0 0
      %3634 = vmatpush1.bf16.msra.mxu0 0
      %3635 = vmatprep.subr.bf16.mxu0 0
      %3636 = vmatpush1.bf16.msra.mxu0 0
      %3637 = vmatprep.subr.bf16.mxu0 0
      %3638 = vmatpush1.bf16.msra.mxu0 0
      %3639 = vmatprep.subr.bf16.mxu0 0
      %3640 = vmatpush1.bf16.msra.mxu0 0
      %3641 = vmatprep.subr.bf16.mxu0 0
      %3642 = vmatpush1.bf16.msra.mxu0 0
      %3643 = vmatprep.subr.bf16.mxu0 0
      %3644 = vmatpush1.bf16.msra.mxu0 0
      %3645 = vmatprep.mubr.bf16.mxu0 0
      %3646 = vmatmul.mubr.bf16.gmra.mrb[0].mxu0 %v3611
      %v3647 = vpop.f32.mrb[0].mxu0
      %v3648 = vadd.f32 0.0, %v3647
      %v3649 = vpop.f32.mrb[0].mxu0
      %v3650 = vpop.f32.mrb[0].mxu0
      %v3651 = vadd.f32 0.0, %v3650
      %v3652 = vpop.f32.mrb[0].mxu0
      %3653 = vdwg.mxu0
      %3656 = vrot.lane.b32.xlu0 %v3525, 32
      %v3657 = vpop.permute.xlu0 %3656
      %3658 = vrot.lane.b32.xlu0 %v3528, 32
      %v3659 = vpop.permute.xlu0 %3658
      %3664 = vrot.lane.b32.xlu0 %v3648, 64
      %v3665 = vpop.permute.xlu0 %3664
      %3666 = vrot.lane.b32.xlu0 %v3651, 64
      %v3667 = vpop.permute.xlu0 %3666
      %v3670 = vsel %vm1721, %v3399, %v3657
      %v3671 = vsel %vm1721, %v3402, %v3659
      %v3672 = vsel %vm2302, %v3670, %v3665
      %v3673 = vsel %vm2302, %v3671, %v3667
      %v3674 = vpack.c.bf16 %v2304, %v2303
      %v3675 = vpack.c.bf16 %v2306, %v2305
      %v3676 = vpack.c.bf16 %v2695, %v2694
      %v3677 = vpack.c.bf16 %v3283, %v3282
      %v3678 = vpack.c.bf16 %v3285, %v3284
      %v3679 = vpack.c.bf16 %v3673, %v3672
      %v3692 = vunpack.c.l.b16 %v1072
      %v3693 = vunpack.c.l.b16 %v1073
      %v3694 = vunpack.c.l.b16 %v1074
      %v3695 = vunpack.c.l.b16 %v1075
      %v3696 = vunpack.c.l.b16 %v1076
      %v3697 = vunpack.c.l.b16 %v1077
      %v3698 = vunpack.c.l.b16 %v1078
      %v3699 = vunpack.c.l.b16 %v1079
      %v3700 = vunpack.c.l.b16 %v1080
      %v3701 = vunpack.c.l.b16 %v1081
      %v3702 = vunpack.c.l.b16 %v1082
      %v3703 = vunpack.c.l.b16 %v1083
      %v3704 = vpack.c.b16 %v3693, %v3692
      %v3705 = vpack.c.b16 %v3695, %v3694
      %v3706 = vpack.c.b16 %v3697, %v3696
      %v3707 = vpack.c.b16 %v3699, %v3698
      %v3708 = vpack.c.b16 %v3701, %v3700
      %v3709 = vpack.c.b16 %v3703, %v3702
      %v3717 = vsel %vm1125, %v3674, 0
      %v3720 = vsel %vm1125, %v3675, 0
      %v3723 = vsel %vm1125, %v3676, 0
      %v3726 = vsel %vm1125, %v3677, 0
      %v3729 = vsel %vm1125, %v3678, 0
      %v3732 = vsel %vm1125, %v3679, 0
      %3734 = vmatprep.subr.bf16.mxu0 0
      %3735 = vmatpush1.bf16.msra.mxu0 %v3704
      %3736 = vmatprep.subr.bf16.mxu0 0
      %3737 = vmatpush1.bf16.msra.mxu0 %v3705
      %3738 = vmatprep.subr.bf16.mxu0 0
      %3739 = vmatpush1.bf16.msra.mxu0 %v3706
      %3740 = vmatprep.subr.bf16.mxu0 0
      %3741 = vmatpush1.bf16.msra.mxu0 %v3707
      %3742 = vmatprep.subr.bf16.mxu0 0
      %3743 = vmatpush1.bf16.msra.mxu0 %v3708
      %3744 = vmatprep.subr.bf16.mxu0 0
      %3745 = vmatpush1.bf16.msra.mxu0 %v3709
      %3746 = vmatprep.subr.bf16.mxu0 0
      %3747 = vmatpush1.bf16.msra.mxu0 0
      %3748 = vmatprep.subr.bf16.mxu0 0
      %3749 = vmatpush1.bf16.msra.mxu0 0
      %3750 = vmatprep.subr.bf16.mxu0 0
      %3751 = vmatpush1.bf16.msra.mxu0 0
      %3752 = vmatprep.subr.bf16.mxu0 0
      %3753 = vmatpush1.bf16.msra.mxu0 0
      %3754 = vmatprep.subr.bf16.mxu0 0
      %3755 = vmatpush1.bf16.msra.mxu0 0
      %3756 = vmatprep.subr.bf16.mxu0 0
      %3757 = vmatpush1.bf16.msra.mxu0 0
      %3758 = vmatprep.subr.bf16.mxu0 0
      %3759 = vmatpush1.bf16.msra.mxu0 0
      %3760 = vmatprep.subr.bf16.mxu0 0
      %3761 = vmatpush1.bf16.msra.mxu0 0
      %3762 = vmatprep.subr.bf16.mxu0 0
      %3763 = vmatpush1.bf16.msra.mxu0 0
      %3764 = vmatprep.subr.bf16.mxu0 0
      %3765 = vmatpush1.bf16.msra.mxu0 0
      %3766 = vmatprep.mubr.bf16.mxu0 0
      %3767 = vmatmul.mubr.bf16.gmra.mrb[0].mxu0 %v3717
      %v3768 = vpop.f32.mrb[0].mxu0
      %v3769 = vadd.f32 0.0, %v3768
      %v3770 = vpop.f32.mrb[0].mxu0
      %v3771 = vpop.f32.mrb[0].mxu0
      %v3772 = vadd.f32 0.0, %v3771
      %v3773 = vpop.f32.mrb[0].mxu0
      %3774 = vmatprep.mubr.bf16.mxu0 0
      %3775 = vmatmul.mubr.bf16.gmra.mrb[0].mxu0 %v3720
      %v3776 = vpop.f32.mrb[0].mxu0
      %v3777 = vadd.f32 0.0, %v3776
      %v3778 = vpop.f32.mrb[0].mxu0
      %v3779 = vpop.f32.mrb[0].mxu0
      %v3780 = vadd.f32 0.0, %v3779
      %v3781 = vpop.f32.mrb[0].mxu0
      %3782 = vmatprep.mubr.bf16.mxu0 0
      %3783 = vmatmul.mubr.bf16.gmra.mrb[0].mxu0 %v3723
      %v3784 = vpop.f32.mrb[0].mxu0
      %v3785 = vadd.f32 0.0, %v3784
      %v3786 = vpop.f32.mrb[0].mxu0
      %v3787 = vpop.f32.mrb[0].mxu0
      %v3788 = vadd.f32 0.0, %v3787
      %v3789 = vpop.f32.mrb[0].mxu0
      %3790 = vmatprep.mubr.bf16.mxu0 0
      %3791 = vmatmul.mubr.bf16.gmra.mrb[0].mxu0 %v3726
      %v3792 = vpop.f32.mrb[0].mxu0
      %v3793 = vadd.f32 0.0, %v3792
      %v3794 = vpop.f32.mrb[0].mxu0
      %v3795 = vpop.f32.mrb[0].mxu0
      %v3796 = vadd.f32 0.0, %v3795
      %v3797 = vpop.f32.mrb[0].mxu0
      %3798 = vmatprep.mubr.bf16.mxu0 0
      %3799 = vmatmul.mubr.bf16.gmra.mrb[0].mxu0 %v3729
      %v3800 = vpop.f32.mrb[0].mxu0
      %v3801 = vadd.f32 0.0, %v3800
      %v3802 = vpop.f32.mrb[0].mxu0
      %v3803 = vpop.f32.mrb[0].mxu0
      %v3804 = vadd.f32 0.0, %v3803
      %v3805 = vpop.f32.mrb[0].mxu0
      %3806 = vmatprep.mubr.bf16.mxu0 0
      %3807 = vmatmul.mubr.bf16.gmra.mrb[0].mxu0 %v3732
      %v3808 = vpop.f32.mrb[0].mxu0
      %v3809 = vadd.f32 0.0, %v3808
      %v3810 = vpop.f32.mrb[0].mxu0
      %v3811 = vpop.f32.mrb[0].mxu0
      %v3812 = vadd.f32 0.0, %v3811
      %v3813 = vpop.f32.mrb[0].mxu0
      %3814 = vdwg.mxu0
      %v3815 = vadd.f32 %v1019, %v3769
      %v3816 = vadd.f32 %v1020, %v3772
      %v3817 = vadd.f32 %v1021, %v3777
      %v3818 = vadd.f32 %v1022, %v3780
      %v3819 = vadd.f32 %v1023, %v3785
      %v3820 = vadd.f32 %v1024, %v3788
      %v3821 = vadd.f32 %v1025, %v3793
      %v3822 = vadd.f32 %v1026, %v3796
      %v3823 = vadd.f32 %v1027, %v3801
      %v3824 = vadd.f32 %v1028, %v3804
      %v3825 = vadd.f32 %v1029, %v3809
      %v3826 = vadd.f32 %v1030, %v3812
      %v3828 = vlaneseq
      %v3829 = vshrl.u32 %v3828, 7
      %v3830 = vsub.s32 0, %v3829
      %v3831 = vrot.slane %v1084, %v3830
      %v3833 = vadd.f32 %v3815, %v3831
      %v3834 = vadd.f32 %v3816, %v3831
      %v3835 = vadd.f32 %v3817, %v3831
      %v3836 = vadd.f32 %v3818, %v3831
      %v3837 = vadd.f32 %v3819, %v3831
      %v3838 = vadd.f32 %v3820, %v3831
      %v3839 = vadd.f32 %v3821, %v3831
      %v3840 = vadd.f32 %v3822, %v3831
      %v3841 = vadd.f32 %v3823, %v3831
      %v3842 = vadd.f32 %v3824, %v3831
      %v3843 = vadd.f32 %v3825, %v3831
      %v3844 = vadd.f32 %v3826, %v3831
      %v3845 = vsel %vm1125, %v3833, 0.0
      %3846 = vadd.xlane.f32.xlu0 %v3845
      %v3847 = vpop.xlane.xlu0 %3846
      %v3848 = vsel %vm1125, %v3834, 0.0
      %3849 = vadd.xlane.f32.xlu0 %v3848
      %v3850 = vpop.xlane.xlu0 %3849
      %v3851 = vsel %vm1125, %v3835, 0.0
      %3852 = vadd.xlane.f32.xlu0 %v3851
      %v3853 = vpop.xlane.xlu0 %3852
      %v3854 = vsel %vm1125, %v3836, 0.0
      %3855 = vadd.xlane.f32.xlu0 %v3854
      %v3856 = vpop.xlane.xlu0 %3855
      %v3857 = vsel %vm1125, %v3837, 0.0
      %3858 = vadd.xlane.f32.xlu0 %v3857
      %v3859 = vpop.xlane.xlu0 %3858
      %v3860 = vsel %vm1125, %v3838, 0.0
      %3861 = vadd.xlane.f32.xlu0 %v3860
      %v3862 = vpop.xlane.xlu0 %3861
      %v3863 = vsel %vm1125, %v3839, 0.0
      %3864 = vadd.xlane.f32.xlu0 %v3863
      %v3865 = vpop.xlane.xlu0 %3864
      %v3866 = vsel %vm1125, %v3840, 0.0
      %3867 = vadd.xlane.f32.xlu0 %v3866
      %v3868 = vpop.xlane.xlu0 %3867
      %v3869 = vsel %vm1125, %v3841, 0.0
      %3870 = vadd.xlane.f32.xlu0 %v3869
      %v3871 = vpop.xlane.xlu0 %3870
      %v3872 = vsel %vm1125, %v3842, 0.0
      %3873 = vadd.xlane.f32.xlu0 %v3872
      %v3874 = vpop.xlane.xlu0 %3873
      %v3875 = vsel %vm1125, %v3843, 0.0
      %3876 = vadd.xlane.f32.xlu0 %v3875
      %v3877 = vpop.xlane.xlu0 %3876
      %v3878 = vsel %vm1125, %v3844, 0.0
      %3879 = vadd.xlane.f32.xlu0 %v3878
      %v3880 = vpop.xlane.xlu0 %3879
      %v3881 = vmul.f32 %v3847, %v1162
      %v3882 = vmul.f32 %v3850, %v1162
      %v3883 = vmul.f32 %v3853, %v1162
      %v3884 = vmul.f32 %v3856, %v1162
      %v3885 = vmul.f32 %v3859, %v1162
      %v3886 = vmul.f32 %v3862, %v1162
      %v3887 = vmul.f32 %v3865, %v1162
      %v3888 = vmul.f32 %v3868, %v1162
      %v3889 = vmul.f32 %v3871, %v1162
      %v3890 = vmul.f32 %v3874, %v1162
      %v3891 = vmul.f32 %v3877, %v1162
      %v3892 = vmul.f32 %v3880, %v1162
      %v3893 = vsub.f32 %v3833, %v3881
      %v3894 = vsub.f32 %v3834, %v3882
      %v3895 = vsub.f32 %v3835, %v3883
      %v3896 = vsub.f32 %v3836, %v3884
      %v3897 = vsub.f32 %v3837, %v3885
      %v3898 = vsub.f32 %v3838, %v3886
      %v3899 = vsub.f32 %v3839, %v3887
      %v3900 = vsub.f32 %v3840, %v3888
      %v3901 = vsub.f32 %v3841, %v3889
      %v3902 = vsub.f32 %v3842, %v3890
      %v3903 = vsub.f32 %v3843, %v3891
      %v3904 = vsub.f32 %v3844, %v3892
      %v3905 = vmul.f32 %v3893, %v3893
      %v3906 = vmul.f32 %v3894, %v3894
      %v3907 = vmul.f32 %v3895, %v3895
      %v3908 = vmul.f32 %v3896, %v3896
      %v3909 = vmul.f32 %v3897, %v3897
      %v3910 = vmul.f32 %v3898, %v3898
      %v3911 = vmul.f32 %v3899, %v3899
      %v3912 = vmul.f32 %v3900, %v3900
      %v3913 = vmul.f32 %v3901, %v3901
      %v3914 = vmul.f32 %v3902, %v3902
      %v3915 = vmul.f32 %v3903, %v3903
      %v3916 = vmul.f32 %v3904, %v3904
      %v3917 = vsel %vm1125, %v3905, 0.0
      %3918 = vadd.xlane.f32.xlu0 %v3917
      %v3919 = vpop.xlane.xlu0 %3918
      %v3920 = vsel %vm1125, %v3906, 0.0
      %3921 = vadd.xlane.f32.xlu0 %v3920
      %v3922 = vpop.xlane.xlu0 %3921
      %v3923 = vsel %vm1125, %v3907, 0.0
      %3924 = vadd.xlane.f32.xlu0 %v3923
      %v3925 = vpop.xlane.xlu0 %3924
      %v3926 = vsel %vm1125, %v3908, 0.0
      %3927 = vadd.xlane.f32.xlu0 %v3926
      %v3928 = vpop.xlane.xlu0 %3927
      %v3929 = vsel %vm1125, %v3909, 0.0
      %3930 = vadd.xlane.f32.xlu0 %v3929
      %v3931 = vpop.xlane.xlu0 %3930
      %v3932 = vsel %vm1125, %v3910, 0.0
      %3933 = vadd.xlane.f32.xlu0 %v3932
      %v3934 = vpop.xlane.xlu0 %3933
      %v3935 = vsel %vm1125, %v3911, 0.0
      %3936 = vadd.xlane.f32.xlu0 %v3935
      %v3937 = vpop.xlane.xlu0 %3936
      %v3938 = vsel %vm1125, %v3912, 0.0
      %3939 = vadd.xlane.f32.xlu0 %v3938
      %v3940 = vpop.xlane.xlu0 %3939
      %v3941 = vsel %vm1125, %v3913, 0.0
      %3942 = vadd.xlane.f32.xlu0 %v3941
      %v3943 = vpop.xlane.xlu0 %3942
      %v3944 = vsel %vm1125, %v3914, 0.0
      %3945 = vadd.xlane.f32.xlu0 %v3944
      %v3946 = vpop.xlane.xlu0 %3945
      %v3947 = vsel %vm1125, %v3915, 0.0
      %3948 = vadd.xlane.f32.xlu0 %v3947
      %v3949 = vpop.xlane.xlu0 %3948
      %v3950 = vsel %vm1125, %v3916, 0.0
      %3951 = vadd.xlane.f32.xlu0 %v3950
      %v3952 = vpop.xlane.xlu0 %3951
      %v3953 = vmul.f32 %v3919, %v1162
      %v3954 = vmul.f32 %v3922, %v1162
      %v3955 = vmul.f32 %v3925, %v1162
      %v3956 = vmul.f32 %v3928, %v1162
      %v3957 = vmul.f32 %v3931, %v1162
      %v3958 = vmul.f32 %v3934, %v1162
      %v3959 = vmul.f32 %v3937, %v1162
      %v3960 = vmul.f32 %v3940, %v1162
      %v3961 = vmul.f32 %v3943, %v1162
      %v3962 = vmul.f32 %v3946, %v1162
      %v3963 = vmul.f32 %v3949, %v1162
      %v3964 = vmul.f32 %v3952, %v1162
      %v3965 = vadd.f32 %v3953, 1e-05
      %v3966 = vadd.f32 %v3954, 1e-05
      %v3967 = vadd.f32 %v3955, 1e-05
      %v3968 = vadd.f32 %v3956, 1e-05
      %v3969 = vadd.f32 %v3957, 1e-05
      %v3970 = vadd.f32 %v3958, 1e-05
      %v3971 = vadd.f32 %v3959, 1e-05
      %v3972 = vadd.f32 %v3960, 1e-05
      %v3973 = vadd.f32 %v3961, 1e-05
      %v3974 = vadd.f32 %v3962, 1e-05
      %v3975 = vadd.f32 %v3963, 1e-05
      %v3976 = vadd.f32 %v3964, 1e-05
      %v3977 = vrsqrt.pop %v3965
      %v3978 = vrsqrt.pop %v3966
      %v3979 = vrsqrt.pop %v3967
      %v3980 = vrsqrt.pop %v3968
      %v3981 = vrsqrt.pop %v3969
      %v3982 = vrsqrt.pop %v3970
      %v3983 = vrsqrt.pop %v3971
      %v3984 = vrsqrt.pop %v3972
      %v3985 = vrsqrt.pop %v3973
      %v3986 = vrsqrt.pop %v3974
      %v3987 = vrsqrt.pop %v3975
      %v3988 = vrsqrt.pop %v3976
      %v3989 = vmul.f32 %v3893, %v3977
      %v3990 = vmul.f32 %v3894, %v3978
      %v3991 = vmul.f32 %v3895, %v3979
      %v3992 = vmul.f32 %v3896, %v3980
      %v3993 = vmul.f32 %v3897, %v3981
      %v3994 = vmul.f32 %v3898, %v3982
      %v3995 = vmul.f32 %v3899, %v3983
      %v3996 = vmul.f32 %v3900, %v3984
      %v3997 = vmul.f32 %v3901, %v3985
      %v3998 = vmul.f32 %v3902, %v3986
      %v3999 = vmul.f32 %v3903, %v3987
      %v4000 = vmul.f32 %v3904, %v3988
      %v4002 = vlaneseq
      %v4003 = vshrl.u32 %v4002, 7
      %v4004 = vsub.s32 0, %v4003
      %v4005 = vrot.slane %v1085, %v4004
      %v4007 = vmul.f32 %v3989, %v4005
      %v4008 = vmul.f32 %v3990, %v4005
      %v4009 = vmul.f32 %v3991, %v4005
      %v4010 = vmul.f32 %v3992, %v4005
      %v4011 = vmul.f32 %v3993, %v4005
      %v4012 = vmul.f32 %v3994, %v4005
      %v4013 = vmul.f32 %v3995, %v4005
      %v4014 = vmul.f32 %v3996, %v4005
      %v4015 = vmul.f32 %v3997, %v4005
      %v4016 = vmul.f32 %v3998, %v4005
      %v4017 = vmul.f32 %v3999, %v4005
      %v4018 = vmul.f32 %v4000, %v4005
      %v4020 = vlaneseq
      %v4021 = vshrl.u32 %v4020, 7
      %v4022 = vsub.s32 0, %v4021
      %v4023 = vrot.slane %v1086, %v4022
      %v4025 = vadd.f32 %v4007, %v4023
      %v4026 = vadd.f32 %v4008, %v4023
      %v4027 = vadd.f32 %v4009, %v4023
      %v4028 = vadd.f32 %v4010, %v4023
      %v4029 = vadd.f32 %v4011, %v4023
      %v4030 = vadd.f32 %v4012, %v4023
      %v4031 = vadd.f32 %v4013, %v4023
      %v4032 = vadd.f32 %v4014, %v4023
      %v4033 = vadd.f32 %v4015, %v4023
      %v4034 = vadd.f32 %v4016, %v4023
      %v4035 = vadd.f32 %v4017, %v4023
      %v4036 = vadd.f32 %v4018, %v4023
      %v4037 = vpack.c.bf16 %v4026, %v4025
      %v4038 = vpack.c.bf16 %v4028, %v4027
      %v4039 = vpack.c.bf16 %v4030, %v4029
      %v4040 = vpack.c.bf16 %v4032, %v4031
      %v4041 = vpack.c.bf16 %v4034, %v4033
      %v4042 = vpack.c.bf16 %v4036, %v4035
      %v4044 = vlaneseq
      %v4045 = vshrl.u32 %v4044, 7
      %v4046 = vsub.s32 0, %v4045
      %v4047 = vrot.slane %v1099, %v4046
      %v4048 = vlaneseq
      %v4049 = vshrl.u32 %v4048, 7
      %v4050 = vsub.s32 1, %v4049
      %v4051 = vrot.slane %v1099, %v4050
      %v4066 = vunpack.c.l.b16 %v1087
      %v4067 = vunpack.c.h.b16 %v1087
      %v4068 = vunpack.c.l.b16 %v1088
      %v4069 = vunpack.c.h.b16 %v1088
      %v4070 = vunpack.c.l.b16 %v1089
      %v4071 = vunpack.c.h.b16 %v1089
      %v4072 = vunpack.c.l.b16 %v1090
      %v4073 = vunpack.c.h.b16 %v1090
      %v4074 = vunpack.c.l.b16 %v1091
      %v4075 = vunpack.c.h.b16 %v1091
      %v4076 = vunpack.c.l.b16 %v1092
      %v4077 = vunpack.c.h.b16 %v1092
      %v4078 = vunpack.c.l.b16 %v1093
      %v4079 = vunpack.c.h.b16 %v1093
      %v4080 = vunpack.c.l.b16 %v1094
      %v4081 = vunpack.c.h.b16 %v1094
      %v4082 = vunpack.c.l.b16 %v1095
      %v4083 = vunpack.c.h.b16 %v1095
      %v4084 = vunpack.c.l.b16 %v1096
      %v4085 = vunpack.c.h.b16 %v1096
      %v4086 = vunpack.c.l.b16 %v1097
      %v4087 = vunpack.c.h.b16 %v1097
      %v4088 = vunpack.c.l.b16 %v1098
      %v4089 = vunpack.c.h.b16 %v1098
      %v4090 = vpack.c.b16 %v4068, %v4066
      %v4091 = vpack.c.b16 %v4069, %v4067
      %v4092 = vpack.c.b16 %v4072, %v4070
      %v4093 = vpack.c.b16 %v4073, %v4071
      %v4094 = vpack.c.b16 %v4076, %v4074
      %v4095 = vpack.c.b16 %v4077, %v4075
      %v4096 = vpack.c.b16 %v4080, %v4078
      %v4097 = vpack.c.b16 %v4081, %v4079
      %v4098 = vpack.c.b16 %v4084, %v4082
      %v4099 = vpack.c.b16 %v4085, %v4083
      %v4100 = vpack.c.b16 %v4088, %v4086
      %v4101 = vpack.c.b16 %v4089, %v4087
      %v4115 = vsel %vm1125, %v4037, 0
      %v4118 = vsel %vm1125, %v4038, 0
      %v4121 = vsel %vm1125, %v4039, 0
      %v4124 = vsel %vm1125, %v4040, 0
      %v4127 = vsel %vm1125, %v4041, 0
      %v4130 = vsel %vm1125, %v4042, 0
      %4132 = vmatprep.subr.bf16.mxu0 %v4091
      %4133 = vmatpush1.bf16.msra.mxu0 %v4090
      %4134 = vmatprep.subr.bf16.mxu0 %v4093
      %4135 = vmatpush1.bf16.msra.mxu0 %v4092
      %4136 = vmatprep.subr.bf16.mxu0 %v4095
      %4137 = vmatpush1.bf16.msra.mxu0 %v4094
      %4138 = vmatprep.subr.bf16.mxu0 %v4097
      %4139 = vmatpush1.bf16.msra.mxu0 %v4096
      %4140 = vmatprep.subr.bf16.mxu0 %v4099
      %4141 = vmatpush1.bf16.msra.mxu0 %v4098
      %4142 = vmatprep.subr.bf16.mxu0 %v4101
      %4143 = vmatpush1.bf16.msra.mxu0 %v4100
      %4144 = vmatprep.subr.bf16.mxu0 0
      %4145 = vmatpush1.bf16.msra.mxu0 0
      %4146 = vmatprep.subr.bf16.mxu0 0
      %4147 = vmatpush1.bf16.msra.mxu0 0
      %4148 = vmatprep.subr.bf16.mxu0 0
      %4149 = vmatpush1.bf16.msra.mxu0 0
      %4150 = vmatprep.subr.bf16.mxu0 0
      %4151 = vmatpush1.bf16.msra.mxu0 0
      %4152 = vmatprep.subr.bf16.mxu0 0
      %4153 = vmatpush1.bf16.msra.mxu0 0
      %4154 = vmatprep.subr.bf16.mxu0 0
      %4155 = vmatpush1.bf16.msra.mxu0 0
      %4156 = vmatprep.subr.bf16.mxu0 0
      %4157 = vmatpush1.bf16.msra.mxu0 0
      %4158 = vmatprep.subr.bf16.mxu0 0
      %4159 = vmatpush1.bf16.msra.mxu0 0
      %4160 = vmatprep.subr.bf16.mxu0 0
      %4161 = vmatpush1.bf16.msra.mxu0 0
      %4162 = vmatprep.subr.bf16.mxu0 0
      %4163 = vmatpush1.bf16.msra.mxu0 0
      %4164 = vmatprep.mubr.bf16.mxu0 0
      %4165 = vmatmul.mubr.bf16.gmra.mrb[0].mxu0 %v4115
      %v4166 = vpop.f32.mrb[0].mxu0
      %v4167 = vadd.f32 %v4047, %v4166
      %v4168 = vpop.f32.mrb[0].mxu0
      %v4169 = vadd.f32 %v4051, %v4168
      %v4170 = vpop.f32.mrb[0].mxu0
      %v4171 = vadd.f32 %v4047, %v4170
      %v4172 = vpop.f32.mrb[0].mxu0
      %v4173 = vadd.f32 %v4051, %v4172
      %4174 = vmatprep.mubr.bf16.mxu0 0
      %4175 = vmatmul.mubr.bf16.gmra.mrb[0].mxu0 %v4118
      %v4176 = vpop.f32.mrb[0].mxu0
      %v4177 = vadd.f32 %v4047, %v4176
      %v4178 = vpop.f32.mrb[0].mxu0
      %v4179 = vadd.f32 %v4051, %v4178
      %v4180 = vpop.f32.mrb[0].mxu0
      %v4181 = vadd.f32 %v4047, %v4180
      %v4182 = vpop.f32.mrb[0].mxu0
      %v4183 = vadd.f32 %v4051, %v4182
      %4184 = vmatprep.mubr.bf16.mxu0 0
      %4185 = vmatmul.mubr.bf16.gmra.mrb[0].mxu0 %v4121
      %v4186 = vpop.f32.mrb[0].mxu0
      %v4187 = vadd.f32 %v4047, %v4186
      %v4188 = vpop.f32.mrb[0].mxu0
      %v4189 = vadd.f32 %v4051, %v4188
      %v4190 = vpop.f32.mrb[0].mxu0
      %v4191 = vadd.f32 %v4047, %v4190
      %v4192 = vpop.f32.mrb[0].mxu0
      %v4193 = vadd.f32 %v4051, %v4192
      %4194 = vmatprep.mubr.bf16.mxu0 0
      %4195 = vmatmul.mubr.bf16.gmra.mrb[0].mxu0 %v4124
      %v4196 = vpop.f32.mrb[0].mxu0
      %v4197 = vadd.f32 %v4047, %v4196
      %v4198 = vpop.f32.mrb[0].mxu0
      %v4199 = vadd.f32 %v4051, %v4198
      %v4200 = vpop.f32.mrb[0].mxu0
      %v4201 = vadd.f32 %v4047, %v4200
      %v4202 = vpop.f32.mrb[0].mxu0
      %v4203 = vadd.f32 %v4051, %v4202
      %4204 = vmatprep.mubr.bf16.mxu0 0
      %4205 = vmatmul.mubr.bf16.gmra.mrb[0].mxu0 %v4127
      %v4206 = vpop.f32.mrb[0].mxu0
      %v4207 = vadd.f32 %v4047, %v4206
      %v4208 = vpop.f32.mrb[0].mxu0
      %v4209 = vadd.f32 %v4051, %v4208
      %v4210 = vpop.f32.mrb[0].mxu0
      %v4211 = vadd.f32 %v4047, %v4210
      %v4212 = vpop.f32.mrb[0].mxu0
      %v4213 = vadd.f32 %v4051, %v4212
      %4214 = vmatprep.mubr.bf16.mxu0 0
      %4215 = vmatmul.mubr.bf16.gmra.mrb[0].mxu0 %v4130
      %v4216 = vpop.f32.mrb[0].mxu0
      %v4217 = vadd.f32 %v4047, %v4216
      %v4218 = vpop.f32.mrb[0].mxu0
      %v4219 = vadd.f32 %v4051, %v4218
      %v4220 = vpop.f32.mrb[0].mxu0
      %v4221 = vadd.f32 %v4047, %v4220
      %v4222 = vpop.f32.mrb[0].mxu0
      %v4223 = vadd.f32 %v4051, %v4222
      %4224 = vdwg.mxu0
      %v4225 = vmul.f32 %v4167, 0.5
      %v4226 = vmul.f32 %v4169, 0.5
      %v4227 = vmul.f32 %v4171, 0.5
      %v4228 = vmul.f32 %v4173, 0.5
      %v4229 = vmul.f32 %v4177, 0.5
      %v4230 = vmul.f32 %v4179, 0.5
      %v4231 = vmul.f32 %v4181, 0.5
      %v4232 = vmul.f32 %v4183, 0.5
      %v4233 = vmul.f32 %v4187, 0.5
      %v4234 = vmul.f32 %v4189, 0.5
      %v4235 = vmul.f32 %v4191, 0.5
      %v4236 = vmul.f32 %v4193, 0.5
      %v4237 = vmul.f32 %v4197, 0.5
      %v4238 = vmul.f32 %v4199, 0.5
      %v4239 = vmul.f32 %v4201, 0.5
      %v4240 = vmul.f32 %v4203, 0.5
      %v4241 = vmul.f32 %v4207, 0.5
      %v4242 = vmul.f32 %v4209, 0.5
      %v4243 = vmul.f32 %v4211, 0.5
      %v4244 = vmul.f32 %v4213, 0.5
      %v4245 = vmul.f32 %v4217, 0.5
      %v4246 = vmul.f32 %v4219, 0.5
      %v4247 = vmul.f32 %v4221, 0.5
      %v4248 = vmul.f32 %v4223, 0.5
      %v4249 = vmul.f32 %v4167, 0.70710677
      %v4250 = vmul.f32 %v4169, 0.70710677
      %v4251 = vmul.f32 %v4171, 0.70710677
      %v4252 = vmul.f32 %v4173, 0.70710677
      %v4253 = vmul.f32 %v4177, 0.70710677
      %v4254 = vmul.f32 %v4179, 0.70710677
      %v4255 = vmul.f32 %v4181, 0.70710677
      %v4256 = vmul.f32 %v4183, 0.70710677
      %v4257 = vmul.f32 %v4187, 0.70710677
      %v4258 = vmul.f32 %v4189, 0.70710677
      %v4259 = vmul.f32 %v4191, 0.70710677
      %v4260 = vmul.f32 %v4193, 0.70710677
      %v4261 = vmul.f32 %v4197, 0.70710677
      %v4262 = vmul.f32 %v4199, 0.70710677
      %v4263 = vmul.f32 %v4201, 0.70710677
      %v4264 = vmul.f32 %v4203, 0.70710677
      %v4265 = vmul.f32 %v4207, 0.70710677
      %v4266 = vmul.f32 %v4209, 0.70710677
      %v4267 = vmul.f32 %v4211, 0.70710677
      %v4268 = vmul.f32 %v4213, 0.70710677
      %v4269 = vmul.f32 %v4217, 0.70710677
      %v4270 = vmul.f32 %v4219, 0.70710677
      %v4271 = vmul.f32 %v4221, 0.70710677
      %v4272 = vmul.f32 %v4223, 0.70710677
      %v4273 = vand.u32 2147483647, %v4249
      %v4274 = vand.u32 2147483647, %v4250
      %v4275 = vand.u32 2147483647, %v4251
      %v4276 = vand.u32 2147483647, %v4252
      %v4277 = vand.u32 2147483647, %v4253
      %v4278 = vand.u32 2147483647, %v4254
      %v4279 = vand.u32 2147483647, %v4255
      %v4280 = vand.u32 2147483647, %v4256
      %v4281 = vand.u32 2147483647, %v4257
      %v4282 = vand.u32 2147483647, %v4258
      %v4283 = vand.u32 2147483647, %v4259
      %v4284 = vand.u32 2147483647, %v4260
      %v4285 = vand.u32 2147483647, %v4261
      %v4286 = vand.u32 2147483647, %v4262
      %v4287 = vand.u32 2147483647, %v4263
      %v4288 = vand.u32 2147483647, %v4264
      %v4289 = vand.u32 2147483647, %v4265
      %v4290 = vand.u32 2147483647, %v4266
      %v4291 = vand.u32 2147483647, %v4267
      %v4292 = vand.u32 2147483647, %v4268
      %v4293 = vand.u32 2147483647, %v4269
      %v4294 = vand.u32 2147483647, %v4270
      %v4295 = vand.u32 2147483647, %v4271
      %v4296 = vand.u32 2147483647, %v4272
      %v4297 = vmul.f32 %v4273, 0.3275911
      %v4298 = vmul.f32 %v4274, 0.3275911
      %v4299 = vmul.f32 %v4275, 0.3275911
      %v4300 = vmul.f32 %v4276, 0.3275911
      %v4301 = vmul.f32 %v4277, 0.3275911
      %v4302 = vmul.f32 %v4278, 0.3275911
      %v4303 = vmul.f32 %v4279, 0.3275911
      %v4304 = vmul.f32 %v4280, 0.3275911
      %v4305 = vmul.f32 %v4281, 0.3275911
      %v4306 = vmul.f32 %v4282, 0.3275911
      %v4307 = vmul.f32 %v4283, 0.3275911
      %v4308 = vmul.f32 %v4284, 0.3275911
      %v4309 = vmul.f32 %v4285, 0.3275911
      %v4310 = vmul.f32 %v4286, 0.3275911
      %v4311 = vmul.f32 %v4287, 0.3275911
      %v4312 = vmul.f32 %v4288, 0.3275911
      %v4313 = vmul.f32 %v4289, 0.3275911
      %v4314 = vmul.f32 %v4290, 0.3275911
      %v4315 = vmul.f32 %v4291, 0.3275911
      %v4316 = vmul.f32 %v4292, 0.3275911
      %v4317 = vmul.f32 %v4293, 0.3275911
      %v4318 = vmul.f32 %v4294, 0.3275911
      %v4319 = vmul.f32 %v4295, 0.3275911
      %v4320 = vmul.f32 %v4296, 0.3275911
      %v4321 = vadd.f32 %v4297, 1.0
      %v4322 = vadd.f32 %v4298, 1.0
      %v4323 = vadd.f32 %v4299, 1.0
      %v4324 = vadd.f32 %v4300, 1.0
      %v4325 = vadd.f32 %v4301, 1.0
      %v4326 = vadd.f32 %v4302, 1.0
      %v4327 = vadd.f32 %v4303, 1.0
      %v4328 = vadd.f32 %v4304, 1.0
      %v4329 = vadd.f32 %v4305, 1.0
      %v4330 = vadd.f32 %v4306, 1.0
      %v4331 = vadd.f32 %v4307, 1.0
      %v4332 = vadd.f32 %v4308, 1.0
      %v4333 = vadd.f32 %v4309, 1.0
      %v4334 = vadd.f32 %v4310, 1.0
      %v4335 = vadd.f32 %v4311, 1.0
      %v4336 = vadd.f32 %v4312, 1.0
      %v4337 = vadd.f32 %v4313, 1.0
      %v4338 = vadd.f32 %v4314, 1.0
      %v4339 = vadd.f32 %v4315, 1.0
      %v4340 = vadd.f32 %v4316, 1.0
      %v4341 = vadd.f32 %v4317, 1.0
      %v4342 = vadd.f32 %v4318, 1.0
      %v4343 = vadd.f32 %v4319, 1.0
      %v4344 = vadd.f32 %v4320, 1.0
      %v4345 = vrcp.pop %v4321
      %v4346 = vmul.f32 1.0, %v4345
      %v4347 = vrcp.pop %v4322
      %v4348 = vmul.f32 1.0, %v4347
      %v4349 = vrcp.pop %v4323
      %v4350 = vmul.f32 1.0, %v4349
      %v4351 = vrcp.pop %v4324
      %v4352 = vmul.f32 1.0, %v4351
      %v4353 = vrcp.pop %v4325
      %v4354 = vmul.f32 1.0, %v4353
      %v4355 = vrcp.pop %v4326
      %v4356 = vmul.f32 1.0, %v4355
      %v4357 = vrcp.pop %v4327
      %v4358 = vmul.f32 1.0, %v4357
      %v4359 = vrcp.pop %v4328
      %v4360 = vmul.f32 1.0, %v4359
      %v4361 = vrcp.pop %v4329
      %v4362 = vmul.f32 1.0, %v4361
      %v4363 = vrcp.pop %v4330
      %v4364 = vmul.f32 1.0, %v4363
      %v4365 = vrcp.pop %v4331
      %v4366 = vmul.f32 1.0, %v4365
      %v4367 = vrcp.pop %v4332
      %v4368 = vmul.f32 1.0, %v4367
      %v4369 = vrcp.pop %v4333
      %v4370 = vmul.f32 1.0, %v4369
      %v4371 = vrcp.pop %v4334
      %v4372 = vmul.f32 1.0, %v4371
      %v4373 = vrcp.pop %v4335
      %v4374 = vmul.f32 1.0, %v4373
      %v4375 = vrcp.pop %v4336
      %v4376 = vmul.f32 1.0, %v4375
      %v4377 = vrcp.pop %v4337
      %v4378 = vmul.f32 1.0, %v4377
      %v4379 = vrcp.pop %v4338
      %v4380 = vmul.f32 1.0, %v4379
      %v4381 = vrcp.pop %v4339
      %v4382 = vmul.f32 1.0, %v4381
      %v4383 = vrcp.pop %v4340
      %v4384 = vmul.f32 1.0, %v4383
      %v4385 = vrcp.pop %v4341
      %v4386 = vmul.f32 1.0, %v4385
      %v4387 = vrcp.pop %v4342
      %v4388 = vmul.f32 1.0, %v4387
      %v4389 = vrcp.pop %v4343
      %v4390 = vmul.f32 1.0, %v4389
      %v4391 = vrcp.pop %v4344
      %v4392 = vmul.f32 1.0, %v4391
      %v4393 = vmul.f32 %v4346, 1.0614054
      %v4394 = vmul.f32 %v4348, 1.0614054
      %v4395 = vmul.f32 %v4350, 1.0614054
      %v4396 = vmul.f32 %v4352, 1.0614054
      %v4397 = vmul.f32 %v4354, 1.0614054
      %v4398 = vmul.f32 %v4356, 1.0614054
      %v4399 = vmul.f32 %v4358, 1.0614054
      %v4400 = vmul.f32 %v4360, 1.0614054
      %v4401 = vmul.f32 %v4362, 1.0614054
      %v4402 = vmul.f32 %v4364, 1.0614054
      %v4403 = vmul.f32 %v4366, 1.0614054
      %v4404 = vmul.f32 %v4368, 1.0614054
      %v4405 = vmul.f32 %v4370, 1.0614054
      %v4406 = vmul.f32 %v4372, 1.0614054
      %v4407 = vmul.f32 %v4374, 1.0614054
      %v4408 = vmul.f32 %v4376, 1.0614054
      %v4409 = vmul.f32 %v4378, 1.0614054
      %v4410 = vmul.f32 %v4380, 1.0614054
      %v4411 = vmul.f32 %v4382, 1.0614054
      %v4412 = vmul.f32 %v4384, 1.0614054
      %v4413 = vmul.f32 %v4386, 1.0614054
      %v4414 = vmul.f32 %v4388, 1.0614054
      %v4415 = vmul.f32 %v4390, 1.0614054
      %v4416 = vmul.f32 %v4392, 1.0614054
      %v4417 = vsub.f32 %v4393, 1.4531521
      %v4418 = vsub.f32 %v4394, 1.4531521
      %v4419 = vsub.f32 %v4395, 1.4531521
      %v4420 = vsub.f32 %v4396, 1.4531521
      %v4421 = vsub.f32 %v4397, 1.4531521
      %v4422 = vsub.f32 %v4398, 1.4531521
      %v4423 = vsub.f32 %v4399, 1.4531521
      %v4424 = vsub.f32 %v4400, 1.4531521
      %v4425 = vsub.f32 %v4401, 1.4531521
      %v4426 = vsub.f32 %v4402, 1.4531521
      %v4427 = vsub.f32 %v4403, 1.4531521
      %v4428 = vsub.f32 %v4404, 1.4531521
      %v4429 = vsub.f32 %v4405, 1.4531521
      %v4430 = vsub.f32 %v4406, 1.4531521
      %v4431 = vsub.f32 %v4407, 1.4531521
      %v4432 = vsub.f32 %v4408, 1.4531521
      %v4433 = vsub.f32 %v4409, 1.4531521
      %v4434 = vsub.f32 %v4410, 1.4531521
      %v4435 = vsub.f32 %v4411, 1.4531521
      %v4436 = vsub.f32 %v4412, 1.4531521
      %v4437 = vsub.f32 %v4413, 1.4531521
      %v4438 = vsub.f32 %v4414, 1.4531521
      %v4439 = vsub.f32 %v4415, 1.4531521
      %v4440 = vsub.f32 %v4416, 1.4531521
      %v4441 = vmul.f32 %v4417, %v4346
      %v4442 = vmul.f32 %v4418, %v4348
      %v4443 = vmul.f32 %v4419, %v4350
      %v4444 = vmul.f32 %v4420, %v4352
      %v4445 = vmul.f32 %v4421, %v4354
      %v4446 = vmul.f32 %v4422, %v4356
      %v4447 = vmul.f32 %v4423, %v4358
      %v4448 = vmul.f32 %v4424, %v4360
      %v4449 = vmul.f32 %v4425, %v4362
      %v4450 = vmul.f32 %v4426, %v4364
      %v4451 = vmul.f32 %v4427, %v4366
      %v4452 = vmul.f32 %v4428, %v4368
      %v4453 = vmul.f32 %v4429, %v4370
      %v4454 = vmul.f32 %v4430, %v4372
      %v4455 = vmul.f32 %v4431, %v4374
      %v4456 = vmul.f32 %v4432, %v4376
      %v4457 = vmul.f32 %v4433, %v4378
      %v4458 = vmul.f32 %v4434, %v4380
      %v4459 = vmul.f32 %v4435, %v4382
      %v4460 = vmul.f32 %v4436, %v4384
      %v4461 = vmul.f32 %v4437, %v4386
      %v4462 = vmul.f32 %v4438, %v4388
      %v4463 = vmul.f32 %v4439, %v4390
      %v4464 = vmul.f32 %v4440, %v4392
      %v4465 = vadd.f32 %v4441, 1.4214138
      %v4466 = vadd.f32 %v4442, 1.4214138
      %v4467 = vadd.f32 %v4443, 1.4214138
      %v4468 = vadd.f32 %v4444, 1.4214138
      %v4469 = vadd.f32 %v4445, 1.4214138
      %v4470 = vadd.f32 %v4446, 1.4214138
      %v4471 = vadd.f32 %v4447, 1.4214138
      %v4472 = vadd.f32 %v4448, 1.4214138
      %v4473 = vadd.f32 %v4449, 1.4214138
      %v4474 = vadd.f32 %v4450, 1.4214138
      %v4475 = vadd.f32 %v4451, 1.4214138
      %v4476 = vadd.f32 %v4452, 1.4214138
      %v4477 = vadd.f32 %v4453, 1.4214138
      %v4478 = vadd.f32 %v4454, 1.4214138
      %v4479 = vadd.f32 %v4455, 1.4214138
      %v4480 = vadd.f32 %v4456, 1.4214138
      %v4481 = vadd.f32 %v4457, 1.4214138
      %v4482 = vadd.f32 %v4458, 1.4214138
      %v4483 = vadd.f32 %v4459, 1.4214138
      %v4484 = vadd.f32 %v4460, 1.4214138
      %v4485 = vadd.f32 %v4461, 1.4214138
      %v4486 = vadd.f32 %v4462, 1.4214138
      %v4487 = vadd.f32 %v4463, 1.4214138
      %v4488 = vadd.f32 %v4464, 1.4214138
      %v4489 = vmul.f32 %v4465, %v4346
      %v4490 = vmul.f32 %v4466, %v4348
      %v4491 = vmul.f32 %v4467, %v4350
      %v4492 = vmul.f32 %v4468, %v4352
      %v4493 = vmul.f32 %v4469, %v4354
      %v4494 = vmul.f32 %v4470, %v4356
      %v4495 = vmul.f32 %v4471, %v4358
      %v4496 = vmul.f32 %v4472, %v4360
      %v4497 = vmul.f32 %v4473, %v4362
      %v4498 = vmul.f32 %v4474, %v4364
      %v4499 = vmul.f32 %v4475, %v4366
      %v4500 = vmul.f32 %v4476, %v4368
      %v4501 = vmul.f32 %v4477, %v4370
      %v4502 = vmul.f32 %v4478, %v4372
      %v4503 = vmul.f32 %v4479, %v4374
      %v4504 = vmul.f32 %v4480, %v4376
      %v4505 = vmul.f32 %v4481, %v4378
      %v4506 = vmul.f32 %v4482, %v4380
      %v4507 = vmul.f32 %v4483, %v4382
      %v4508 = vmul.f32 %v4484, %v4384
      %v4509 = vmul.f32 %v4485, %v4386
      %v4510 = vmul.f32 %v4486, %v4388
      %v4511 = vmul.f32 %v4487, %v4390
      %v4512 = vmul.f32 %v4488, %v4392
      %v4513 = vsub.f32 %v4489, 0.28449672
      %v4514 = vsub.f32 %v4490, 0.28449672
      %v4515 = vsub.f32 %v4491, 0.28449672
      %v4516 = vsub.f32 %v4492, 0.28449672
      %v4517 = vsub.f32 %v4493, 0.28449672
      %v4518 = vsub.f32 %v4494, 0.28449672
      %v4519 = vsub.f32 %v4495, 0.28449672
      %v4520 = vsub.f32 %v4496, 0.28449672
      %v4521 = vsub.f32 %v4497, 0.28449672
      %v4522 = vsub.f32 %v4498, 0.28449672
      %v4523 = vsub.f32 %v4499, 0.28449672
      %v4524 = vsub.f32 %v4500, 0.28449672
      %v4525 = vsub.f32 %v4501, 0.28449672
      %v4526 = vsub.f32 %v4502, 0.28449672
      %v4527 = vsub.f32 %v4503, 0.28449672
      %v4528 = vsub.f32 %v4504, 0.28449672
      %v4529 = vsub.f32 %v4505, 0.28449672
      %v4530 = vsub.f32 %v4506, 0.28449672
      %v4531 = vsub.f32 %v4507, 0.28449672
      %v4532 = vsub.f32 %v4508, 0.28449672
      %v4533 = vsub.f32 %v4509, 0.28449672
      %v4534 = vsub.f32 %v4510, 0.28449672
      %v4535 = vsub.f32 %v4511, 0.28449672
      %v4536 = vsub.f32 %v4512, 0.28449672
      %v4537 = vmul.f32 %v4513, %v4346
      %v4538 = vmul.f32 %v4514, %v4348
      %v4539 = vmul.f32 %v4515, %v4350
      %v4540 = vmul.f32 %v4516, %v4352
      %v4541 = vmul.f32 %v4517, %v4354
      %v4542 = vmul.f32 %v4518, %v4356
      %v4543 = vmul.f32 %v4519, %v4358
      %v4544 = vmul.f32 %v4520, %v4360
      %v4545 = vmul.f32 %v4521, %v4362
      %v4546 = vmul.f32 %v4522, %v4364
      %v4547 = vmul.f32 %v4523, %v4366
      %v4548 = vmul.f32 %v4524, %v4368
      %v4549 = vmul.f32 %v4525, %v4370
      %v4550 = vmul.f32 %v4526, %v4372
      %v4551 = vmul.f32 %v4527, %v4374
      %v4552 = vmul.f32 %v4528, %v4376
      %v4553 = vmul.f32 %v4529, %v4378
      %v4554 = vmul.f32 %v4530, %v4380
      %v4555 = vmul.f32 %v4531, %v4382
      %v4556 = vmul.f32 %v4532, %v4384
      %v4557 = vmul.f32 %v4533, %v4386
      %v4558 = vmul.f32 %v4534, %v4388
      %v4559 = vmul.f32 %v4535, %v4390
      %v4560 = vmul.f32 %v4536, %v4392
      %v4561 = vadd.f32 %v4537, 0.2548296
      %v4562 = vadd.f32 %v4538, 0.2548296
      %v4563 = vadd.f32 %v4539, 0.2548296
      %v4564 = vadd.f32 %v4540, 0.2548296
      %v4565 = vadd.f32 %v4541, 0.2548296
      %v4566 = vadd.f32 %v4542, 0.2548296
      %v4567 = vadd.f32 %v4543, 0.2548296
      %v4568 = vadd.f32 %v4544, 0.2548296
      %v4569 = vadd.f32 %v4545, 0.2548296
      %v4570 = vadd.f32 %v4546, 0.2548296
      %v4571 = vadd.f32 %v4547, 0.2548296
      %v4572 = vadd.f32 %v4548, 0.2548296
      %v4573 = vadd.f32 %v4549, 0.2548296
      %v4574 = vadd.f32 %v4550, 0.2548296
      %v4575 = vadd.f32 %v4551, 0.2548296
      %v4576 = vadd.f32 %v4552, 0.2548296
      %v4577 = vadd.f32 %v4553, 0.2548296
      %v4578 = vadd.f32 %v4554, 0.2548296
      %v4579 = vadd.f32 %v4555, 0.2548296
      %v4580 = vadd.f32 %v4556, 0.2548296
      %v4581 = vadd.f32 %v4557, 0.2548296
      %v4582 = vadd.f32 %v4558, 0.2548296
      %v4583 = vadd.f32 %v4559, 0.2548296
      %v4584 = vadd.f32 %v4560, 0.2548296
      %v4585 = vmul.f32 %v4561, %v4346
      %v4586 = vmul.f32 %v4562, %v4348
      %v4587 = vmul.f32 %v4563, %v4350
      %v4588 = vmul.f32 %v4564, %v4352
      %v4589 = vmul.f32 %v4565, %v4354
      %v4590 = vmul.f32 %v4566, %v4356
      %v4591 = vmul.f32 %v4567, %v4358
      %v4592 = vmul.f32 %v4568, %v4360
      %v4593 = vmul.f32 %v4569, %v4362
      %v4594 = vmul.f32 %v4570, %v4364
      %v4595 = vmul.f32 %v4571, %v4366
      %v4596 = vmul.f32 %v4572, %v4368
      %v4597 = vmul.f32 %v4573, %v4370
      %v4598 = vmul.f32 %v4574, %v4372
      %v4599 = vmul.f32 %v4575, %v4374
      %v4600 = vmul.f32 %v4576, %v4376
      %v4601 = vmul.f32 %v4577, %v4378
      %v4602 = vmul.f32 %v4578, %v4380
      %v4603 = vmul.f32 %v4579, %v4382
      %v4604 = vmul.f32 %v4580, %v4384
      %v4605 = vmul.f32 %v4581, %v4386
      %v4606 = vmul.f32 %v4582, %v4388
      %v4607 = vmul.f32 %v4583, %v4390
      %v4608 = vmul.f32 %v4584, %v4392
      %v4609 = vsub.f32 0.0, %v4249
      %v4610 = vsub.f32 0.0, %v4250
      %v4611 = vsub.f32 0.0, %v4251
      %v4612 = vsub.f32 0.0, %v4252
      %v4613 = vsub.f32 0.0, %v4253
      %v4614 = vsub.f32 0.0, %v4254
      %v4615 = vsub.f32 0.0, %v4255
      %v4616 = vsub.f32 0.0, %v4256
      %v4617 = vsub.f32 0.0, %v4257
      %v4618 = vsub.f32 0.0, %v4258
      %v4619 = vsub.f32 0.0, %v4259
      %v4620 = vsub.f32 0.0, %v4260
      %v4621 = vsub.f32 0.0, %v4261
      %v4622 = vsub.f32 0.0, %v4262
      %v4623 = vsub.f32 0.0, %v4263
      %v4624 = vsub.f32 0.0, %v4264
      %v4625 = vsub.f32 0.0, %v4265
      %v4626 = vsub.f32 0.0, %v4266
      %v4627 = vsub.f32 0.0, %v4267
      %v4628 = vsub.f32 0.0, %v4268
      %v4629 = vsub.f32 0.0, %v4269
      %v4630 = vsub.f32 0.0, %v4270
      %v4631 = vsub.f32 0.0, %v4271
      %v4632 = vsub.f32 0.0, %v4272
      %v4633 = vmul.f32 %v4609, %v4249
      %v4634 = vmul.f32 %v4610, %v4250
      %v4635 = vmul.f32 %v4611, %v4251
      %v4636 = vmul.f32 %v4612, %v4252
      %v4637 = vmul.f32 %v4613, %v4253
      %v4638 = vmul.f32 %v4614, %v4254
      %v4639 = vmul.f32 %v4615, %v4255
      %v4640 = vmul.f32 %v4616, %v4256
      %v4641 = vmul.f32 %v4617, %v4257
      %v4642 = vmul.f32 %v4618, %v4258
      %v4643 = vmul.f32 %v4619, %v4259
      %v4644 = vmul.f32 %v4620, %v4260
      %v4645 = vmul.f32 %v4621, %v4261
      %v4646 = vmul.f32 %v4622, %v4262
      %v4647 = vmul.f32 %v4623, %v4263
      %v4648 = vmul.f32 %v4624, %v4264
      %v4649 = vmul.f32 %v4625, %v4265
      %v4650 = vmul.f32 %v4626, %v4266
      %v4651 = vmul.f32 %v4627, %v4267
      %v4652 = vmul.f32 %v4628, %v4268
      %v4653 = vmul.f32 %v4629, %v4269
      %v4654 = vmul.f32 %v4630, %v4270
      %v4655 = vmul.f32 %v4631, %v4271
      %v4656 = vmul.f32 %v4632, %v4272
      %v4657 = vmul.f32 %v4633, 1.442695
      %v4658 = vpow.pop %v4657
      %v4659 = vmul.f32 %v4634, 1.442695
      %v4660 = vpow.pop %v4659
      %v4661 = vmul.f32 %v4635, 1.442695
      %v4662 = vpow.pop %v4661
      %v4663 = vmul.f32 %v4636, 1.442695
      %v4664 = vpow.pop %v4663
      %v4665 = vmul.f32 %v4637, 1.442695
      %v4666 = vpow.pop %v4665
      %v4667 = vmul.f32 %v4638, 1.442695
      %v4668 = vpow.pop %v4667
      %v4669 = vmul.f32 %v4639, 1.442695
      %v4670 = vpow.pop %v4669
      %v4671 = vmul.f32 %v4640, 1.442695
      %v4672 = vpow.pop %v4671
      %v4673 = vmul.f32 %v4641, 1.442695
      %v4674 = vpow.pop %v4673
      %v4675 = vmul.f32 %v4642, 1.442695
      %v4676 = vpow.pop %v4675
      %v4677 = vmul.f32 %v4643, 1.442695
      %v4678 = vpow.pop %v4677
      %v4679 = vmul.f32 %v4644, 1.442695
      %v4680 = vpow.pop %v4679
      %v4681 = vmul.f32 %v4645, 1.442695
      %v4682 = vpow.pop %v4681
      %v4683 = vmul.f32 %v4646, 1.442695
      %v4684 = vpow.pop %v4683
      %v4685 = vmul.f32 %v4647, 1.442695
      %v4686 = vpow.pop %v4685
      %v4687 = vmul.f32 %v4648, 1.442695
      %v4688 = vpow.pop %v4687
      %v4689 = vmul.f32 %v4649, 1.442695
      %v4690 = vpow.pop %v4689
      %v4691 = vmul.f32 %v4650, 1.442695
      %v4692 = vpow.pop %v4691
      %v4693 = vmul.f32 %v4651, 1.442695
      %v4694 = vpow.pop %v4693
      %v4695 = vmul.f32 %v4652, 1.442695
      %v4696 = vpow.pop %v4695
      %v4697 = vmul.f32 %v4653, 1.442695
      %v4698 = vpow.pop %v4697
      %v4699 = vmul.f32 %v4654, 1.442695
      %v4700 = vpow.pop %v4699
      %v4701 = vmul.f32 %v4655, 1.442695
      %v4702 = vpow.pop %v4701
      %v4703 = vmul.f32 %v4656, 1.442695
      %v4704 = vpow.pop %v4703
      %v4705 = vmul.f32 %v4585, %v4658
      %v4706 = vmul.f32 %v4586, %v4660
      %v4707 = vmul.f32 %v4587, %v4662
      %v4708 = vmul.f32 %v4588, %v4664
      %v4709 = vmul.f32 %v4589, %v4666
      %v4710 = vmul.f32 %v4590, %v4668
      %v4711 = vmul.f32 %v4591, %v4670
      %v4712 = vmul.f32 %v4592, %v4672
      %v4713 = vmul.f32 %v4593, %v4674
      %v4714 = vmul.f32 %v4594, %v4676
      %v4715 = vmul.f32 %v4595, %v4678
      %v4716 = vmul.f32 %v4596, %v4680
      %v4717 = vmul.f32 %v4597, %v4682
      %v4718 = vmul.f32 %v4598, %v4684
      %v4719 = vmul.f32 %v4599, %v4686
      %v4720 = vmul.f32 %v4600, %v4688
      %v4721 = vmul.f32 %v4601, %v4690
      %v4722 = vmul.f32 %v4602, %v4692
      %v4723 = vmul.f32 %v4603, %v4694
      %v4724 = vmul.f32 %v4604, %v4696
      %v4725 = vmul.f32 %v4605, %v4698
      %v4726 = vmul.f32 %v4606, %v4700
      %v4727 = vmul.f32 %v4607, %v4702
      %v4728 = vmul.f32 %v4608, %v4704
      %v4729 = vsub.f32 1.0, %v4705
      %v4730 = vsub.f32 1.0, %v4706
      %v4731 = vsub.f32 1.0, %v4707
      %v4732 = vsub.f32 1.0, %v4708
      %v4733 = vsub.f32 1.0, %v4709
      %v4734 = vsub.f32 1.0, %v4710
      %v4735 = vsub.f32 1.0, %v4711
      %v4736 = vsub.f32 1.0, %v4712
      %v4737 = vsub.f32 1.0, %v4713
      %v4738 = vsub.f32 1.0, %v4714
      %v4739 = vsub.f32 1.0, %v4715
      %v4740 = vsub.f32 1.0, %v4716
      %v4741 = vsub.f32 1.0, %v4717
      %v4742 = vsub.f32 1.0, %v4718
      %v4743 = vsub.f32 1.0, %v4719
      %v4744 = vsub.f32 1.0, %v4720
      %v4745 = vsub.f32 1.0, %v4721
      %v4746 = vsub.f32 1.0, %v4722
      %v4747 = vsub.f32 1.0, %v4723
      %v4748 = vsub.f32 1.0, %v4724
      %v4749 = vsub.f32 1.0, %v4725
      %v4750 = vsub.f32 1.0, %v4726
      %v4751 = vsub.f32 1.0, %v4727
      %v4752 = vsub.f32 1.0, %v4728
      %vm4753 = vcmp.ge.f32.partialorder %v4249, 0.0
      %vm4754 = vcmp.ge.f32.partialorder %v4250, 0.0
      %vm4755 = vcmp.ge.f32.partialorder %v4251, 0.0
      %vm4756 = vcmp.ge.f32.partialorder %v4252, 0.0
      %vm4757 = vcmp.ge.f32.partialorder %v4253, 0.0
      %vm4758 = vcmp.ge.f32.partialorder %v4254, 0.0
      %vm4759 = vcmp.ge.f32.partialorder %v4255, 0.0
      %vm4760 = vcmp.ge.f32.partialorder %v4256, 0.0
      %vm4761 = vcmp.ge.f32.partialorder %v4257, 0.0
      %vm4762 = vcmp.ge.f32.partialorder %v4258, 0.0
      %vm4763 = vcmp.ge.f32.partialorder %v4259, 0.0
      %vm4764 = vcmp.ge.f32.partialorder %v4260, 0.0
      %vm4765 = vcmp.ge.f32.partialorder %v4261, 0.0
      %vm4766 = vcmp.ge.f32.partialorder %v4262, 0.0
      %vm4767 = vcmp.ge.f32.partialorder %v4263, 0.0
      %vm4768 = vcmp.ge.f32.partialorder %v4264, 0.0
      %vm4769 = vcmp.ge.f32.partialorder %v4265, 0.0
      %vm4770 = vcmp.ge.f32.partialorder %v4266, 0.0
      %vm4771 = vcmp.ge.f32.partialorder %v4267, 0.0
      %vm4772 = vcmp.ge.f32.partialorder %v4268, 0.0
      %vm4773 = vcmp.ge.f32.partialorder %v4269, 0.0
      %vm4774 = vcmp.ge.f32.partialorder %v4270, 0.0
      %vm4775 = vcmp.ge.f32.partialorder %v4271, 0.0
      %vm4776 = vcmp.ge.f32.partialorder %v4272, 0.0
      %v4777 = vsub.f32 0.0, %v4729
      %v4778 = vsub.f32 0.0, %v4730
      %v4779 = vsub.f32 0.0, %v4731
      %v4780 = vsub.f32 0.0, %v4732
      %v4781 = vsub.f32 0.0, %v4733
      %v4782 = vsub.f32 0.0, %v4734
      %v4783 = vsub.f32 0.0, %v4735
      %v4784 = vsub.f32 0.0, %v4736
      %v4785 = vsub.f32 0.0, %v4737
      %v4786 = vsub.f32 0.0, %v4738
      %v4787 = vsub.f32 0.0, %v4739
      %v4788 = vsub.f32 0.0, %v4740
      %v4789 = vsub.f32 0.0, %v4741
      %v4790 = vsub.f32 0.0, %v4742
      %v4791 = vsub.f32 0.0, %v4743
      %v4792 = vsub.f32 0.0, %v4744
      %v4793 = vsub.f32 0.0, %v4745
      %v4794 = vsub.f32 0.0, %v4746
      %v4795 = vsub.f32 0.0, %v4747
      %v4796 = vsub.f32 0.0, %v4748
      %v4797 = vsub.f32 0.0, %v4749
      %v4798 = vsub.f32 0.0, %v4750
      %v4799 = vsub.f32 0.0, %v4751
      %v4800 = vsub.f32 0.0, %v4752
      %v4801 = vsel %vm4753, %v4729, %v4777
      %v4802 = vsel %vm4754, %v4730, %v4778
      %v4803 = vsel %vm4755, %v4731, %v4779
      %v4804 = vsel %vm4756, %v4732, %v4780
      %v4805 = vsel %vm4757, %v4733, %v4781
      %v4806 = vsel %vm4758, %v4734, %v4782
      %v4807 = vsel %vm4759, %v4735, %v4783
      %v4808 = vsel %vm4760, %v4736, %v4784
      %v4809 = vsel %vm4761, %v4737, %v4785
      %v4810 = vsel %vm4762, %v4738, %v4786
      %v4811 = vsel %vm4763, %v4739, %v4787
      %v4812 = vsel %vm4764, %v4740, %v4788
      %v4813 = vsel %vm4765, %v4741, %v4789
      %v4814 = vsel %vm4766, %v4742, %v4790
      %v4815 = vsel %vm4767, %v4743, %v4791
      %v4816 = vsel %vm4768, %v4744, %v4792
      %v4817 = vsel %vm4769, %v4745, %v4793
      %v4818 = vsel %vm4770, %v4746, %v4794
      %v4819 = vsel %vm4771, %v4747, %v4795
      %v4820 = vsel %vm4772, %v4748, %v4796
      %v4821 = vsel %vm4773, %v4749, %v4797
      %v4822 = vsel %vm4774, %v4750, %v4798
      %v4823 = vsel %vm4775, %v4751, %v4799
      %v4824 = vsel %vm4776, %v4752, %v4800
      %v4825 = vadd.f32 %v4801, 1.0
      %v4826 = vadd.f32 %v4802, 1.0
      %v4827 = vadd.f32 %v4803, 1.0
      %v4828 = vadd.f32 %v4804, 1.0
      %v4829 = vadd.f32 %v4805, 1.0
      %v4830 = vadd.f32 %v4806, 1.0
      %v4831 = vadd.f32 %v4807, 1.0
      %v4832 = vadd.f32 %v4808, 1.0
      %v4833 = vadd.f32 %v4809, 1.0
      %v4834 = vadd.f32 %v4810, 1.0
      %v4835 = vadd.f32 %v4811, 1.0
      %v4836 = vadd.f32 %v4812, 1.0
      %v4837 = vadd.f32 %v4813, 1.0
      %v4838 = vadd.f32 %v4814, 1.0
      %v4839 = vadd.f32 %v4815, 1.0
      %v4840 = vadd.f32 %v4816, 1.0
      %v4841 = vadd.f32 %v4817, 1.0
      %v4842 = vadd.f32 %v4818, 1.0
      %v4843 = vadd.f32 %v4819, 1.0
      %v4844 = vadd.f32 %v4820, 1.0
      %v4845 = vadd.f32 %v4821, 1.0
      %v4846 = vadd.f32 %v4822, 1.0
      %v4847 = vadd.f32 %v4823, 1.0
      %v4848 = vadd.f32 %v4824, 1.0
      %v4849 = vmul.f32 %v4225, %v4825
      %v4850 = vmul.f32 %v4226, %v4826
      %v4851 = vmul.f32 %v4227, %v4827
      %v4852 = vmul.f32 %v4228, %v4828
      %v4853 = vmul.f32 %v4229, %v4829
      %v4854 = vmul.f32 %v4230, %v4830
      %v4855 = vmul.f32 %v4231, %v4831
      %v4856 = vmul.f32 %v4232, %v4832
      %v4857 = vmul.f32 %v4233, %v4833
      %v4858 = vmul.f32 %v4234, %v4834
      %v4859 = vmul.f32 %v4235, %v4835
      %v4860 = vmul.f32 %v4236, %v4836
      %v4861 = vmul.f32 %v4237, %v4837
      %v4862 = vmul.f32 %v4238, %v4838
      %v4863 = vmul.f32 %v4239, %v4839
      %v4864 = vmul.f32 %v4240, %v4840
      %v4865 = vmul.f32 %v4241, %v4841
      %v4866 = vmul.f32 %v4242, %v4842
      %v4867 = vmul.f32 %v4243, %v4843
      %v4868 = vmul.f32 %v4244, %v4844
      %v4869 = vmul.f32 %v4245, %v4845
      %v4870 = vmul.f32 %v4246, %v4846
      %v4871 = vmul.f32 %v4247, %v4847
      %v4872 = vmul.f32 %v4248, %v4848
      %v4873 = vpack.c.bf16 %v4851, %v4849
      %v4874 = vpack.c.bf16 %v4852, %v4850
      %v4875 = vpack.c.bf16 %v4855, %v4853
      %v4876 = vpack.c.bf16 %v4856, %v4854
      %v4877 = vpack.c.bf16 %v4859, %v4857
      %v4878 = vpack.c.bf16 %v4860, %v4858
      %v4879 = vpack.c.bf16 %v4863, %v4861
      %v4880 = vpack.c.bf16 %v4864, %v4862
      %v4881 = vpack.c.bf16 %v4867, %v4865
      %v4882 = vpack.c.bf16 %v4868, %v4866
      %v4883 = vpack.c.bf16 %v4871, %v4869
      %v4884 = vpack.c.bf16 %v4872, %v4870
      %v4886 = vlaneseq
      %v4887 = vshrl.u32 %v4886, 7
      %v4888 = vsub.s32 0, %v4887
      %v4889 = vrot.slane %v1124, %v4888
      %v4915 = vunpack.c.l.b16 %v1100
      %v4916 = vunpack.c.l.b16 %v1101
      %v4917 = vunpack.c.l.b16 %v1102
      %v4918 = vunpack.c.l.b16 %v1103
      %v4919 = vunpack.c.l.b16 %v1104
      %v4920 = vunpack.c.l.b16 %v1105
      %v4921 = vunpack.c.l.b16 %v1106
      %v4922 = vunpack.c.l.b16 %v1107
      %v4923 = vunpack.c.l.b16 %v1108
      %v4924 = vunpack.c.l.b16 %v1109
      %v4925 = vunpack.c.l.b16 %v1110
      %v4926 = vunpack.c.l.b16 %v1111
      %v4927 = vunpack.c.l.b16 %v1112
      %v4928 = vunpack.c.l.b16 %v1113
      %v4929 = vunpack.c.l.b16 %v1114
      %v4930 = vunpack.c.l.b16 %v1115
      %v4931 = vunpack.c.l.b16 %v1116
      %v4932 = vunpack.c.l.b16 %v1117
      %v4933 = vunpack.c.l.b16 %v1118
      %v4934 = vunpack.c.l.b16 %v1119
      %v4935 = vunpack.c.l.b16 %v1120
      %v4936 = vunpack.c.l.b16 %v1121
      %v4937 = vunpack.c.l.b16 %v1122
      %v4938 = vunpack.c.l.b16 %v1123
      %v4939 = vpack.c.b16 %v4916, %v4915
      %v4940 = vpack.c.b16 %v4918, %v4917
      %v4941 = vpack.c.b16 %v4920, %v4919
      %v4942 = vpack.c.b16 %v4922, %v4921
      %v4943 = vpack.c.b16 %v4924, %v4923
      %v4944 = vpack.c.b16 %v4926, %v4925
      %v4945 = vpack.c.b16 %v4928, %v4927
      %v4946 = vpack.c.b16 %v4930, %v4929
      %v4947 = vpack.c.b16 %v4932, %v4931
      %v4948 = vpack.c.b16 %v4934, %v4933
      %v4949 = vpack.c.b16 %v4936, %v4935
      %v4950 = vpack.c.b16 %v4938, %v4937
      %v4964 = vsel %vm2302, %v4874, 0
      %v4967 = vsel %vm2302, %v4876, 0
      %v4970 = vsel %vm2302, %v4878, 0
      %v4973 = vsel %vm2302, %v4880, 0
      %v4976 = vsel %vm2302, %v4882, 0
      %v4979 = vsel %vm2302, %v4884, 0
      %4981 = vmatprep.subr.bf16.mxu0 0
      %4982 = vmatpush1.bf16.msra.mxu0 %v4939
      %4983 = vmatprep.subr.bf16.mxu0 0
      %4984 = vmatpush1.bf16.msra.mxu0 %v4940
      %4985 = vmatprep.subr.bf16.mxu0 0
      %4986 = vmatpush1.bf16.msra.mxu0 %v4941
      %4987 = vmatprep.subr.bf16.mxu0 0
      %4988 = vmatpush1.bf16.msra.mxu0 %v4942
      %4989 = vmatprep.subr.bf16.mxu0 0
      %4990 = vmatpush1.bf16.msra.mxu0 %v4943
      %4991 = vmatprep.subr.bf16.mxu0 0
      %4992 = vmatpush1.bf16.msra.mxu0 %v4944
      %4993 = vmatprep.subr.bf16.mxu0 0
      %4994 = vmatpush1.bf16.msra.mxu0 %v4945
      %4995 = vmatprep.subr.bf16.mxu0 0
      %4996 = vmatpush1.bf16.msra.mxu0 %v4946
      %4997 = vmatprep.subr.bf16.mxu0 0
      %4998 = vmatpush1.bf16.msra.mxu0 %v4947
      %4999 = vmatprep.subr.bf16.mxu0 0
      %5000 = vmatpush1.bf16.msra.mxu0 %v4948
      %5001 = vmatprep.subr.bf16.mxu0 0
      %5002 = vmatpush1.bf16.msra.mxu0 %v4949
      %5003 = vmatprep.subr.bf16.mxu0 0
      %5004 = vmatpush1.bf16.msra.mxu0 %v4950
      %5005 = vmatprep.subr.bf16.mxu0 0
      %5006 = vmatpush1.bf16.msra.mxu0 0
      %5007 = vmatprep.subr.bf16.mxu0 0
      %5008 = vmatpush1.bf16.msra.mxu0 0
      %5009 = vmatprep.subr.bf16.mxu0 0
      %5010 = vmatpush1.bf16.msra.mxu0 0
      %5011 = vmatprep.subr.bf16.mxu0 0
      %5012 = vmatpush1.bf16.msra.mxu0 0
      %5013 = vmatprep.mubr.bf16.mxu0 %v4964
      %5014 = vmatmul.mubr.bf16.gmra.mrb[0].mxu0 %v4873
      %v5015 = vpop.f32.mrb[0].mxu0
      %v5016 = vadd.f32 %v4889, %v5015
      %v5017 = vpop.f32.mrb[0].mxu0
      %v5018 = vpop.f32.mrb[0].mxu0
      %v5019 = vadd.f32 %v4889, %v5018
      %v5020 = vpop.f32.mrb[0].mxu0
      %5021 = vmatprep.mubr.bf16.mxu0 %v4967
      %5022 = vmatmul.mubr.bf16.gmra.mrb[0].mxu0 %v4875
      %v5023 = vpop.f32.mrb[0].mxu0
      %v5024 = vadd.f32 %v4889, %v5023
      %v5025 = vpop.f32.mrb[0].mxu0
      %v5026 = vpop.f32.mrb[0].mxu0
      %v5027 = vadd.f32 %v4889, %v5026
      %v5028 = vpop.f32.mrb[0].mxu0
      %5029 = vmatprep.mubr.bf16.mxu0 %v4970
      %5030 = vmatmul.mubr.bf16.gmra.mrb[0].mxu0 %v4877
      %v5031 = vpop.f32.mrb[0].mxu0
      %v5032 = vadd.f32 %v4889, %v5031
      %v5033 = vpop.f32.mrb[0].mxu0
      %v5034 = vpop.f32.mrb[0].mxu0
      %v5035 = vadd.f32 %v4889, %v5034
      %v5036 = vpop.f32.mrb[0].mxu0
      %5037 = vmatprep.mubr.bf16.mxu0 %v4973
      %5038 = vmatmul.mubr.bf16.gmra.mrb[0].mxu0 %v4879
      %v5039 = vpop.f32.mrb[0].mxu0
      %v5040 = vadd.f32 %v4889, %v5039
      %v5041 = vpop.f32.mrb[0].mxu0
      %v5042 = vpop.f32.mrb[0].mxu0
      %v5043 = vadd.f32 %v4889, %v5042
      %v5044 = vpop.f32.mrb[0].mxu0
      %5045 = vmatprep.mubr.bf16.mxu0 %v4976
      %5046 = vmatmul.mubr.bf16.gmra.mrb[0].mxu0 %v4881
      %v5047 = vpop.f32.mrb[0].mxu0
      %v5048 = vadd.f32 %v4889, %v5047
      %v5049 = vpop.f32.mrb[0].mxu0
      %v5050 = vpop.f32.mrb[0].mxu0
      %v5051 = vadd.f32 %v4889, %v5050
      %v5052 = vpop.f32.mrb[0].mxu0
      %5053 = vmatprep.mubr.bf16.mxu0 %v4979
      %5054 = vmatmul.mubr.bf16.gmra.mrb[0].mxu0 %v4883
      %v5055 = vpop.f32.mrb[0].mxu0
      %v5056 = vadd.f32 %v4889, %v5055
      %v5057 = vpop.f32.mrb[0].mxu0
      %v5058 = vpop.f32.mrb[0].mxu0
      %v5059 = vadd.f32 %v4889, %v5058
      %v5060 = vpop.f32.mrb[0].mxu0
      %5061 = vdwg.mxu0
      %v5062 = vadd.f32 %v3833, %v5016
      %v5063 = vadd.f32 %v3834, %v5019
      %v5064 = vadd.f32 %v3835, %v5024
      %v5065 = vadd.f32 %v3836, %v5027
      %v5066 = vadd.f32 %v3837, %v5032
      %v5067 = vadd.f32 %v3838, %v5035
      %v5068 = vadd.f32 %v3839, %v5040
      %v5069 = vadd.f32 %v3840, %v5043
      %v5070 = vadd.f32 %v3841, %v5048
      %v5071 = vadd.f32 %v3842, %v5051
      %v5072 = vadd.f32 %v3843, %v5056
      %v5073 = vadd.f32 %v3844, %v5059
      %5074 = vst.msk [vmem:[%s19] sm:$0xff] %vm1125, %v5062
      %5075 = vst.msk [vmem:[%s19 + $0x8] sm:$0xff] %vm1125, %v5063
      %5076 = vst.msk [vmem:[%s19 + $0x10] sm:$0xff] %vm1125, %v5064
      %5077 = vst.msk [vmem:[%s19 + $0x18] sm:$0xff] %vm1125, %v5065
      %5078 = vst.msk [vmem:[%s19 + $0x20] sm:$0xff] %vm1125, %v5066
      %5079 = vst.msk [vmem:[%s19 + $0x28] sm:$0xff] %vm1125, %v5067
      %5080 = vst.msk [vmem:[%s19 + $0x30] sm:$0xff] %vm1125, %v5068
      %5081 = vst.msk [vmem:[%s19 + $0x38] sm:$0xff] %vm1125, %v5069
      %5082 = vst.msk [vmem:[%s19 + $0x40] sm:$0xff] %vm1125, %v5070
      %5083 = vst.msk [vmem:[%s19 + $0x48] sm:$0xff] %vm1125, %v5071
      %5084 = vst.msk [vmem:[%s19 + $0x50] sm:$0xff] %vm1125, %v5072
      %5085 = vst.msk [vmem:[%s19 + $0x58] sm:$0xff] %vm1125, %v5073
      // Predicated region
      $region101: #{trans_rppg_forward.2} parent=95 // pred_check
        %p5086 = pneg %p522
      $region102: #{trans_rppg_forward.2} parent=95 // pred_check_branch
        %5088 = sbr.rel (%p5086) target = $region104
      $region103: #{trans_rppg_forward.2} parent=95 // pred_region
        _
      $region104: #{trans_rppg_forward.2} parent=95 // pred_fallthru
        _
      // Predicated region
      $region105: #{trans_rppg_forward.2} parent=95 // pred_check
        %p5089 = pneg %p522
      $region106: #{trans_rppg_forward.2} parent=95 // pred_check_branch
        %5091 = sbr.rel (%p5089) target = $region108
      $region107: #{trans_rppg_forward.2} parent=95 // pred_region
        _
      $region108: #{trans_rppg_forward.2} parent=95 // pred_fallthru
        _
    $region96: #{trans_rppg_forward.2} parent=5 // pred_fallthru
      _
    %p5092 = scmp.le.s32.totalorder 2, %s25
    // Predicated region
    $region109: #{trans_rppg_forward.2} parent=5 // pred_check
      %p5093 = pneg %p5092
    $region110: #{trans_rppg_forward.2} parent=5 // pred_check_branch
      %5095 = sbr.rel (%p5093) target = $region112
    $region111: #{trans_rppg_forward.2} parent=5 // pred_region
      %s5096 = ssub.s32 %s25, 2
    $region112: #{trans_rppg_forward.2} parent=5 // pred_fallthru
      _
  $region6: #{trans_rppg_forward.2} parent=0 // loop_footer
    %s29 = sadd.s32 1, %s25
  $region7: #{trans_rppg_forward.2} parent=0 // loop_footer_branch
    %24 = sbr.rel target = $region3
  $region8: #{trans_rppg_forward.2} parent=0 // loop_exit
    _

// kernel: trans_rppg_forward.3
$region0: #{trans_rppg_forward.3}
  #allocation0 [shape = 'u32[]', space=smem, size = 0x4, offset = 0x4, fixed_abs, tag = 'smem constant byte address 0x4 - core index']
  #allocation1 [shape = 'u32[144,128]{1,0:T(1,128)}', space=vmem, size = 0x12000, scoped, tag = 'internal scratch']
  #allocation2 [shape = 'f32[96,96]{1,0:T(8,128)}', space=vmem, size = 0xc000, scoped, tag = 'scratch operand']
  %s0 = inlined_call_operand.vmem [shape: f32[96,96], index: 0, kind: input, shape index: {}]
  %s1 = inlined_call_operand.vmem [shape: f32[4,96], index: 1, kind: input, shape index: {}]
  %s2 = inlined_call_operand.vmem [shape: f32[1,1,96], index: 2, kind: input, shape index: {}]
  %s3 = inlined_call_operand.vmem [shape: f32[1,1,96], index: 3, kind: input, shape index: {}]
  %s4 = inlined_call_operand.vmem [shape: bf16[1,96,96], index: 4, kind: input, shape index: {}]
  %s5 = inlined_call_operand.vmem [shape: f32[1,1,96], index: 5, kind: input, shape index: {}]
  %s6 = inlined_call_operand.vmem [shape: bf16[1,96,96], index: 6, kind: input, shape index: {}]
  %s7 = inlined_call_operand.vmem [shape: f32[1,1,96], index: 7, kind: input, shape index: {}]
  %s8 = inlined_call_operand.vmem [shape: bf16[1,96,96], index: 8, kind: input, shape index: {}]
  %s9 = inlined_call_operand.vmem [shape: f32[1,1,96], index: 9, kind: input, shape index: {}]
  %s10 = inlined_call_operand.vmem [shape: bf16[1,96,96], index: 10, kind: input, shape index: {}]
  %s11 = inlined_call_operand.vmem [shape: f32[1,1,96], index: 11, kind: input, shape index: {}]
  %s12 = inlined_call_operand.vmem [shape: f32[1,1,96], index: 12, kind: input, shape index: {}]
  %s13 = inlined_call_operand.vmem [shape: f32[1,1,96], index: 13, kind: input, shape index: {}]
  %s14 = inlined_call_operand.vmem [shape: bf16[1,96,192], index: 14, kind: input, shape index: {}]
  %s15 = inlined_call_operand.vmem [shape: f32[1,1,192], index: 15, kind: input, shape index: {}]
  %s16 = inlined_call_operand.vmem [shape: bf16[1,192,96], index: 16, kind: input, shape index: {}]
  %s17 = inlined_call_operand.vmem [shape: f32[1,1,96], index: 17, kind: input, shape index: {}]
  %s18 = inlined_call_operand.vmem [shape: f32[3,1,96], index: 18, kind: input, shape index: {}]
  %s19 = inlined_call_operand.vmem [shape: f32[3,1,96], index: 19, kind: input, shape index: {}]
  %s20 = inlined_call_operand.vmem [shape: bf16[3,96,128], index: 20, kind: input, shape index: {}]
  %s21 = inlined_call_operand.vmem [shape: f32[3,1,128], index: 21, kind: input, shape index: {}]
  %s22 = inlined_call_operand.vmem [shape: f32[6,128], index: 22, kind: output, shape index: {}]
  %s23 = sld [smem:[#allocation0]]
  $region106: #{trans_rppg_forward.3} parent=0
    _
  %s25 = ssub.s32 1, %s23
  %s26 = scalar_select 0, %s25, %s23
  // Predicated region
  $region2: #{trans_rppg_forward.3} parent=0 // pred_check
    _
  $region3: #{trans_rppg_forward.3} parent=0 // pred_check_branch
    %28 = sbr.rel (0) target = $region5
  $region4: #{trans_rppg_forward.3} parent=0 // pred_region
    _
  $region5: #{trans_rppg_forward.3} parent=0 // pred_fallthru
    _
  // Predicated region
  $region6: #{trans_rppg_forward.3} parent=0 // pred_check
    _
  $region7: #{trans_rppg_forward.3} parent=0 // pred_check_branch
    %30 = sbr.rel (0) target = $region9
  $region8: #{trans_rppg_forward.3} parent=0 // pred_region
    _
  $region9: #{trans_rppg_forward.3} parent=0 // pred_fallthru
    _
  // Predicated region
  $region10: #{trans_rppg_forward.3} parent=0 // pred_check
    _
  $region11: #{trans_rppg_forward.3} parent=0 // pred_check_branch
    %32 = sbr.rel (0) target = $region13
  $region12: #{trans_rppg_forward.3} parent=0 // pred_region
    _
  $region13: #{trans_rppg_forward.3} parent=0 // pred_fallthru
    _
  // Predicated region
  $region14: #{trans_rppg_forward.3} parent=0 // pred_check
    _
  $region15: #{trans_rppg_forward.3} parent=0 // pred_check_branch
    %34 = sbr.rel (0) target = $region17
  $region16: #{trans_rppg_forward.3} parent=0 // pred_region
    _
  $region17: #{trans_rppg_forward.3} parent=0 // pred_fallthru
    _
  // Predicated region
  $region18: #{trans_rppg_forward.3} parent=0 // pred_check
    _
  $region19: #{trans_rppg_forward.3} parent=0 // pred_check_branch
    %36 = sbr.rel (0) target = $region21
  $region20: #{trans_rppg_forward.3} parent=0 // pred_region
    _
  $region21: #{trans_rppg_forward.3} parent=0 // pred_fallthru
    _
  // Predicated region
  $region22: #{trans_rppg_forward.3} parent=0 // pred_check
    _
  $region23: #{trans_rppg_forward.3} parent=0 // pred_check_branch
    %38 = sbr.rel (0) target = $region25
  $region24: #{trans_rppg_forward.3} parent=0 // pred_region
    _
  $region25: #{trans_rppg_forward.3} parent=0 // pred_fallthru
    _
  // Predicated region
  $region26: #{trans_rppg_forward.3} parent=0 // pred_check
    _
  $region27: #{trans_rppg_forward.3} parent=0 // pred_check_branch
    %40 = sbr.rel (0) target = $region29
  $region28: #{trans_rppg_forward.3} parent=0 // pred_region
    _
  $region29: #{trans_rppg_forward.3} parent=0 // pred_fallthru
    _
  // Predicated region
  $region30: #{trans_rppg_forward.3} parent=0 // pred_check
    _
  $region31: #{trans_rppg_forward.3} parent=0 // pred_check_branch
    %42 = sbr.rel (0) target = $region33
  $region32: #{trans_rppg_forward.3} parent=0 // pred_region
    _
  $region33: #{trans_rppg_forward.3} parent=0 // pred_fallthru
    _
  // Predicated region
  $region34: #{trans_rppg_forward.3} parent=0 // pred_check
    _
  $region35: #{trans_rppg_forward.3} parent=0 // pred_check_branch
    %44 = sbr.rel (0) target = $region37
  $region36: #{trans_rppg_forward.3} parent=0 // pred_region
    _
  $region37: #{trans_rppg_forward.3} parent=0 // pred_fallthru
    _
  // Predicated region
  $region38: #{trans_rppg_forward.3} parent=0 // pred_check
    _
  $region39: #{trans_rppg_forward.3} parent=0 // pred_check_branch
    %46 = sbr.rel (0) target = $region41
  $region40: #{trans_rppg_forward.3} parent=0 // pred_region
    _
  $region41: #{trans_rppg_forward.3} parent=0 // pred_fallthru
    _
  // Predicated region
  $region42: #{trans_rppg_forward.3} parent=0 // pred_check
    _
  $region43: #{trans_rppg_forward.3} parent=0 // pred_check_branch
    %48 = sbr.rel (0) target = $region45
  $region44: #{trans_rppg_forward.3} parent=0 // pred_region
    _
  $region45: #{trans_rppg_forward.3} parent=0 // pred_fallthru
    _
  // Predicated region
  $region46: #{trans_rppg_forward.3} parent=0 // pred_check
    _
  $region47: #{trans_rppg_forward.3} parent=0 // pred_check_branch
    %50 = sbr.rel (0) target = $region49
  $region48: #{trans_rppg_forward.3} parent=0 // pred_region
    _
  $region49: #{trans_rppg_forward.3} parent=0 // pred_fallthru
    _
  // Predicated region
  $region50: #{trans_rppg_forward.3} parent=0 // pred_check
    _
  $region51: #{trans_rppg_forward.3} parent=0 // pred_check_branch
    %52 = sbr.rel (0) target = $region53
  $region52: #{trans_rppg_forward.3} parent=0 // pred_region
    _
  $region53: #{trans_rppg_forward.3} parent=0 // pred_fallthru
    _
  // Predicated region
  $region54: #{trans_rppg_forward.3} parent=0 // pred_check
    _
  $region55: #{trans_rppg_forward.3} parent=0 // pred_check_branch
    %54 = sbr.rel (0) target = $region57
  $region56: #{trans_rppg_forward.3} parent=0 // pred_region
    _
  $region57: #{trans_rppg_forward.3} parent=0 // pred_fallthru
    _
  // Predicated region
  $region58: #{trans_rppg_forward.3} parent=0 // pred_check
    _
  $region59: #{trans_rppg_forward.3} parent=0 // pred_check_branch
    %56 = sbr.rel (0) target = $region61
  $region60: #{trans_rppg_forward.3} parent=0 // pred_region
    _
  $region61: #{trans_rppg_forward.3} parent=0 // pred_fallthru
    _
  // Predicated region
  $region62: #{trans_rppg_forward.3} parent=0 // pred_check
    _
  $region63: #{trans_rppg_forward.3} parent=0 // pred_check_branch
    %58 = sbr.rel (0) target = $region65
  $region64: #{trans_rppg_forward.3} parent=0 // pred_region
    _
  $region65: #{trans_rppg_forward.3} parent=0 // pred_fallthru
    _
  // Predicated region
  $region66: #{trans_rppg_forward.3} parent=0 // pred_check
    _
  $region67: #{trans_rppg_forward.3} parent=0 // pred_check_branch
    %60 = sbr.rel (0) target = $region69
  $region68: #{trans_rppg_forward.3} parent=0 // pred_region
    _
  $region69: #{trans_rppg_forward.3} parent=0 // pred_fallthru
    _
  // Predicated region
  $region70: #{trans_rppg_forward.3} parent=0 // pred_check
    _
  $region71: #{trans_rppg_forward.3} parent=0 // pred_check_branch
    %62 = sbr.rel (0) target = $region73
  $region72: #{trans_rppg_forward.3} parent=0 // pred_region
    _
  $region73: #{trans_rppg_forward.3} parent=0 // pred_fallthru
    _
  // Predicated region
  $region74: #{trans_rppg_forward.3} parent=0 // pred_check
    _
  $region75: #{trans_rppg_forward.3} parent=0 // pred_check_branch
    %64 = sbr.rel (0) target = $region77
  $region76: #{trans_rppg_forward.3} parent=0 // pred_region
    _
  $region77: #{trans_rppg_forward.3} parent=0 // pred_fallthru
    _
  // Predicated region
  $region78: #{trans_rppg_forward.3} parent=0 // pred_check
    _
  $region79: #{trans_rppg_forward.3} parent=0 // pred_check_branch
    %66 = sbr.rel (0) target = $region81
  $region80: #{trans_rppg_forward.3} parent=0 // pred_region
    _
  $region81: #{trans_rppg_forward.3} parent=0 // pred_fallthru
    _
  // Predicated region
  $region82: #{trans_rppg_forward.3} parent=0 // pred_check
    _
  $region83: #{trans_rppg_forward.3} parent=0 // pred_check_branch
    %68 = sbr.rel (0) target = $region85
  $region84: #{trans_rppg_forward.3} parent=0 // pred_region
    _
  $region85: #{trans_rppg_forward.3} parent=0 // pred_fallthru
    _
  // Predicated region
  $region86: #{trans_rppg_forward.3} parent=0 // pred_check
    _
  $region87: #{trans_rppg_forward.3} parent=0 // pred_check_branch
    %70 = sbr.rel (0) target = $region89
  $region88: #{trans_rppg_forward.3} parent=0 // pred_region
    _
  $region89: #{trans_rppg_forward.3} parent=0 // pred_fallthru
    _
  %p72 = scmp.eq.s32.totalorder 0, 0
  // Predicated region
  $region90: #{trans_rppg_forward.3} parent=0 // pred_check
    %p73 = pneg %p72
  $region91: #{trans_rppg_forward.3} parent=0 // pred_check_branch
    %75 = sbr.rel (%p73) target = $region93
  $region92: #{trans_rppg_forward.3} parent=0 // pred_region
    %v76 = vld [vmem:[%s0] sm:$0xff]
    %v77 = vld [vmem:[%s0 + $0x8] sm:$0xff]
    %v78 = vld [vmem:[%s0 + $0x10] sm:$0xff]
    %v79 = vld [vmem:[%s0 + $0x18] sm:$0xff]
    %v80 = vld [vmem:[%s0 + $0x20] sm:$0xff]
    %v81 = vld [vmem:[%s0 + $0x28] sm:$0xff]
    %v82 = vld [vmem:[%s0 + $0x30] sm:$0xff]
    %v83 = vld [vmem:[%s0 + $0x38] sm:$0xff]
    %v84 = vld [vmem:[%s0 + $0x40] sm:$0xff]
    %v85 = vld [vmem:[%s0 + $0x48] sm:$0xff]
    %v86 = vld [vmem:[%s0 + $0x50] sm:$0xff]
    %v87 = vld [vmem:[%s0 + $0x58] sm:$0xff]
    %vm88 = vcmask 785408
    %89 = vst.msk [vmem:[#allocation2] sm:$0xff] %vm88, %v76
    %90 = vst.msk [vmem:[#allocation2 + $0x8] sm:$0xff] %vm88, %v77
    %91 = vst.msk [vmem:[#allocation2 + $0x10] sm:$0xff] %vm88, %v78
    %92 = vst.msk [vmem:[#allocation2 + $0x18] sm:$0xff] %vm88, %v79
    %93 = vst.msk [vmem:[#allocation2 + $0x20] sm:$0xff] %vm88, %v80
    %94 = vst.msk [vmem:[#allocation2 + $0x28] sm:$0xff] %vm88, %v81
    %95 = vst.msk [vmem:[#allocation2 + $0x30] sm:$0xff] %vm88, %v82
    %96 = vst.msk [vmem:[#allocation2 + $0x38] sm:$0xff] %vm88, %v83
    %97 = vst.msk [vmem:[#allocation2 + $0x40] sm:$0xff] %vm88, %v84
    %98 = vst.msk [vmem:[#allocation2 + $0x48] sm:$0xff] %vm88, %v85
    %99 = vst.msk [vmem:[#allocation2 + $0x50] sm:$0xff] %vm88, %v86
    %100 = vst.msk [vmem:[#allocation2 + $0x58] sm:$0xff] %vm88, %v87
  $region93: #{trans_rppg_forward.3} parent=0 // pred_fallthru
    _
  %v101 = vld [vmem:[#allocation2] sm:$0xff]
  %v102 = vld [vmem:[#allocation2 + $0x8] sm:$0xff]
  %v103 = vld [vmem:[#allocation2 + $0x10] sm:$0xff]
  %v104 = vld [vmem:[#allocation2 + $0x18] sm:$0xff]
  %v105 = vld [vmem:[#allocation2 + $0x20] sm:$0xff]
  %v106 = vld [vmem:[#allocation2 + $0x28] sm:$0xff]
  %v107 = vld [vmem:[#allocation2 + $0x30] sm:$0xff]
  %v108 = vld [vmem:[#allocation2 + $0x38] sm:$0xff]
  %v109 = vld [vmem:[#allocation2 + $0x40] sm:$0xff]
  %v110 = vld [vmem:[#allocation2 + $0x48] sm:$0xff]
  %v111 = vld [vmem:[#allocation2 + $0x50] sm:$0xff]
  %v112 = vld [vmem:[#allocation2 + $0x58] sm:$0xff]
  %v113 = vld [vmem:[%s2] sm:$0x1]
  %v114 = vld [vmem:[%s3] sm:$0x1]
  %v115 = vld [vmem:[%s4] sm:$0xf]
  %v116 = vld [vmem:[%s4 + $0x4] sm:$0xf]
  %v117 = vld [vmem:[%s4 + $0x8] sm:$0xf]
  %v118 = vld [vmem:[%s4 + $0xc] sm:$0xf]
  %v119 = vld [vmem:[%s4 + $0x10] sm:$0xf]
  %v120 = vld [vmem:[%s4 + $0x14] sm:$0xf]
  %v121 = vld [vmem:[%s4 + $0x18] sm:$0xf]
  %v122 = vld [vmem:[%s4 + $0x1c] sm:$0xf]
  %v123 = vld [vmem:[%s4 + $0x20] sm:$0xf]
  %v124 = vld [vmem:[%s4 + $0x24] sm:$0xf]
  %v125 = vld [vmem:[%s4 + $0x28] sm:$0xf]
  %v126 = vld [vmem:[%s4 + $0x2c] sm:$0xf]
  %v127 = vld [vmem:[%s5] sm:$0x1]
  %v128 = vld [vmem:[%s6] sm:$0xf]
  %v129 = vld [vmem:[%s6 + $0x4] sm:$0xf]
  %v130 = vld [vmem:[%s6 + $0x8] sm:$0xf]
  %v131 = vld [vmem:[%s6 + $0xc] sm:$0xf]
  %v132 = vld [vmem:[%s6 + $0x10] sm:$0xf]
  %v133 = vld [vmem:[%s6 + $0x14] sm:$0xf]
  %v134 = vld [vmem:[%s6 + $0x18] sm:$0xf]
  %v135 = vld [vmem:[%s6 + $0x1c] sm:$0xf]
  %v136 = vld [vmem:[%s6 + $0x20] sm:$0xf]
  %v137 = vld [vmem:[%s6 + $0x24] sm:$0xf]
  %v138 = vld [vmem:[%s6 + $0x28] sm:$0xf]
  %v139 = vld [vmem:[%s6 + $0x2c] sm:$0xf]
  %v140 = vld [vmem:[%s7] sm:$0x1]
  %v141 = vld [vmem:[%s8] sm:$0xf]
  %v142 = vld [vmem:[%s8 + $0x4] sm:$0xf]
  %v143 = vld [vmem:[%s8 + $0x8] sm:$0xf]
  %v144 = vld [vmem:[%s8 + $0xc] sm:$0xf]
  %v145 = vld [vmem:[%s8 + $0x10] sm:$0xf]
  %v146 = vld [vmem:[%s8 + $0x14] sm:$0xf]
  %v147 = vld [vmem:[%s8 + $0x18] sm:$0xf]
  %v148 = vld [vmem:[%s8 + $0x1c] sm:$0xf]
  %v149 = vld [vmem:[%s8 + $0x20] sm:$0xf]
  %v150 = vld [vmem:[%s8 + $0x24] sm:$0xf]
  %v151 = vld [vmem:[%s8 + $0x28] sm:$0xf]
  %v152 = vld [vmem:[%s8 + $0x2c] sm:$0xf]
  %v153 = vld [vmem:[%s9] sm:$0x1]
  %v154 = vld [vmem:[%s10] sm:$0xf]
  %v155 = vld [vmem:[%s10 + $0x4] sm:$0xf]
  %v156 = vld [vmem:[%s10 + $0x8] sm:$0xf]
  %v157 = vld [vmem:[%s10 + $0xc] sm:$0xf]
  %v158 = vld [vmem:[%s10 + $0x10] sm:$0xf]
  %v159 = vld [vmem:[%s10 + $0x14] sm:$0xf]
  %v160 = vld [vmem:[%s10 + $0x18] sm:$0xf]
  %v161 = vld [vmem:[%s10 + $0x1c] sm:$0xf]
  %v162 = vld [vmem:[%s10 + $0x20] sm:$0xf]
  %v163 = vld [vmem:[%s10 + $0x24] sm:$0xf]
  %v164 = vld [vmem:[%s10 + $0x28] sm:$0xf]
  %v165 = vld [vmem:[%s10 + $0x2c] sm:$0xf]
  %v166 = vld [vmem:[%s11] sm:$0x1]
  %v167 = vld [vmem:[%s12] sm:$0x1]
  %v168 = vld [vmem:[%s13] sm:$0x1]
  %v169 = vld [vmem:[%s14] sm:$0xff]
  %v170 = vld [vmem:[%s14 + $0x8] sm:$0xff]
  %v171 = vld [vmem:[%s14 + $0x10] sm:$0xff]
  %v172 = vld [vmem:[%s14 + $0x18] sm:$0xff]
  %v173 = vld [vmem:[%s14 + $0x20] sm:$0xff]
  %v174 = vld [vmem:[%s14 + $0x28] sm:$0xff]
  %v175 = vld [vmem:[%s14 + $0x30] sm:$0xff]
  %v176 = vld [vmem:[%s14 + $0x38] sm:$0xff]
  %v177 = vld [vmem:[%s14 + $0x40] sm:$0xff]
  %v178 = vld [vmem:[%s14 + $0x48] sm:$0xff]
  %v179 = vld [vmem:[%s14 + $0x50] sm:$0xff]
  %v180 = vld [vmem:[%s14 + $0x58] sm:$0xff]
  %v181 = vld [vmem:[%s15] sm:$0x3]
  %v182 = vld [vmem:[%s16] sm:$0xf]
  %v183 = vld [vmem:[%s16 + $0x4] sm:$0xf]
  %v184 = vld [vmem:[%s16 + $0x8] sm:$0xf]
  %v185 = vld [vmem:[%s16 + $0xc] sm:$0xf]
  %v186 = vld [vmem:[%s16 + $0x10] sm:$0xf]
  %v187 = vld [vmem:[%s16 + $0x14] sm:$0xf]
  %v188 = vld [vmem:[%s16 + $0x18] sm:$0xf]
  %v189 = vld [vmem:[%s16 + $0x1c] sm:$0xf]
  %v190 = vld [vmem:[%s16 + $0x20] sm:$0xf]
  %v191 = vld [vmem:[%s16 + $0x24] sm:$0xf]
  %v192 = vld [vmem:[%s16 + $0x28] sm:$0xf]
  %v193 = vld [vmem:[%s16 + $0x2c] sm:$0xf]
  %v194 = vld [vmem:[%s16 + $0x30] sm:$0xf]
  %v195 = vld [vmem:[%s16 + $0x34] sm:$0xf]
  %v196 = vld [vmem:[%s16 + $0x38] sm:$0xf]
  %v197 = vld [vmem:[%s16 + $0x3c] sm:$0xf]
  %v198 = vld [vmem:[%s16 + $0x40] sm:$0xf]
  %v199 = vld [vmem:[%s16 + $0x44] sm:$0xf]
  %v200 = vld [vmem:[%s16 + $0x48] sm:$0xf]
  %v201 = vld [vmem:[%s16 + $0x4c] sm:$0xf]
  %v202 = vld [vmem:[%s16 + $0x50] sm:$0xf]
  %v203 = vld [vmem:[%s16 + $0x54] sm:$0xf]
  %v204 = vld [vmem:[%s16 + $0x58] sm:$0xf]
  %v205 = vld [vmem:[%s16 + $0x5c] sm:$0xf]
  %v206 = vld [vmem:[%s17] sm:$0x1]
  %vm207 = vcmask 785408
  %v208 = vsel %vm207, %v101, 0.0
  %209 = vadd.xlane.f32.xlu0 %v208
  %v210 = vpop.xlane.xlu0 %209
  %v211 = vsel %vm207, %v102, 0.0
  %212 = vadd.xlane.f32.xlu0 %v211
  %v213 = vpop.xlane.xlu0 %212
  %v214 = vsel %vm207, %v103, 0.0
  %215 = vadd.xlane.f32.xlu0 %v214
  %v216 = vpop.xlane.xlu0 %215
  %v217 = vsel %vm207, %v104, 0.0
  %218 = vadd.xlane.f32.xlu0 %v217
  %v219 = vpop.xlane.xlu0 %218
  %v220 = vsel %vm207, %v105, 0.0
  %221 = vadd.xlane.f32.xlu0 %v220
  %v222 = vpop.xlane.xlu0 %221
  %v223 = vsel %vm207, %v106, 0.0
  %224 = vadd.xlane.f32.xlu0 %v223
  %v225 = vpop.xlane.xlu0 %224
  %v226 = vsel %vm207, %v107, 0.0
  %227 = vadd.xlane.f32.xlu0 %v226
  %v228 = vpop.xlane.xlu0 %227
  %v229 = vsel %vm207, %v108, 0.0
  %230 = vadd.xlane.f32.xlu0 %v229
  %v231 = vpop.xlane.xlu0 %230
  %v232 = vsel %vm207, %v109, 0.0
  %233 = vadd.xlane.f32.xlu0 %v232
  %v234 = vpop.xlane.xlu0 %233
  %v235 = vsel %vm207, %v110, 0.0
  %236 = vadd.xlane.f32.xlu0 %v235
  %v237 = vpop.xlane.xlu0 %236
  %v238 = vsel %vm207, %v111, 0.0
  %239 = vadd.xlane.f32.xlu0 %v238
  %v240 = vpop.xlane.xlu0 %239
  %v241 = vsel %vm207, %v112, 0.0
  %242 = vadd.xlane.f32.xlu0 %v241
  %v243 = vpop.xlane.xlu0 %242
  %v244 = vrcp.pop 96.0
  %v245 = vmul.f32 %v210, %v244
  %v246 = vmul.f32 %v213, %v244
  %v247 = vmul.f32 %v216, %v244
  %v248 = vmul.f32 %v219, %v244
  %v249 = vmul.f32 %v222, %v244
  %v250 = vmul.f32 %v225, %v244
  %v251 = vmul.f32 %v228, %v244
  %v252 = vmul.f32 %v231, %v244
  %v253 = vmul.f32 %v234, %v244
  %v254 = vmul.f32 %v237, %v244
  %v255 = vmul.f32 %v240, %v244
  %v256 = vmul.f32 %v243, %v244
  %v257 = vsub.f32 %v101, %v245
  %v258 = vsub.f32 %v102, %v246
  %v259 = vsub.f32 %v103, %v247
  %v260 = vsub.f32 %v104, %v248
  %v261 = vsub.f32 %v105, %v249
  %v262 = vsub.f32 %v106, %v250
  %v263 = vsub.f32 %v107, %v251
  %v264 = vsub.f32 %v108, %v252
  %v265 = vsub.f32 %v109, %v253
  %v266 = vsub.f32 %v110, %v254
  %v267 = vsub.f32 %v111, %v255
  %v268 = vsub.f32 %v112, %v256
  %v269 = vmul.f32 %v257, %v257
  %v270 = vmul.f32 %v258, %v258
  %v271 = vmul.f32 %v259, %v259
  %v272 = vmul.f32 %v260, %v260
  %v273 = vmul.f32 %v261, %v261
  %v274 = vmul.f32 %v262, %v262
  %v275 = vmul.f32 %v263, %v263
  %v276 = vmul.f32 %v264, %v264
  %v277 = vmul.f32 %v265, %v265
  %v278 = vmul.f32 %v266, %v266
  %v279 = vmul.f32 %v267, %v267
  %v280 = vmul.f32 %v268, %v268
  %v281 = vsel %vm207, %v269, 0.0
  %282 = vadd.xlane.f32.xlu0 %v281
  %v283 = vpop.xlane.xlu0 %282
  %v284 = vsel %vm207, %v270, 0.0
  %285 = vadd.xlane.f32.xlu0 %v284
  %v286 = vpop.xlane.xlu0 %285
  %v287 = vsel %vm207, %v271, 0.0
  %288 = vadd.xlane.f32.xlu0 %v287
  %v289 = vpop.xlane.xlu0 %288
  %v290 = vsel %vm207, %v272, 0.0
  %291 = vadd.xlane.f32.xlu0 %v290
  %v292 = vpop.xlane.xlu0 %291
  %v293 = vsel %vm207, %v273, 0.0
  %294 = vadd.xlane.f32.xlu0 %v293
  %v295 = vpop.xlane.xlu0 %294
  %v296 = vsel %vm207, %v274, 0.0
  %297 = vadd.xlane.f32.xlu0 %v296
  %v298 = vpop.xlane.xlu0 %297
  %v299 = vsel %vm207, %v275, 0.0
  %300 = vadd.xlane.f32.xlu0 %v299
  %v301 = vpop.xlane.xlu0 %300
  %v302 = vsel %vm207, %v276, 0.0
  %303 = vadd.xlane.f32.xlu0 %v302
  %v304 = vpop.xlane.xlu0 %303
  %v305 = vsel %vm207, %v277, 0.0
  %306 = vadd.xlane.f32.xlu0 %v305
  %v307 = vpop.xlane.xlu0 %306
  %v308 = vsel %vm207, %v278, 0.0
  %309 = vadd.xlane.f32.xlu0 %v308
  %v310 = vpop.xlane.xlu0 %309
  %v311 = vsel %vm207, %v279, 0.0
  %312 = vadd.xlane.f32.xlu0 %v311
  %v313 = vpop.xlane.xlu0 %312
  %v314 = vsel %vm207, %v280, 0.0
  %315 = vadd.xlane.f32.xlu0 %v314
  %v316 = vpop.xlane.xlu0 %315
  %v317 = vmul.f32 %v283, %v244
  %v318 = vmul.f32 %v286, %v244
  %v319 = vmul.f32 %v289, %v244
  %v320 = vmul.f32 %v292, %v244
  %v321 = vmul.f32 %v295, %v244
  %v322 = vmul.f32 %v298, %v244
  %v323 = vmul.f32 %v301, %v244
  %v324 = vmul.f32 %v304, %v244
  %v325 = vmul.f32 %v307, %v244
  %v326 = vmul.f32 %v310, %v244
  %v327 = vmul.f32 %v313, %v244
  %v328 = vmul.f32 %v316, %v244
  %v329 = vadd.f32 %v317, 1e-05
  %v330 = vadd.f32 %v318, 1e-05
  %v331 = vadd.f32 %v319, 1e-05
  %v332 = vadd.f32 %v320, 1e-05
  %v333 = vadd.f32 %v321, 1e-05
  %v334 = vadd.f32 %v322, 1e-05
  %v335 = vadd.f32 %v323, 1e-05
  %v336 = vadd.f32 %v324, 1e-05
  %v337 = vadd.f32 %v325, 1e-05
  %v338 = vadd.f32 %v326, 1e-05
  %v339 = vadd.f32 %v327, 1e-05
  %v340 = vadd.f32 %v328, 1e-05
  %v341 = vrsqrt.pop %v329
  %v342 = vrsqrt.pop %v330
  %v343 = vrsqrt.pop %v331
  %v344 = vrsqrt.pop %v332
  %v345 = vrsqrt.pop %v333
  %v346 = vrsqrt.pop %v334
  %v347 = vrsqrt.pop %v335
  %v348 = vrsqrt.pop %v336
  %v349 = vrsqrt.pop %v337
  %v350 = vrsqrt.pop %v338
  %v351 = vrsqrt.pop %v339
  %v352 = vrsqrt.pop %v340
  %v353 = vmul.f32 %v257, %v341
  %v354 = vmul.f32 %v258, %v342
  %v355 = vmul.f32 %v259, %v343
  %v356 = vmul.f32 %v260, %v344
  %v357 = vmul.f32 %v261, %v345
  %v358 = vmul.f32 %v262, %v346
  %v359 = vmul.f32 %v263, %v347
  %v360 = vmul.f32 %v264, %v348
  %v361 = vmul.f32 %v265, %v349
  %v362 = vmul.f32 %v266, %v350
  %v363 = vmul.f32 %v267, %v351
  %v364 = vmul.f32 %v268, %v352
  %v366 = vlaneseq
  %v367 = vshrl.u32 %v366, 7
  %v368 = vsub.s32 0, %v367
  %v369 = vrot.slane %v113, %v368
  %v371 = vmul.f32 %v353, %v369
  %v372 = vmul.f32 %v354, %v369
  %v373 = vmul.f32 %v355, %v369
  %v374 = vmul.f32 %v356, %v369
  %v375 = vmul.f32 %v357, %v369
  %v376 = vmul.f32 %v358, %v369
  %v377 = vmul.f32 %v359, %v369
  %v378 = vmul.f32 %v360, %v369
  %v379 = vmul.f32 %v361, %v369
  %v380 = vmul.f32 %v362, %v369
  %v381 = vmul.f32 %v363, %v369
  %v382 = vmul.f32 %v364, %v369
  %v384 = vlaneseq
  %v385 = vshrl.u32 %v384, 7
  %v386 = vsub.s32 0, %v385
  %v387 = vrot.slane %v114, %v386
  %v389 = vadd.f32 %v371, %v387
  %v390 = vadd.f32 %v372, %v387
  %v391 = vadd.f32 %v373, %v387
  %v392 = vadd.f32 %v374, %v387
  %v393 = vadd.f32 %v375, %v387
  %v394 = vadd.f32 %v376, %v387
  %v395 = vadd.f32 %v377, %v387
  %v396 = vadd.f32 %v378, %v387
  %v397 = vadd.f32 %v379, %v387
  %v398 = vadd.f32 %v380, %v387
  %v399 = vadd.f32 %v381, %v387
  %v400 = vadd.f32 %v382, %v387
  %v401 = vpack.c.bf16 %v390, %v389
  %v402 = vpack.c.bf16 %v392, %v391
  %v403 = vpack.c.bf16 %v394, %v393
  %v404 = vpack.c.bf16 %v396, %v395
  %v405 = vpack.c.bf16 %v398, %v397
  %v406 = vpack.c.bf16 %v400, %v399
  %v408 = vlaneseq
  %v409 = vshrl.u32 %v408, 7
  %v410 = vsub.s32 0, %v409
  %v411 = vrot.slane %v127, %v410
  %v425 = vunpack.c.l.b16 %v115
  %v426 = vunpack.c.l.b16 %v116
  %v427 = vunpack.c.l.b16 %v117
  %v428 = vunpack.c.l.b16 %v118
  %v429 = vunpack.c.l.b16 %v119
  %v430 = vunpack.c.l.b16 %v120
  %v431 = vunpack.c.l.b16 %v121
  %v432 = vunpack.c.l.b16 %v122
  %v433 = vunpack.c.l.b16 %v123
  %v434 = vunpack.c.l.b16 %v124
  %v435 = vunpack.c.l.b16 %v125
  %v436 = vunpack.c.l.b16 %v126
  %v437 = vpack.c.b16 %v426, %v425
  %v438 = vpack.c.b16 %v428, %v427
  %v439 = vpack.c.b16 %v430, %v429
  %v440 = vpack.c.b16 %v432, %v431
  %v441 = vpack.c.b16 %v434, %v433
  %v442 = vpack.c.b16 %v436, %v435
  %v450 = vsel %vm207, %v401, 0
  %v453 = vsel %vm207, %v402, 0
  %v456 = vsel %vm207, %v403, 0
  %v459 = vsel %vm207, %v404, 0
  %v462 = vsel %vm207, %v405, 0
  %v465 = vsel %vm207, %v406, 0
  %467 = vmatprep.subr.bf16.mxu0 0
  %468 = vmatpush1.bf16.msra.mxu0 %v437
  %469 = vmatprep.subr.bf16.mxu0 0
  %470 = vmatpush1.bf16.msra.mxu0 %v438
  %471 = vmatprep.subr.bf16.mxu0 0
  %472 = vmatpush1.bf16.msra.mxu0 %v439
  %473 = vmatprep.subr.bf16.mxu0 0
  %474 = vmatpush1.bf16.msra.mxu0 %v440
  %475 = vmatprep.subr.bf16.mxu0 0
  %476 = vmatpush1.bf16.msra.mxu0 %v441
  %477 = vmatprep.subr.bf16.mxu0 0
  %478 = vmatpush1.bf16.msra.mxu0 %v442
  %479 = vmatprep.subr.bf16.mxu0 0
  %480 = vmatpush1.bf16.msra.mxu0 0
  %481 = vmatprep.subr.bf16.mxu0 0
  %482 = vmatpush1.bf16.msra.mxu0 0
  %483 = vmatprep.subr.bf16.mxu0 0
  %484 = vmatpush1.bf16.msra.mxu0 0
  %485 = vmatprep.subr.bf16.mxu0 0
  %486 = vmatpush1.bf16.msra.mxu0 0
  %487 = vmatprep.subr.bf16.mxu0 0
  %488 = vmatpush1.bf16.msra.mxu0 0
  %489 = vmatprep.subr.bf16.mxu0 0
  %490 = vmatpush1.bf16.msra.mxu0 0
  %491 = vmatprep.subr.bf16.mxu0 0
  %492 = vmatpush1.bf16.msra.mxu0 0
  %493 = vmatprep.subr.bf16.mxu0 0
  %494 = vmatpush1.bf16.msra.mxu0 0
  %495 = vmatprep.subr.bf16.mxu0 0
  %496 = vmatpush1.bf16.msra.mxu0 0
  %497 = vmatprep.subr.bf16.mxu0 0
  %498 = vmatpush1.bf16.msra.mxu0 0
  %499 = vmatprep.mubr.bf16.mxu0 0
  %500 = vmatmul.mubr.bf16.gmra.mrb[0].mxu0 %v450
  %v501 = vpop.f32.mrb[0].mxu0
  %v502 = vadd.f32 %v411, %v501
  %v503 = vpop.f32.mrb[0].mxu0
  %v504 = vpop.f32.mrb[0].mxu0
  %v505 = vadd.f32 %v411, %v504
  %v506 = vpop.f32.mrb[0].mxu0
  %507 = vmatprep.mubr.bf16.mxu0 0
  %508 = vmatmul.mubr.bf16.gmra.mrb[0].mxu0 %v453
  %v509 = vpop.f32.mrb[0].mxu0
  %v510 = vadd.f32 %v411, %v509
  %v511 = vpop.f32.mrb[0].mxu0
  %v512 = vpop.f32.mrb[0].mxu0
  %v513 = vadd.f32 %v411, %v512
  %v514 = vpop.f32.mrb[0].mxu0
  %515 = vmatprep.mubr.bf16.mxu0 0
  %516 = vmatmul.mubr.bf16.gmra.mrb[0].mxu0 %v456
  %v517 = vpop.f32.mrb[0].mxu0
  %v518 = vadd.f32 %v411, %v517
  %v519 = vpop.f32.mrb[0].mxu0
  %v520 = vpop.f32.mrb[0].mxu0
  %v521 = vadd.f32 %v411, %v520
  %v522 = vpop.f32.mrb[0].mxu0
  %523 = vmatprep.mubr.bf16.mxu0 0
  %524 = vmatmul.mubr.bf16.gmra.mrb[0].mxu0 %v459
  %v525 = vpop.f32.mrb[0].mxu0
  %v526 = vadd.f32 %v411, %v525
  %v527 = vpop.f32.mrb[0].mxu0
  %v528 = vpop.f32.mrb[0].mxu0
  %v529 = vadd.f32 %v411, %v528
  %v530 = vpop.f32.mrb[0].mxu0
  %531 = vmatprep.mubr.bf16.mxu0 0
  %532 = vmatmul.mubr.bf16.gmra.mrb[0].mxu0 %v462
  %v533 = vpop.f32.mrb[0].mxu0
  %v534 = vadd.f32 %v411, %v533
  %v535 = vpop.f32.mrb[0].mxu0
  %v536 = vpop.f32.mrb[0].mxu0
  %v537 = vadd.f32 %v411, %v536
  %v538 = vpop.f32.mrb[0].mxu0
  %539 = vmatprep.mubr.bf16.mxu0 0
  %540 = vmatmul.mubr.bf16.gmra.mrb[0].mxu0 %v465
  %v541 = vpop.f32.mrb[0].mxu0
  %v542 = vadd.f32 %v411, %v541
  %v543 = vpop.f32.mrb[0].mxu0
  %v544 = vpop.f32.mrb[0].mxu0
  %v545 = vadd.f32 %v411, %v544
  %v546 = vpop.f32.mrb[0].mxu0
  %547 = vdwg.mxu0
  %v549 = vlaneseq
  %v550 = vshrl.u32 %v549, 7
  %v551 = vsub.s32 0, %v550
  %v552 = vrot.slane %v140, %v551
  %v566 = vunpack.c.l.b16 %v128
  %v567 = vunpack.c.l.b16 %v129
  %v568 = vunpack.c.l.b16 %v130
  %v569 = vunpack.c.l.b16 %v131
  %v570 = vunpack.c.l.b16 %v132
  %v571 = vunpack.c.l.b16 %v133
  %v572 = vunpack.c.l.b16 %v134
  %v573 = vunpack.c.l.b16 %v135
  %v574 = vunpack.c.l.b16 %v136
  %v575 = vunpack.c.l.b16 %v137
  %v576 = vunpack.c.l.b16 %v138
  %v577 = vunpack.c.l.b16 %v139
  %v578 = vpack.c.b16 %v567, %v566
  %v579 = vpack.c.b16 %v569, %v568
  %v580 = vpack.c.b16 %v571, %v570
  %v581 = vpack.c.b16 %v573, %v572
  %v582 = vpack.c.b16 %v575, %v574
  %v583 = vpack.c.b16 %v577, %v576
  %590 = vmatprep.subr.bf16.mxu0 0
  %591 = vmatpush1.bf16.msra.mxu0 %v578
  %592 = vmatprep.subr.bf16.mxu0 0
  %593 = vmatpush1.bf16.msra.mxu0 %v579
  %594 = vmatprep.subr.bf16.mxu0 0
  %595 = vmatpush1.bf16.msra.mxu0 %v580
  %596 = vmatprep.subr.bf16.mxu0 0
  %597 = vmatpush1.bf16.msra.mxu0 %v581
  %598 = vmatprep.subr.bf16.mxu0 0
  %599 = vmatpush1.bf16.msra.mxu0 %v582
  %600 = vmatprep.subr.bf16.mxu0 0
  %601 = vmatpush1.bf16.msra.mxu0 %v583
  %602 = vmatprep.subr.bf16.mxu0 0
  %603 = vmatpush1.bf16.msra.mxu0 0
  %604 = vmatprep.subr.bf16.mxu0 0
  %605 = vmatpush1.bf16.msra.mxu0 0
  %606 = vmatprep.subr.bf16.mxu0 0
  %607 = vmatpush1.bf16.msra.mxu0 0
  %608 = vmatprep.subr.bf16.mxu0 0
  %609 = vmatpush1.bf16.msra.mxu0 0
  %610 = vmatprep.subr.bf16.mxu0 0
  %611 = vmatpush1.bf16.msra.mxu0 0
  %612 = vmatprep.subr.bf16.mxu0 0
  %613 = vmatpush1.bf16.msra.mxu0 0
  %614 = vmatprep.subr.bf16.mxu0 0
  %615 = vmatpush1.bf16.msra.mxu0 0
  %616 = vmatprep.subr.bf16.mxu0 0
  %617 = vmatpush1.bf16.msra.mxu0 0
  %618 = vmatprep.subr.bf16.mxu0 0
  %619 = vmatpush1.bf16.msra.mxu0 0
  %620 = vmatprep.subr.bf16.mxu0 0
  %621 = vmatpush1.bf16.msra.mxu0 0
  %622 = vmatprep.mubr.bf16.mxu0 0
  %623 = vmatmul.mubr.bf16.gmra.mrb[0].mxu0 %v450
  %v624 = vpop.f32.mrb[0].mxu0
  %v625 = vadd.f32 %v552, %v624
  %v626 = vpop.f32.mrb[0].mxu0
  %v627 = vpop.f32.mrb[0].mxu0
  %v628 = vadd.f32 %v552, %v627
  %v629 = vpop.f32.mrb[0].mxu0
  %630 = vmatprep.mubr.bf16.mxu0 0
  %631 = vmatmul.mubr.bf16.gmra.mrb[0].mxu0 %v453
  %v632 = vpop.f32.mrb[0].mxu0
  %v633 = vadd.f32 %v552, %v632
  %v634 = vpop.f32.mrb[0].mxu0
  %v635 = vpop.f32.mrb[0].mxu0
  %v636 = vadd.f32 %v552, %v635
  %v637 = vpop.f32.mrb[0].mxu0
  %638 = vmatprep.mubr.bf16.mxu0 0
  %639 = vmatmul.mubr.bf16.gmra.mrb[0].mxu0 %v456
  %v640 = vpop.f32.mrb[0].mxu0
  %v641 = vadd.f32 %v552, %v640
  %v642 = vpop.f32.mrb[0].mxu0
  %v643 = vpop.f32.mrb[0].mxu0
  %v644 = vadd.f32 %v552, %v643
  %v645 = vpop.f32.mrb[0].mxu0
  %646 = vmatprep.mubr.bf16.mxu0 0
  %647 = vmatmul.mubr.bf16.gmra.mrb[0].mxu0 %v459
  %v648 = vpop.f32.mrb[0].mxu0
  %v649 = vadd.f32 %v552, %v648
  %v650 = vpop.f32.mrb[0].mxu0
  %v651 = vpop.f32.mrb[0].mxu0
  %v652 = vadd.f32 %v552, %v651
  %v653 = vpop.f32.mrb[0].mxu0
  %654 = vmatprep.mubr.bf16.mxu0 0
  %655 = vmatmul.mubr.bf16.gmra.mrb[0].mxu0 %v462
  %v656 = vpop.f32.mrb[0].mxu0
  %v657 = vadd.f32 %v552, %v656
  %v658 = vpop.f32.mrb[0].mxu0
  %v659 = vpop.f32.mrb[0].mxu0
  %v660 = vadd.f32 %v552, %v659
  %v661 = vpop.f32.mrb[0].mxu0
  %662 = vmatprep.mubr.bf16.mxu0 0
  %663 = vmatmul.mubr.bf16.gmra.mrb[0].mxu0 %v465
  %v664 = vpop.f32.mrb[0].mxu0
  %v665 = vadd.f32 %v552, %v664
  %v666 = vpop.f32.mrb[0].mxu0
  %v667 = vpop.f32.mrb[0].mxu0
  %v668 = vadd.f32 %v552, %v667
  %v669 = vpop.f32.mrb[0].mxu0
  %670 = vdwg.mxu0
  %v672 = vlaneseq
  %v673 = vshrl.u32 %v672, 7
  %v674 = vsub.s32 0, %v673
  %v675 = vrot.slane %v153, %v674
  %v689 = vunpack.c.l.b16 %v141
  %v690 = vunpack.c.l.b16 %v142
  %v691 = vunpack.c.l.b16 %v143
  %v692 = vunpack.c.l.b16 %v144
  %v693 = vunpack.c.l.b16 %v145
  %v694 = vunpack.c.l.b16 %v146
  %v695 = vunpack.c.l.b16 %v147
  %v696 = vunpack.c.l.b16 %v148
  %v697 = vunpack.c.l.b16 %v149
  %v698 = vunpack.c.l.b16 %v150
  %v699 = vunpack.c.l.b16 %v151
  %v700 = vunpack.c.l.b16 %v152
  %v701 = vpack.c.b16 %v690, %v689
  %v702 = vpack.c.b16 %v692, %v691
  %v703 = vpack.c.b16 %v694, %v693
  %v704 = vpack.c.b16 %v696, %v695
  %v705 = vpack.c.b16 %v698, %v697
  %v706 = vpack.c.b16 %v700, %v699
  %713 = vmatprep.subr.bf16.mxu0 0
  %714 = vmatpush1.bf16.msra.mxu0 %v701
  %715 = vmatprep.subr.bf16.mxu0 0
  %716 = vmatpush1.bf16.msra.mxu0 %v702
  %717 = vmatprep.subr.bf16.mxu0 0
  %718 = vmatpush1.bf16.msra.mxu0 %v703
  %719 = vmatprep.subr.bf16.mxu0 0
  %720 = vmatpush1.bf16.msra.mxu0 %v704
  %721 = vmatprep.subr.bf16.mxu0 0
  %722 = vmatpush1.bf16.msra.mxu0 %v705
  %723 = vmatprep.subr.bf16.mxu0 0
  %724 = vmatpush1.bf16.msra.mxu0 %v706
  %725 = vmatprep.subr.bf16.mxu0 0
  %726 = vmatpush1.bf16.msra.mxu0 0
  %727 = vmatprep.subr.bf16.mxu0 0
  %728 = vmatpush1.bf16.msra.mxu0 0
  %729 = vmatprep.subr.bf16.mxu0 0
  %730 = vmatpush1.bf16.msra.mxu0 0
  %731 = vmatprep.subr.bf16.mxu0 0
  %732 = vmatpush1.bf16.msra.mxu0 0
  %733 = vmatprep.subr.bf16.mxu0 0
  %734 = vmatpush1.bf16.msra.mxu0 0
  %735 = vmatprep.subr.bf16.mxu0 0
  %736 = vmatpush1.bf16.msra.mxu0 0
  %737 = vmatprep.subr.bf16.mxu0 0
  %738 = vmatpush1.bf16.msra.mxu0 0
  %739 = vmatprep.subr.bf16.mxu0 0
  %740 = vmatpush1.bf16.msra.mxu0 0
  %741 = vmatprep.subr.bf16.mxu0 0
  %742 = vmatpush1.bf16.msra.mxu0 0
  %743 = vmatprep.subr.bf16.mxu0 0
  %744 = vmatpush1.bf16.msra.mxu0 0
  %745 = vmatprep.mubr.bf16.mxu0 0
  %746 = vmatmul.mubr.bf16.gmra.mrb[0].mxu0 %v450
  %v747 = vpop.f32.mrb[0].mxu0
  %v748 = vadd.f32 %v675, %v747
  %v749 = vpop.f32.mrb[0].mxu0
  %v750 = vpop.f32.mrb[0].mxu0
  %v751 = vadd.f32 %v675, %v750
  %v752 = vpop.f32.mrb[0].mxu0
  %753 = vmatprep.mubr.bf16.mxu0 0
  %754 = vmatmul.mubr.bf16.gmra.mrb[0].mxu0 %v453
  %v755 = vpop.f32.mrb[0].mxu0
  %v756 = vadd.f32 %v675, %v755
  %v757 = vpop.f32.mrb[0].mxu0
  %v758 = vpop.f32.mrb[0].mxu0
  %v759 = vadd.f32 %v675, %v758
  %v760 = vpop.f32.mrb[0].mxu0
  %761 = vmatprep.mubr.bf16.mxu0 0
  %762 = vmatmul.mubr.bf16.gmra.mrb[0].mxu0 %v456
  %v763 = vpop.f32.mrb[0].mxu0
  %v764 = vadd.f32 %v675, %v763
  %v765 = vpop.f32.mrb[0].mxu0
  %v766 = vpop.f32.mrb[0].mxu0
  %v767 = vadd.f32 %v675, %v766
  %v768 = vpop.f32.mrb[0].mxu0
  %769 = vmatprep.mubr.bf16.mxu0 0
  %770 = vmatmul.mubr.bf16.gmra.mrb[0].mxu0 %v459
  %v771 = vpop.f32.mrb[0].mxu0
  %v772 = vadd.f32 %v675, %v771
  %v773 = vpop.f32.mrb[0].mxu0
  %v774 = vpop.f32.mrb[0].mxu0
  %v775 = vadd.f32 %v675, %v774
  %v776 = vpop.f32.mrb[0].mxu0
  %777 = vmatprep.mubr.bf16.mxu0 0
  %778 = vmatmul.mubr.bf16.gmra.mrb[0].mxu0 %v462
  %v779 = vpop.f32.mrb[0].mxu0
  %v780 = vadd.f32 %v675, %v779
  %v781 = vpop.f32.mrb[0].mxu0
  %v782 = vpop.f32.mrb[0].mxu0
  %v783 = vadd.f32 %v675, %v782
  %v784 = vpop.f32.mrb[0].mxu0
  %785 = vmatprep.mubr.bf16.mxu0 0
  %786 = vmatmul.mubr.bf16.gmra.mrb[0].mxu0 %v465
  %v787 = vpop.f32.mrb[0].mxu0
  %v788 = vadd.f32 %v675, %v787
  %v789 = vpop.f32.mrb[0].mxu0
  %v790 = vpop.f32.mrb[0].mxu0
  %v791 = vadd.f32 %v675, %v790
  %v792 = vpop.f32.mrb[0].mxu0
  %793 = vdwg.mxu0
  %v794 = vpack.c.bf16 %v505, %v502
  %v795 = vpack.c.bf16 %v513, %v510
  %v796 = vpack.c.bf16 %v521, %v518
  %v797 = vpack.c.bf16 %v628, %v625
  %v798 = vpack.c.bf16 %v636, %v633
  %v799 = vpack.c.bf16 %v644, %v641
  %v800 = vpack.c.bf16 %v751, %v748
  %v801 = vpack.c.bf16 %v759, %v756
  %v802 = vpack.c.bf16 %v767, %v764
  %v803 = vlaneseq
  %v804 = vand.u32 %v803, 127
  %vm805 = vcmp.lt.s32.totalorder %v804, 41
  %vm806 = vcmask 261120
  %v808 = vsel %vm806, %v794, 0
  %v811 = vsel %vm806, %v795, 0
  %v814 = vsel %vm806, %v796, 0
  %v817 = vsel %vm806, %v797, 0
  %v820 = vsel %vm806, %v798, 0
  %v823 = vsel %vm806, %v799, 0
  %825 = vmatprep.subr.bf16.mxu0 0
  %826 = vmatpush1.bf16.xpose.msra.mxu0 %v817
  %827 = vmatprep.subr.bf16.mxu0 0
  %828 = vmatpush1.bf16.xpose.msra.mxu0 %v820
  %829 = vmatprep.subr.bf16.mxu0 0
  %830 = vmatpush1.bf16.xpose.msra.mxu0 %v823
  %831 = vmatprep.subr.bf16.mxu0 0
  %832 = vmatpush1.bf16.xpose.msra.mxu0 0
  %833 = vmatprep.subr.bf16.mxu0 0
  %834 = vmatpush1.bf16.xpose.msra.mxu0 0
  %835 = vmatprep.subr.bf16.mxu0 0
  %836 = vmatpush1.bf16.xpose.msra.mxu0 0
  %837 = vmatprep.subr.bf16.mxu0 0
  %838 = vmatpush1.bf16.xpose.msra.mxu0 0
  %839 = vmatprep.subr.bf16.mxu0 0
  %840 = vmatpush1.bf16.xpose.msra.mxu0 0
  %841 = vmatprep.subr.bf16.mxu0 0
  %842 = vmatpush1.bf16.xpose.msra.mxu0 0
  %843 = vmatprep.subr.bf16.mxu0 0
  %844 = vmatpush1.bf16.xpose.msra.mxu0 0
  %845 = vmatprep.subr.bf16.mxu0 0
  %846 = vmatpush1.bf16.xpose.msra.mxu0 0
  %847 = vmatprep.subr.bf16.mxu0 0
  %848 = vmatpush1.bf16.xpose.msra.mxu0 0
  %849 = vmatprep.subr.bf16.mxu0 0
  %850 = vmatpush1.bf16.xpose.msra.mxu0 0
  %851 = vmatprep.subr.bf16.mxu0 0
  %852 = vmatpush1.bf16.xpose.msra.mxu0 0
  %853 = vmatprep.subr.bf16.mxu0 0
  %854 = vmatpush1.bf16.xpose.msra.mxu0 0
  %855 = vmatprep.subr.bf16.mxu0 0
  %856 = vmatpush1.bf16.xpose.msra.mxu0 0
  %857 = vmatprep.mubr.bf16.mxu0 0
  %858 = vmatmul.mubr.bf16.gmra.mrb[0].mxu0 %v808
  %v859 = vpop.f32.mrb[0].mxu0
  %v860 = vadd.f32 0.0, %v859
  %v861 = vpop.f32.mrb[0].mxu0
  %v862 = vpop.f32.mrb[0].mxu0
  %v863 = vadd.f32 0.0, %v862
  %v864 = vpop.f32.mrb[0].mxu0
  %865 = vmatprep.mubr.bf16.mxu0 0
  %866 = vmatmul.mubr.bf16.gmra.mrb[0].mxu0 %v811
  %v867 = vpop.f32.mrb[0].mxu0
  %v868 = vadd.f32 0.0, %v867
  %v869 = vpop.f32.mrb[0].mxu0
  %v870 = vpop.f32.mrb[0].mxu0
  %v871 = vadd.f32 0.0, %v870
  %v872 = vpop.f32.mrb[0].mxu0
  %873 = vmatprep.mubr.bf16.mxu0 0
  %874 = vmatmul.mubr.bf16.gmra.mrb[0].mxu0 %v814
  %v875 = vpop.f32.mrb[0].mxu0
  %v876 = vadd.f32 0.0, %v875
  %v877 = vpop.f32.mrb[0].mxu0
  %v878 = vpop.f32.mrb[0].mxu0
  %v879 = vadd.f32 0.0, %v878
  %v880 = vpop.f32.mrb[0].mxu0
  %881 = vdwg.mxu0
  %v882 = vsel %vm805, %v860, -1e+30
  %v883 = vsel %vm805, %v863, -1e+30
  %v884 = vsel %vm805, %v868, -1e+30
  %v885 = vsel %vm805, %v871, -1e+30
  %v886 = vsel %vm805, %v876, -1e+30
  %v887 = vsel %vm805, %v879, -1e+30
  %vm888 = vcmask 392192
  %v889 = vsel %vm888, %v882, -inf
  %890 = vmax.xlane.f32.xlu0 %v889
  %v891 = vpop.xlane.xlu0 %890
  %v892 = vsel %vm888, %v883, -inf
  %893 = vmax.xlane.f32.xlu0 %v892
  %v894 = vpop.xlane.xlu0 %893
  %v895 = vsel %vm888, %v884, -inf
  %896 = vmax.xlane.f32.xlu0 %v895
  %v897 = vpop.xlane.xlu0 %896
  %v898 = vsel %vm888, %v885, -inf
  %899 = vmax.xlane.f32.xlu0 %v898
  %v900 = vpop.xlane.xlu0 %899
  %v901 = vsel %vm888, %v886, -inf
  %902 = vmax.xlane.f32.xlu0 %v901
  %v903 = vpop.xlane.xlu0 %902
  %v904 = vsel %vm888, %v887, -inf
  %905 = vmax.xlane.f32.xlu0 %v904
  %v906 = vpop.xlane.xlu0 %905
  %v907 = vsub.f32 %v882, %v891
  %v908 = vsub.f32 %v883, %v894
  %v909 = vsub.f32 %v884, %v897
  %v910 = vsub.f32 %v885, %v900
  %v911 = vsub.f32 %v886, %v903
  %v912 = vsub.f32 %v887, %v906
  %v913 = vmul.f32 %v907, 1.442695
  %v914 = vpow.pop %v913
  %v915 = vmul.f32 %v908, 1.442695
  %v916 = vpow.pop %v915
  %v917 = vmul.f32 %v909, 1.442695
  %v918 = vpow.pop %v917
  %v919 = vmul.f32 %v910, 1.442695
  %v920 = vpow.pop %v919
  %v921 = vmul.f32 %v911, 1.442695
  %v922 = vpow.pop %v921
  %v923 = vmul.f32 %v912, 1.442695
  %v924 = vpow.pop %v923
  %v925 = vsel %vm888, %v914, 0.0
  %926 = vadd.xlane.f32.xlu0 %v925
  %v927 = vpop.xlane.xlu0 %926
  %v928 = vsel %vm888, %v916, 0.0
  %929 = vadd.xlane.f32.xlu0 %v928
  %v930 = vpop.xlane.xlu0 %929
  %v931 = vsel %vm888, %v918, 0.0
  %932 = vadd.xlane.f32.xlu0 %v931
  %v933 = vpop.xlane.xlu0 %932
  %v934 = vsel %vm888, %v920, 0.0
  %935 = vadd.xlane.f32.xlu0 %v934
  %v936 = vpop.xlane.xlu0 %935
  %v937 = vsel %vm888, %v922, 0.0
  %938 = vadd.xlane.f32.xlu0 %v937
  %v939 = vpop.xlane.xlu0 %938
  %v940 = vsel %vm888, %v924, 0.0
  %941 = vadd.xlane.f32.xlu0 %v940
  %v942 = vpop.xlane.xlu0 %941
  %v943 = vmul.f32 %v927, 9.797959
  %v944 = vmul.f32 %v930, 9.797959
  %v945 = vmul.f32 %v933, 9.797959
  %v946 = vmul.f32 %v936, 9.797959
  %v947 = vmul.f32 %v939, 9.797959
  %v948 = vmul.f32 %v942, 9.797959
  %v949 = vrcp.pop %v943
  %v950 = vrcp.pop %v944
  %v951 = vrcp.pop %v945
  %v952 = vrcp.pop %v946
  %v953 = vrcp.pop %v947
  %v954 = vrcp.pop %v948
  %v955 = vmul.f32 %v914, %v949
  %v956 = vmul.f32 %v916, %v950
  %v957 = vmul.f32 %v918, %v951
  %v958 = vmul.f32 %v920, %v952
  %v959 = vmul.f32 %v922, %v953
  %v960 = vmul.f32 %v924, %v954
  %v961 = vpack.c.bf16 %v956, %v955
  %v962 = vpack.c.bf16 %v958, %v957
  %v963 = vpack.c.bf16 %v960, %v959
  %v965 = vsel %vm888, %v961, 0
  %v968 = vsel %vm888, %v962, 0
  %v971 = vsel %vm888, %v963, 0
  %973 = vmatprep.subr.bf16.mxu0 0
  %974 = vmatpush1.bf16.msra.mxu0 %v800
  %975 = vmatprep.subr.bf16.mxu0 0
  %976 = vmatpush1.bf16.msra.mxu0 %v801
  %977 = vmatprep.subr.bf16.mxu0 0
  %978 = vmatpush1.bf16.msra.mxu0 %v802
  %979 = vmatprep.subr.bf16.mxu0 0
  %980 = vmatpush1.bf16.msra.mxu0 0
  %981 = vmatprep.subr.bf16.mxu0 0
  %982 = vmatpush1.bf16.msra.mxu0 0
  %983 = vmatprep.subr.bf16.mxu0 0
  %984 = vmatpush1.bf16.msra.mxu0 0
  %985 = vmatprep.subr.bf16.mxu0 0
  %986 = vmatpush1.bf16.msra.mxu0 0
  %987 = vmatprep.subr.bf16.mxu0 0
  %988 = vmatpush1.bf16.msra.mxu0 0
  %989 = vmatprep.subr.bf16.mxu0 0
  %990 = vmatpush1.bf16.msra.mxu0 0
  %991 = vmatprep.subr.bf16.mxu0 0
  %992 = vmatpush1.bf16.msra.mxu0 0
  %993 = vmatprep.subr.bf16.mxu0 0
  %994 = vmatpush1.bf16.msra.mxu0 0
  %995 = vmatprep.subr.bf16.mxu0 0
  %996 = vmatpush1.bf16.msra.mxu0 0
  %997 = vmatprep.subr.bf16.mxu0 0
  %998 = vmatpush1.bf16.msra.mxu0 0
  %999 = vmatprep.subr.bf16.mxu0 0
  %1000 = vmatpush1.bf16.msra.mxu0 0
  %1001 = vmatprep.subr.bf16.mxu0 0
  %1002 = vmatpush1.bf16.msra.mxu0 0
  %1003 = vmatprep.subr.bf16.mxu0 0
  %1004 = vmatpush1.bf16.msra.mxu0 0
  %1005 = vmatprep.mubr.bf16.mxu0 0
  %1006 = vmatmul.mubr.bf16.gmra.mrb[0].mxu0 %v965
  %v1007 = vpop.f32.mrb[0].mxu0
  %v1008 = vadd.f32 0.0, %v1007
  %v1009 = vpop.f32.mrb[0].mxu0
  %v1010 = vpop.f32.mrb[0].mxu0
  %v1011 = vadd.f32 0.0, %v1010
  %v1012 = vpop.f32.mrb[0].mxu0
  %1013 = vmatprep.mubr.bf16.mxu0 0
  %1014 = vmatmul.mubr.bf16.gmra.mrb[0].mxu0 %v968
  %v1015 = vpop.f32.mrb[0].mxu0
  %v1016 = vadd.f32 0.0, %v1015
  %v1017 = vpop.f32.mrb[0].mxu0
  %v1018 = vpop.f32.mrb[0].mxu0
  %v1019 = vadd.f32 0.0, %v1018
  %v1020 = vpop.f32.mrb[0].mxu0
  %1021 = vmatprep.mubr.bf16.mxu0 0
  %1022 = vmatmul.mubr.bf16.gmra.mrb[0].mxu0 %v971
  %v1023 = vpop.f32.mrb[0].mxu0
  %v1024 = vadd.f32 0.0, %v1023
  %v1025 = vpop.f32.mrb[0].mxu0
  %v1026 = vpop.f32.mrb[0].mxu0
  %v1027 = vadd.f32 0.0, %v1026
  %v1028 = vpop.f32.mrb[0].mxu0
  %1029 = vdwg.mxu0
  %1033 = vrot.lane.b32.xlu0 %v794, 96
  %v1034 = vpop.permute.xlu0 %1033
  %1035 = vrot.lane.b32.xlu0 %v795, 96
  %v1036 = vpop.permute.xlu0 %1035
  %1037 = vrot.lane.b32.xlu0 %v796, 96
  %v1038 = vpop.permute.xlu0 %1037
  %1042 = vrot.lane.b32.xlu0 %v797, 96
  %v1043 = vpop.permute.xlu0 %1042
  %1044 = vrot.lane.b32.xlu0 %v798, 96
  %v1045 = vpop.permute.xlu0 %1044
  %1046 = vrot.lane.b32.xlu0 %v799, 96
  %v1047 = vpop.permute.xlu0 %1046
  %v1049 = vsel %vm806, %v1034, 0
  %v1052 = vsel %vm806, %v1036, 0
  %v1055 = vsel %vm806, %v1038, 0
  %v1058 = vsel %vm806, %v1043, 0
  %v1061 = vsel %vm806, %v1045, 0
  %v1064 = vsel %vm806, %v1047, 0
  %1066 = vmatprep.subr.bf16.mxu0 0
  %1067 = vmatpush1.bf16.xpose.msra.mxu0 %v1058
  %1068 = vmatprep.subr.bf16.mxu0 0
  %1069 = vmatpush1.bf16.xpose.msra.mxu0 %v1061
  %1070 = vmatprep.subr.bf16.mxu0 0
  %1071 = vmatpush1.bf16.xpose.msra.mxu0 %v1064
  %1072 = vmatprep.subr.bf16.mxu0 0
  %1073 = vmatpush1.bf16.xpose.msra.mxu0 0
  %1074 = vmatprep.subr.bf16.mxu0 0
  %1075 = vmatpush1.bf16.xpose.msra.mxu0 0
  %1076 = vmatprep.subr.bf16.mxu0 0
  %1077 = vmatpush1.bf16.xpose.msra.mxu0 0
  %1078 = vmatprep.subr.bf16.mxu0 0
  %1079 = vmatpush1.bf16.xpose.msra.mxu0 0
  %1080 = vmatprep.subr.bf16.mxu0 0
  %1081 = vmatpush1.bf16.xpose.msra.mxu0 0
  %1082 = vmatprep.subr.bf16.mxu0 0
  %1083 = vmatpush1.bf16.xpose.msra.mxu0 0
  %1084 = vmatprep.subr.bf16.mxu0 0
  %1085 = vmatpush1.bf16.xpose.msra.mxu0 0
  %1086 = vmatprep.subr.bf16.mxu0 0
  %1087 = vmatpush1.bf16.xpose.msra.mxu0 0
  %1088 = vmatprep.subr.bf16.mxu0 0
  %1089 = vmatpush1.bf16.xpose.msra.mxu0 0
  %1090 = vmatprep.subr.bf16.mxu0 0
  %1091 = vmatpush1.bf16.xpose.msra.mxu0 0
  %1092 = vmatprep.subr.bf16.mxu0 0
  %1093 = vmatpush1.bf16.xpose.msra.mxu0 0
  %1094 = vmatprep.subr.bf16.mxu0 0
  %1095 = vmatpush1.bf16.xpose.msra.mxu0 0
  %1096 = vmatprep.subr.bf16.mxu0 0
  %1097 = vmatpush1.bf16.xpose.msra.mxu0 0
  %1098 = vmatprep.mubr.bf16.mxu0 0
  %1099 = vmatmul.mubr.bf16.gmra.mrb[0].mxu0 %v1049
  %v1100 = vpop.f32.mrb[0].mxu0
  %v1101 = vadd.f32 0.0, %v1100
  %v1102 = vpop.f32.mrb[0].mxu0
  %v1103 = vpop.f32.mrb[0].mxu0
  %v1104 = vadd.f32 0.0, %v1103
  %v1105 = vpop.f32.mrb[0].mxu0
  %1106 = vmatprep.mubr.bf16.mxu0 0
  %1107 = vmatmul.mubr.bf16.gmra.mrb[0].mxu0 %v1052
  %v1108 = vpop.f32.mrb[0].mxu0
  %v1109 = vadd.f32 0.0, %v1108
  %v1110 = vpop.f32.mrb[0].mxu0
  %v1111 = vpop.f32.mrb[0].mxu0
  %v1112 = vadd.f32 0.0, %v1111
  %v1113 = vpop.f32.mrb[0].mxu0
  %1114 = vmatprep.mubr.bf16.mxu0 0
  %1115 = vmatmul.mubr.bf16.gmra.mrb[0].mxu0 %v1055
  %v1116 = vpop.f32.mrb[0].mxu0
  %v1117 = vadd.f32 0.0, %v1116
  %v1118 = vpop.f32.mrb[0].mxu0
  %v1119 = vpop.f32.mrb[0].mxu0
  %v1120 = vadd.f32 0.0, %v1119
  %v1121 = vpop.f32.mrb[0].mxu0
  %1122 = vdwg.mxu0
  %v1123 = vsel %vm805, %v1101, -1e+30
  %v1124 = vsel %vm805, %v1104, -1e+30
  %v1125 = vsel %vm805, %v1109, -1e+30
  %v1126 = vsel %vm805, %v1112, -1e+30
  %v1127 = vsel %vm805, %v1117, -1e+30
  %v1128 = vsel %vm805, %v1120, -1e+30
  %v1129 = vsel %vm888, %v1123, -inf
  %1130 = vmax.xlane.f32.xlu0 %v1129
  %v1131 = vpop.xlane.xlu0 %1130
  %v1132 = vsel %vm888, %v1124, -inf
  %1133 = vmax.xlane.f32.xlu0 %v1132
  %v1134 = vpop.xlane.xlu0 %1133
  %v1135 = vsel %vm888, %v1125, -inf
  %1136 = vmax.xlane.f32.xlu0 %v1135
  %v1137 = vpop.xlane.xlu0 %1136
  %v1138 = vsel %vm888, %v1126, -inf
  %1139 = vmax.xlane.f32.xlu0 %v1138
  %v1140 = vpop.xlane.xlu0 %1139
  %v1141 = vsel %vm888, %v1127, -inf
  %1142 = vmax.xlane.f32.xlu0 %v1141
  %v1143 = vpop.xlane.xlu0 %1142
  %v1144 = vsel %vm888, %v1128, -inf
  %1145 = vmax.xlane.f32.xlu0 %v1144
  %v1146 = vpop.xlane.xlu0 %1145
  %v1147 = vsub.f32 %v1123, %v1131
  %v1148 = vsub.f32 %v1124, %v1134
  %v1149 = vsub.f32 %v1125, %v1137
  %v1150 = vsub.f32 %v1126, %v1140
  %v1151 = vsub.f32 %v1127, %v1143
  %v1152 = vsub.f32 %v1128, %v1146
  %v1153 = vmul.f32 %v1147, 1.442695
  %v1154 = vpow.pop %v1153
  %v1155 = vmul.f32 %v1148, 1.442695
  %v1156 = vpow.pop %v1155
  %v1157 = vmul.f32 %v1149, 1.442695
  %v1158 = vpow.pop %v1157
  %v1159 = vmul.f32 %v1150, 1.442695
  %v1160 = vpow.pop %v1159
  %v1161 = vmul.f32 %v1151, 1.442695
  %v1162 = vpow.pop %v1161
  %v1163 = vmul.f32 %v1152, 1.442695
  %v1164 = vpow.pop %v1163
  %v1165 = vsel %vm888, %v1154, 0.0
  %1166 = vadd.xlane.f32.xlu0 %v1165
  %v1167 = vpop.xlane.xlu0 %1166
  %v1168 = vsel %vm888, %v1156, 0.0
  %1169 = vadd.xlane.f32.xlu0 %v1168
  %v1170 = vpop.xlane.xlu0 %1169
  %v1171 = vsel %vm888, %v1158, 0.0
  %1172 = vadd.xlane.f32.xlu0 %v1171
  %v1173 = vpop.xlane.xlu0 %1172
  %v1174 = vsel %vm888, %v1160, 0.0
  %1175 = vadd.xlane.f32.xlu0 %v1174
  %v1176 = vpop.xlane.xlu0 %1175
  %v1177 = vsel %vm888, %v1162, 0.0
  %1178 = vadd.xlane.f32.xlu0 %v1177
  %v1179 = vpop.xlane.xlu0 %1178
  %v1180 = vsel %vm888, %v1164, 0.0
  %1181 = vadd.xlane.f32.xlu0 %v1180
  %v1182 = vpop.xlane.xlu0 %1181
  %v1183 = vmul.f32 %v1167, 9.797959
  %v1184 = vmul.f32 %v1170, 9.797959
  %v1185 = vmul.f32 %v1173, 9.797959
  %v1186 = vmul.f32 %v1176, 9.797959
  %v1187 = vmul.f32 %v1179, 9.797959
  %v1188 = vmul.f32 %v1182, 9.797959
  %v1189 = vrcp.pop %v1183
  %v1190 = vrcp.pop %v1184
  %v1191 = vrcp.pop %v1185
  %v1192 = vrcp.pop %v1186
  %v1193 = vrcp.pop %v1187
  %v1194 = vrcp.pop %v1188
  %v1195 = vmul.f32 %v1154, %v1189
  %v1196 = vmul.f32 %v1156, %v1190
  %v1197 = vmul.f32 %v1158, %v1191
  %v1198 = vmul.f32 %v1160, %v1192
  %v1199 = vmul.f32 %v1162, %v1193
  %v1200 = vmul.f32 %v1164, %v1194
  %v1201 = vpack.c.bf16 %v1196, %v1195
  %v1202 = vpack.c.bf16 %v1198, %v1197
  %v1203 = vpack.c.bf16 %v1200, %v1199
  %1207 = vrot.lane.b32.xlu0 %v800, 96
  %v1208 = vpop.permute.xlu0 %1207
  %1209 = vrot.lane.b32.xlu0 %v801, 96
  %v1210 = vpop.permute.xlu0 %1209
  %1211 = vrot.lane.b32.xlu0 %v802, 96
  %v1212 = vpop.permute.xlu0 %1211
  %v1217 = vsel %vm888, %v1201, 0
  %v1220 = vsel %vm888, %v1202, 0
  %v1223 = vsel %vm888, %v1203, 0
  %1225 = vmatprep.subr.bf16.mxu0 0
  %1226 = vmatpush1.bf16.msra.mxu0 %v1208
  %1227 = vmatprep.subr.bf16.mxu0 0
  %1228 = vmatpush1.bf16.msra.mxu0 %v1210
  %1229 = vmatprep.subr.bf16.mxu0 0
  %1230 = vmatpush1.bf16.msra.mxu0 %v1212
  %1231 = vmatprep.subr.bf16.mxu0 0
  %1232 = vmatpush1.bf16.msra.mxu0 0
  %1233 = vmatprep.subr.bf16.mxu0 0
  %1234 = vmatpush1.bf16.msra.mxu0 0
  %1235 = vmatprep.subr.bf16.mxu0 0
  %1236 = vmatpush1.bf16.msra.mxu0 0
  %1237 = vmatprep.subr.bf16.mxu0 0
  %1238 = vmatpush1.bf16.msra.mxu0 0
  %1239 = vmatprep.subr.bf16.mxu0 0
  %1240 = vmatpush1.bf16.msra.mxu0 0
  %1241 = vmatprep.subr.bf16.mxu0 0
  %1242 = vmatpush1.bf16.msra.mxu0 0
  %1243 = vmatprep.subr.bf16.mxu0 0
  %1244 = vmatpush1.bf16.msra.mxu0 0
  %1245 = vmatprep.subr.bf16.mxu0 0
  %1246 = vmatpush1.bf16.msra.mxu0 0
  %1247 = vmatprep.subr.bf16.mxu0 0
  %1248 = vmatpush1.bf16.msra.mxu0 0
  %1249 = vmatprep.subr.bf16.mxu0 0
  %1250 = vmatpush1.bf16.msra.mxu0 0
  %1251 = vmatprep.subr.bf16.mxu0 0
  %1252 = vmatpush1.bf16.msra.mxu0 0
  %1253 = vmatprep.subr.bf16.mxu0 0
  %1254 = vmatpush1.bf16.msra.mxu0 0
  %1255 = vmatprep.subr.bf16.mxu0 0
  %1256 = vmatpush1.bf16.msra.mxu0 0
  %1257 = vmatprep.mubr.bf16.mxu0 0
  %1258 = vmatmul.mubr.bf16.gmra.mrb[0].mxu0 %v1217
  %v1259 = vpop.f32.mrb[0].mxu0
  %v1260 = vadd.f32 0.0, %v1259
  %v1261 = vpop.f32.mrb[0].mxu0
  %v1262 = vpop.f32.mrb[0].mxu0
  %v1263 = vadd.f32 0.0, %v1262
  %v1264 = vpop.f32.mrb[0].mxu0
  %1265 = vmatprep.mubr.bf16.mxu0 0
  %1266 = vmatmul.mubr.bf16.gmra.mrb[0].mxu0 %v1220
  %v1267 = vpop.f32.mrb[0].mxu0
  %v1268 = vadd.f32 0.0, %v1267
  %v1269 = vpop.f32.mrb[0].mxu0
  %v1270 = vpop.f32.mrb[0].mxu0
  %v1271 = vadd.f32 0.0, %v1270
  %v1272 = vpop.f32.mrb[0].mxu0
  %1273 = vmatprep.mubr.bf16.mxu0 0
  %1274 = vmatmul.mubr.bf16.gmra.mrb[0].mxu0 %v1223
  %v1275 = vpop.f32.mrb[0].mxu0
  %v1276 = vadd.f32 0.0, %v1275
  %v1277 = vpop.f32.mrb[0].mxu0
  %v1278 = vpop.f32.mrb[0].mxu0
  %v1279 = vadd.f32 0.0, %v1278
  %v1280 = vpop.f32.mrb[0].mxu0
  %1281 = vdwg.mxu0
  %1282 = vrot.lane.b32.xlu0 %v794, 64
  %v1283 = vpop.permute.xlu0 %1282
  %1284 = vrot.lane.b32.xlu0 %v795, 64
  %v1285 = vpop.permute.xlu0 %1284
  %1286 = vrot.lane.b32.xlu0 %v796, 64
  %v1287 = vpop.permute.xlu0 %1286
  %1288 = vrot.lane.b32.xlu0 %v797, 64
  %v1289 = vpop.permute.xlu0 %1288
  %1290 = vrot.lane.b32.xlu0 %v798, 64
  %v1291 = vpop.permute.xlu0 %1290
  %1292 = vrot.lane.b32.xlu0 %v799, 64
  %v1293 = vpop.permute.xlu0 %1292
  %v1295 = vsel %vm806, %v1283, 0
  %v1298 = vsel %vm806, %v1285, 0
  %v1301 = vsel %vm806, %v1287, 0
  %v1304 = vsel %vm806, %v1289, 0
  %v1307 = vsel %vm806, %v1291, 0
  %v1310 = vsel %vm806, %v1293, 0
  %1312 = vmatprep.subr.bf16.mxu0 0
  %1313 = vmatpush1.bf16.xpose.msra.mxu0 %v1304
  %1314 = vmatprep.subr.bf16.mxu0 0
  %1315 = vmatpush1.bf16.xpose.msra.mxu0 %v1307
  %1316 = vmatprep.subr.bf16.mxu0 0
  %1317 = vmatpush1.bf16.xpose.msra.mxu0 %v1310
  %1318 = vmatprep.subr.bf16.mxu0 0
  %1319 = vmatpush1.bf16.xpose.msra.mxu0 0
  %1320 = vmatprep.subr.bf16.mxu0 0
  %1321 = vmatpush1.bf16.xpose.msra.mxu0 0
  %1322 = vmatprep.subr.bf16.mxu0 0
  %1323 = vmatpush1.bf16.xpose.msra.mxu0 0
  %1324 = vmatprep.subr.bf16.mxu0 0
  %1325 = vmatpush1.bf16.xpose.msra.mxu0 0
  %1326 = vmatprep.subr.bf16.mxu0 0
  %1327 = vmatpush1.bf16.xpose.msra.mxu0 0
  %1328 = vmatprep.subr.bf16.mxu0 0
  %1329 = vmatpush1.bf16.xpose.msra.mxu0 0
  %1330 = vmatprep.subr.bf16.mxu0 0
  %1331 = vmatpush1.bf16.xpose.msra.mxu0 0
  %1332 = vmatprep.subr.bf16.mxu0 0
  %1333 = vmatpush1.bf16.xpose.msra.mxu0 0
  %1334 = vmatprep.subr.bf16.mxu0 0
  %1335 = vmatpush1.bf16.xpose.msra.mxu0 0
  %1336 = vmatprep.subr.bf16.mxu0 0
  %1337 = vmatpush1.bf16.xpose.msra.mxu0 0
  %1338 = vmatprep.subr.bf16.mxu0 0
  %1339 = vmatpush1.bf16.xpose.msra.mxu0 0
  %1340 = vmatprep.subr.bf16.mxu0 0
  %1341 = vmatpush1.bf16.xpose.msra.mxu0 0
  %1342 = vmatprep.subr.bf16.mxu0 0
  %1343 = vmatpush1.bf16.xpose.msra.mxu0 0
  %1344 = vmatprep.mubr.bf16.mxu0 0
  %1345 = vmatmul.mubr.bf16.gmra.mrb[0].mxu0 %v1295
  %v1346 = vpop.f32.mrb[0].mxu0
  %v1347 = vadd.f32 0.0, %v1346
  %v1348 = vpop.f32.mrb[0].mxu0
  %v1349 = vpop.f32.mrb[0].mxu0
  %v1350 = vadd.f32 0.0, %v1349
  %v1351 = vpop.f32.mrb[0].mxu0
  %1352 = vmatprep.mubr.bf16.mxu0 0
  %1353 = vmatmul.mubr.bf16.gmra.mrb[0].mxu0 %v1298
  %v1354 = vpop.f32.mrb[0].mxu0
  %v1355 = vadd.f32 0.0, %v1354
  %v1356 = vpop.f32.mrb[0].mxu0
  %v1357 = vpop.f32.mrb[0].mxu0
  %v1358 = vadd.f32 0.0, %v1357
  %v1359 = vpop.f32.mrb[0].mxu0
  %1360 = vmatprep.mubr.bf16.mxu0 0
  %1361 = vmatmul.mubr.bf16.gmra.mrb[0].mxu0 %v1301
  %v1362 = vpop.f32.mrb[0].mxu0
  %v1363 = vadd.f32 0.0, %v1362
  %v1364 = vpop.f32.mrb[0].mxu0
  %v1365 = vpop.f32.mrb[0].mxu0
  %v1366 = vadd.f32 0.0, %v1365
  %v1367 = vpop.f32.mrb[0].mxu0
  %1368 = vdwg.mxu0
  %v1369 = vsel %vm805, %v1347, -1e+30
  %v1370 = vsel %vm805, %v1350, -1e+30
  %v1371 = vsel %vm805, %v1355, -1e+30
  %v1372 = vsel %vm805, %v1358, -1e+30
  %v1373 = vsel %vm805, %v1363, -1e+30
  %v1374 = vsel %vm805, %v1366, -1e+30
  %v1375 = vsel %vm888, %v1369, -inf
  %1376 = vmax.xlane.f32.xlu0 %v1375
  %v1377 = vpop.xlane.xlu0 %1376
  %v1378 = vsel %vm888, %v1370, -inf
  %1379 = vmax.xlane.f32.xlu0 %v1378
  %v1380 = vpop.xlane.xlu0 %1379
  %v1381 = vsel %vm888, %v1371, -inf
  %1382 = vmax.xlane.f32.xlu0 %v1381
  %v1383 = vpop.xlane.xlu0 %1382
  %v1384 = vsel %vm888, %v1372, -inf
  %1385 = vmax.xlane.f32.xlu0 %v1384
  %v1386 = vpop.xlane.xlu0 %1385
  %v1387 = vsel %vm888, %v1373, -inf
  %1388 = vmax.xlane.f32.xlu0 %v1387
  %v1389 = vpop.xlane.xlu0 %1388
  %v1390 = vsel %vm888, %v1374, -inf
  %1391 = vmax.xlane.f32.xlu0 %v1390
  %v1392 = vpop.xlane.xlu0 %1391
  %v1393 = vsub.f32 %v1369, %v1377
  %v1394 = vsub.f32 %v1370, %v1380
  %v1395 = vsub.f32 %v1371, %v1383
  %v1396 = vsub.f32 %v1372, %v1386
  %v1397 = vsub.f32 %v1373, %v1389
  %v1398 = vsub.f32 %v1374, %v1392
  %v1399 = vmul.f32 %v1393, 1.442695
  %v1400 = vpow.pop %v1399
  %v1401 = vmul.f32 %v1394, 1.442695
  %v1402 = vpow.pop %v1401
  %v1403 = vmul.f32 %v1395, 1.442695
  %v1404 = vpow.pop %v1403
  %v1405 = vmul.f32 %v1396, 1.442695
  %v1406 = vpow.pop %v1405
  %v1407 = vmul.f32 %v1397, 1.442695
  %v1408 = vpow.pop %v1407
  %v1409 = vmul.f32 %v1398, 1.442695
  %v1410 = vpow.pop %v1409
  %v1411 = vsel %vm888, %v1400, 0.0
  %1412 = vadd.xlane.f32.xlu0 %v1411
  %v1413 = vpop.xlane.xlu0 %1412
  %v1414 = vsel %vm888, %v1402, 0.0
  %1415 = vadd.xlane.f32.xlu0 %v1414
  %v1416 = vpop.xlane.xlu0 %1415
  %v1417 = vsel %vm888, %v1404, 0.0
  %1418 = vadd.xlane.f32.xlu0 %v1417
  %v1419 = vpop.xlane.xlu0 %1418
  %v1420 = vsel %vm888, %v1406, 0.0
  %1421 = vadd.xlane.f32.xlu0 %v1420
  %v1422 = vpop.xlane.xlu0 %1421
  %v1423 = vsel %vm888, %v1408, 0.0
  %1424 = vadd.xlane.f32.xlu0 %v1423
  %v1425 = vpop.xlane.xlu0 %1424
  %v1426 = vsel %vm888, %v1410, 0.0
  %1427 = vadd.xlane.f32.xlu0 %v1426
  %v1428 = vpop.xlane.xlu0 %1427
  %v1429 = vmul.f32 %v1413, 9.797959
  %v1430 = vmul.f32 %v1416, 9.797959
  %v1431 = vmul.f32 %v1419, 9.797959
  %v1432 = vmul.f32 %v1422, 9.797959
  %v1433 = vmul.f32 %v1425, 9.797959
  %v1434 = vmul.f32 %v1428, 9.797959
  %v1435 = vrcp.pop %v1429
  %v1436 = vrcp.pop %v1430
  %v1437 = vrcp.pop %v1431
  %v1438 = vrcp.pop %v1432
  %v1439 = vrcp.pop %v1433
  %v1440 = vrcp.pop %v1434
  %v1441 = vmul.f32 %v1400, %v1435
  %v1442 = vmul.f32 %v1402, %v1436
  %v1443 = vmul.f32 %v1404, %v1437
  %v1444 = vmul.f32 %v1406, %v1438
  %v1445 = vmul.f32 %v1408, %v1439
  %v1446 = vmul.f32 %v1410, %v1440
  %v1447 = vpack.c.bf16 %v1442, %v1441
  %v1448 = vpack.c.bf16 %v1444, %v1443
  %v1449 = vpack.c.bf16 %v1446, %v1445
  %1450 = vrot.lane.b32.xlu0 %v800, 64
  %v1451 = vpop.permute.xlu0 %1450
  %1452 = vrot.lane.b32.xlu0 %v801, 64
  %v1453 = vpop.permute.xlu0 %1452
  %1454 = vrot.lane.b32.xlu0 %v802, 64
  %v1455 = vpop.permute.xlu0 %1454
  %v1460 = vsel %vm888, %v1447, 0
  %v1463 = vsel %vm888, %v1448, 0
  %v1466 = vsel %vm888, %v1449, 0
  %1468 = vmatprep.subr.bf16.mxu0 0
  %1469 = vmatpush1.bf16.msra.mxu0 %v1451
  %1470 = vmatprep.subr.bf16.mxu0 0
  %1471 = vmatpush1.bf16.msra.mxu0 %v1453
  %1472 = vmatprep.subr.bf16.mxu0 0
  %1473 = vmatpush1.bf16.msra.mxu0 %v1455
  %1474 = vmatprep.subr.bf16.mxu0 0
  %1475 = vmatpush1.bf16.msra.mxu0 0
  %1476 = vmatprep.subr.bf16.mxu0 0
  %1477 = vmatpush1.bf16.msra.mxu0 0
  %1478 = vmatprep.subr.bf16.mxu0 0
  %1479 = vmatpush1.bf16.msra.mxu0 0
  %1480 = vmatprep.subr.bf16.mxu0 0
  %1481 = vmatpush1.bf16.msra.mxu0 0
  %1482 = vmatprep.subr.bf16.mxu0 0
  %1483 = vmatpush1.bf16.msra.mxu0 0
  %1484 = vmatprep.subr.bf16.mxu0 0
  %1485 = vmatpush1.bf16.msra.mxu0 0
  %1486 = vmatprep.subr.bf16.mxu0 0
  %1487 = vmatpush1.bf16.msra.mxu0 0
  %1488 = vmatprep.subr.bf16.mxu0 0
  %1489 = vmatpush1.bf16.msra.mxu0 0
  %1490 = vmatprep.subr.bf16.mxu0 0
  %1491 = vmatpush1.bf16.msra.mxu0 0
  %1492 = vmatprep.subr.bf16.mxu0 0
  %1493 = vmatpush1.bf16.msra.mxu0 0
  %1494 = vmatprep.subr.bf16.mxu0 0
  %1495 = vmatpush1.bf16.msra.mxu0 0
  %1496 = vmatprep.subr.bf16.mxu0 0
  %1497 = vmatpush1.bf16.msra.mxu0 0
  %1498 = vmatprep.subr.bf16.mxu0 0
  %1499 = vmatpush1.bf16.msra.mxu0 0
  %1500 = vmatprep.mubr.bf16.mxu0 0
  %1501 = vmatmul.mubr.bf16.gmra.mrb[0].mxu0 %v1460
  %v1502 = vpop.f32.mrb[0].mxu0
  %v1503 = vadd.f32 0.0, %v1502
  %v1504 = vpop.f32.mrb[0].mxu0
  %v1505 = vpop.f32.mrb[0].mxu0
  %v1506 = vadd.f32 0.0, %v1505
  %v1507 = vpop.f32.mrb[0].mxu0
  %1508 = vmatprep.mubr.bf16.mxu0 0
  %1509 = vmatmul.mubr.bf16.gmra.mrb[0].mxu0 %v1463
  %v1510 = vpop.f32.mrb[0].mxu0
  %v1511 = vadd.f32 0.0, %v1510
  %v1512 = vpop.f32.mrb[0].mxu0
  %v1513 = vpop.f32.mrb[0].mxu0
  %v1514 = vadd.f32 0.0, %v1513
  %v1515 = vpop.f32.mrb[0].mxu0
  %1516 = vmatprep.mubr.bf16.mxu0 0
  %1517 = vmatmul.mubr.bf16.gmra.mrb[0].mxu0 %v1466
  %v1518 = vpop.f32.mrb[0].mxu0
  %v1519 = vadd.f32 0.0, %v1518
  %v1520 = vpop.f32.mrb[0].mxu0
  %v1521 = vpop.f32.mrb[0].mxu0
  %v1522 = vadd.f32 0.0, %v1521
  %v1523 = vpop.f32.mrb[0].mxu0
  %1524 = vdwg.mxu0
  %1531 = vrot.lane.b32.xlu0 %v1260, 32
  %v1532 = vpop.permute.xlu0 %1531
  %1533 = vrot.lane.b32.xlu0 %v1263, 32
  %v1534 = vpop.permute.xlu0 %1533
  %1535 = vrot.lane.b32.xlu0 %v1268, 32
  %v1536 = vpop.permute.xlu0 %1535
  %1537 = vrot.lane.b32.xlu0 %v1271, 32
  %v1538 = vpop.permute.xlu0 %1537
  %1539 = vrot.lane.b32.xlu0 %v1276, 32
  %v1540 = vpop.permute.xlu0 %1539
  %1541 = vrot.lane.b32.xlu0 %v1279, 32
  %v1542 = vpop.permute.xlu0 %1541
  %1555 = vrot.lane.b32.xlu0 %v1503, 64
  %v1556 = vpop.permute.xlu0 %1555
  %1557 = vrot.lane.b32.xlu0 %v1506, 64
  %v1558 = vpop.permute.xlu0 %1557
  %1559 = vrot.lane.b32.xlu0 %v1511, 64
  %v1560 = vpop.permute.xlu0 %1559
  %1561 = vrot.lane.b32.xlu0 %v1514, 64
  %v1562 = vpop.permute.xlu0 %1561
  %1563 = vrot.lane.b32.xlu0 %v1519, 64
  %v1564 = vpop.permute.xlu0 %1563
  %1565 = vrot.lane.b32.xlu0 %v1522, 64
  %v1566 = vpop.permute.xlu0 %1565
  %v1573 = vsel %vm806, %v1008, %v1532
  %v1574 = vsel %vm806, %v1011, %v1534
  %v1575 = vsel %vm806, %v1016, %v1536
  %v1576 = vsel %vm806, %v1019, %v1538
  %v1577 = vsel %vm806, %v1024, %v1540
  %v1578 = vsel %vm806, %v1027, %v1542
  %vm1579 = vcmask 523264
  %v1580 = vsel %vm1579, %v1573, %v1556
  %v1581 = vsel %vm1579, %v1574, %v1558
  %v1582 = vsel %vm1579, %v1575, %v1560
  %v1583 = vsel %vm1579, %v1576, %v1562
  %v1584 = vsel %vm1579, %v1577, %v1564
  %v1585 = vsel %vm1579, %v1578, %v1566
  %v1586 = vpack.c.bf16 %v529, %v526
  %v1587 = vpack.c.bf16 %v537, %v534
  %v1588 = vpack.c.bf16 %v545, %v542
  %v1589 = vpack.c.bf16 %v652, %v649
  %v1590 = vpack.c.bf16 %v660, %v657
  %v1591 = vpack.c.bf16 %v668, %v665
  %v1592 = vpack.c.bf16 %v775, %v772
  %v1593 = vpack.c.bf16 %v783, %v780
  %v1594 = vpack.c.bf16 %v791, %v788
  %v1596 = vsel %vm806, %v1586, 0
  %v1599 = vsel %vm806, %v1587, 0
  %v1602 = vsel %vm806, %v1588, 0
  %v1605 = vsel %vm806, %v1589, 0
  %v1608 = vsel %vm806, %v1590, 0
  %v1611 = vsel %vm806, %v1591, 0
  %1613 = vmatprep.subr.bf16.mxu0 0
  %1614 = vmatpush1.bf16.xpose.msra.mxu0 %v1605
  %1615 = vmatprep.subr.bf16.mxu0 0
  %1616 = vmatpush1.bf16.xpose.msra.mxu0 %v1608
  %1617 = vmatprep.subr.bf16.mxu0 0
  %1618 = vmatpush1.bf16.xpose.msra.mxu0 %v1611
  %1619 = vmatprep.subr.bf16.mxu0 0
  %1620 = vmatpush1.bf16.xpose.msra.mxu0 0
  %1621 = vmatprep.subr.bf16.mxu0 0
  %1622 = vmatpush1.bf16.xpose.msra.mxu0 0
  %1623 = vmatprep.subr.bf16.mxu0 0
  %1624 = vmatpush1.bf16.xpose.msra.mxu0 0
  %1625 = vmatprep.subr.bf16.mxu0 0
  %1626 = vmatpush1.bf16.xpose.msra.mxu0 0
  %1627 = vmatprep.subr.bf16.mxu0 0
  %1628 = vmatpush1.bf16.xpose.msra.mxu0 0
  %1629 = vmatprep.subr.bf16.mxu0 0
  %1630 = vmatpush1.bf16.xpose.msra.mxu0 0
  %1631 = vmatprep.subr.bf16.mxu0 0
  %1632 = vmatpush1.bf16.xpose.msra.mxu0 0
  %1633 = vmatprep.subr.bf16.mxu0 0
  %1634 = vmatpush1.bf16.xpose.msra.mxu0 0
  %1635 = vmatprep.subr.bf16.mxu0 0
  %1636 = vmatpush1.bf16.xpose.msra.mxu0 0
  %1637 = vmatprep.subr.bf16.mxu0 0
  %1638 = vmatpush1.bf16.xpose.msra.mxu0 0
  %1639 = vmatprep.subr.bf16.mxu0 0
  %1640 = vmatpush1.bf16.xpose.msra.mxu0 0
  %1641 = vmatprep.subr.bf16.mxu0 0
  %1642 = vmatpush1.bf16.xpose.msra.mxu0 0
  %1643 = vmatprep.subr.bf16.mxu0 0
  %1644 = vmatpush1.bf16.xpose.msra.mxu0 0
  %1645 = vmatprep.mubr.bf16.mxu0 0
  %1646 = vmatmul.mubr.bf16.gmra.mrb[0].mxu0 %v1596
  %v1647 = vpop.f32.mrb[0].mxu0
  %v1648 = vadd.f32 0.0, %v1647
  %v1649 = vpop.f32.mrb[0].mxu0
  %v1650 = vpop.f32.mrb[0].mxu0
  %v1651 = vadd.f32 0.0, %v1650
  %v1652 = vpop.f32.mrb[0].mxu0
  %1653 = vmatprep.mubr.bf16.mxu0 0
  %1654 = vmatmul.mubr.bf16.gmra.mrb[0].mxu0 %v1599
  %v1655 = vpop.f32.mrb[0].mxu0
  %v1656 = vadd.f32 0.0, %v1655
  %v1657 = vpop.f32.mrb[0].mxu0
  %v1658 = vpop.f32.mrb[0].mxu0
  %v1659 = vadd.f32 0.0, %v1658
  %v1660 = vpop.f32.mrb[0].mxu0
  %1661 = vmatprep.mubr.bf16.mxu0 0
  %1662 = vmatmul.mubr.bf16.gmra.mrb[0].mxu0 %v1602
  %v1663 = vpop.f32.mrb[0].mxu0
  %v1664 = vadd.f32 0.0, %v1663
  %v1665 = vpop.f32.mrb[0].mxu0
  %v1666 = vpop.f32.mrb[0].mxu0
  %v1667 = vadd.f32 0.0, %v1666
  %v1668 = vpop.f32.mrb[0].mxu0
  %1669 = vdwg.mxu0
  %v1670 = vsel %vm805, %v1648, -1e+30
  %v1671 = vsel %vm805, %v1651, -1e+30
  %v1672 = vsel %vm805, %v1656, -1e+30
  %v1673 = vsel %vm805, %v1659, -1e+30
  %v1674 = vsel %vm805, %v1664, -1e+30
  %v1675 = vsel %vm805, %v1667, -1e+30
  %v1676 = vsel %vm888, %v1670, -inf
  %1677 = vmax.xlane.f32.xlu0 %v1676
  %v1678 = vpop.xlane.xlu0 %1677
  %v1679 = vsel %vm888, %v1671, -inf
  %1680 = vmax.xlane.f32.xlu0 %v1679
  %v1681 = vpop.xlane.xlu0 %1680
  %v1682 = vsel %vm888, %v1672, -inf
  %1683 = vmax.xlane.f32.xlu0 %v1682
  %v1684 = vpop.xlane.xlu0 %1683
  %v1685 = vsel %vm888, %v1673, -inf
  %1686 = vmax.xlane.f32.xlu0 %v1685
  %v1687 = vpop.xlane.xlu0 %1686
  %v1688 = vsel %vm888, %v1674, -inf
  %1689 = vmax.xlane.f32.xlu0 %v1688
  %v1690 = vpop.xlane.xlu0 %1689
  %v1691 = vsel %vm888, %v1675, -inf
  %1692 = vmax.xlane.f32.xlu0 %v1691
  %v1693 = vpop.xlane.xlu0 %1692
  %v1694 = vsub.f32 %v1670, %v1678
  %v1695 = vsub.f32 %v1671, %v1681
  %v1696 = vsub.f32 %v1672, %v1684
  %v1697 = vsub.f32 %v1673, %v1687
  %v1698 = vsub.f32 %v1674, %v1690
  %v1699 = vsub.f32 %v1675, %v1693
  %v1700 = vmul.f32 %v1694, 1.442695
  %v1701 = vpow.pop %v1700
  %v1702 = vmul.f32 %v1695, 1.442695
  %v1703 = vpow.pop %v1702
  %v1704 = vmul.f32 %v1696, 1.442695
  %v1705 = vpow.pop %v1704
  %v1706 = vmul.f32 %v1697, 1.442695
  %v1707 = vpow.pop %v1706
  %v1708 = vmul.f32 %v1698, 1.442695
  %v1709 = vpow.pop %v1708
  %v1710 = vmul.f32 %v1699, 1.442695
  %v1711 = vpow.pop %v1710
  %v1712 = vsel %vm888, %v1701, 0.0
  %1713 = vadd.xlane.f32.xlu0 %v1712
  %v1714 = vpop.xlane.xlu0 %1713
  %v1715 = vsel %vm888, %v1703, 0.0
  %1716 = vadd.xlane.f32.xlu0 %v1715
  %v1717 = vpop.xlane.xlu0 %1716
  %v1718 = vsel %vm888, %v1705, 0.0
  %1719 = vadd.xlane.f32.xlu0 %v1718
  %v1720 = vpop.xlane.xlu0 %1719
  %v1721 = vsel %vm888, %v1707, 0.0
  %1722 = vadd.xlane.f32.xlu0 %v1721
  %v1723 = vpop.xlane.xlu0 %1722
  %v1724 = vsel %vm888, %v1709, 0.0
  %1725 = vadd.xlane.f32.xlu0 %v1724
  %v1726 = vpop.xlane.xlu0 %1725
  %v1727 = vsel %vm888, %v1711, 0.0
  %1728 = vadd.xlane.f32.xlu0 %v1727
  %v1729 = vpop.xlane.xlu0 %1728
  %v1730 = vmul.f32 %v1714, 9.797959
  %v1731 = vmul.f32 %v1717, 9.797959
  %v1732 = vmul.f32 %v1720, 9.797959
  %v1733 = vmul.f32 %v1723, 9.797959
  %v1734 = vmul.f32 %v1726, 9.797959
  %v1735 = vmul.f32 %v1729, 9.797959
  %v1736 = vrcp.pop %v1730
  %v1737 = vrcp.pop %v1731
  %v1738 = vrcp.pop %v1732
  %v1739 = vrcp.pop %v1733
  %v1740 = vrcp.pop %v1734
  %v1741 = vrcp.pop %v1735
  %v1742 = vmul.f32 %v1701, %v1736
  %v1743 = vmul.f32 %v1703, %v1737
  %v1744 = vmul.f32 %v1705, %v1738
  %v1745 = vmul.f32 %v1707, %v1739
  %v1746 = vmul.f32 %v1709, %v1740
  %v1747 = vmul.f32 %v1711, %v1741
  %v1748 = vpack.c.bf16 %v1743, %v1742
  %v1749 = vpack.c.bf16 %v1745, %v1744
  %v1750 = vpack.c.bf16 %v1747, %v1746
  %v1752 = vsel %vm888, %v1748, 0
  %v1755 = vsel %vm888, %v1749, 0
  %v1758 = vsel %vm888, %v1750, 0
  %1760 = vmatprep.subr.bf16.mxu0 0
  %1761 = vmatpush1.bf16.msra.mxu0 %v1592
  %1762 = vmatprep.subr.bf16.mxu0 0
  %1763 = vmatpush1.bf16.msra.mxu0 %v1593
  %1764 = vmatprep.subr.bf16.mxu0 0
  %1765 = vmatpush1.bf16.msra.mxu0 %v1594
  %1766 = vmatprep.subr.bf16.mxu0 0
  %1767 = vmatpush1.bf16.msra.mxu0 0
  %1768 = vmatprep.subr.bf16.mxu0 0
  %1769 = vmatpush1.bf16.msra.mxu0 0
  %1770 = vmatprep.subr.bf16.mxu0 0
  %1771 = vmatpush1.bf16.msra.mxu0 0
  %1772 = vmatprep.subr.bf16.mxu0 0
  %1773 = vmatpush1.bf16.msra.mxu0 0
  %1774 = vmatprep.subr.bf16.mxu0 0
  %1775 = vmatpush1.bf16.msra.mxu0 0
  %1776 = vmatprep.subr.bf16.mxu0 0
  %1777 = vmatpush1.bf16.msra.mxu0 0
  %1778 = vmatprep.subr.bf16.mxu0 0
  %1779 = vmatpush1.bf16.msra.mxu0 0
  %1780 = vmatprep.subr.bf16.mxu0 0
  %1781 = vmatpush1.bf16.msra.mxu0 0
  %1782 = vmatprep.subr.bf16.mxu0 0
  %1783 = vmatpush1.bf16.msra.mxu0 0
  %1784 = vmatprep.subr.bf16.mxu0 0
  %1785 = vmatpush1.bf16.msra.mxu0 0
  %1786 = vmatprep.subr.bf16.mxu0 0
  %1787 = vmatpush1.bf16.msra.mxu0 0
  %1788 = vmatprep.subr.bf16.mxu0 0
  %1789 = vmatpush1.bf16.msra.mxu0 0
  %1790 = vmatprep.subr.bf16.mxu0 0
  %1791 = vmatpush1.bf16.msra.mxu0 0
  %1792 = vmatprep.mubr.bf16.mxu0 0
  %1793 = vmatmul.mubr.bf16.gmra.mrb[0].mxu0 %v1752
  %v1794 = vpop.f32.mrb[0].mxu0
  %v1795 = vadd.f32 0.0, %v1794
  %v1796 = vpop.f32.mrb[0].mxu0
  %v1797 = vpop.f32.mrb[0].mxu0
  %v1798 = vadd.f32 0.0, %v1797
  %v1799 = vpop.f32.mrb[0].mxu0
  %1800 = vmatprep.mubr.bf16.mxu0 0
  %1801 = vmatmul.mubr.bf16.gmra.mrb[0].mxu0 %v1755
  %v1802 = vpop.f32.mrb[0].mxu0
  %v1803 = vadd.f32 0.0, %v1802
  %v1804 = vpop.f32.mrb[0].mxu0
  %v1805 = vpop.f32.mrb[0].mxu0
  %v1806 = vadd.f32 0.0, %v1805
  %v1807 = vpop.f32.mrb[0].mxu0
  %1808 = vmatprep.mubr.bf16.mxu0 0
  %1809 = vmatmul.mubr.bf16.gmra.mrb[0].mxu0 %v1758
  %v1810 = vpop.f32.mrb[0].mxu0
  %v1811 = vadd.f32 0.0, %v1810
  %v1812 = vpop.f32.mrb[0].mxu0
  %v1813 = vpop.f32.mrb[0].mxu0
  %v1814 = vadd.f32 0.0, %v1813
  %v1815 = vpop.f32.mrb[0].mxu0
  %1816 = vdwg.mxu0
  %1820 = vrot.lane.b32.xlu0 %v1586, 96
  %v1821 = vpop.permute.xlu0 %1820
  %1822 = vrot.lane.b32.xlu0 %v1587, 96
  %v1823 = vpop.permute.xlu0 %1822
  %1824 = vrot.lane.b32.xlu0 %v1588, 96
  %v1825 = vpop.permute.xlu0 %1824
  %1829 = vrot.lane.b32.xlu0 %v1589, 96
  %v1830 = vpop.permute.xlu0 %1829
  %1831 = vrot.lane.b32.xlu0 %v1590, 96
  %v1832 = vpop.permute.xlu0 %1831
  %1833 = vrot.lane.b32.xlu0 %v1591, 96
  %v1834 = vpop.permute.xlu0 %1833
  %v1836 = vsel %vm806, %v1821, 0
  %v1839 = vsel %vm806, %v1823, 0
  %v1842 = vsel %vm806, %v1825, 0
  %v1845 = vsel %vm806, %v1830, 0
  %v1848 = vsel %vm806, %v1832, 0
  %v1851 = vsel %vm806, %v1834, 0
  %1853 = vmatprep.subr.bf16.mxu0 0
  %1854 = vmatpush1.bf16.xpose.msra.mxu0 %v1845
  %1855 = vmatprep.subr.bf16.mxu0 0
  %1856 = vmatpush1.bf16.xpose.msra.mxu0 %v1848
  %1857 = vmatprep.subr.bf16.mxu0 0
  %1858 = vmatpush1.bf16.xpose.msra.mxu0 %v1851
  %1859 = vmatprep.subr.bf16.mxu0 0
  %1860 = vmatpush1.bf16.xpose.msra.mxu0 0
  %1861 = vmatprep.subr.bf16.mxu0 0
  %1862 = vmatpush1.bf16.xpose.msra.mxu0 0
  %1863 = vmatprep.subr.bf16.mxu0 0
  %1864 = vmatpush1.bf16.xpose.msra.mxu0 0
  %1865 = vmatprep.subr.bf16.mxu0 0
  %1866 = vmatpush1.bf16.xpose.msra.mxu0 0
  %1867 = vmatprep.subr.bf16.mxu0 0
  %1868 = vmatpush1.bf16.xpose.msra.mxu0 0
  %1869 = vmatprep.subr.bf16.mxu0 0
  %1870 = vmatpush1.bf16.xpose.msra.mxu0 0
  %1871 = vmatprep.subr.bf16.mxu0 0
  %1872 = vmatpush1.bf16.xpose.msra.mxu0 0
  %1873 = vmatprep.subr.bf16.mxu0 0
  %1874 = vmatpush1.bf16.xpose.msra.mxu0 0
  %1875 = vmatprep.subr.bf16.mxu0 0
  %1876 = vmatpush1.bf16.xpose.msra.mxu0 0
  %1877 = vmatprep.subr.bf16.mxu0 0
  %1878 = vmatpush1.bf16.xpose.msra.mxu0 0
  %1879 = vmatprep.subr.bf16.mxu0 0
  %1880 = vmatpush1.bf16.xpose.msra.mxu0 0
  %1881 = vmatprep.subr.bf16.mxu0 0
  %1882 = vmatpush1.bf16.xpose.msra.mxu0 0
  %1883 = vmatprep.subr.bf16.mxu0 0
  %1884 = vmatpush1.bf16.xpose.msra.mxu0 0
  %1885 = vmatprep.mubr.bf16.mxu0 0
  %1886 = vmatmul.mubr.bf16.gmra.mrb[0].mxu0 %v1836
  %v1887 = vpop.f32.mrb[0].mxu0
  %v1888 = vadd.f32 0.0, %v1887
  %v1889 = vpop.f32.mrb[0].mxu0
  %v1890 = vpop.f32.mrb[0].mxu0
  %v1891 = vadd.f32 0.0, %v1890
  %v1892 = vpop.f32.mrb[0].mxu0
  %1893 = vmatprep.mubr.bf16.mxu0 0
  %1894 = vmatmul.mubr.bf16.gmra.mrb[0].mxu0 %v1839
  %v1895 = vpop.f32.mrb[0].mxu0
  %v1896 = vadd.f32 0.0, %v1895
  %v1897 = vpop.f32.mrb[0].mxu0
  %v1898 = vpop.f32.mrb[0].mxu0
  %v1899 = vadd.f32 0.0, %v1898
  %v1900 = vpop.f32.mrb[0].mxu0
  %1901 = vmatprep.mubr.bf16.mxu0 0
  %1902 = vmatmul.mubr.bf16.gmra.mrb[0].mxu0 %v1842
  %v1903 = vpop.f32.mrb[0].mxu0
  %v1904 = vadd.f32 0.0, %v1903
  %v1905 = vpop.f32.mrb[0].mxu0
  %v1906 = vpop.f32.mrb[0].mxu0
  %v1907 = vadd.f32 0.0, %v1906
  %v1908 = vpop.f32.mrb[0].mxu0
  %1909 = vdwg.mxu0
  %v1910 = vsel %vm805, %v1888, -1e+30
  %v1911 = vsel %vm805, %v1891, -1e+30
  %v1912 = vsel %vm805, %v1896, -1e+30
  %v1913 = vsel %vm805, %v1899, -1e+30
  %v1914 = vsel %vm805, %v1904, -1e+30
  %v1915 = vsel %vm805, %v1907, -1e+30
  %v1916 = vsel %vm888, %v1910, -inf
  %1917 = vmax.xlane.f32.xlu0 %v1916
  %v1918 = vpop.xlane.xlu0 %1917
  %v1919 = vsel %vm888, %v1911, -inf
  %1920 = vmax.xlane.f32.xlu0 %v1919
  %v1921 = vpop.xlane.xlu0 %1920
  %v1922 = vsel %vm888, %v1912, -inf
  %1923 = vmax.xlane.f32.xlu0 %v1922
  %v1924 = vpop.xlane.xlu0 %1923
  %v1925 = vsel %vm888, %v1913, -inf
  %1926 = vmax.xlane.f32.xlu0 %v1925
  %v1927 = vpop.xlane.xlu0 %1926
  %v1928 = vsel %vm888, %v1914, -inf
  %1929 = vmax.xlane.f32.xlu0 %v1928
  %v1930 = vpop.xlane.xlu0 %1929
  %v1931 = vsel %vm888, %v1915, -inf
  %1932 = vmax.xlane.f32.xlu0 %v1931
  %v1933 = vpop.xlane.xlu0 %1932
  %v1934 = vsub.f32 %v1910, %v1918
  %v1935 = vsub.f32 %v1911, %v1921
  %v1936 = vsub.f32 %v1912, %v1924
  %v1937 = vsub.f32 %v1913, %v1927
  %v1938 = vsub.f32 %v1914, %v1930
  %v1939 = vsub.f32 %v1915, %v1933
  %v1940 = vmul.f32 %v1934, 1.442695
  %v1941 = vpow.pop %v1940
  %v1942 = vmul.f32 %v1935, 1.442695
  %v1943 = vpow.pop %v1942
  %v1944 = vmul.f32 %v1936, 1.442695
  %v1945 = vpow.pop %v1944
  %v1946 = vmul.f32 %v1937, 1.442695
  %v1947 = vpow.pop %v1946
  %v1948 = vmul.f32 %v1938, 1.442695
  %v1949 = vpow.pop %v1948
  %v1950 = vmul.f32 %v1939, 1.442695
  %v1951 = vpow.pop %v1950
  %v1952 = vsel %vm888, %v1941, 0.0
  %1953 = vadd.xlane.f32.xlu0 %v1952
  %v1954 = vpop.xlane.xlu0 %1953
  %v1955 = vsel %vm888, %v1943, 0.0
  %1956 = vadd.xlane.f32.xlu0 %v1955
  %v1957 = vpop.xlane.xlu0 %1956
  %v1958 = vsel %vm888, %v1945, 0.0
  %1959 = vadd.xlane.f32.xlu0 %v1958
  %v1960 = vpop.xlane.xlu0 %1959
  %v1961 = vsel %vm888, %v1947, 0.0
  %1962 = vadd.xlane.f32.xlu0 %v1961
  %v1963 = vpop.xlane.xlu0 %1962
  %v1964 = vsel %vm888, %v1949, 0.0
  %1965 = vadd.xlane.f32.xlu0 %v1964
  %v1966 = vpop.xlane.xlu0 %1965
  %v1967 = vsel %vm888, %v1951, 0.0
  %1968 = vadd.xlane.f32.xlu0 %v1967
  %v1969 = vpop.xlane.xlu0 %1968
  %v1970 = vmul.f32 %v1954, 9.797959
  %v1971 = vmul.f32 %v1957, 9.797959
  %v1972 = vmul.f32 %v1960, 9.797959
  %v1973 = vmul.f32 %v1963, 9.797959
  %v1974 = vmul.f32 %v1966, 9.797959
  %v1975 = vmul.f32 %v1969, 9.797959
  %v1976 = vrcp.pop %v1970
  %v1977 = vrcp.pop %v1971
  %v1978 = vrcp.pop %v1972
  %v1979 = vrcp.pop %v1973
  %v1980 = vrcp.pop %v1974
  %v1981 = vrcp.pop %v1975
  %v1982 = vmul.f32 %v1941, %v1976
  %v1983 = vmul.f32 %v1943, %v1977
  %v1984 = vmul.f32 %v1945, %v1978
  %v1985 = vmul.f32 %v1947, %v1979
  %v1986 = vmul.f32 %v1949, %v1980
  %v1987 = vmul.f32 %v1951, %v1981
  %v1988 = vpack.c.bf16 %v1983, %v1982
  %v1989 = vpack.c.bf16 %v1985, %v1984
  %v1990 = vpack.c.bf16 %v1987, %v1986
  %1994 = vrot.lane.b32.xlu0 %v1592, 96
  %v1995 = vpop.permute.xlu0 %1994
  %1996 = vrot.lane.b32.xlu0 %v1593, 96
  %v1997 = vpop.permute.xlu0 %1996
  %1998 = vrot.lane.b32.xlu0 %v1594, 96
  %v1999 = vpop.permute.xlu0 %1998
  %v2004 = vsel %vm888, %v1988, 0
  %v2007 = vsel %vm888, %v1989, 0
  %v2010 = vsel %vm888, %v1990, 0
  %2012 = vmatprep.subr.bf16.mxu0 0
  %2013 = vmatpush1.bf16.msra.mxu0 %v1995
  %2014 = vmatprep.subr.bf16.mxu0 0
  %2015 = vmatpush1.bf16.msra.mxu0 %v1997
  %2016 = vmatprep.subr.bf16.mxu0 0
  %2017 = vmatpush1.bf16.msra.mxu0 %v1999
  %2018 = vmatprep.subr.bf16.mxu0 0
  %2019 = vmatpush1.bf16.msra.mxu0 0
  %2020 = vmatprep.subr.bf16.mxu0 0
  %2021 = vmatpush1.bf16.msra.mxu0 0
  %2022 = vmatprep.subr.bf16.mxu0 0
  %2023 = vmatpush1.bf16.msra.mxu0 0
  %2024 = vmatprep.subr.bf16.mxu0 0
  %2025 = vmatpush1.bf16.msra.mxu0 0
  %2026 = vmatprep.subr.bf16.mxu0 0
  %2027 = vmatpush1.bf16.msra.mxu0 0
  %2028 = vmatprep.subr.bf16.mxu0 0
  %2029 = vmatpush1.bf16.msra.mxu0 0
  %2030 = vmatprep.subr.bf16.mxu0 0
  %2031 = vmatpush1.bf16.msra.mxu0 0
  %2032 = vmatprep.subr.bf16.mxu0 0
  %2033 = vmatpush1.bf16.msra.mxu0 0
  %2034 = vmatprep.subr.bf16.mxu0 0
  %2035 = vmatpush1.bf16.msra.mxu0 0
  %2036 = vmatprep.subr.bf16.mxu0 0
  %2037 = vmatpush1.bf16.msra.mxu0 0
  %2038 = vmatprep.subr.bf16.mxu0 0
  %2039 = vmatpush1.bf16.msra.mxu0 0
  %2040 = vmatprep.subr.bf16.mxu0 0
  %2041 = vmatpush1.bf16.msra.mxu0 0
  %2042 = vmatprep.subr.bf16.mxu0 0
  %2043 = vmatpush1.bf16.msra.mxu0 0
  %2044 = vmatprep.mubr.bf16.mxu0 0
  %2045 = vmatmul.mubr.bf16.gmra.mrb[0].mxu0 %v2004
  %v2046 = vpop.f32.mrb[0].mxu0
  %v2047 = vadd.f32 0.0, %v2046
  %v2048 = vpop.f32.mrb[0].mxu0
  %v2049 = vpop.f32.mrb[0].mxu0
  %v2050 = vadd.f32 0.0, %v2049
  %v2051 = vpop.f32.mrb[0].mxu0
  %2052 = vmatprep.mubr.bf16.mxu0 0
  %2053 = vmatmul.mubr.bf16.gmra.mrb[0].mxu0 %v2007
  %v2054 = vpop.f32.mrb[0].mxu0
  %v2055 = vadd.f32 0.0, %v2054
  %v2056 = vpop.f32.mrb[0].mxu0
  %v2057 = vpop.f32.mrb[0].mxu0
  %v2058 = vadd.f32 0.0, %v2057
  %v2059 = vpop.f32.mrb[0].mxu0
  %2060 = vmatprep.mubr.bf16.mxu0 0
  %2061 = vmatmul.mubr.bf16.gmra.mrb[0].mxu0 %v2010
  %v2062 = vpop.f32.mrb[0].mxu0
  %v2063 = vadd.f32 0.0, %v2062
  %v2064 = vpop.f32.mrb[0].mxu0
  %v2065 = vpop.f32.mrb[0].mxu0
  %v2066 = vadd.f32 0.0, %v2065
  %v2067 = vpop.f32.mrb[0].mxu0
  %2068 = vdwg.mxu0
  %2069 = vrot.lane.b32.xlu0 %v1586, 64
  %v2070 = vpop.permute.xlu0 %2069
  %2071 = vrot.lane.b32.xlu0 %v1587, 64
  %v2072 = vpop.permute.xlu0 %2071
  %2073 = vrot.lane.b32.xlu0 %v1588, 64
  %v2074 = vpop.permute.xlu0 %2073
  %2075 = vrot.lane.b32.xlu0 %v1589, 64
  %v2076 = vpop.permute.xlu0 %2075
  %2077 = vrot.lane.b32.xlu0 %v1590, 64
  %v2078 = vpop.permute.xlu0 %2077
  %2079 = vrot.lane.b32.xlu0 %v1591, 64
  %v2080 = vpop.permute.xlu0 %2079
  %v2082 = vsel %vm806, %v2070, 0
  %v2085 = vsel %vm806, %v2072, 0
  %v2088 = vsel %vm806, %v2074, 0
  %v2091 = vsel %vm806, %v2076, 0
  %v2094 = vsel %vm806, %v2078, 0
  %v2097 = vsel %vm806, %v2080, 0
  %2099 = vmatprep.subr.bf16.mxu0 0
  %2100 = vmatpush1.bf16.xpose.msra.mxu0 %v2091
  %2101 = vmatprep.subr.bf16.mxu0 0
  %2102 = vmatpush1.bf16.xpose.msra.mxu0 %v2094
  %2103 = vmatprep.subr.bf16.mxu0 0
  %2104 = vmatpush1.bf16.xpose.msra.mxu0 %v2097
  %2105 = vmatprep.subr.bf16.mxu0 0
  %2106 = vmatpush1.bf16.xpose.msra.mxu0 0
  %2107 = vmatprep.subr.bf16.mxu0 0
  %2108 = vmatpush1.bf16.xpose.msra.mxu0 0
  %2109 = vmatprep.subr.bf16.mxu0 0
  %2110 = vmatpush1.bf16.xpose.msra.mxu0 0
  %2111 = vmatprep.subr.bf16.mxu0 0
  %2112 = vmatpush1.bf16.xpose.msra.mxu0 0
  %2113 = vmatprep.subr.bf16.mxu0 0
  %2114 = vmatpush1.bf16.xpose.msra.mxu0 0
  %2115 = vmatprep.subr.bf16.mxu0 0
  %2116 = vmatpush1.bf16.xpose.msra.mxu0 0
  %2117 = vmatprep.subr.bf16.mxu0 0
  %2118 = vmatpush1.bf16.xpose.msra.mxu0 0
  %2119 = vmatprep.subr.bf16.mxu0 0
  %2120 = vmatpush1.bf16.xpose.msra.mxu0 0
  %2121 = vmatprep.subr.bf16.mxu0 0
  %2122 = vmatpush1.bf16.xpose.msra.mxu0 0
  %2123 = vmatprep.subr.bf16.mxu0 0
  %2124 = vmatpush1.bf16.xpose.msra.mxu0 0
  %2125 = vmatprep.subr.bf16.mxu0 0
  %2126 = vmatpush1.bf16.xpose.msra.mxu0 0
  %2127 = vmatprep.subr.bf16.mxu0 0
  %2128 = vmatpush1.bf16.xpose.msra.mxu0 0
  %2129 = vmatprep.subr.bf16.mxu0 0
  %2130 = vmatpush1.bf16.xpose.msra.mxu0 0
  %2131 = vmatprep.mubr.bf16.mxu0 0
  %2132 = vmatmul.mubr.bf16.gmra.mrb[0].mxu0 %v2082
  %v2133 = vpop.f32.mrb[0].mxu0
  %v2134 = vadd.f32 0.0, %v2133
  %v2135 = vpop.f32.mrb[0].mxu0
  %v2136 = vpop.f32.mrb[0].mxu0
  %v2137 = vadd.f32 0.0, %v2136
  %v2138 = vpop.f32.mrb[0].mxu0
  %2139 = vmatprep.mubr.bf16.mxu0 0
  %2140 = vmatmul.mubr.bf16.gmra.mrb[0].mxu0 %v2085
  %v2141 = vpop.f32.mrb[0].mxu0
  %v2142 = vadd.f32 0.0, %v2141
  %v2143 = vpop.f32.mrb[0].mxu0
  %v2144 = vpop.f32.mrb[0].mxu0
  %v2145 = vadd.f32 0.0, %v2144
  %v2146 = vpop.f32.mrb[0].mxu0
  %2147 = vmatprep.mubr.bf16.mxu0 0
  %2148 = vmatmul.mubr.bf16.gmra.mrb[0].mxu0 %v2088
  %v2149 = vpop.f32.mrb[0].mxu0
  %v2150 = vadd.f32 0.0, %v2149
  %v2151 = vpop.f32.mrb[0].mxu0
  %v2152 = vpop.f32.mrb[0].mxu0
  %v2153 = vadd.f32 0.0, %v2152
  %v2154 = vpop.f32.mrb[0].mxu0
  %2155 = vdwg.mxu0
  %v2156 = vsel %vm805, %v2134, -1e+30
  %v2157 = vsel %vm805, %v2137, -1e+30
  %v2158 = vsel %vm805, %v2142, -1e+30
  %v2159 = vsel %vm805, %v2145, -1e+30
  %v2160 = vsel %vm805, %v2150, -1e+30
  %v2161 = vsel %vm805, %v2153, -1e+30
  %v2162 = vsel %vm888, %v2156, -inf
  %2163 = vmax.xlane.f32.xlu0 %v2162
  %v2164 = vpop.xlane.xlu0 %2163
  %v2165 = vsel %vm888, %v2157, -inf
  %2166 = vmax.xlane.f32.xlu0 %v2165
  %v2167 = vpop.xlane.xlu0 %2166
  %v2168 = vsel %vm888, %v2158, -inf
  %2169 = vmax.xlane.f32.xlu0 %v2168
  %v2170 = vpop.xlane.xlu0 %2169
  %v2171 = vsel %vm888, %v2159, -inf
  %2172 = vmax.xlane.f32.xlu0 %v2171
  %v2173 = vpop.xlane.xlu0 %2172
  %v2174 = vsel %vm888, %v2160, -inf
  %2175 = vmax.xlane.f32.xlu0 %v2174
  %v2176 = vpop.xlane.xlu0 %2175
  %v2177 = vsel %vm888, %v2161, -inf
  %2178 = vmax.xlane.f32.xlu0 %v2177
  %v2179 = vpop.xlane.xlu0 %2178
  %v2180 = vsub.f32 %v2156, %v2164
  %v2181 = vsub.f32 %v2157, %v2167
  %v2182 = vsub.f32 %v2158, %v2170
  %v2183 = vsub.f32 %v2159, %v2173
  %v2184 = vsub.f32 %v2160, %v2176
  %v2185 = vsub.f32 %v2161, %v2179
  %v2186 = vmul.f32 %v2180, 1.442695
  %v2187 = vpow.pop %v2186
  %v2188 = vmul.f32 %v2181, 1.442695
  %v2189 = vpow.pop %v2188
  %v2190 = vmul.f32 %v2182, 1.442695
  %v2191 = vpow.pop %v2190
  %v2192 = vmul.f32 %v2183, 1.442695
  %v2193 = vpow.pop %v2192
  %v2194 = vmul.f32 %v2184, 1.442695
  %v2195 = vpow.pop %v2194
  %v2196 = vmul.f32 %v2185, 1.442695
  %v2197 = vpow.pop %v2196
  %v2198 = vsel %vm888, %v2187, 0.0
  %2199 = vadd.xlane.f32.xlu0 %v2198
  %v2200 = vpop.xlane.xlu0 %2199
  %v2201 = vsel %vm888, %v2189, 0.0
  %2202 = vadd.xlane.f32.xlu0 %v2201
  %v2203 = vpop.xlane.xlu0 %2202
  %v2204 = vsel %vm888, %v2191, 0.0
  %2205 = vadd.xlane.f32.xlu0 %v2204
  %v2206 = vpop.xlane.xlu0 %2205
  %v2207 = vsel %vm888, %v2193, 0.0
  %2208 = vadd.xlane.f32.xlu0 %v2207
  %v2209 = vpop.xlane.xlu0 %2208
  %v2210 = vsel %vm888, %v2195, 0.0
  %2211 = vadd.xlane.f32.xlu0 %v2210
  %v2212 = vpop.xlane.xlu0 %2211
  %v2213 = vsel %vm888, %v2197, 0.0
  %2214 = vadd.xlane.f32.xlu0 %v2213
  %v2215 = vpop.xlane.xlu0 %2214
  %v2216 = vmul.f32 %v2200, 9.797959
  %v2217 = vmul.f32 %v2203, 9.797959
  %v2218 = vmul.f32 %v2206, 9.797959
  %v2219 = vmul.f32 %v2209, 9.797959
  %v2220 = vmul.f32 %v2212, 9.797959
  %v2221 = vmul.f32 %v2215, 9.797959
  %v2222 = vrcp.pop %v2216
  %v2223 = vrcp.pop %v2217
  %v2224 = vrcp.pop %v2218
  %v2225 = vrcp.pop %v2219
  %v2226 = vrcp.pop %v2220
  %v2227 = vrcp.pop %v2221
  %v2228 = vmul.f32 %v2187, %v2222
  %v2229 = vmul.f32 %v2189, %v2223
  %v2230 = vmul.f32 %v2191, %v2224
  %v2231 = vmul.f32 %v2193, %v2225
  %v2232 = vmul.f32 %v2195, %v2226
  %v2233 = vmul.f32 %v2197, %v2227
  %v2234 = vpack.c.bf16 %v2229, %v2228
  %v2235 = vpack.c.bf16 %v2231, %v2230
  %v2236 = vpack.c.bf16 %v2233, %v2232
  %2237 = vrot.lane.b32.xlu0 %v1592, 64
  %v2238 = vpop.permute.xlu0 %2237
  %2239 = vrot.lane.b32.xlu0 %v1593, 64
  %v2240 = vpop.permute.xlu0 %2239
  %2241 = vrot.lane.b32.xlu0 %v1594, 64
  %v2242 = vpop.permute.xlu0 %2241
  %v2247 = vsel %vm888, %v2234, 0
  %v2250 = vsel %vm888, %v2235, 0
  %v2253 = vsel %vm888, %v2236, 0
  %2255 = vmatprep.subr.bf16.mxu0 0
  %2256 = vmatpush1.bf16.msra.mxu0 %v2238
  %2257 = vmatprep.subr.bf16.mxu0 0
  %2258 = vmatpush1.bf16.msra.mxu0 %v2240
  %2259 = vmatprep.subr.bf16.mxu0 0
  %2260 = vmatpush1.bf16.msra.mxu0 %v2242
  %2261 = vmatprep.subr.bf16.mxu0 0
  %2262 = vmatpush1.bf16.msra.mxu0 0
  %2263 = vmatprep.subr.bf16.mxu0 0
  %2264 = vmatpush1.bf16.msra.mxu0 0
  %2265 = vmatprep.subr.bf16.mxu0 0
  %2266 = vmatpush1.bf16.msra.mxu0 0
  %2267 = vmatprep.subr.bf16.mxu0 0
  %2268 = vmatpush1.bf16.msra.mxu0 0
  %2269 = vmatprep.subr.bf16.mxu0 0
  %2270 = vmatpush1.bf16.msra.mxu0 0
  %2271 = vmatprep.subr.bf16.mxu0 0
  %2272 = vmatpush1.bf16.msra.mxu0 0
  %2273 = vmatprep.subr.bf16.mxu0 0
  %2274 = vmatpush1.bf16.msra.mxu0 0
  %2275 = vmatprep.subr.bf16.mxu0 0
  %2276 = vmatpush1.bf16.msra.mxu0 0
  %2277 = vmatprep.subr.bf16.mxu0 0
  %2278 = vmatpush1.bf16.msra.mxu0 0
  %2279 = vmatprep.subr.bf16.mxu0 0
  %2280 = vmatpush1.bf16.msra.mxu0 0
  %2281 = vmatprep.subr.bf16.mxu0 0
  %2282 = vmatpush1.bf16.msra.mxu0 0
  %2283 = vmatprep.subr.bf16.mxu0 0
  %2284 = vmatpush1.bf16.msra.mxu0 0
  %2285 = vmatprep.subr.bf16.mxu0 0
  %2286 = vmatpush1.bf16.msra.mxu0 0
  %2287 = vmatprep.mubr.bf16.mxu0 0
  %2288 = vmatmul.mubr.bf16.gmra.mrb[0].mxu0 %v2247
  %v2289 = vpop.f32.mrb[0].mxu0
  %v2290 = vadd.f32 0.0, %v2289
  %v2291 = vpop.f32.mrb[0].mxu0
  %v2292 = vpop.f32.mrb[0].mxu0
  %v2293 = vadd.f32 0.0, %v2292
  %v2294 = vpop.f32.mrb[0].mxu0
  %2295 = vmatprep.mubr.bf16.mxu0 0
  %2296 = vmatmul.mubr.bf16.gmra.mrb[0].mxu0 %v2250
  %v2297 = vpop.f32.mrb[0].mxu0
  %v2298 = vadd.f32 0.0, %v2297
  %v2299 = vpop.f32.mrb[0].mxu0
  %v2300 = vpop.f32.mrb[0].mxu0
  %v2301 = vadd.f32 0.0, %v2300
  %v2302 = vpop.f32.mrb[0].mxu0
  %2303 = vmatprep.mubr.bf16.mxu0 0
  %2304 = vmatmul.mubr.bf16.gmra.mrb[0].mxu0 %v2253
  %v2305 = vpop.f32.mrb[0].mxu0
  %v2306 = vadd.f32 0.0, %v2305
  %v2307 = vpop.f32.mrb[0].mxu0
  %v2308 = vpop.f32.mrb[0].mxu0
  %v2309 = vadd.f32 0.0, %v2308
  %v2310 = vpop.f32.mrb[0].mxu0
  %2311 = vdwg.mxu0
  %2318 = vrot.lane.b32.xlu0 %v2047, 32
  %v2319 = vpop.permute.xlu0 %2318
  %2320 = vrot.lane.b32.xlu0 %v2050, 32
  %v2321 = vpop.permute.xlu0 %2320
  %2322 = vrot.lane.b32.xlu0 %v2055, 32
  %v2323 = vpop.permute.xlu0 %2322
  %2324 = vrot.lane.b32.xlu0 %v2058, 32
  %v2325 = vpop.permute.xlu0 %2324
  %2326 = vrot.lane.b32.xlu0 %v2063, 32
  %v2327 = vpop.permute.xlu0 %2326
  %2328 = vrot.lane.b32.xlu0 %v2066, 32
  %v2329 = vpop.permute.xlu0 %2328
  %2342 = vrot.lane.b32.xlu0 %v2290, 64
  %v2343 = vpop.permute.xlu0 %2342
  %2344 = vrot.lane.b32.xlu0 %v2293, 64
  %v2345 = vpop.permute.xlu0 %2344
  %2346 = vrot.lane.b32.xlu0 %v2298, 64
  %v2347 = vpop.permute.xlu0 %2346
  %2348 = vrot.lane.b32.xlu0 %v2301, 64
  %v2349 = vpop.permute.xlu0 %2348
  %2350 = vrot.lane.b32.xlu0 %v2306, 64
  %v2351 = vpop.permute.xlu0 %2350
  %2352 = vrot.lane.b32.xlu0 %v2309, 64
  %v2353 = vpop.permute.xlu0 %2352
  %v2360 = vsel %vm806, %v1795, %v2319
  %v2361 = vsel %vm806, %v1798, %v2321
  %v2362 = vsel %vm806, %v1803, %v2323
  %v2363 = vsel %vm806, %v1806, %v2325
  %v2364 = vsel %vm806, %v1811, %v2327
  %v2365 = vsel %vm806, %v1814, %v2329
  %v2366 = vsel %vm1579, %v2360, %v2343
  %v2367 = vsel %vm1579, %v2361, %v2345
  %v2368 = vsel %vm1579, %v2362, %v2347
  %v2369 = vsel %vm1579, %v2363, %v2349
  %v2370 = vsel %vm1579, %v2364, %v2351
  %v2371 = vsel %vm1579, %v2365, %v2353
  %v2372 = vpack.c.bf16 %v1581, %v1580
  %v2373 = vpack.c.bf16 %v1583, %v1582
  %v2374 = vpack.c.bf16 %v1585, %v1584
  %v2375 = vpack.c.bf16 %v2367, %v2366
  %v2376 = vpack.c.bf16 %v2369, %v2368
  %v2377 = vpack.c.bf16 %v2371, %v2370
  %v2390 = vunpack.c.l.b16 %v154
  %v2391 = vunpack.c.l.b16 %v155
  %v2392 = vunpack.c.l.b16 %v156
  %v2393 = vunpack.c.l.b16 %v157
  %v2394 = vunpack.c.l.b16 %v158
  %v2395 = vunpack.c.l.b16 %v159
  %v2396 = vunpack.c.l.b16 %v160
  %v2397 = vunpack.c.l.b16 %v161
  %v2398 = vunpack.c.l.b16 %v162
  %v2399 = vunpack.c.l.b16 %v163
  %v2400 = vunpack.c.l.b16 %v164
  %v2401 = vunpack.c.l.b16 %v165
  %v2402 = vpack.c.b16 %v2391, %v2390
  %v2403 = vpack.c.b16 %v2393, %v2392
  %v2404 = vpack.c.b16 %v2395, %v2394
  %v2405 = vpack.c.b16 %v2397, %v2396
  %v2406 = vpack.c.b16 %v2399, %v2398
  %v2407 = vpack.c.b16 %v2401, %v2400
  %v2415 = vsel %vm207, %v2372, 0
  %v2418 = vsel %vm207, %v2373, 0
  %v2421 = vsel %vm207, %v2374, 0
  %v2424 = vsel %vm207, %v2375, 0
  %v2427 = vsel %vm207, %v2376, 0
  %v2430 = vsel %vm207, %v2377, 0
  %2432 = vmatprep.subr.bf16.mxu0 0
  %2433 = vmatpush1.bf16.msra.mxu0 %v2402
  %2434 = vmatprep.subr.bf16.mxu0 0
  %2435 = vmatpush1.bf16.msra.mxu0 %v2403
  %2436 = vmatprep.subr.bf16.mxu0 0
  %2437 = vmatpush1.bf16.msra.mxu0 %v2404
  %2438 = vmatprep.subr.bf16.mxu0 0
  %2439 = vmatpush1.bf16.msra.mxu0 %v2405
  %2440 = vmatprep.subr.bf16.mxu0 0
  %2441 = vmatpush1.bf16.msra.mxu0 %v2406
  %2442 = vmatprep.subr.bf16.mxu0 0
  %2443 = vmatpush1.bf16.msra.mxu0 %v2407
  %2444 = vmatprep.subr.bf16.mxu0 0
  %2445 = vmatpush1.bf16.msra.mxu0 0
  %2446 = vmatprep.subr.bf16.mxu0 0
  %2447 = vmatpush1.bf16.msra.mxu0 0
  %2448 = vmatprep.subr.bf16.mxu0 0
  %2449 = vmatpush1.bf16.msra.mxu0 0
  %2450 = vmatprep.subr.bf16.mxu0 0
  %2451 = vmatpush1.bf16.msra.mxu0 0
  %2452 = vmatprep.subr.bf16.mxu0 0
  %2453 = vmatpush1.bf16.msra.mxu0 0
  %2454 = vmatprep.subr.bf16.mxu0 0
  %2455 = vmatpush1.bf16.msra.mxu0 0
  %2456 = vmatprep.subr.bf16.mxu0 0
  %2457 = vmatpush1.bf16.msra.mxu0 0
  %2458 = vmatprep.subr.bf16.mxu0 0
  %2459 = vmatpush1.bf16.msra.mxu0 0
  %2460 = vmatprep.subr.bf16.mxu0 0
  %2461 = vmatpush1.bf16.msra.mxu0 0
  %2462 = vmatprep.subr.bf16.mxu0 0
  %2463 = vmatpush1.bf16.msra.mxu0 0
  %2464 = vmatprep.mubr.bf16.mxu0 0
  %2465 = vmatmul.mubr.bf16.gmra.mrb[0].mxu0 %v2415
  %v2466 = vpop.f32.mrb[0].mxu0
  %v2467 = vadd.f32 0.0, %v2466
  %v2468 = vpop.f32.mrb[0].mxu0
  %v2469 = vpop.f32.mrb[0].mxu0
  %v2470 = vadd.f32 0.0, %v2469
  %v2471 = vpop.f32.mrb[0].mxu0
  %2472 = vmatprep.mubr.bf16.mxu0 0
  %2473 = vmatmul.mubr.bf16.gmra.mrb[0].mxu0 %v2418
  %v2474 = vpop.f32.mrb[0].mxu0
  %v2475 = vadd.f32 0.0, %v2474
  %v2476 = vpop.f32.mrb[0].mxu0
  %v2477 = vpop.f32.mrb[0].mxu0
  %v2478 = vadd.f32 0.0, %v2477
  %v2479 = vpop.f32.mrb[0].mxu0
  %2480 = vmatprep.mubr.bf16.mxu0 0
  %2481 = vmatmul.mubr.bf16.gmra.mrb[0].mxu0 %v2421
  %v2482 = vpop.f32.mrb[0].mxu0
  %v2483 = vadd.f32 0.0, %v2482
  %v2484 = vpop.f32.mrb[0].mxu0
  %v2485 = vpop.f32.mrb[0].mxu0
  %v2486 = vadd.f32 0.0, %v2485
  %v2487 = vpop.f32.mrb[0].mxu0
  %2488 = vmatprep.mubr.bf16.mxu0 0
  %2489 = vmatmul.mubr.bf16.gmra.mrb[0].mxu0 %v2424
  %v2490 = vpop.f32.mrb[0].mxu0
  %v2491 = vadd.f32 0.0, %v2490
  %v2492 = vpop.f32.mrb[0].mxu0
  %v2493 = vpop.f32.mrb[0].mxu0
  %v2494 = vadd.f32 0.0, %v2493
  %v2495 = vpop.f32.mrb[0].mxu0
  %2496 = vmatprep.mubr.bf16.mxu0 0
  %2497 = vmatmul.mubr.bf16.gmra.mrb[0].mxu0 %v2427
  %v2498 = vpop.f32.mrb[0].mxu0
  %v2499 = vadd.f32 0.0, %v2498
  %v2500 = vpop.f32.mrb[0].mxu0
  %v2501 = vpop.f32.mrb[0].mxu0
  %v2502 = vadd.f32 0.0, %v2501
  %v2503 = vpop.f32.mrb[0].mxu0
  %2504 = vmatprep.mubr.bf16.mxu0 0
  %2505 = vmatmul.mubr.bf16.gmra.mrb[0].mxu0 %v2430
  %v2506 = vpop.f32.mrb[0].mxu0
  %v2507 = vadd.f32 0.0, %v2506
  %v2508 = vpop.f32.mrb[0].mxu0
  %v2509 = vpop.f32.mrb[0].mxu0
  %v2510 = vadd.f32 0.0, %v2509
  %v2511 = vpop.f32.mrb[0].mxu0
  %2512 = vdwg.mxu0
  %v2513 = vadd.f32 %v101, %v2467
  %v2514 = vadd.f32 %v102, %v2470
  %v2515 = vadd.f32 %v103, %v2475
  %v2516 = vadd.f32 %v104, %v2478
  %v2517 = vadd.f32 %v105, %v2483
  %v2518 = vadd.f32 %v106, %v2486
  %v2519 = vadd.f32 %v107, %v2491
  %v2520 = vadd.f32 %v108, %v2494
  %v2521 = vadd.f32 %v109, %v2499
  %v2522 = vadd.f32 %v110, %v2502
  %v2523 = vadd.f32 %v111, %v2507
  %v2524 = vadd.f32 %v112, %v2510
  %v2526 = vlaneseq
  %v2527 = vshrl.u32 %v2526, 7
  %v2528 = vsub.s32 0, %v2527
  %v2529 = vrot.slane %v166, %v2528
  %v2531 = vadd.f32 %v2513, %v2529
  %v2532 = vadd.f32 %v2514, %v2529
  %v2533 = vadd.f32 %v2515, %v2529
  %v2534 = vadd.f32 %v2516, %v2529
  %v2535 = vadd.f32 %v2517, %v2529
  %v2536 = vadd.f32 %v2518, %v2529
  %v2537 = vadd.f32 %v2519, %v2529
  %v2538 = vadd.f32 %v2520, %v2529
  %v2539 = vadd.f32 %v2521, %v2529
  %v2540 = vadd.f32 %v2522, %v2529
  %v2541 = vadd.f32 %v2523, %v2529
  %v2542 = vadd.f32 %v2524, %v2529
  %v2543 = vsel %vm207, %v2531, 0.0
  %2544 = vadd.xlane.f32.xlu0 %v2543
  %v2545 = vpop.xlane.xlu0 %2544
  %v2546 = vsel %vm207, %v2532, 0.0
  %2547 = vadd.xlane.f32.xlu0 %v2546
  %v2548 = vpop.xlane.xlu0 %2547
  %v2549 = vsel %vm207, %v2533, 0.0
  %2550 = vadd.xlane.f32.xlu0 %v2549
  %v2551 = vpop.xlane.xlu0 %2550
  %v2552 = vsel %vm207, %v2534, 0.0
  %2553 = vadd.xlane.f32.xlu0 %v2552
  %v2554 = vpop.xlane.xlu0 %2553
  %v2555 = vsel %vm207, %v2535, 0.0
  %2556 = vadd.xlane.f32.xlu0 %v2555
  %v2557 = vpop.xlane.xlu0 %2556
  %v2558 = vsel %vm207, %v2536, 0.0
  %2559 = vadd.xlane.f32.xlu0 %v2558
  %v2560 = vpop.xlane.xlu0 %2559
  %v2561 = vsel %vm207, %v2537, 0.0
  %2562 = vadd.xlane.f32.xlu0 %v2561
  %v2563 = vpop.xlane.xlu0 %2562
  %v2564 = vsel %vm207, %v2538, 0.0
  %2565 = vadd.xlane.f32.xlu0 %v2564
  %v2566 = vpop.xlane.xlu0 %2565
  %v2567 = vsel %vm207, %v2539, 0.0
  %2568 = vadd.xlane.f32.xlu0 %v2567
  %v2569 = vpop.xlane.xlu0 %2568
  %v2570 = vsel %vm207, %v2540, 0.0
  %2571 = vadd.xlane.f32.xlu0 %v2570
  %v2572 = vpop.xlane.xlu0 %2571
  %v2573 = vsel %vm207, %v2541, 0.0
  %2574 = vadd.xlane.f32.xlu0 %v2573
  %v2575 = vpop.xlane.xlu0 %2574
  %v2576 = vsel %vm207, %v2542, 0.0
  %2577 = vadd.xlane.f32.xlu0 %v2576
  %v2578 = vpop.xlane.xlu0 %2577
  %v2579 = vmul.f32 %v2545, %v244
  %v2580 = vmul.f32 %v2548, %v244
  %v2581 = vmul.f32 %v2551, %v244
  %v2582 = vmul.f32 %v2554, %v244
  %v2583 = vmul.f32 %v2557, %v244
  %v2584 = vmul.f32 %v2560, %v244
  %v2585 = vmul.f32 %v2563, %v244
  %v2586 = vmul.f32 %v2566, %v244
  %v2587 = vmul.f32 %v2569, %v244
  %v2588 = vmul.f32 %v2572, %v244
  %v2589 = vmul.f32 %v2575, %v244
  %v2590 = vmul.f32 %v2578, %v244
  %v2591 = vsub.f32 %v2531, %v2579
  %v2592 = vsub.f32 %v2532, %v2580
  %v2593 = vsub.f32 %v2533, %v2581
  %v2594 = vsub.f32 %v2534, %v2582
  %v2595 = vsub.f32 %v2535, %v2583
  %v2596 = vsub.f32 %v2536, %v2584
  %v2597 = vsub.f32 %v2537, %v2585
  %v2598 = vsub.f32 %v2538, %v2586
  %v2599 = vsub.f32 %v2539, %v2587
  %v2600 = vsub.f32 %v2540, %v2588
  %v2601 = vsub.f32 %v2541, %v2589
  %v2602 = vsub.f32 %v2542, %v2590
  %v2603 = vmul.f32 %v2591, %v2591
  %v2604 = vmul.f32 %v2592, %v2592
  %v2605 = vmul.f32 %v2593, %v2593
  %v2606 = vmul.f32 %v2594, %v2594
  %v2607 = vmul.f32 %v2595, %v2595
  %v2608 = vmul.f32 %v2596, %v2596
  %v2609 = vmul.f32 %v2597, %v2597
  %v2610 = vmul.f32 %v2598, %v2598
  %v2611 = vmul.f32 %v2599, %v2599
  %v2612 = vmul.f32 %v2600, %v2600
  %v2613 = vmul.f32 %v2601, %v2601
  %v2614 = vmul.f32 %v2602, %v2602
  %v2615 = vsel %vm207, %v2603, 0.0
  %2616 = vadd.xlane.f32.xlu0 %v2615
  %v2617 = vpop.xlane.xlu0 %2616
  %v2618 = vsel %vm207, %v2604, 0.0
  %2619 = vadd.xlane.f32.xlu0 %v2618
  %v2620 = vpop.xlane.xlu0 %2619
  %v2621 = vsel %vm207, %v2605, 0.0
  %2622 = vadd.xlane.f32.xlu0 %v2621
  %v2623 = vpop.xlane.xlu0 %2622
  %v2624 = vsel %vm207, %v2606, 0.0
  %2625 = vadd.xlane.f32.xlu0 %v2624
  %v2626 = vpop.xlane.xlu0 %2625
  %v2627 = vsel %vm207, %v2607, 0.0
  %2628 = vadd.xlane.f32.xlu0 %v2627
  %v2629 = vpop.xlane.xlu0 %2628
  %v2630 = vsel %vm207, %v2608, 0.0
  %2631 = vadd.xlane.f32.xlu0 %v2630
  %v2632 = vpop.xlane.xlu0 %2631
  %v2633 = vsel %vm207, %v2609, 0.0
  %2634 = vadd.xlane.f32.xlu0 %v2633
  %v2635 = vpop.xlane.xlu0 %2634
  %v2636 = vsel %vm207, %v2610, 0.0
  %2637 = vadd.xlane.f32.xlu0 %v2636
  %v2638 = vpop.xlane.xlu0 %2637
  %v2639 = vsel %vm207, %v2611, 0.0
  %2640 = vadd.xlane.f32.xlu0 %v2639
  %v2641 = vpop.xlane.xlu0 %2640
  %v2642 = vsel %vm207, %v2612, 0.0
  %2643 = vadd.xlane.f32.xlu0 %v2642
  %v2644 = vpop.xlane.xlu0 %2643
  %v2645 = vsel %vm207, %v2613, 0.0
  %2646 = vadd.xlane.f32.xlu0 %v2645
  %v2647 = vpop.xlane.xlu0 %2646
  %v2648 = vsel %vm207, %v2614, 0.0
  %2649 = vadd.xlane.f32.xlu0 %v2648
  %v2650 = vpop.xlane.xlu0 %2649
  %v2651 = vmul.f32 %v2617, %v244
  %v2652 = vmul.f32 %v2620, %v244
  %v2653 = vmul.f32 %v2623, %v244
  %v2654 = vmul.f32 %v2626, %v244
  %v2655 = vmul.f32 %v2629, %v244
  %v2656 = vmul.f32 %v2632, %v244
  %v2657 = vmul.f32 %v2635, %v244
  %v2658 = vmul.f32 %v2638, %v244
  %v2659 = vmul.f32 %v2641, %v244
  %v2660 = vmul.f32 %v2644, %v244
  %v2661 = vmul.f32 %v2647, %v244
  %v2662 = vmul.f32 %v2650, %v244
  %v2663 = vadd.f32 %v2651, 1e-05
  %v2664 = vadd.f32 %v2652, 1e-05
  %v2665 = vadd.f32 %v2653, 1e-05
  %v2666 = vadd.f32 %v2654, 1e-05
  %v2667 = vadd.f32 %v2655, 1e-05
  %v2668 = vadd.f32 %v2656, 1e-05
  %v2669 = vadd.f32 %v2657, 1e-05
  %v2670 = vadd.f32 %v2658, 1e-05
  %v2671 = vadd.f32 %v2659, 1e-05
  %v2672 = vadd.f32 %v2660, 1e-05
  %v2673 = vadd.f32 %v2661, 1e-05
  %v2674 = vadd.f32 %v2662, 1e-05
  %v2675 = vrsqrt.pop %v2663
  %v2676 = vrsqrt.pop %v2664
  %v2677 = vrsqrt.pop %v2665
  %v2678 = vrsqrt.pop %v2666
  %v2679 = vrsqrt.pop %v2667
  %v2680 = vrsqrt.pop %v2668
  %v2681 = vrsqrt.pop %v2669
  %v2682 = vrsqrt.pop %v2670
  %v2683 = vrsqrt.pop %v2671
  %v2684 = vrsqrt.pop %v2672
  %v2685 = vrsqrt.pop %v2673
  %v2686 = vrsqrt.pop %v2674
  %v2687 = vmul.f32 %v2591, %v2675
  %v2688 = vmul.f32 %v2592, %v2676
  %v2689 = vmul.f32 %v2593, %v2677
  %v2690 = vmul.f32 %v2594, %v2678
  %v2691 = vmul.f32 %v2595, %v2679
  %v2692 = vmul.f32 %v2596, %v2680
  %v2693 = vmul.f32 %v2597, %v2681
  %v2694 = vmul.f32 %v2598, %v2682
  %v2695 = vmul.f32 %v2599, %v2683
  %v2696 = vmul.f32 %v2600, %v2684
  %v2697 = vmul.f32 %v2601, %v2685
  %v2698 = vmul.f32 %v2602, %v2686
  %v2700 = vlaneseq
  %v2701 = vshrl.u32 %v2700, 7
  %v2702 = vsub.s32 0, %v2701
  %v2703 = vrot.slane %v167, %v2702
  %v2705 = vmul.f32 %v2687, %v2703
  %v2706 = vmul.f32 %v2688, %v2703
  %v2707 = vmul.f32 %v2689, %v2703
  %v2708 = vmul.f32 %v2690, %v2703
  %v2709 = vmul.f32 %v2691, %v2703
  %v2710 = vmul.f32 %v2692, %v2703
  %v2711 = vmul.f32 %v2693, %v2703
  %v2712 = vmul.f32 %v2694, %v2703
  %v2713 = vmul.f32 %v2695, %v2703
  %v2714 = vmul.f32 %v2696, %v2703
  %v2715 = vmul.f32 %v2697, %v2703
  %v2716 = vmul.f32 %v2698, %v2703
  %v2718 = vlaneseq
  %v2719 = vshrl.u32 %v2718, 7
  %v2720 = vsub.s32 0, %v2719
  %v2721 = vrot.slane %v168, %v2720
  %v2723 = vadd.f32 %v2705, %v2721
  %v2724 = vadd.f32 %v2706, %v2721
  %v2725 = vadd.f32 %v2707, %v2721
  %v2726 = vadd.f32 %v2708, %v2721
  %v2727 = vadd.f32 %v2709, %v2721
  %v2728 = vadd.f32 %v2710, %v2721
  %v2729 = vadd.f32 %v2711, %v2721
  %v2730 = vadd.f32 %v2712, %v2721
  %v2731 = vadd.f32 %v2713, %v2721
  %v2732 = vadd.f32 %v2714, %v2721
  %v2733 = vadd.f32 %v2715, %v2721
  %v2734 = vadd.f32 %v2716, %v2721
  %v2735 = vpack.c.bf16 %v2724, %v2723
  %v2736 = vpack.c.bf16 %v2726, %v2725
  %v2737 = vpack.c.bf16 %v2728, %v2727
  %v2738 = vpack.c.bf16 %v2730, %v2729
  %v2739 = vpack.c.bf16 %v2732, %v2731
  %v2740 = vpack.c.bf16 %v2734, %v2733
  %v2742 = vlaneseq
  %v2743 = vshrl.u32 %v2742, 7
  %v2744 = vsub.s32 0, %v2743
  %v2745 = vrot.slane %v181, %v2744
  %v2746 = vlaneseq
  %v2747 = vshrl.u32 %v2746, 7
  %v2748 = vsub.s32 1, %v2747
  %v2749 = vrot.slane %v181, %v2748
  %v2764 = vunpack.c.l.b16 %v169
  %v2765 = vunpack.c.h.b16 %v169
  %v2766 = vunpack.c.l.b16 %v170
  %v2767 = vunpack.c.h.b16 %v170
  %v2768 = vunpack.c.l.b16 %v171
  %v2769 = vunpack.c.h.b16 %v171
  %v2770 = vunpack.c.l.b16 %v172
  %v2771 = vunpack.c.h.b16 %v172
  %v2772 = vunpack.c.l.b16 %v173
  %v2773 = vunpack.c.h.b16 %v173
  %v2774 = vunpack.c.l.b16 %v174
  %v2775 = vunpack.c.h.b16 %v174
  %v2776 = vunpack.c.l.b16 %v175
  %v2777 = vunpack.c.h.b16 %v175
  %v2778 = vunpack.c.l.b16 %v176
  %v2779 = vunpack.c.h.b16 %v176
  %v2780 = vunpack.c.l.b16 %v177
  %v2781 = vunpack.c.h.b16 %v177
  %v2782 = vunpack.c.l.b16 %v178
  %v2783 = vunpack.c.h.b16 %v178
  %v2784 = vunpack.c.l.b16 %v179
  %v2785 = vunpack.c.h.b16 %v179
  %v2786 = vunpack.c.l.b16 %v180
  %v2787 = vunpack.c.h.b16 %v180
  %v2788 = vpack.c.b16 %v2766, %v2764
  %v2789 = vpack.c.b16 %v2767, %v2765
  %v2790 = vpack.c.b16 %v2770, %v2768
  %v2791 = vpack.c.b16 %v2771, %v2769
  %v2792 = vpack.c.b16 %v2774, %v2772
  %v2793 = vpack.c.b16 %v2775, %v2773
  %v2794 = vpack.c.b16 %v2778, %v2776
  %v2795 = vpack.c.b16 %v2779, %v2777
  %v2796 = vpack.c.b16 %v2782, %v2780
  %v2797 = vpack.c.b16 %v2783, %v2781
  %v2798 = vpack.c.b16 %v2786, %v2784
  %v2799 = vpack.c.b16 %v2787, %v2785
  %v2813 = vsel %vm207, %v2735, 0
  %v2816 = vsel %vm207, %v2736, 0
  %v2819 = vsel %vm207, %v2737, 0
  %v2822 = vsel %vm207, %v2738, 0
  %v2825 = vsel %vm207, %v2739, 0
  %v2828 = vsel %vm207, %v2740, 0
  %2830 = vmatprep.subr.bf16.mxu0 %v2789
  %2831 = vmatpush1.bf16.msra.mxu0 %v2788
  %2832 = vmatprep.subr.bf16.mxu0 %v2791
  %2833 = vmatpush1.bf16.msra.mxu0 %v2790
  %2834 = vmatprep.subr.bf16.mxu0 %v2793
  %2835 = vmatpush1.bf16.msra.mxu0 %v2792
  %2836 = vmatprep.subr.bf16.mxu0 %v2795
  %2837 = vmatpush1.bf16.msra.mxu0 %v2794
  %2838 = vmatprep.subr.bf16.mxu0 %v2797
  %2839 = vmatpush1.bf16.msra.mxu0 %v2796
  %2840 = vmatprep.subr.bf16.mxu0 %v2799
  %2841 = vmatpush1.bf16.msra.mxu0 %v2798
  %2842 = vmatprep.subr.bf16.mxu0 0
  %2843 = vmatpush1.bf16.msra.mxu0 0
  %2844 = vmatprep.subr.bf16.mxu0 0
  %2845 = vmatpush1.bf16.msra.mxu0 0
  %2846 = vmatprep.subr.bf16.mxu0 0
  %2847 = vmatpush1.bf16.msra.mxu0 0
  %2848 = vmatprep.subr.bf16.mxu0 0
  %2849 = vmatpush1.bf16.msra.mxu0 0
  %2850 = vmatprep.subr.bf16.mxu0 0
  %2851 = vmatpush1.bf16.msra.mxu0 0
  %2852 = vmatprep.subr.bf16.mxu0 0
  %2853 = vmatpush1.bf16.msra.mxu0 0
  %2854 = vmatprep.subr.bf16.mxu0 0
  %2855 = vmatpush1.bf16.msra.mxu0 0
  %2856 = vmatprep.subr.bf16.mxu0 0
  %2857 = vmatpush1.bf16.msra.mxu0 0
  %2858 = vmatprep.subr.bf16.mxu0 0
  %2859 = vmatpush1.bf16.msra.mxu0 0
  %2860 = vmatprep.subr.bf16.mxu0 0
  %2861 = vmatpush1.bf16.msra.mxu0 0
  %2862 = vmatprep.mubr.bf16.mxu0 0
  %2863 = vmatmul.mubr.bf16.gmra.mrb[0].mxu0 %v2813
  %v2864 = vpop.f32.mrb[0].mxu0
  %v2865 = vadd.f32 %v2745, %v2864
  %v2866 = vpop.f32.mrb[0].mxu0
  %v2867 = vadd.f32 %v2749, %v2866
  %v2868 = vpop.f32.mrb[0].mxu0
  %v2869 = vadd.f32 %v2745, %v2868
  %v2870 = vpop.f32.mrb[0].mxu0
  %v2871 = vadd.f32 %v2749, %v2870
  %2872 = vmatprep.mubr.bf16.mxu0 0
  %2873 = vmatmul.mubr.bf16.gmra.mrb[0].mxu0 %v2816
  %v2874 = vpop.f32.mrb[0].mxu0
  %v2875 = vadd.f32 %v2745, %v2874
  %v2876 = vpop.f32.mrb[0].mxu0
  %v2877 = vadd.f32 %v2749, %v2876
  %v2878 = vpop.f32.mrb[0].mxu0
  %v2879 = vadd.f32 %v2745, %v2878
  %v2880 = vpop.f32.mrb[0].mxu0
  %v2881 = vadd.f32 %v2749, %v2880
  %2882 = vmatprep.mubr.bf16.mxu0 0
  %2883 = vmatmul.mubr.bf16.gmra.mrb[0].mxu0 %v2819
  %v2884 = vpop.f32.mrb[0].mxu0
  %v2885 = vadd.f32 %v2745, %v2884
  %v2886 = vpop.f32.mrb[0].mxu0
  %v2887 = vadd.f32 %v2749, %v2886
  %v2888 = vpop.f32.mrb[0].mxu0
  %v2889 = vadd.f32 %v2745, %v2888
  %v2890 = vpop.f32.mrb[0].mxu0
  %v2891 = vadd.f32 %v2749, %v2890
  %2892 = vmatprep.mubr.bf16.mxu0 0
  %2893 = vmatmul.mubr.bf16.gmra.mrb[0].mxu0 %v2822
  %v2894 = vpop.f32.mrb[0].mxu0
  %v2895 = vadd.f32 %v2745, %v2894
  %v2896 = vpop.f32.mrb[0].mxu0
  %v2897 = vadd.f32 %v2749, %v2896
  %v2898 = vpop.f32.mrb[0].mxu0
  %v2899 = vadd.f32 %v2745, %v2898
  %v2900 = vpop.f32.mrb[0].mxu0
  %v2901 = vadd.f32 %v2749, %v2900
  %2902 = vmatprep.mubr.bf16.mxu0 0
  %2903 = vmatmul.mubr.bf16.gmra.mrb[0].mxu0 %v2825
  %v2904 = vpop.f32.mrb[0].mxu0
  %v2905 = vadd.f32 %v2745, %v2904
  %v2906 = vpop.f32.mrb[0].mxu0
  %v2907 = vadd.f32 %v2749, %v2906
  %v2908 = vpop.f32.mrb[0].mxu0
  %v2909 = vadd.f32 %v2745, %v2908
  %v2910 = vpop.f32.mrb[0].mxu0
  %v2911 = vadd.f32 %v2749, %v2910
  %2912 = vmatprep.mubr.bf16.mxu0 0
  %2913 = vmatmul.mubr.bf16.gmra.mrb[0].mxu0 %v2828
  %v2914 = vpop.f32.mrb[0].mxu0
  %v2915 = vadd.f32 %v2745, %v2914
  %v2916 = vpop.f32.mrb[0].mxu0
  %v2917 = vadd.f32 %v2749, %v2916
  %v2918 = vpop.f32.mrb[0].mxu0
  %v2919 = vadd.f32 %v2745, %v2918
  %v2920 = vpop.f32.mrb[0].mxu0
  %v2921 = vadd.f32 %v2749, %v2920
  %2922 = vdwg.mxu0
  %v2923 = vmul.f32 %v2865, 0.5
  %v2924 = vmul.f32 %v2867, 0.5
  %v2925 = vmul.f32 %v2869, 0.5
  %v2926 = vmul.f32 %v2871, 0.5
  %v2927 = vmul.f32 %v2875, 0.5
  %v2928 = vmul.f32 %v2877, 0.5
  %v2929 = vmul.f32 %v2879, 0.5
  %v2930 = vmul.f32 %v2881, 0.5
  %v2931 = vmul.f32 %v2885, 0.5
  %v2932 = vmul.f32 %v2887, 0.5
  %v2933 = vmul.f32 %v2889, 0.5
  %v2934 = vmul.f32 %v2891, 0.5
  %v2935 = vmul.f32 %v2895, 0.5
  %v2936 = vmul.f32 %v2897, 0.5
  %v2937 = vmul.f32 %v2899, 0.5
  %v2938 = vmul.f32 %v2901, 0.5
  %v2939 = vmul.f32 %v2905, 0.5
  %v2940 = vmul.f32 %v2907, 0.5
  %v2941 = vmul.f32 %v2909, 0.5
  %v2942 = vmul.f32 %v2911, 0.5
  %v2943 = vmul.f32 %v2915, 0.5
  %v2944 = vmul.f32 %v2917, 0.5
  %v2945 = vmul.f32 %v2919, 0.5
  %v2946 = vmul.f32 %v2921, 0.5
  %v2947 = vmul.f32 %v2865, 0.70710677
  %v2948 = vmul.f32 %v2867, 0.70710677
  %v2949 = vmul.f32 %v2869, 0.70710677
  %v2950 = vmul.f32 %v2871, 0.70710677
  %v2951 = vmul.f32 %v2875, 0.70710677
  %v2952 = vmul.f32 %v2877, 0.70710677
  %v2953 = vmul.f32 %v2879, 0.70710677
  %v2954 = vmul.f32 %v2881, 0.70710677
  %v2955 = vmul.f32 %v2885, 0.70710677
  %v2956 = vmul.f32 %v2887, 0.70710677
  %v2957 = vmul.f32 %v2889, 0.70710677
  %v2958 = vmul.f32 %v2891, 0.70710677
  %v2959 = vmul.f32 %v2895, 0.70710677
  %v2960 = vmul.f32 %v2897, 0.70710677
  %v2961 = vmul.f32 %v2899, 0.70710677
  %v2962 = vmul.f32 %v2901, 0.70710677
  %v2963 = vmul.f32 %v2905, 0.70710677
  %v2964 = vmul.f32 %v2907, 0.70710677
  %v2965 = vmul.f32 %v2909, 0.70710677
  %v2966 = vmul.f32 %v2911, 0.70710677
  %v2967 = vmul.f32 %v2915, 0.70710677
  %v2968 = vmul.f32 %v2917, 0.70710677
  %v2969 = vmul.f32 %v2919, 0.70710677
  %v2970 = vmul.f32 %v2921, 0.70710677
  %v2971 = vand.u32 2147483647, %v2947
  %v2972 = vand.u32 2147483647, %v2948
  %v2973 = vand.u32 2147483647, %v2949
  %v2974 = vand.u32 2147483647, %v2950
  %v2975 = vand.u32 2147483647, %v2951
  %v2976 = vand.u32 2147483647, %v2952
  %v2977 = vand.u32 2147483647, %v2953
  %v2978 = vand.u32 2147483647, %v2954
  %v2979 = vand.u32 2147483647, %v2955
  %v2980 = vand.u32 2147483647, %v2956
  %v2981 = vand.u32 2147483647, %v2957
  %v2982 = vand.u32 2147483647, %v2958
  %v2983 = vand.u32 2147483647, %v2959
  %v2984 = vand.u32 2147483647, %v2960
  %v2985 = vand.u32 2147483647, %v2961
  %v2986 = vand.u32 2147483647, %v2962
  %v2987 = vand.u32 2147483647, %v2963
  %v2988 = vand.u32 2147483647, %v2964
  %v2989 = vand.u32 2147483647, %v2965
  %v2990 = vand.u32 2147483647, %v2966
  %v2991 = vand.u32 2147483647, %v2967
  %v2992 = vand.u32 2147483647, %v2968
  %v2993 = vand.u32 2147483647, %v2969
  %v2994 = vand.u32 2147483647, %v2970
  %v2995 = vmul.f32 %v2971, 0.3275911
  %v2996 = vmul.f32 %v2972, 0.3275911
  %v2997 = vmul.f32 %v2973, 0.3275911
  %v2998 = vmul.f32 %v2974, 0.3275911
  %v2999 = vmul.f32 %v2975, 0.3275911
  %v3000 = vmul.f32 %v2976, 0.3275911
  %v3001 = vmul.f32 %v2977, 0.3275911
  %v3002 = vmul.f32 %v2978, 0.3275911
  %v3003 = vmul.f32 %v2979, 0.3275911
  %v3004 = vmul.f32 %v2980, 0.3275911
  %v3005 = vmul.f32 %v2981, 0.3275911
  %v3006 = vmul.f32 %v2982, 0.3275911
  %v3007 = vmul.f32 %v2983, 0.3275911
  %v3008 = vmul.f32 %v2984, 0.3275911
  %v3009 = vmul.f32 %v2985, 0.3275911
  %v3010 = vmul.f32 %v2986, 0.3275911
  %v3011 = vmul.f32 %v2987, 0.3275911
  %v3012 = vmul.f32 %v2988, 0.3275911
  %v3013 = vmul.f32 %v2989, 0.3275911
  %v3014 = vmul.f32 %v2990, 0.3275911
  %v3015 = vmul.f32 %v2991, 0.3275911
  %v3016 = vmul.f32 %v2992, 0.3275911
  %v3017 = vmul.f32 %v2993, 0.3275911
  %v3018 = vmul.f32 %v2994, 0.3275911
  %v3019 = vadd.f32 %v2995, 1.0
  %v3020 = vadd.f32 %v2996, 1.0
  %v3021 = vadd.f32 %v2997, 1.0
  %v3022 = vadd.f32 %v2998, 1.0
  %v3023 = vadd.f32 %v2999, 1.0
  %v3024 = vadd.f32 %v3000, 1.0
  %v3025 = vadd.f32 %v3001, 1.0
  %v3026 = vadd.f32 %v3002, 1.0
  %v3027 = vadd.f32 %v3003, 1.0
  %v3028 = vadd.f32 %v3004, 1.0
  %v3029 = vadd.f32 %v3005, 1.0
  %v3030 = vadd.f32 %v3006, 1.0
  %v3031 = vadd.f32 %v3007, 1.0
  %v3032 = vadd.f32 %v3008, 1.0
  %v3033 = vadd.f32 %v3009, 1.0
  %v3034 = vadd.f32 %v3010, 1.0
  %v3035 = vadd.f32 %v3011, 1.0
  %v3036 = vadd.f32 %v3012, 1.0
  %v3037 = vadd.f32 %v3013, 1.0
  %v3038 = vadd.f32 %v3014, 1.0
  %v3039 = vadd.f32 %v3015, 1.0
  %v3040 = vadd.f32 %v3016, 1.0
  %v3041 = vadd.f32 %v3017, 1.0
  %v3042 = vadd.f32 %v3018, 1.0
  %v3043 = vrcp.pop %v3019
  %v3044 = vmul.f32 1.0, %v3043
  %v3045 = vrcp.pop %v3020
  %v3046 = vmul.f32 1.0, %v3045
  %v3047 = vrcp.pop %v3021
  %v3048 = vmul.f32 1.0, %v3047
  %v3049 = vrcp.pop %v3022
  %v3050 = vmul.f32 1.0, %v3049
  %v3051 = vrcp.pop %v3023
  %v3052 = vmul.f32 1.0, %v3051
  %v3053 = vrcp.pop %v3024
  %v3054 = vmul.f32 1.0, %v3053
  %v3055 = vrcp.pop %v3025
  %v3056 = vmul.f32 1.0, %v3055
  %v3057 = vrcp.pop %v3026
  %v3058 = vmul.f32 1.0, %v3057
  %v3059 = vrcp.pop %v3027
  %v3060 = vmul.f32 1.0, %v3059
  %v3061 = vrcp.pop %v3028
  %v3062 = vmul.f32 1.0, %v3061
  %v3063 = vrcp.pop %v3029
  %v3064 = vmul.f32 1.0, %v3063
  %v3065 = vrcp.pop %v3030
  %v3066 = vmul.f32 1.0, %v3065
  %v3067 = vrcp.pop %v3031
  %v3068 = vmul.f32 1.0, %v3067
  %v3069 = vrcp.pop %v3032
  %v3070 = vmul.f32 1.0, %v3069
  %v3071 = vrcp.pop %v3033
  %v3072 = vmul.f32 1.0, %v3071
  %v3073 = vrcp.pop %v3034
  %v3074 = vmul.f32 1.0, %v3073
  %v3075 = vrcp.pop %v3035
  %v3076 = vmul.f32 1.0, %v3075
  %v3077 = vrcp.pop %v3036
  %v3078 = vmul.f32 1.0, %v3077
  %v3079 = vrcp.pop %v3037
  %v3080 = vmul.f32 1.0, %v3079
  %v3081 = vrcp.pop %v3038
  %v3082 = vmul.f32 1.0, %v3081
  %v3083 = vrcp.pop %v3039
  %v3084 = vmul.f32 1.0, %v3083
  %v3085 = vrcp.pop %v3040
  %v3086 = vmul.f32 1.0, %v3085
  %v3087 = vrcp.pop %v3041
  %v3088 = vmul.f32 1.0, %v3087
  %v3089 = vrcp.pop %v3042
  %v3090 = vmul.f32 1.0, %v3089
  %v3091 = vmul.f32 %v3044, 1.0614054
  %v3092 = vmul.f32 %v3046, 1.0614054
  %v3093 = vmul.f32 %v3048, 1.0614054
  %v3094 = vmul.f32 %v3050, 1.0614054
  %v3095 = vmul.f32 %v3052, 1.0614054
  %v3096 = vmul.f32 %v3054, 1.0614054
  %v3097 = vmul.f32 %v3056, 1.0614054
  %v3098 = vmul.f32 %v3058, 1.0614054
  %v3099 = vmul.f32 %v3060, 1.0614054
  %v3100 = vmul.f32 %v3062, 1.0614054
  %v3101 = vmul.f32 %v3064, 1.0614054
  %v3102 = vmul.f32 %v3066, 1.0614054
  %v3103 = vmul.f32 %v3068, 1.0614054
  %v3104 = vmul.f32 %v3070, 1.0614054
  %v3105 = vmul.f32 %v3072, 1.0614054
  %v3106 = vmul.f32 %v3074, 1.0614054
  %v3107 = vmul.f32 %v3076, 1.0614054
  %v3108 = vmul.f32 %v3078, 1.0614054
  %v3109 = vmul.f32 %v3080, 1.0614054
  %v3110 = vmul.f32 %v3082, 1.0614054
  %v3111 = vmul.f32 %v3084, 1.0614054
  %v3112 = vmul.f32 %v3086, 1.0614054
  %v3113 = vmul.f32 %v3088, 1.0614054
  %v3114 = vmul.f32 %v3090, 1.0614054
  %v3115 = vsub.f32 %v3091, 1.4531521
  %v3116 = vsub.f32 %v3092, 1.4531521
  %v3117 = vsub.f32 %v3093, 1.4531521
  %v3118 = vsub.f32 %v3094, 1.4531521
  %v3119 = vsub.f32 %v3095, 1.4531521
  %v3120 = vsub.f32 %v3096, 1.4531521
  %v3121 = vsub.f32 %v3097, 1.4531521
  %v3122 = vsub.f32 %v3098, 1.4531521
  %v3123 = vsub.f32 %v3099, 1.4531521
  %v3124 = vsub.f32 %v3100, 1.4531521
  %v3125 = vsub.f32 %v3101, 1.4531521
  %v3126 = vsub.f32 %v3102, 1.4531521
  %v3127 = vsub.f32 %v3103, 1.4531521
  %v3128 = vsub.f32 %v3104, 1.4531521
  %v3129 = vsub.f32 %v3105, 1.4531521
  %v3130 = vsub.f32 %v3106, 1.4531521
  %v3131 = vsub.f32 %v3107, 1.4531521
  %v3132 = vsub.f32 %v3108, 1.4531521
  %v3133 = vsub.f32 %v3109, 1.4531521
  %v3134 = vsub.f32 %v3110, 1.4531521
  %v3135 = vsub.f32 %v3111, 1.4531521
  %v3136 = vsub.f32 %v3112, 1.4531521
  %v3137 = vsub.f32 %v3113, 1.4531521
  %v3138 = vsub.f32 %v3114, 1.4531521
  %v3139 = vmul.f32 %v3115, %v3044
  %v3140 = vmul.f32 %v3116, %v3046
  %v3141 = vmul.f32 %v3117, %v3048
  %v3142 = vmul.f32 %v3118, %v3050
  %v3143 = vmul.f32 %v3119, %v3052
  %v3144 = vmul.f32 %v3120, %v3054
  %v3145 = vmul.f32 %v3121, %v3056
  %v3146 = vmul.f32 %v3122, %v3058
  %v3147 = vmul.f32 %v3123, %v3060
  %v3148 = vmul.f32 %v3124, %v3062
  %v3149 = vmul.f32 %v3125, %v3064
  %v3150 = vmul.f32 %v3126, %v3066
  %v3151 = vmul.f32 %v3127, %v3068
  %v3152 = vmul.f32 %v3128, %v3070
  %v3153 = vmul.f32 %v3129, %v3072
  %v3154 = vmul.f32 %v3130, %v3074
  %v3155 = vmul.f32 %v3131, %v3076
  %v3156 = vmul.f32 %v3132, %v3078
  %v3157 = vmul.f32 %v3133, %v3080
  %v3158 = vmul.f32 %v3134, %v3082
  %v3159 = vmul.f32 %v3135, %v3084
  %v3160 = vmul.f32 %v3136, %v3086
  %v3161 = vmul.f32 %v3137, %v3088
  %v3162 = vmul.f32 %v3138, %v3090
  %v3163 = vadd.f32 %v3139, 1.4214138
  %v3164 = vadd.f32 %v3140, 1.4214138
  %v3165 = vadd.f32 %v3141, 1.4214138
  %v3166 = vadd.f32 %v3142, 1.4214138
  %v3167 = vadd.f32 %v3143, 1.4214138
  %v3168 = vadd.f32 %v3144, 1.4214138
  %v3169 = vadd.f32 %v3145, 1.4214138
  %v3170 = vadd.f32 %v3146, 1.4214138
  %v3171 = vadd.f32 %v3147, 1.4214138
  %v3172 = vadd.f32 %v3148, 1.4214138
  %v3173 = vadd.f32 %v3149, 1.4214138
  %v3174 = vadd.f32 %v3150, 1.4214138
  %v3175 = vadd.f32 %v3151, 1.4214138
  %v3176 = vadd.f32 %v3152, 1.4214138
  %v3177 = vadd.f32 %v3153, 1.4214138
  %v3178 = vadd.f32 %v3154, 1.4214138
  %v3179 = vadd.f32 %v3155, 1.4214138
  %v3180 = vadd.f32 %v3156, 1.4214138
  %v3181 = vadd.f32 %v3157, 1.4214138
  %v3182 = vadd.f32 %v3158, 1.4214138
  %v3183 = vadd.f32 %v3159, 1.4214138
  %v3184 = vadd.f32 %v3160, 1.4214138
  %v3185 = vadd.f32 %v3161, 1.4214138
  %v3186 = vadd.f32 %v3162, 1.4214138
  %v3187 = vmul.f32 %v3163, %v3044
  %v3188 = vmul.f32 %v3164, %v3046
  %v3189 = vmul.f32 %v3165, %v3048
  %v3190 = vmul.f32 %v3166, %v3050
  %v3191 = vmul.f32 %v3167, %v3052
  %v3192 = vmul.f32 %v3168, %v3054
  %v3193 = vmul.f32 %v3169, %v3056
  %v3194 = vmul.f32 %v3170, %v3058
  %v3195 = vmul.f32 %v3171, %v3060
  %v3196 = vmul.f32 %v3172, %v3062
  %v3197 = vmul.f32 %v3173, %v3064
  %v3198 = vmul.f32 %v3174, %v3066
  %v3199 = vmul.f32 %v3175, %v3068
  %v3200 = vmul.f32 %v3176, %v3070
  %v3201 = vmul.f32 %v3177, %v3072
  %v3202 = vmul.f32 %v3178, %v3074
  %v3203 = vmul.f32 %v3179, %v3076
  %v3204 = vmul.f32 %v3180, %v3078
  %v3205 = vmul.f32 %v3181, %v3080
  %v3206 = vmul.f32 %v3182, %v3082
  %v3207 = vmul.f32 %v3183, %v3084
  %v3208 = vmul.f32 %v3184, %v3086
  %v3209 = vmul.f32 %v3185, %v3088
  %v3210 = vmul.f32 %v3186, %v3090
  %v3211 = vsub.f32 %v3187, 0.28449672
  %v3212 = vsub.f32 %v3188, 0.28449672
  %v3213 = vsub.f32 %v3189, 0.28449672
  %v3214 = vsub.f32 %v3190, 0.28449672
  %v3215 = vsub.f32 %v3191, 0.28449672
  %v3216 = vsub.f32 %v3192, 0.28449672
  %v3217 = vsub.f32 %v3193, 0.28449672
  %v3218 = vsub.f32 %v3194, 0.28449672
  %v3219 = vsub.f32 %v3195, 0.28449672
  %v3220 = vsub.f32 %v3196, 0.28449672
  %v3221 = vsub.f32 %v3197, 0.28449672
  %v3222 = vsub.f32 %v3198, 0.28449672
  %v3223 = vsub.f32 %v3199, 0.28449672
  %v3224 = vsub.f32 %v3200, 0.28449672
  %v3225 = vsub.f32 %v3201, 0.28449672
  %v3226 = vsub.f32 %v3202, 0.28449672
  %v3227 = vsub.f32 %v3203, 0.28449672
  %v3228 = vsub.f32 %v3204, 0.28449672
  %v3229 = vsub.f32 %v3205, 0.28449672
  %v3230 = vsub.f32 %v3206, 0.28449672
  %v3231 = vsub.f32 %v3207, 0.28449672
  %v3232 = vsub.f32 %v3208, 0.28449672
  %v3233 = vsub.f32 %v3209, 0.28449672
  %v3234 = vsub.f32 %v3210, 0.28449672
  %v3235 = vmul.f32 %v3211, %v3044
  %v3236 = vmul.f32 %v3212, %v3046
  %v3237 = vmul.f32 %v3213, %v3048
  %v3238 = vmul.f32 %v3214, %v3050
  %v3239 = vmul.f32 %v3215, %v3052
  %v3240 = vmul.f32 %v3216, %v3054
  %v3241 = vmul.f32 %v3217, %v3056
  %v3242 = vmul.f32 %v3218, %v3058
  %v3243 = vmul.f32 %v3219, %v3060
  %v3244 = vmul.f32 %v3220, %v3062
  %v3245 = vmul.f32 %v3221, %v3064
  %v3246 = vmul.f32 %v3222, %v3066
  %v3247 = vmul.f32 %v3223, %v3068
  %v3248 = vmul.f32 %v3224, %v3070
  %v3249 = vmul.f32 %v3225, %v3072
  %v3250 = vmul.f32 %v3226, %v3074
  %v3251 = vmul.f32 %v3227, %v3076
  %v3252 = vmul.f32 %v3228, %v3078
  %v3253 = vmul.f32 %v3229, %v3080
  %v3254 = vmul.f32 %v3230, %v3082
  %v3255 = vmul.f32 %v3231, %v3084
  %v3256 = vmul.f32 %v3232, %v3086
  %v3257 = vmul.f32 %v3233, %v3088
  %v3258 = vmul.f32 %v3234, %v3090
  %v3259 = vadd.f32 %v3235, 0.2548296
  %v3260 = vadd.f32 %v3236, 0.2548296
  %v3261 = vadd.f32 %v3237, 0.2548296
  %v3262 = vadd.f32 %v3238, 0.2548296
  %v3263 = vadd.f32 %v3239, 0.2548296
  %v3264 = vadd.f32 %v3240, 0.2548296
  %v3265 = vadd.f32 %v3241, 0.2548296
  %v3266 = vadd.f32 %v3242, 0.2548296
  %v3267 = vadd.f32 %v3243, 0.2548296
  %v3268 = vadd.f32 %v3244, 0.2548296
  %v3269 = vadd.f32 %v3245, 0.2548296
  %v3270 = vadd.f32 %v3246, 0.2548296
  %v3271 = vadd.f32 %v3247, 0.2548296
  %v3272 = vadd.f32 %v3248, 0.2548296
  %v3273 = vadd.f32 %v3249, 0.2548296
  %v3274 = vadd.f32 %v3250, 0.2548296
  %v3275 = vadd.f32 %v3251, 0.2548296
  %v3276 = vadd.f32 %v3252, 0.2548296
  %v3277 = vadd.f32 %v3253, 0.2548296
  %v3278 = vadd.f32 %v3254, 0.2548296
  %v3279 = vadd.f32 %v3255, 0.2548296
  %v3280 = vadd.f32 %v3256, 0.2548296
  %v3281 = vadd.f32 %v3257, 0.2548296
  %v3282 = vadd.f32 %v3258, 0.2548296
  %v3283 = vmul.f32 %v3259, %v3044
  %v3284 = vmul.f32 %v3260, %v3046
  %v3285 = vmul.f32 %v3261, %v3048
  %v3286 = vmul.f32 %v3262, %v3050
  %v3287 = vmul.f32 %v3263, %v3052
  %v3288 = vmul.f32 %v3264, %v3054
  %v3289 = vmul.f32 %v3265, %v3056
  %v3290 = vmul.f32 %v3266, %v3058
  %v3291 = vmul.f32 %v3267, %v3060
  %v3292 = vmul.f32 %v3268, %v3062
  %v3293 = vmul.f32 %v3269, %v3064
  %v3294 = vmul.f32 %v3270, %v3066
  %v3295 = vmul.f32 %v3271, %v3068
  %v3296 = vmul.f32 %v3272, %v3070
  %v3297 = vmul.f32 %v3273, %v3072
  %v3298 = vmul.f32 %v3274, %v3074
  %v3299 = vmul.f32 %v3275, %v3076
  %v3300 = vmul.f32 %v3276, %v3078
  %v3301 = vmul.f32 %v3277, %v3080
  %v3302 = vmul.f32 %v3278, %v3082
  %v3303 = vmul.f32 %v3279, %v3084
  %v3304 = vmul.f32 %v3280, %v3086
  %v3305 = vmul.f32 %v3281, %v3088
  %v3306 = vmul.f32 %v3282, %v3090
  %v3307 = vsub.f32 0.0, %v2947
  %v3308 = vsub.f32 0.0, %v2948
  %v3309 = vsub.f32 0.0, %v2949
  %v3310 = vsub.f32 0.0, %v2950
  %v3311 = vsub.f32 0.0, %v2951
  %v3312 = vsub.f32 0.0, %v2952
  %v3313 = vsub.f32 0.0, %v2953
  %v3314 = vsub.f32 0.0, %v2954
  %v3315 = vsub.f32 0.0, %v2955
  %v3316 = vsub.f32 0.0, %v2956
  %v3317 = vsub.f32 0.0, %v2957
  %v3318 = vsub.f32 0.0, %v2958
  %v3319 = vsub.f32 0.0, %v2959
  %v3320 = vsub.f32 0.0, %v2960
  %v3321 = vsub.f32 0.0, %v2961
  %v3322 = vsub.f32 0.0, %v2962
  %v3323 = vsub.f32 0.0, %v2963
  %v3324 = vsub.f32 0.0, %v2964
  %v3325 = vsub.f32 0.0, %v2965
  %v3326 = vsub.f32 0.0, %v2966
  %v3327 = vsub.f32 0.0, %v2967
  %v3328 = vsub.f32 0.0, %v2968
  %v3329 = vsub.f32 0.0, %v2969
  %v3330 = vsub.f32 0.0, %v2970
  %v3331 = vmul.f32 %v3307, %v2947
  %v3332 = vmul.f32 %v3308, %v2948
  %v3333 = vmul.f32 %v3309, %v2949
  %v3334 = vmul.f32 %v3310, %v2950
  %v3335 = vmul.f32 %v3311, %v2951
  %v3336 = vmul.f32 %v3312, %v2952
  %v3337 = vmul.f32 %v3313, %v2953
  %v3338 = vmul.f32 %v3314, %v2954
  %v3339 = vmul.f32 %v3315, %v2955
  %v3340 = vmul.f32 %v3316, %v2956
  %v3341 = vmul.f32 %v3317, %v2957
  %v3342 = vmul.f32 %v3318, %v2958
  %v3343 = vmul.f32 %v3319, %v2959
  %v3344 = vmul.f32 %v3320, %v2960
  %v3345 = vmul.f32 %v3321, %v2961
  %v3346 = vmul.f32 %v3322, %v2962
  %v3347 = vmul.f32 %v3323, %v2963
  %v3348 = vmul.f32 %v3324, %v2964
  %v3349 = vmul.f32 %v3325, %v2965
  %v3350 = vmul.f32 %v3326, %v2966
  %v3351 = vmul.f32 %v3327, %v2967
  %v3352 = vmul.f32 %v3328, %v2968
  %v3353 = vmul.f32 %v3329, %v2969
  %v3354 = vmul.f32 %v3330, %v2970
  %v3355 = vmul.f32 %v3331, 1.442695
  %v3356 = vpow.pop %v3355
  %v3357 = vmul.f32 %v3332, 1.442695
  %v3358 = vpow.pop %v3357
  %v3359 = vmul.f32 %v3333, 1.442695
  %v3360 = vpow.pop %v3359
  %v3361 = vmul.f32 %v3334, 1.442695
  %v3362 = vpow.pop %v3361
  %v3363 = vmul.f32 %v3335, 1.442695
  %v3364 = vpow.pop %v3363
  %v3365 = vmul.f32 %v3336, 1.442695
  %v3366 = vpow.pop %v3365
  %v3367 = vmul.f32 %v3337, 1.442695
  %v3368 = vpow.pop %v3367
  %v3369 = vmul.f32 %v3338, 1.442695
  %v3370 = vpow.pop %v3369
  %v3371 = vmul.f32 %v3339, 1.442695
  %v3372 = vpow.pop %v3371
  %v3373 = vmul.f32 %v3340, 1.442695
  %v3374 = vpow.pop %v3373
  %v3375 = vmul.f32 %v3341, 1.442695
  %v3376 = vpow.pop %v3375
  %v3377 = vmul.f32 %v3342, 1.442695
  %v3378 = vpow.pop %v3377
  %v3379 = vmul.f32 %v3343, 1.442695
  %v3380 = vpow.pop %v3379
  %v3381 = vmul.f32 %v3344, 1.442695
  %v3382 = vpow.pop %v3381
  %v3383 = vmul.f32 %v3345, 1.442695
  %v3384 = vpow.pop %v3383
  %v3385 = vmul.f32 %v3346, 1.442695
  %v3386 = vpow.pop %v3385
  %v3387 = vmul.f32 %v3347, 1.442695
  %v3388 = vpow.pop %v3387
  %v3389 = vmul.f32 %v3348, 1.442695
  %v3390 = vpow.pop %v3389
  %v3391 = vmul.f32 %v3349, 1.442695
  %v3392 = vpow.pop %v3391
  %v3393 = vmul.f32 %v3350, 1.442695
  %v3394 = vpow.pop %v3393
  %v3395 = vmul.f32 %v3351, 1.442695
  %v3396 = vpow.pop %v3395
  %v3397 = vmul.f32 %v3352, 1.442695
  %v3398 = vpow.pop %v3397
  %v3399 = vmul.f32 %v3353, 1.442695
  %v3400 = vpow.pop %v3399
  %v3401 = vmul.f32 %v3354, 1.442695
  %v3402 = vpow.pop %v3401
  %v3403 = vmul.f32 %v3283, %v3356
  %v3404 = vmul.f32 %v3284, %v3358
  %v3405 = vmul.f32 %v3285, %v3360
  %v3406 = vmul.f32 %v3286, %v3362
  %v3407 = vmul.f32 %v3287, %v3364
  %v3408 = vmul.f32 %v3288, %v3366
  %v3409 = vmul.f32 %v3289, %v3368
  %v3410 = vmul.f32 %v3290, %v3370
  %v3411 = vmul.f32 %v3291, %v3372
  %v3412 = vmul.f32 %v3292, %v3374
  %v3413 = vmul.f32 %v3293, %v3376
  %v3414 = vmul.f32 %v3294, %v3378
  %v3415 = vmul.f32 %v3295, %v3380
  %v3416 = vmul.f32 %v3296, %v3382
  %v3417 = vmul.f32 %v3297, %v3384
  %v3418 = vmul.f32 %v3298, %v3386
  %v3419 = vmul.f32 %v3299, %v3388
  %v3420 = vmul.f32 %v3300, %v3390
  %v3421 = vmul.f32 %v3301, %v3392
  %v3422 = vmul.f32 %v3302, %v3394
  %v3423 = vmul.f32 %v3303, %v3396
  %v3424 = vmul.f32 %v3304, %v3398
  %v3425 = vmul.f32 %v3305, %v3400
  %v3426 = vmul.f32 %v3306, %v3402
  %v3427 = vsub.f32 1.0, %v3403
  %v3428 = vsub.f32 1.0, %v3404
  %v3429 = vsub.f32 1.0, %v3405
  %v3430 = vsub.f32 1.0, %v3406
  %v3431 = vsub.f32 1.0, %v3407
  %v3432 = vsub.f32 1.0, %v3408
  %v3433 = vsub.f32 1.0, %v3409
  %v3434 = vsub.f32 1.0, %v3410
  %v3435 = vsub.f32 1.0, %v3411
  %v3436 = vsub.f32 1.0, %v3412
  %v3437 = vsub.f32 1.0, %v3413
  %v3438 = vsub.f32 1.0, %v3414
  %v3439 = vsub.f32 1.0, %v3415
  %v3440 = vsub.f32 1.0, %v3416
  %v3441 = vsub.f32 1.0, %v3417
  %v3442 = vsub.f32 1.0, %v3418
  %v3443 = vsub.f32 1.0, %v3419
  %v3444 = vsub.f32 1.0, %v3420
  %v3445 = vsub.f32 1.0, %v3421
  %v3446 = vsub.f32 1.0, %v3422
  %v3447 = vsub.f32 1.0, %v3423
  %v3448 = vsub.f32 1.0, %v3424
  %v3449 = vsub.f32 1.0, %v3425
  %v3450 = vsub.f32 1.0, %v3426
  %vm3451 = vcmp.ge.f32.partialorder %v2947, 0.0
  %vm3452 = vcmp.ge.f32.partialorder %v2948, 0.0
  %vm3453 = vcmp.ge.f32.partialorder %v2949, 0.0
  %vm3454 = vcmp.ge.f32.partialorder %v2950, 0.0
  %vm3455 = vcmp.ge.f32.partialorder %v2951, 0.0
  %vm3456 = vcmp.ge.f32.partialorder %v2952, 0.0
  %vm3457 = vcmp.ge.f32.partialorder %v2953, 0.0
  %vm3458 = vcmp.ge.f32.partialorder %v2954, 0.0
  %vm3459 = vcmp.ge.f32.partialorder %v2955, 0.0
  %vm3460 = vcmp.ge.f32.partialorder %v2956, 0.0
  %vm3461 = vcmp.ge.f32.partialorder %v2957, 0.0
  %vm3462 = vcmp.ge.f32.partialorder %v2958, 0.0
  %vm3463 = vcmp.ge.f32.partialorder %v2959, 0.0
  %vm3464 = vcmp.ge.f32.partialorder %v2960, 0.0
  %vm3465 = vcmp.ge.f32.partialorder %v2961, 0.0
  %vm3466 = vcmp.ge.f32.partialorder %v2962, 0.0
  %vm3467 = vcmp.ge.f32.partialorder %v2963, 0.0
  %vm3468 = vcmp.ge.f32.partialorder %v2964, 0.0
  %vm3469 = vcmp.ge.f32.partialorder %v2965, 0.0
  %vm3470 = vcmp.ge.f32.partialorder %v2966, 0.0
  %vm3471 = vcmp.ge.f32.partialorder %v2967, 0.0
  %vm3472 = vcmp.ge.f32.partialorder %v2968, 0.0
  %vm3473 = vcmp.ge.f32.partialorder %v2969, 0.0
  %vm3474 = vcmp.ge.f32.partialorder %v2970, 0.0
  %v3475 = vsub.f32 0.0, %v3427
  %v3476 = vsub.f32 0.0, %v3428
  %v3477 = vsub.f32 0.0, %v3429
  %v3478 = vsub.f32 0.0, %v3430
  %v3479 = vsub.f32 0.0, %v3431
  %v3480 = vsub.f32 0.0, %v3432
  %v3481 = vsub.f32 0.0, %v3433
  %v3482 = vsub.f32 0.0, %v3434
  %v3483 = vsub.f32 0.0, %v3435
  %v3484 = vsub.f32 0.0, %v3436
  %v3485 = vsub.f32 0.0, %v3437
  %v3486 = vsub.f32 0.0, %v3438
  %v3487 = vsub.f32 0.0, %v3439
  %v3488 = vsub.f32 0.0, %v3440
  %v3489 = vsub.f32 0.0, %v3441
  %v3490 = vsub.f32 0.0, %v3442
  %v3491 = vsub.f32 0.0, %v3443
  %v3492 = vsub.f32 0.0, %v3444
  %v3493 = vsub.f32 0.0, %v3445
  %v3494 = vsub.f32 0.0, %v3446
  %v3495 = vsub.f32 0.0, %v3447
  %v3496 = vsub.f32 0.0, %v3448
  %v3497 = vsub.f32 0.0, %v3449
  %v3498 = vsub.f32 0.0, %v3450
  %v3499 = vsel %vm3451, %v3427, %v3475
  %v3500 = vsel %vm3452, %v3428, %v3476
  %v3501 = vsel %vm3453, %v3429, %v3477
  %v3502 = vsel %vm3454, %v3430, %v3478
  %v3503 = vsel %vm3455, %v3431, %v3479
  %v3504 = vsel %vm3456, %v3432, %v3480
  %v3505 = vsel %vm3457, %v3433, %v3481
  %v3506 = vsel %vm3458, %v3434, %v3482
  %v3507 = vsel %vm3459, %v3435, %v3483
  %v3508 = vsel %vm3460, %v3436, %v3484
  %v3509 = vsel %vm3461, %v3437, %v3485
  %v3510 = vsel %vm3462, %v3438, %v3486
  %v3511 = vsel %vm3463, %v3439, %v3487
  %v3512 = vsel %vm3464, %v3440, %v3488
  %v3513 = vsel %vm3465, %v3441, %v3489
  %v3514 = vsel %vm3466, %v3442, %v3490
  %v3515 = vsel %vm3467, %v3443, %v3491
  %v3516 = vsel %vm3468, %v3444, %v3492
  %v3517 = vsel %vm3469, %v3445, %v3493
  %v3518 = vsel %vm3470, %v3446, %v3494
  %v3519 = vsel %vm3471, %v3447, %v3495
  %v3520 = vsel %vm3472, %v3448, %v3496
  %v3521 = vsel %vm3473, %v3449, %v3497
  %v3522 = vsel %vm3474, %v3450, %v3498
  %v3523 = vadd.f32 %v3499, 1.0
  %v3524 = vadd.f32 %v3500, 1.0
  %v3525 = vadd.f32 %v3501, 1.0
  %v3526 = vadd.f32 %v3502, 1.0
  %v3527 = vadd.f32 %v3503, 1.0
  %v3528 = vadd.f32 %v3504, 1.0
  %v3529 = vadd.f32 %v3505, 1.0
  %v3530 = vadd.f32 %v3506, 1.0
  %v3531 = vadd.f32 %v3507, 1.0
  %v3532 = vadd.f32 %v3508, 1.0
  %v3533 = vadd.f32 %v3509, 1.0
  %v3534 = vadd.f32 %v3510, 1.0
  %v3535 = vadd.f32 %v3511, 1.0
  %v3536 = vadd.f32 %v3512, 1.0
  %v3537 = vadd.f32 %v3513, 1.0
  %v3538 = vadd.f32 %v3514, 1.0
  %v3539 = vadd.f32 %v3515, 1.0
  %v3540 = vadd.f32 %v3516, 1.0
  %v3541 = vadd.f32 %v3517, 1.0
  %v3542 = vadd.f32 %v3518, 1.0
  %v3543 = vadd.f32 %v3519, 1.0
  %v3544 = vadd.f32 %v3520, 1.0
  %v3545 = vadd.f32 %v3521, 1.0
  %v3546 = vadd.f32 %v3522, 1.0
  %v3547 = vmul.f32 %v2923, %v3523
  %v3548 = vmul.f32 %v2924, %v3524
  %v3549 = vmul.f32 %v2925, %v3525
  %v3550 = vmul.f32 %v2926, %v3526
  %v3551 = vmul.f32 %v2927, %v3527
  %v3552 = vmul.f32 %v2928, %v3528
  %v3553 = vmul.f32 %v2929, %v3529
  %v3554 = vmul.f32 %v2930, %v3530
  %v3555 = vmul.f32 %v2931, %v3531
  %v3556 = vmul.f32 %v2932, %v3532
  %v3557 = vmul.f32 %v2933, %v3533
  %v3558 = vmul.f32 %v2934, %v3534
  %v3559 = vmul.f32 %v2935, %v3535
  %v3560 = vmul.f32 %v2936, %v3536
  %v3561 = vmul.f32 %v2937, %v3537
  %v3562 = vmul.f32 %v2938, %v3538
  %v3563 = vmul.f32 %v2939, %v3539
  %v3564 = vmul.f32 %v2940, %v3540
  %v3565 = vmul.f32 %v2941, %v3541
  %v3566 = vmul.f32 %v2942, %v3542
  %v3567 = vmul.f32 %v2943, %v3543
  %v3568 = vmul.f32 %v2944, %v3544
  %v3569 = vmul.f32 %v2945, %v3545
  %v3570 = vmul.f32 %v2946, %v3546
  %v3571 = vpack.c.bf16 %v3549, %v3547
  %v3572 = vpack.c.bf16 %v3550, %v3548
  %v3573 = vpack.c.bf16 %v3553, %v3551
  %v3574 = vpack.c.bf16 %v3554, %v3552
  %v3575 = vpack.c.bf16 %v3557, %v3555
  %v3576 = vpack.c.bf16 %v3558, %v3556
  %v3577 = vpack.c.bf16 %v3561, %v3559
  %v3578 = vpack.c.bf16 %v3562, %v3560
  %v3579 = vpack.c.bf16 %v3565, %v3563
  %v3580 = vpack.c.bf16 %v3566, %v3564
  %v3581 = vpack.c.bf16 %v3569, %v3567
  %v3582 = vpack.c.bf16 %v3570, %v3568
  %v3584 = vlaneseq
  %v3585 = vshrl.u32 %v3584, 7
  %v3586 = vsub.s32 0, %v3585
  %v3587 = vrot.slane %v206, %v3586
  %v3613 = vunpack.c.l.b16 %v182
  %v3614 = vunpack.c.l.b16 %v183
  %v3615 = vunpack.c.l.b16 %v184
  %v3616 = vunpack.c.l.b16 %v185
  %v3617 = vunpack.c.l.b16 %v186
  %v3618 = vunpack.c.l.b16 %v187
  %v3619 = vunpack.c.l.b16 %v188
  %v3620 = vunpack.c.l.b16 %v189
  %v3621 = vunpack.c.l.b16 %v190
  %v3622 = vunpack.c.l.b16 %v191
  %v3623 = vunpack.c.l.b16 %v192
  %v3624 = vunpack.c.l.b16 %v193
  %v3625 = vunpack.c.l.b16 %v194
  %v3626 = vunpack.c.l.b16 %v195
  %v3627 = vunpack.c.l.b16 %v196
  %v3628 = vunpack.c.l.b16 %v197
  %v3629 = vunpack.c.l.b16 %v198
  %v3630 = vunpack.c.l.b16 %v199
  %v3631 = vunpack.c.l.b16 %v200
  %v3632 = vunpack.c.l.b16 %v201
  %v3633 = vunpack.c.l.b16 %v202
  %v3634 = vunpack.c.l.b16 %v203
  %v3635 = vunpack.c.l.b16 %v204
  %v3636 = vunpack.c.l.b16 %v205
  %v3637 = vpack.c.b16 %v3614, %v3613
  %v3638 = vpack.c.b16 %v3616, %v3615
  %v3639 = vpack.c.b16 %v3618, %v3617
  %v3640 = vpack.c.b16 %v3620, %v3619
  %v3641 = vpack.c.b16 %v3622, %v3621
  %v3642 = vpack.c.b16 %v3624, %v3623
  %v3643 = vpack.c.b16 %v3626, %v3625
  %v3644 = vpack.c.b16 %v3628, %v3627
  %v3645 = vpack.c.b16 %v3630, %v3629
  %v3646 = vpack.c.b16 %v3632, %v3631
  %v3647 = vpack.c.b16 %v3634, %v3633
  %v3648 = vpack.c.b16 %v3636, %v3635
  %v3662 = vsel %vm1579, %v3572, 0
  %v3665 = vsel %vm1579, %v3574, 0
  %v3668 = vsel %vm1579, %v3576, 0
  %v3671 = vsel %vm1579, %v3578, 0
  %v3674 = vsel %vm1579, %v3580, 0
  %v3677 = vsel %vm1579, %v3582, 0
  %3679 = vmatprep.subr.bf16.mxu0 0
  %3680 = vmatpush1.bf16.msra.mxu0 %v3637
  %3681 = vmatprep.subr.bf16.mxu0 0
  %3682 = vmatpush1.bf16.msra.mxu0 %v3638
  %3683 = vmatprep.subr.bf16.mxu0 0
  %3684 = vmatpush1.bf16.msra.mxu0 %v3639
  %3685 = vmatprep.subr.bf16.mxu0 0
  %3686 = vmatpush1.bf16.msra.mxu0 %v3640
  %3687 = vmatprep.subr.bf16.mxu0 0
  %3688 = vmatpush1.bf16.msra.mxu0 %v3641
  %3689 = vmatprep.subr.bf16.mxu0 0
  %3690 = vmatpush1.bf16.msra.mxu0 %v3642
  %3691 = vmatprep.subr.bf16.mxu0 0
  %3692 = vmatpush1.bf16.msra.mxu0 %v3643
  %3693 = vmatprep.subr.bf16.mxu0 0
  %3694 = vmatpush1.bf16.msra.mxu0 %v3644
  %3695 = vmatprep.subr.bf16.mxu0 0
  %3696 = vmatpush1.bf16.msra.mxu0 %v3645
  %3697 = vmatprep.subr.bf16.mxu0 0
  %3698 = vmatpush1.bf16.msra.mxu0 %v3646
  %3699 = vmatprep.subr.bf16.mxu0 0
  %3700 = vmatpush1.bf16.msra.mxu0 %v3647
  %3701 = vmatprep.subr.bf16.mxu0 0
  %3702 = vmatpush1.bf16.msra.mxu0 %v3648
  %3703 = vmatprep.subr.bf16.mxu0 0
  %3704 = vmatpush1.bf16.msra.mxu0 0
  %3705 = vmatprep.subr.bf16.mxu0 0
  %3706 = vmatpush1.bf16.msra.mxu0 0
  %3707 = vmatprep.subr.bf16.mxu0 0
  %3708 = vmatpush1.bf16.msra.mxu0 0
  %3709 = vmatprep.subr.bf16.mxu0 0
  %3710 = vmatpush1.bf16.msra.mxu0 0
  %3711 = vmatprep.mubr.bf16.mxu0 %v3662
  %3712 = vmatmul.mubr.bf16.gmra.mrb[0].mxu0 %v3571
  %v3713 = vpop.f32.mrb[0].mxu0
  %v3714 = vadd.f32 %v3587, %v3713
  %v3715 = vpop.f32.mrb[0].mxu0
  %v3716 = vpop.f32.mrb[0].mxu0
  %v3717 = vadd.f32 %v3587, %v3716
  %v3718 = vpop.f32.mrb[0].mxu0
  %3719 = vmatprep.mubr.bf16.mxu0 %v3665
  %3720 = vmatmul.mubr.bf16.gmra.mrb[0].mxu0 %v3573
  %v3721 = vpop.f32.mrb[0].mxu0
  %v3722 = vadd.f32 %v3587, %v3721
  %v3723 = vpop.f32.mrb[0].mxu0
  %v3724 = vpop.f32.mrb[0].mxu0
  %v3725 = vadd.f32 %v3587, %v3724
  %v3726 = vpop.f32.mrb[0].mxu0
  %3727 = vmatprep.mubr.bf16.mxu0 %v3668
  %3728 = vmatmul.mubr.bf16.gmra.mrb[0].mxu0 %v3575
  %v3729 = vpop.f32.mrb[0].mxu0
  %v3730 = vadd.f32 %v3587, %v3729
  %v3731 = vpop.f32.mrb[0].mxu0
  %v3732 = vpop.f32.mrb[0].mxu0
  %v3733 = vadd.f32 %v3587, %v3732
  %v3734 = vpop.f32.mrb[0].mxu0
  %3735 = vmatprep.mubr.bf16.mxu0 %v3671
  %3736 = vmatmul.mubr.bf16.gmra.mrb[0].mxu0 %v3577
  %v3737 = vpop.f32.mrb[0].mxu0
  %v3738 = vadd.f32 %v3587, %v3737
  %v3739 = vpop.f32.mrb[0].mxu0
  %v3740 = vpop.f32.mrb[0].mxu0
  %v3741 = vadd.f32 %v3587, %v3740
  %v3742 = vpop.f32.mrb[0].mxu0
  %3743 = vmatprep.mubr.bf16.mxu0 %v3674
  %3744 = vmatmul.mubr.bf16.gmra.mrb[0].mxu0 %v3579
  %v3745 = vpop.f32.mrb[0].mxu0
  %v3746 = vadd.f32 %v3587, %v3745
  %v3747 = vpop.f32.mrb[0].mxu0
  %v3748 = vpop.f32.mrb[0].mxu0
  %v3749 = vadd.f32 %v3587, %v3748
  %v3750 = vpop.f32.mrb[0].mxu0
  %3751 = vmatprep.mubr.bf16.mxu0 %v3677
  %3752 = vmatmul.mubr.bf16.gmra.mrb[0].mxu0 %v3581
  %v3753 = vpop.f32.mrb[0].mxu0
  %v3754 = vadd.f32 %v3587, %v3753
  %v3755 = vpop.f32.mrb[0].mxu0
  %v3756 = vpop.f32.mrb[0].mxu0
  %v3757 = vadd.f32 %v3587, %v3756
  %v3758 = vpop.f32.mrb[0].mxu0
  %3759 = vdwg.mxu0
  %v3760 = vadd.f32 %v2531, %v3714
  %v3761 = vadd.f32 %v2532, %v3717
  %v3762 = vadd.f32 %v2533, %v3722
  %v3763 = vadd.f32 %v2534, %v3725
  %v3764 = vadd.f32 %v2535, %v3730
  %v3765 = vadd.f32 %v2536, %v3733
  %v3766 = vadd.f32 %v2537, %v3738
  %v3767 = vadd.f32 %v2538, %v3741
  %v3768 = vadd.f32 %v2539, %v3746
  %v3769 = vadd.f32 %v2540, %v3749
  %v3770 = vadd.f32 %v2541, %v3754
  %v3771 = vadd.f32 %v2542, %v3757
  %3772 = vst.msk [vmem:[#allocation2] sm:$0xff] %vm207, %v3760
  %3773 = vst.msk [vmem:[#allocation2 + $0x8] sm:$0xff] %vm207, %v3761
  %3774 = vst.msk [vmem:[#allocation2 + $0x10] sm:$0xff] %vm207, %v3762
  %3775 = vst.msk [vmem:[#allocation2 + $0x18] sm:$0xff] %vm207, %v3763
  %3776 = vst.msk [vmem:[#allocation2 + $0x20] sm:$0xff] %vm207, %v3764
  %3777 = vst.msk [vmem:[#allocation2 + $0x28] sm:$0xff] %vm207, %v3765
  %3778 = vst.msk [vmem:[#allocation2 + $0x30] sm:$0xff] %vm207, %v3766
  %3779 = vst.msk [vmem:[#allocation2 + $0x38] sm:$0xff] %vm207, %v3767
  %3780 = vst.msk [vmem:[#allocation2 + $0x40] sm:$0xff] %vm207, %v3768
  %3781 = vst.msk [vmem:[#allocation2 + $0x48] sm:$0xff] %vm207, %v3769
  %3782 = vst.msk [vmem:[#allocation2 + $0x50] sm:$0xff] %vm207, %v3770
  %3783 = vst.msk [vmem:[#allocation2 + $0x58] sm:$0xff] %vm207, %v3771
  // Predicated region
  $region94: #{trans_rppg_forward.3} parent=0 // pred_check
    %p3784 = pneg %p72
  $region95: #{trans_rppg_forward.3} parent=0 // pred_check_branch
    %3786 = sbr.rel (%p3784) target = $region97
  $region96: #{trans_rppg_forward.3} parent=0 // pred_region
    %v3787 = vld [vmem:[#allocation2] sm:$0xff]
    %v3788 = vld [vmem:[#allocation2 + $0x30] sm:$0xff]
    %v3790 = vrot.slane %v3788, 7
    %vm3792 = vcmask 1040384
    %v3793 = vsel %vm3792, %v3787, %v3790
    %v3794 = vld [vmem:[%s1] sm:$0xf]
    %v3796 = vrot.slane %v3794, 6
    %vm3798 = vcmask 1041408
    %v3799 = vsel %vm3798, %v3793, %v3796
    %v3800 = vld [vmem:[%s18] sm:$0x1]
    %v3801 = vld [vmem:[%s19] sm:$0x1]
    %vm3802 = vcmask 779264
    %v3803 = vsel %vm3802, %v3799, 0.0
    %3804 = vadd.xlane.f32.xlu0 %v3803
    %v3805 = vpop.xlane.xlu0 %3804
    %v3806 = vmul.f32 %v3805, %v244
    %v3807 = vsub.f32 %v3799, %v3806
    %v3808 = vmul.f32 %v3807, %v3807
    %v3809 = vsel %vm3802, %v3808, 0.0
    %3810 = vadd.xlane.f32.xlu0 %v3809
    %v3811 = vpop.xlane.xlu0 %3810
    %v3812 = vmul.f32 %v3811, %v244
    %v3813 = vadd.f32 %v3812, 1e-05
    %v3814 = vrsqrt.pop %v3813
    %v3815 = vmul.f32 %v3807, %v3814
    %v3817 = vlaneseq
    %v3818 = vshrl.u32 %v3817, 7
    %v3819 = vsub.s32 0, %v3818
    %v3820 = vrot.slane %v3800, %v3819
    %v3822 = vmul.f32 %v3815, %v3820
    %v3824 = vlaneseq
    %v3825 = vshrl.u32 %v3824, 7
    %v3826 = vsub.s32 0, %v3825
    %v3827 = vrot.slane %v3801, %v3826
    %v3829 = vadd.f32 %v3822, %v3827
    %v3830 = vpack.c.bf16 %v3829, %v3829
    %v3831 = vld [vmem:[%s20] sm:$0xf]
    %v3832 = vld [vmem:[%s20 + $0x4] sm:$0xf]
    %v3833 = vld [vmem:[%s20 + $0x8] sm:$0xf]
    %v3834 = vld [vmem:[%s20 + $0xc] sm:$0xf]
    %v3835 = vld [vmem:[%s20 + $0x10] sm:$0xf]
    %v3836 = vld [vmem:[%s20 + $0x14] sm:$0xf]
    %v3837 = vld [vmem:[%s20 + $0x18] sm:$0xf]
    %v3838 = vld [vmem:[%s20 + $0x1c] sm:$0xf]
    %v3839 = vld [vmem:[%s20 + $0x20] sm:$0xf]
    %v3840 = vld [vmem:[%s20 + $0x24] sm:$0xf]
    %v3841 = vld [vmem:[%s20 + $0x28] sm:$0xf]
    %v3842 = vld [vmem:[%s20 + $0x2c] sm:$0xf]
    %v3843 = vld [vmem:[%s21] sm:$0x1]
    %v3845 = vlaneseq
    %v3846 = vshrl.u32 %v3845, 7
    %v3847 = vsub.s32 0, %v3846
    %v3848 = vrot.slane %v3843, %v3847
    %v3862 = vunpack.c.l.b16 %v3831
    %v3863 = vunpack.c.l.b16 %v3832
    %v3864 = vunpack.c.l.b16 %v3833
    %v3865 = vunpack.c.l.b16 %v3834
    %v3866 = vunpack.c.l.b16 %v3835
    %v3867 = vunpack.c.l.b16 %v3836
    %v3868 = vunpack.c.l.b16 %v3837
    %v3869 = vunpack.c.l.b16 %v3838
    %v3870 = vunpack.c.l.b16 %v3839
    %v3871 = vunpack.c.l.b16 %v3840
    %v3872 = vunpack.c.l.b16 %v3841
    %v3873 = vunpack.c.l.b16 %v3842
    %v3874 = vpack.c.b16 %v3863, %v3862
    %v3875 = vpack.c.b16 %v3865, %v3864
    %v3876 = vpack.c.b16 %v3867, %v3866
    %v3877 = vpack.c.b16 %v3869, %v3868
    %v3878 = vpack.c.b16 %v3871, %v3870
    %v3879 = vpack.c.b16 %v3873, %v3872
    %v3887 = vsel %vm207, %v3830, 0
    %3889 = vmatprep.subr.bf16.mxu0 0
    %3890 = vmatpush1.bf16.msra.mxu0 %v3874
    %3891 = vmatprep.subr.bf16.mxu0 0
    %3892 = vmatpush1.bf16.msra.mxu0 %v3875
    %3893 = vmatprep.subr.bf16.mxu0 0
    %3894 = vmatpush1.bf16.msra.mxu0 %v3876
    %3895 = vmatprep.subr.bf16.mxu0 0
    %3896 = vmatpush1.bf16.msra.mxu0 %v3877
    %3897 = vmatprep.subr.bf16.mxu0 0
    %3898 = vmatpush1.bf16.msra.mxu0 %v3878
    %3899 = vmatprep.subr.bf16.mxu0 0
    %3900 = vmatpush1.bf16.msra.mxu0 %v3879
    %3901 = vmatprep.subr.bf16.mxu0 0
    %3902 = vmatpush1.bf16.msra.mxu0 0
    %3903 = vmatprep.subr.bf16.mxu0 0
    %3904 = vmatpush1.bf16.msra.mxu0 0
    %3905 = vmatprep.subr.bf16.mxu0 0
    %3906 = vmatpush1.bf16.msra.mxu0 0
    %3907 = vmatprep.subr.bf16.mxu0 0
    %3908 = vmatpush1.bf16.msra.mxu0 0
    %3909 = vmatprep.subr.bf16.mxu0 0
    %3910 = vmatpush1.bf16.msra.mxu0 0
    %3911 = vmatprep.subr.bf16.mxu0 0
    %3912 = vmatpush1.bf16.msra.mxu0 0
    %3913 = vmatprep.subr.bf16.mxu0 0
    %3914 = vmatpush1.bf16.msra.mxu0 0
    %3915 = vmatprep.subr.bf16.mxu0 0
    %3916 = vmatpush1.bf16.msra.mxu0 0
    %3917 = vmatprep.subr.bf16.mxu0 0
    %3918 = vmatpush1.bf16.msra.mxu0 0
    %3919 = vmatprep.subr.bf16.mxu0 0
    %3920 = vmatpush1.bf16.msra.mxu0 0
    %3921 = vmatprep.mubr.bf16.mxu0 0
    %3922 = vmatmul.mubr.bf16.gmra.mrb[0].mxu0 %v3887
    %v3923 = vpop.f32.mrb[0].mxu0
    %v3924 = vadd.f32 %v3848, %v3923
    %v3925 = vpop.f32.mrb[0].mxu0
    %v3926 = vpop.f32.mrb[0].mxu0
    %v3927 = vpop.f32.mrb[0].mxu0
    %3928 = vdwg.mxu0
    %s3929 = scalar_lea.vmem %s18, 1
    %v3930 = vld [vmem:[%s3929] sm:$0x1]
    %s3931 = scalar_lea.vmem %s19, 1
    %v3932 = vld [vmem:[%s3931] sm:$0x1]
    %vm3933 = vcmask 781314
    %v3934 = vsel %vm3933, %v3799, 0.0
    %3935 = vadd.xlane.f32.xlu0 %v3934
    %v3936 = vpop.xlane.xlu0 %3935
    %v3937 = vmul.f32 %v3936, %v244
    %v3938 = vsub.f32 %v3799, %v3937
    %v3939 = vmul.f32 %v3938, %v3938
    %v3940 = vsel %vm3933, %v3939, 0.0
    %3941 = vadd.xlane.f32.xlu0 %v3940
    %v3942 = vpop.xlane.xlu0 %3941
    %v3943 = vmul.f32 %v3942, %v244
    %v3944 = vadd.f32 %v3943, 1e-05
    %v3945 = vrsqrt.pop %v3944
    %v3946 = vmul.f32 %v3938, %v3945
    %v3948 = vlaneseq
    %v3949 = vshrl.u32 %v3948, 7
    %v3950 = vsub.s32 0, %v3949
    %v3951 = vrot.slane %v3930, %v3950
    %v3953 = vmul.f32 %v3946, %v3951
    %v3955 = vlaneseq
    %v3956 = vshrl.u32 %v3955, 7
    %v3957 = vsub.s32 0, %v3956
    %v3958 = vrot.slane %v3932, %v3957
    %v3960 = vadd.f32 %v3953, %v3958
    %v3961 = vpack.c.bf16 %v3960, %v3960
    %s3962 = scalar_lea.vmem %s20, 48
    %v3963 = vld [vmem:[%s3962] sm:$0xf]
    %v3964 = vld [vmem:[%s3962 + $0x4] sm:$0xf]
    %v3965 = vld [vmem:[%s3962 + $0x8] sm:$0xf]
    %v3966 = vld [vmem:[%s3962 + $0xc] sm:$0xf]
    %v3967 = vld [vmem:[%s3962 + $0x10] sm:$0xf]
    %v3968 = vld [vmem:[%s3962 + $0x14] sm:$0xf]
    %v3969 = vld [vmem:[%s3962 + $0x18] sm:$0xf]
    %v3970 = vld [vmem:[%s3962 + $0x1c] sm:$0xf]
    %v3971 = vld [vmem:[%s3962 + $0x20] sm:$0xf]
    %v3972 = vld [vmem:[%s3962 + $0x24] sm:$0xf]
    %v3973 = vld [vmem:[%s3962 + $0x28] sm:$0xf]
    %v3974 = vld [vmem:[%s3962 + $0x2c] sm:$0xf]
    %s3975 = scalar_lea.vmem %s21, 1
    %v3976 = vld [vmem:[%s3975] sm:$0x1]
    %v3978 = vlaneseq
    %v3979 = vshrl.u32 %v3978, 7
    %v3980 = vsub.s32 0, %v3979
    %v3981 = vrot.slane %v3976, %v3980
    %v3984 = vrot.slane %v3961, 1
    %v3997 = vunpack.c.l.b16 %v3963
    %v3998 = vunpack.c.l.b16 %v3964
    %v3999 = vunpack.c.l.b16 %v3965
    %v4000 = vunpack.c.l.b16 %v3966
    %v4001 = vunpack.c.l.b16 %v3967
    %v4002 = vunpack.c.l.b16 %v3968
    %v4003 = vunpack.c.l.b16 %v3969
    %v4004 = vunpack.c.l.b16 %v3970
    %v4005 = vunpack.c.l.b16 %v3971
    %v4006 = vunpack.c.l.b16 %v3972
    %v4007 = vunpack.c.l.b16 %v3973
    %v4008 = vunpack.c.l.b16 %v3974
    %v4009 = vpack.c.b16 %v3998, %v3997
    %v4010 = vpack.c.b16 %v4000, %v3999
    %v4011 = vpack.c.b16 %v4002, %v4001
    %v4012 = vpack.c.b16 %v4004, %v4003
    %v4013 = vpack.c.b16 %v4006, %v4005
    %v4014 = vpack.c.b16 %v4008, %v4007
    %v4022 = vsel %vm207, %v3984, 0
    %4024 = vmatprep.subr.bf16.mxu0 0
    %4025 = vmatpush1.bf16.msra.mxu0 %v4009
    %4026 = vmatprep.subr.bf16.mxu0 0
    %4027 = vmatpush1.bf16.msra.mxu0 %v4010
    %4028 = vmatprep.subr.bf16.mxu0 0
    %4029 = vmatpush1.bf16.msra.mxu0 %v4011
    %4030 = vmatprep.subr.bf16.mxu0 0
    %4031 = vmatpush1.bf16.msra.mxu0 %v4012
    %4032 = vmatprep.subr.bf16.mxu0 0
    %4033 = vmatpush1.bf16.msra.mxu0 %v4013
    %4034 = vmatprep.subr.bf16.mxu0 0
    %4035 = vmatpush1.bf16.msra.mxu0 %v4014
    %4036 = vmatprep.subr.bf16.mxu0 0
    %4037 = vmatpush1.bf16.msra.mxu0 0
    %4038 = vmatprep.subr.bf16.mxu0 0
    %4039 = vmatpush1.bf16.msra.mxu0 0
    %4040 = vmatprep.subr.bf16.mxu0 0
    %4041 = vmatpush1.bf16.msra.mxu0 0
    %4042 = vmatprep.subr.bf16.mxu0 0
    %4043 = vmatpush1.bf16.msra.mxu0 0
    %4044 = vmatprep.subr.bf16.mxu0 0
    %4045 = vmatpush1.bf16.msra.mxu0 0
    %4046 = vmatprep.subr.bf16.mxu0 0
    %4047 = vmatpush1.bf16.msra.mxu0 0
    %4048 = vmatprep.subr.bf16.mxu0 0
    %4049 = vmatpush1.bf16.msra.mxu0 0
    %4050 = vmatprep.subr.bf16.mxu0 0
    %4051 = vmatpush1.bf16.msra.mxu0 0
    %4052 = vmatprep.subr.bf16.mxu0 0
    %4053 = vmatpush1.bf16.msra.mxu0 0
    %4054 = vmatprep.subr.bf16.mxu0 0
    %4055 = vmatpush1.bf16.msra.mxu0 0
    %4056 = vmatprep.mubr.bf16.mxu0 0
    %4057 = vmatmul.mubr.bf16.gmra.mrb[0].mxu0 %v4022
    %v4058 = vpop.f32.mrb[0].mxu0
    %v4059 = vadd.f32 %v3981, %v4058
    %v4060 = vpop.f32.mrb[0].mxu0
    %v4061 = vpop.f32.mrb[0].mxu0
    %v4062 = vpop.f32.mrb[0].mxu0
    %4063 = vdwg.mxu0
    %s4064 = scalar_lea.vmem %s18, 2
    %v4065 = vld [vmem:[%s4064] sm:$0x1]
    %s4066 = scalar_lea.vmem %s19, 2
    %v4067 = vld [vmem:[%s4066] sm:$0x1]
    %vm4068 = vcmask 783364
    %v4069 = vsel %vm4068, %v3799, 0.0
    %4070 = vadd.xlane.f32.xlu0 %v4069
    %v4071 = vpop.xlane.xlu0 %4070
    %v4072 = vmul.f32 %v4071, %v244
    %v4073 = vsub.f32 %v3799, %v4072
    %v4074 = vmul.f32 %v4073, %v4073
    %v4075 = vsel %vm4068, %v4074, 0.0
    %4076 = vadd.xlane.f32.xlu0 %v4075
    %v4077 = vpop.xlane.xlu0 %4076
    %v4078 = vmul.f32 %v4077, %v244
    %v4079 = vadd.f32 %v4078, 1e-05
    %v4080 = vrsqrt.pop %v4079
    %v4081 = vmul.f32 %v4073, %v4080
    %v4083 = vlaneseq
    %v4084 = vshrl.u32 %v4083, 7
    %v4085 = vsub.s32 0, %v4084
    %v4086 = vrot.slane %v4065, %v4085
    %v4088 = vmul.f32 %v4081, %v4086
    %v4090 = vlaneseq
    %v4091 = vshrl.u32 %v4090, 7
    %v4092 = vsub.s32 0, %v4091
    %v4093 = vrot.slane %v4067, %v4092
    %v4095 = vadd.f32 %v4088, %v4093
    %v4096 = vpack.c.bf16 %v4095, %v4095
    %s4097 = scalar_lea.vmem %s20, 96
    %v4098 = vld [vmem:[%s4097] sm:$0xf]
    %v4099 = vld [vmem:[%s4097 + $0x4] sm:$0xf]
    %v4100 = vld [vmem:[%s4097 + $0x8] sm:$0xf]
    %v4101 = vld [vmem:[%s4097 + $0xc] sm:$0xf]
    %v4102 = vld [vmem:[%s4097 + $0x10] sm:$0xf]
    %v4103 = vld [vmem:[%s4097 + $0x14] sm:$0xf]
    %v4104 = vld [vmem:[%s4097 + $0x18] sm:$0xf]
    %v4105 = vld [vmem:[%s4097 + $0x1c] sm:$0xf]
    %v4106 = vld [vmem:[%s4097 + $0x20] sm:$0xf]
    %v4107 = vld [vmem:[%s4097 + $0x24] sm:$0xf]
    %v4108 = vld [vmem:[%s4097 + $0x28] sm:$0xf]
    %v4109 = vld [vmem:[%s4097 + $0x2c] sm:$0xf]
    %s4110 = scalar_lea.vmem %s21, 2
    %v4111 = vld [vmem:[%s4110] sm:$0x1]
    %v4113 = vlaneseq
    %v4114 = vshrl.u32 %v4113, 7
    %v4115 = vsub.s32 0, %v4114
    %v4116 = vrot.slane %v4111, %v4115
    %v4119 = vrot.slane %v4096, 2
    %v4132 = vunpack.c.l.b16 %v4098
    %v4133 = vunpack.c.l.b16 %v4099
    %v4134 = vunpack.c.l.b16 %v4100
    %v4135 = vunpack.c.l.b16 %v4101
    %v4136 = vunpack.c.l.b16 %v4102
    %v4137 = vunpack.c.l.b16 %v4103
    %v4138 = vunpack.c.l.b16 %v4104
    %v4139 = vunpack.c.l.b16 %v4105
    %v4140 = vunpack.c.l.b16 %v4106
    %v4141 = vunpack.c.l.b16 %v4107
    %v4142 = vunpack.c.l.b16 %v4108
    %v4143 = vunpack.c.l.b16 %v4109
    %v4144 = vpack.c.b16 %v4133, %v4132
    %v4145 = vpack.c.b16 %v4135, %v4134
    %v4146 = vpack.c.b16 %v4137, %v4136
    %v4147 = vpack.c.b16 %v4139, %v4138
    %v4148 = vpack.c.b16 %v4141, %v4140
    %v4149 = vpack.c.b16 %v4143, %v4142
    %v4157 = vsel %vm207, %v4119, 0
    %4159 = vmatprep.subr.bf16.mxu0 0
    %4160 = vmatpush1.bf16.msra.mxu0 %v4144
    %4161 = vmatprep.subr.bf16.mxu0 0
    %4162 = vmatpush1.bf16.msra.mxu0 %v4145
    %4163 = vmatprep.subr.bf16.mxu0 0
    %4164 = vmatpush1.bf16.msra.mxu0 %v4146
    %4165 = vmatprep.subr.bf16.mxu0 0
    %4166 = vmatpush1.bf16.msra.mxu0 %v4147
    %4167 = vmatprep.subr.bf16.mxu0 0
    %4168 = vmatpush1.bf16.msra.mxu0 %v4148
    %4169 = vmatprep.subr.bf16.mxu0 0
    %4170 = vmatpush1.bf16.msra.mxu0 %v4149
    %4171 = vmatprep.subr.bf16.mxu0 0
    %4172 = vmatpush1.bf16.msra.mxu0 0
    %4173 = vmatprep.subr.bf16.mxu0 0
    %4174 = vmatpush1.bf16.msra.mxu0 0
    %4175 = vmatprep.subr.bf16.mxu0 0
    %4176 = vmatpush1.bf16.msra.mxu0 0
    %4177 = vmatprep.subr.bf16.mxu0 0
    %4178 = vmatpush1.bf16.msra.mxu0 0
    %4179 = vmatprep.subr.bf16.mxu0 0
    %4180 = vmatpush1.bf16.msra.mxu0 0
    %4181 = vmatprep.subr.bf16.mxu0 0
    %4182 = vmatpush1.bf16.msra.mxu0 0
    %4183 = vmatprep.subr.bf16.mxu0 0
    %4184 = vmatpush1.bf16.msra.mxu0 0
    %4185 = vmatprep.subr.bf16.mxu0 0
    %4186 = vmatpush1.bf16.msra.mxu0 0
    %4187 = vmatprep.subr.bf16.mxu0 0
    %4188 = vmatpush1.bf16.msra.mxu0 0
    %4189 = vmatprep.subr.bf16.mxu0 0
    %4190 = vmatpush1.bf16.msra.mxu0 0
    %4191 = vmatprep.mubr.bf16.mxu0 0
    %4192 = vmatmul.mubr.bf16.gmra.mrb[0].mxu0 %v4157
    %v4193 = vpop.f32.mrb[0].mxu0
    %v4194 = vadd.f32 %v4116, %v4193
    %v4195 = vpop.f32.mrb[0].mxu0
    %v4196 = vpop.f32.mrb[0].mxu0
    %v4197 = vpop.f32.mrb[0].mxu0
    %4198 = vdwg.mxu0
    %v4200 = vrot.slane %v4059, 6
    %v4203 = vrot.slane %v4194, 4
    %v4205 = vsel %vm3798, %v3924, %v4200
    %vm4206 = vcmask 1043456
    %v4207 = vsel %vm4206, %v4205, %v4203
    %4208 = vst [vmem:[%s22] sm:$0x3f] %v4207
  $region97: #{trans_rppg_forward.3} parent=0 // pred_fallthru
    _
  // Predicated region
  $region98: #{trans_rppg_forward.3} parent=0 // pred_check
    _
  $region99: #{trans_rppg_forward.3} parent=0 // pred_check_branch
    %4210 = sbr.rel (0) target = $region101
  $region100: #{trans_rppg_forward.3} parent=0 // pred_region
    _
  $region101: #{trans_rppg_forward.3} parent=0 // pred_fallthru
    _
  // Predicated region
  $region102: #{trans_rppg_forward.3} parent=0 // pred_check
    _
  $region103: #{trans_rppg_forward.3} parent=0 // pred_check_branch
    %4212 = sbr.rel (0) target = $region105
  $region104: #{trans_rppg_forward.3} parent=0 // pred_region
    _
  $region105: #{trans_rppg_forward.3} parent=0 // pred_fallthru
    _

</llo_original>
